<compile_context>
chip_gen: v6e
topology: v6e:2x2x1
jax: 0.10.0
libtpu: 0.0.40
codegen_flags: <defaults>
</compile_context>

<pallas_src>
import functools

import jax
import jax.numpy as jnp
from jax.experimental import pallas as pl
from jax.experimental.pallas import tpu as pltpu

BN_EPS = 1e-5
PALLAS_MIN_M = 128        # below this many output rows, a padded pallas launch is pure overhead


def _round_up(x, m):
    return (x + m - 1) // m * m


# ----------------------------- Pallas kernel -------------------------------

def _fused_matmul_kernel(x_ref, w_ref, ss_ref, o_ref, acc_ref, *, act):
    @pl.when(pl.program_id(2) == 0)
    def _():
        acc_ref[...] = jnp.zeros_like(acc_ref)

    acc_ref[...] += jnp.dot(x_ref[...], w_ref[...],
                            preferred_element_type=jnp.float32)

    @pl.when(pl.program_id(2) == pl.num_programs(2) - 1)
    def _():
        y = acc_ref[...] * ss_ref[0:1, :] + ss_ref[1:2, :]
        if act == "relu":
            y = jnp.maximum(y, 0.0)
        elif act == "sigmoid":
            y = jax.nn.sigmoid(y)
        o_ref[...] = y.astype(o_ref.dtype)


def fused_matmul(x, w_p, ss_p, n_out, act, out_dtype=jnp.bfloat16):
    """activation((x @ w_p) * ss_p[0] + ss_p[1])[:, :n_out].

    x:     (M, K)  activations (any float dtype; cast to bf16)
    w_p:   (Kp, Np) pre-padded bf16 weights (Kp, Np multiples of 128)
    ss_p:  (2, Np)  f32 scale (row 0) / shift (row 1)
    """
    M, K = x.shape
    Kp, Np = w_p.shape
    x = x.astype(jnp.bfloat16)

    # Tiny-layer gate: deep layers at small spatial extents (M == a few rows) are
    # dominated by launch/pad overhead; plain XLA dot with identical math is faster.
    if M < PALLAS_MIN_M:
        xp = jnp.pad(x, ((0, 0), (0, Kp - K)))
        y = jnp.dot(xp, w_p, preferred_element_type=jnp.float32)
        y = y * ss_p[0] + ss_p[1]
        if act == "relu":
            y = jnp.maximum(y, 0.0)
        elif act == "sigmoid":
            y = jax.nn.sigmoid(y)
        return y[:, :n_out].astype(out_dtype)

    # Adaptive tiles: prefer 256-wide N/K (fills v6e/v7x 256x256 MXU) and tall M
    # tiles (amortize per-grid-step overhead), but keep >=2 parallel output tiles
    # so the second TensorCore on megacore parts gets work.
    Mp = _round_up(M, 128)
    TK = 256 if Kp % 256 == 0 else 128
    TN = 256 if Np % 256 == 0 else 128
    if Mp % 512 == 0:
        TM = 512
    elif Mp % 256 == 0:
        TM = 256
    else:
        TM = 128
    while TM > 128 and (Mp // TM) * (Np // TN) < 2:
        TM //= 2

    xp = jnp.pad(x, ((0, Mp - M), (0, Kp - K)))
    grid = (Mp // TM, Np // TN, Kp // TK)

    out = pl.pallas_call(
        functools.partial(_fused_matmul_kernel, act=act),
        out_shape=jax.ShapeDtypeStruct((Mp, Np), out_dtype),
        grid_spec=pltpu.PrefetchScalarGridSpec(
            num_scalar_prefetch=0,
            grid=grid,
            in_specs=[
                pl.BlockSpec((TM, TK), lambda i, j, k: (i, k)),
                pl.BlockSpec((TK, TN), lambda i, j, k: (k, j)),
                pl.BlockSpec((2, TN), lambda i, j, k: (0, j)),
            ],
            out_specs=pl.BlockSpec((TM, TN), lambda i, j, k: (i, j)),
            scratch_shapes=[pltpu.VMEM((TM, TN), jnp.float32)],
        ),
        compiler_params=pltpu.CompilerParams(
            dimension_semantics=("parallel", "parallel", "arbitrary")),
    )(xp, w_p, ss_p)
    return out[:M, :n_out]


# ------------------------------- JAX glue -----------------------------------

def _im2col(x, k, stride, pad):
    n, h, w, c = x.shape
    xp = jnp.pad(x, ((0, 0), (pad, pad), (pad, pad), (0, 0)))
    hp, wp = h + 2 * pad, w + 2 * pad
    ho = (hp - k) // stride + 1
    wo = (wp - k) // stride + 1
    cols = []
    for di in range(k):
        for dj in range(k):
            cols.append(xp[:, di:di + (ho - 1) * stride + 1:stride,
                           dj:dj + (wo - 1) * stride + 1:stride, :])
    return jnp.concatenate(cols, axis=-1), ho, wo


def conv_layer(x, layer, *, cout, k, stride=1, pad=0, act="none",
               out_dtype=jnp.bfloat16):
    n = x.shape[0]
    patches, ho, wo = _im2col(x, k, stride, pad)
    y = fused_matmul(patches.reshape(n * ho * wo, patches.shape[-1]),
                     layer["w"], layer["ss"], cout, act, out_dtype)
    return y.reshape(n, ho, wo, cout)


def deconv2x2_layer(x, layer, *, cout, act="none", out_dtype=jnp.bfloat16):
    """ConvTranspose2d(kernel=2, stride=2) as one matmul; weight columns are
    laid out as col = cout*4 + di*2 + dj."""
    n, h, w, c = x.shape
    y = fused_matmul(x.reshape(n * h * w, c), layer["w"], layer["ss"],
                     cout * 4, act, out_dtype)
    y = y.reshape(n, h, w, cout, 2, 2).transpose(0, 1, 4, 2, 5, 3)
    return y.reshape(n, 2 * h, 2 * w, cout)


def upsample_nearest(x, oh, ow):
    n, h, w, c = x.shape
    hi = (jnp.arange(oh) * h) // oh
    wi = (jnp.arange(ow) * w) // ow
    return x[:, hi][:, :, wi]


def bilinear_align_corners(x, oh, ow):
    n, h, w, c = x.shape
    sh = 0.0 if oh == 1 else (h - 1) / (oh - 1)
    sw = 0.0 if ow == 1 else (w - 1) / (ow - 1)
    hy = jnp.arange(oh, dtype=jnp.float32) * sh
    wx = jnp.arange(ow, dtype=jnp.float32) * sw
    h0 = jnp.floor(hy).astype(jnp.int32)
    w0 = jnp.floor(wx).astype(jnp.int32)
    h1 = jnp.minimum(h0 + 1, h - 1)
    w1 = jnp.minimum(w0 + 1, w - 1)
    ah = (hy - h0)[None, :, None, None]
    aw = (wx - w0)[None, None, :, None]
    x00 = x[:, h0][:, :, w0]
    x01 = x[:, h0][:, :, w1]
    x10 = x[:, h1][:, :, w0]
    x11 = x[:, h1][:, :, w1]
    top = x00 * (1.0 - aw) + x01 * aw
    bot = x10 * (1.0 - aw) + x11 * aw
    return top * (1.0 - ah) + bot * ah


# ----------------------------- parameters -----------------------------------

def init_params(seed=42):
    key = jax.random.PRNGKey(seed)

    def nxt():
        nonlocal key
        key, k = jax.random.split(key)
        return k

    def conv_w(cin, cout, k):             # stored directly in (k*k*cin, cout) matmul layout
        fan_in = cin * k * k
        return jax.random.normal(nxt(), (k * k * cin, cout), jnp.float32) * jnp.sqrt(2.0 / fan_in)

    def deconv_w(cin, cout):              # (cin, cout*4), col = cout*4 + di*2 + dj
        return jax.random.normal(nxt(), (cin, cout * 4), jnp.float32) * jnp.sqrt(2.0 / (cin * 4))

    def bias(cout):
        return jax.random.normal(nxt(), (cout,), jnp.float32) * 0.01

    def bn(cout, beta_val=0.0):
        return (jnp.ones((cout,), jnp.float32), jnp.full((cout,), beta_val, jnp.float32))

    p = {}
    # synthetic backbone (matches resnet18 output channels [64,128,256,512], strides 4/8/16/32)
    # TODO(synk): real ResNet18 backbone (with its running BN stats) is external to the module.
    p["stem1_w"], p["stem1_bn"] = conv_w(3, 32, 3), bn(32)
    p["stem2_w"], p["stem2_bn"] = conv_w(32, 64, 3), bn(64)
    p["c3_w"], p["c3_bn"] = conv_w(64, 128, 3), bn(128)
    p["c4_w"], p["c4_bn"] = conv_w(128, 256, 3), bn(256)
    p["c5_w"], p["c5_bn"] = conv_w(256, 512, 3), bn(512)
    # FPN(in=[64,128,256,512], inner_channels=256) -> inner=64, conv_out=256
    inner = 64
    for name, cin in (("red2", 64), ("red3", 128), ("red4", 256), ("red5", 512)):
        p[f"{name}_w"], p[f"{name}_b"], p[f"{name}_bn"] = conv_w(cin, inner, 1), bias(inner), bn(inner)
    for name in ("smooth2", "smooth3", "smooth4"):
        p[f"{name}_w"], p[f"{name}_b"], p[f"{name}_bn"] = conv_w(inner, inner, 3), bias(inner), bn(inner)
    p["fpn_w"], p["fpn_b"], p["fpn_bn"] = conv_w(256, 256, 3), bias(256), bn(256)
    # DBHead(256): binarize branch (BatchNorm bias filled with 1e-4 per weights_init)
    p["bin_c1_w"], p["bin_c1_b"], p["bin_bn1"] = conv_w(256, 64, 3), bias(64), bn(64, 1e-4)
    p["bin_d1_w"], p["bin_d1_b"], p["bin_bn2"] = deconv_w(64, 64), bias(64), bn(64, 1e-4)
    p["bin_d2_w"], p["bin_d2_b"] = deconv_w(64, 1), bias(1)
    # DBHead thresh branch (first conv bias=False)
    p["thr_c1_w"], p["thr_bn1"] = conv_w(256, 64, 3), bn(64, 1e-4)
    p["thr_d1_w"], p["thr_d1_b"], p["thr_bn2"] = deconv_w(64, 64), bias(64), bn(64, 1e-4)
    p["thr_d2_w"], p["thr_d2_b"] = deconv_w(64, 1), bias(1)
    return p


def _fold_bn(cout, bias, bn):
    """Fold conv bias + eval-mode BatchNorm (running mean=0, var=1) into scale/shift."""
    # TODO(synk): take real running_mean/running_var for trained checkpoints.
    b = bias if bias is not None else jnp.zeros((cout,), jnp.float32)
    if bn is None:
        return jnp.ones((cout,), jnp.float32), b
    gamma, beta = bn
    s = gamma / jnp.sqrt(1.0 + BN_EPS)
    return s, b * s + beta


def _prep_mat(w, scale, shift):
    """Pad weight to (Kp, Np) bf16 and stack scale/shift into a (2, Np) f32 stream."""
    K, N = w.shape
    Kp, Np = _round_up(K, 128), _round_up(N, 128)
    wp = jnp.pad(w, ((0, Kp - K), (0, Np - N))).astype(jnp.bfloat16)
    ss = jnp.stack([jnp.pad(scale, (0, Np - N)),
                    jnp.pad(shift, (0, Np - N))]).astype(jnp.float32)
    return {"w": wp, "ss": ss}


def prepare_params(raw):
    """One-time (outside the per-step forward): fold BN, merge head branches,
    pad + cast everything to its final kernel layout."""
    def conv(wk, bk, bnk):
        w = raw[wk]
        s, b = _fold_bn(w.shape[1], raw[bk] if bk else None, raw[bnk] if bnk else None)
        return _prep_mat(w, s, b)

    p = {}
    p["stem1"] = conv("stem1_w", None, "stem1_bn")
    p["stem2"] = conv("stem2_w", None, "stem2_bn")
    p["c3"] = conv("c3_w", None, "c3_bn")
    p["c4"] = conv("c4_w", None, "c4_bn")
    p["c5"] = conv("c5_w", None, "c5_bn")
    for name in ("red2", "red3", "red4", "red5", "smooth2", "smooth3", "smooth4"):
        p[name] = conv(f"{name}_w", f"{name}_b", f"{name}_bn")
    p["fpn"] = conv("fpn_w", "fpn_b", "fpn_bn")

    # ---- merged DBHead (binarize + thresh share the same input) ----
    # first 3x3 conv: concatenate output channels  (256 -> 64 | 64)
    hc1_w = jnp.concatenate([raw["bin_c1_w"], raw["thr_c1_w"]], axis=1)
    sb, bb = _fold_bn(64, raw["bin_c1_b"], raw["bin_bn1"])
    st, bt = _fold_bn(64, None, raw["thr_bn1"])
    p["head_c1"] = _prep_mat(hc1_w, jnp.concatenate([sb, st]), jnp.concatenate([bb, bt]))

    # first deconv: block-diagonal (128 -> 128 channels, x4 taps)
    d1 = jnp.zeros((128, 512), jnp.float32)
    d1 = d1.at[:64, :256].set(raw["bin_d1_w"]).at[64:, 256:].set(raw["thr_d1_w"])
    sb, bb = _fold_bn(64, raw["bin_d1_b"], raw["bin_bn2"])
    st, bt = _fold_bn(64, raw["thr_d1_b"], raw["thr_bn2"])
    p["head_d1"] = _prep_mat(d1, jnp.repeat(jnp.concatenate([sb, st]), 4),
                                 jnp.repeat(jnp.concatenate([bb, bt]), 4))

    # final deconv: block-diagonal (128 -> 2 channels: shrink, thresh)
    d2 = jnp.zeros((128, 8), jnp.float32)
    d2 = d2.at[:64, :4].set(raw["bin_d2_w"]).at[64:, 4:].set(raw["thr_d2_w"])
    sb, bb = _fold_bn(1, raw["bin_d2_b"], None)
    st, bt = _fold_bn(1, raw["thr_d2_b"], None)
    p["head_d2"] = _prep_mat(d2, jnp.repeat(jnp.concatenate([sb, st]), 4),
                                 jnp.repeat(jnp.concatenate([bb, bt]), 4))
    return p


# ------------------------------ forward pass --------------------------------

def db_forward(params, x_nchw):
    p = params
    x = jnp.transpose(x_nchw, (0, 2, 3, 1)).astype(jnp.bfloat16)   # NCHW -> NHWC, bf16
    img_h, img_w = x.shape[1], x.shape[2]

    # ---- backbone (synthetic, matching resnet18 channels/strides) ----
    t = conv_layer(x, p["stem1"], cout=32, k=3, stride=2, pad=1, act="relu")
    c2 = conv_layer(t, p["stem2"], cout=64, k=3, stride=2, pad=1, act="relu")
    c3 = conv_layer(c2, p["c3"], cout=128, k=3, stride=2, pad=1, act="relu")
    c4 = conv_layer(c3, p["c4"], cout=256, k=3, stride=2, pad=1, act="relu")
    c5 = conv_layer(c4, p["c5"], cout=512, k=3, stride=2, pad=1, act="relu")

    # ---- FPN (segmentation body) ----
    p5 = conv_layer(c5, p["red5"], cout=64, k=1, act="relu")
    r4 = conv_layer(c4, p["red4"], cout=64, k=1, act="relu")
    p4 = upsample_nearest(p5, r4.shape[1], r4.shape[2]) + r4
    p4 = conv_layer(p4, p["smooth4"], cout=64, k=3, pad=1, act="relu")
    r3 = conv_layer(c3, p["red3"], cout=64, k=1, act="relu")
    p3 = upsample_nearest(p4, r3.shape[1], r3.shape[2]) + r3
    p3 = conv_layer(p3, p["smooth3"], cout=64, k=3, pad=1, act="relu")
    r2 = conv_layer(c2, p["red2"], cout=64, k=1, act="relu")
    p2 = upsample_nearest(p3, r2.shape[1], r2.shape[2]) + r2
    p2 = conv_layer(p2, p["smooth2"], cout=64, k=3, pad=1, act="relu")
    h2, w2 = p2.shape[1], p2.shape[2]
    fuse = jnp.concatenate([p2,
                            upsample_nearest(p3, h2, w2),
                            upsample_nearest(p4, h2, w2),
                            upsample_nearest(p5, h2, w2)], axis=-1)   # 256 channels
    body = conv_layer(fuse, p["fpn"], cout=256, k=3, pad=1, act="relu")

    # ---- DBHead (eval mode, binarize + thresh branches merged) ----
    h = conv_layer(body, p["head_c1"], cout=128, k=3, pad=1, act="relu")
    h = deconv2x2_layer(h, p["head_d1"], cout=128, act="relu")
    head = deconv2x2_layer(h, p["head_d2"], cout=2, act="sigmoid",
                           out_dtype=jnp.float32)   # (N, H, W, 2) = [shrink, thresh]

    # final bilinear resize (align_corners=True) back to input resolution
    out = bilinear_align_corners(head, img_h, img_w)
    return jnp.transpose(out, (0, 3, 1, 2))             # NHWC -> NCHW


if __name__ == "__main__":
    raw = init_params(seed=42)
    params = prepare_params(raw)      # one-time pad/cast/fold (kept out of the per-step graph)
    x = jax.random.normal(jax.random.PRNGKey(0), (2, 3, 32, 32), jnp.float32)
    fwd = jax.jit(db_forward)
    y = jax.block_until_ready(fwd(params, x))
    assert y.shape == (2, 2, 32, 32), y.shape
    assert bool(jnp.all(jnp.isfinite(y)))
    assert bool(jnp.all((y >= 0.0) & (y <= 1.0)))   # sigmoid outputs
    print("KERNEL_OK")
</pallas_src>

<mosaic_0001>
module attributes {stable_mosaic.version = 11 : i64} {
  func.func @_fused_matmul_kernel(%arg0: i32, %arg1: i32, %arg2: i32, %arg3: memref<256x128xbf16, #tpu.memory_space<vmem>>, %arg4: memref<128x128xbf16, #tpu.memory_space<vmem>>, %arg5: memref<2x128xf32, #tpu.memory_space<vmem>>, %arg6: memref<256x128xbf16, #tpu.memory_space<vmem>>, %arg7: memref<256x128xf32, #tpu.memory_space<vmem>>) attributes {dimension_semantics = [#tpu.dimension_semantics<parallel>, #tpu.dimension_semantics<parallel>, #tpu.dimension_semantics<arbitrary>], iteration_bounds = array<i64: 2, 1, 1>, scalar_prefetch = 0 : i64, scratch_operands = 1 : i64, tpu.core_type = #tpu.core_type<tc>, window_params = [{transform_indices = @transform_0, window_bounds = array<i64: 256, 128>}, {transform_indices = @transform_1, window_bounds = array<i64: 128, 128>}, {transform_indices = @transform_2, window_bounds = array<i64: 2, 128>}, {transform_indices = @transform_3, window_bounds = array<i64: 256, 128>}]} {
    %c0_i32 = arith.constant 0 : i32
    %0 = arith.cmpi eq, %arg2, %c0_i32 : i32
    %1 = arith.extui %0 : i1 to i32
    %c0_i32_0 = arith.constant 0 : i32
    %2 = arith.cmpi ne, %1, %c0_i32_0 : i32
    scf.if %2 {
      %cst_10 = arith.constant 0.000000e+00 : f32
      %12 = vector.broadcast %cst_10 : f32 to vector<256x128xf32>
      %c0_11 = arith.constant 0 : index
      %c0_12 = arith.constant 0 : index
      %13 = vector.load %arg7[%c0_11, %c0_12] : memref<256x128xf32, #tpu.memory_space<vmem>>, vector<256x128xf32>
      tpu.vector_store %arg7[%c0_11, %c0_12], %12 {strides = array<i32>} : memref<256x128xf32, #tpu.memory_space<vmem>>, vector<256x128xf32>,
    } else {
    }
    %c0 = arith.constant 0 : index
    %c0_1 = arith.constant 0 : index
    %3 = vector.load %arg7[%c0, %c0_1] : memref<256x128xf32, #tpu.memory_space<vmem>>, vector<256x128xf32>
    %c0_2 = arith.constant 0 : index
    %c0_3 = arith.constant 0 : index
    %4 = vector.load %arg3[%c0_2, %c0_3] : memref<256x128xbf16, #tpu.memory_space<vmem>>, vector<256x128xbf16>
    %c0_4 = arith.constant 0 : index
    %c0_5 = arith.constant 0 : index
    %5 = vector.load %arg4[%c0_4, %c0_5] : memref<128x128xbf16, #tpu.memory_space<vmem>>, vector<128x128xbf16>
    %cst = arith.constant dense<0.000000e+00> : vector<256x128xf32>
    %6 = tpu.matmul %4, %5, %cst {dimension_numbers = #tpu.dot_dimension_numbers<[1], [0], [0], [1], [0, 0, 1, 1], [], []>} : vector<256x128xbf16>, vector<128x128xbf16>, vector<256x128xf32> -> vector<256x128xf32>
    %7 = arith.addf %3, %6 : vector<256x128xf32>
    %c0_6 = arith.constant 0 : index
    %c0_7 = arith.constant 0 : index
    %8 = vector.load %arg7[%c0_6, %c0_7] : memref<256x128xf32, #tpu.memory_space<vmem>>, vector<256x128xf32>
    tpu.vector_store %arg7[%c0_6, %c0_7], %7 {strides = array<i32>} : memref<256x128xf32, #tpu.memory_space<vmem>>, vector<256x128xf32>,
    %c0_i32_8 = arith.constant 0 : i32
    %9 = arith.cmpi eq, %arg2, %c0_i32_8 : i32
    %10 = arith.extui %9 : i1 to i32
    %c0_i32_9 = arith.constant 0 : i32
    %11 = arith.cmpi ne, %10, %c0_i32_9 : i32
    scf.if %11 {
      %c0_10 = arith.constant 0 : index
      %c0_11 = arith.constant 0 : index
      %12 = vector.load %arg7[%c0_10, %c0_11] : memref<256x128xf32, #tpu.memory_space<vmem>>, vector<256x128xf32>
      %c0_12 = arith.constant 0 : index
      %c0_13 = arith.constant 0 : index
      %13 = vector.load %arg5[%c0_12, %c0_13] : memref<2x128xf32, #tpu.memory_space<vmem>>, vector<1x128xf32>
      %14 = vector.broadcast %13 : vector<1x128xf32> to vector<256x128xf32>
      %15 = arith.mulf %12, %14 : vector<256x128xf32>
      %c1 = arith.constant 1 : index
      %c0_14 = arith.constant 0 : index
      %16 = vector.load %arg5[%c1, %c0_14] : memref<2x128xf32, #tpu.memory_space<vmem>>, vector<1x128xf32>
      %17 = vector.broadcast %16 : vector<1x128xf32> to vector<256x128xf32>
      %18 = arith.addf %15, %17 : vector<256x128xf32>
      %cst_15 = arith.constant 0.000000e+00 : f32
      %19 = vector.broadcast %cst_15 : f32 to vector<256x128xf32>
      %20 = arith.maximumf %18, %19 : vector<256x128xf32>
      %21 = arith.truncf %20 : vector<256x128xf32> to vector<256x128xbf16>
      %c0_16 = arith.constant 0 : index
      %c0_17 = arith.constant 0 : index
      %22 = vector.load %arg6[%c0_16, %c0_17] : memref<256x128xbf16, #tpu.memory_space<vmem>>, vector<256x128xbf16>
      tpu.vector_store %arg6[%c0_16, %c0_17], %21 {strides = array<i32>} : memref<256x128xbf16, #tpu.memory_space<vmem>>, vector<256x128xbf16>,
    } else {
    }
    return
  }
  func.func @transform_0(%arg0: i32, %arg1: i32, %arg2: i32) -> (i32, i32) {
    %c0_i32 = arith.constant 0 : i32
    return %arg0, %arg2 : i32, i32
  }
  func.func @transform_1(%arg0: i32, %arg1: i32, %arg2: i32) -> (i32, i32) {
    %c0_i32 = arith.constant 0 : i32
    return %arg2, %arg1 : i32, i32
  }
  func.func @transform_2(%arg0: i32, %arg1: i32, %arg2: i32) -> (i32, i32) {
    %c0_i32 = arith.constant 0 : i32
    %c0_i32_0 = arith.constant 0 : i32
    return %c0_i32, %arg1 : i32, i32
  }
  func.func @transform_3(%arg0: i32, %arg1: i32, %arg2: i32) -> (i32, i32) {
    %c0_i32 = arith.constant 0 : i32
    return %arg0, %arg1 : i32, i32
  }
}

module attributes {stable_mosaic.version = 11 : i64} {
  func.func @_fused_matmul_kernel(%arg0: i32, %arg1: i32, %arg2: i32, %arg3: memref<128x128xbf16, #tpu.memory_space<vmem>>, %arg4: memref<128x128xbf16, #tpu.memory_space<vmem>>, %arg5: memref<2x128xf32, #tpu.memory_space<vmem>>, %arg6: memref<128x128xbf16, #tpu.memory_space<vmem>>, %arg7: memref<128x128xf32, #tpu.memory_space<vmem>>) attributes {dimension_semantics = [#tpu.dimension_semantics<parallel>, #tpu.dimension_semantics<parallel>, #tpu.dimension_semantics<arbitrary>], iteration_bounds = array<i64: 1, 1, 3>, scalar_prefetch = 0 : i64, scratch_operands = 1 : i64, tpu.core_type = #tpu.core_type<tc>, window_params = [{transform_indices = @transform_0, window_bounds = array<i64: 128, 128>}, {transform_indices = @transform_1, window_bounds = array<i64: 128, 128>}, {transform_indices = @transform_2, window_bounds = array<i64: 2, 128>}, {transform_indices = @transform_3, window_bounds = array<i64: 128, 128>}]} {
    %c0_i32 = arith.constant 0 : i32
    %0 = arith.cmpi eq, %arg2, %c0_i32 : i32
    %1 = arith.extui %0 : i1 to i32
    %c0_i32_0 = arith.constant 0 : i32
    %2 = arith.cmpi ne, %1, %c0_i32_0 : i32
    scf.if %2 {
      %cst_9 = arith.constant 0.000000e+00 : f32
      %12 = vector.broadcast %cst_9 : f32 to vector<128x128xf32>
      %c0_10 = arith.constant 0 : index
      %c0_11 = arith.constant 0 : index
      %13 = vector.load %arg7[%c0_10, %c0_11] : memref<128x128xf32, #tpu.memory_space<vmem>>, vector<128x128xf32>
      tpu.vector_store %arg7[%c0_10, %c0_11], %12 {strides = array<i32>} : memref<128x128xf32, #tpu.memory_space<vmem>>, vector<128x128xf32>,
    } else {
    }
    %c0 = arith.constant 0 : index
    %c0_1 = arith.constant 0 : index
    %3 = vector.load %arg7[%c0, %c0_1] : memref<128x128xf32, #tpu.memory_space<vmem>>, vector<128x128xf32>
    %c0_2 = arith.constant 0 : index
    %c0_3 = arith.constant 0 : index
    %4 = vector.load %arg3[%c0_2, %c0_3] : memref<128x128xbf16, #tpu.memory_space<vmem>>, vector<128x128xbf16>
    %c0_4 = arith.constant 0 : index
    %c0_5 = arith.constant 0 : index
    %5 = vector.load %arg4[%c0_4, %c0_5] : memref<128x128xbf16, #tpu.memory_space<vmem>>, vector<128x128xbf16>
    %cst = arith.constant dense<0.000000e+00> : vector<128x128xf32>
    %6 = tpu.matmul %4, %5, %cst {dimension_numbers = #tpu.dot_dimension_numbers<[1], [0], [0], [1], [0, 0, 1, 1], [], []>} : vector<128x128xbf16>, vector<128x128xbf16>, vector<128x128xf32> -> vector<128x128xf32>
    %7 = arith.addf %3, %6 : vector<128x128xf32>
    %c0_6 = arith.constant 0 : index
    %c0_7 = arith.constant 0 : index
    %8 = vector.load %arg7[%c0_6, %c0_7] : memref<128x128xf32, #tpu.memory_space<vmem>>, vector<128x128xf32>
    tpu.vector_store %arg7[%c0_6, %c0_7], %7 {strides = array<i32>} : memref<128x128xf32, #tpu.memory_space<vmem>>, vector<128x128xf32>,
    %c2_i32 = arith.constant 2 : i32
    %9 = arith.cmpi eq, %arg2, %c2_i32 : i32
    %10 = arith.extui %9 : i1 to i32
    %c0_i32_8 = arith.constant 0 : i32
    %11 = arith.cmpi ne, %10, %c0_i32_8 : i32
    scf.if %11 {
      %c0_9 = arith.constant 0 : index
      %c0_10 = arith.constant 0 : index
      %12 = vector.load %arg7[%c0_9, %c0_10] : memref<128x128xf32, #tpu.memory_space<vmem>>, vector<128x128xf32>
      %c0_11 = arith.constant 0 : index
      %c0_12 = arith.constant 0 : index
      %13 = vector.load %arg5[%c0_11, %c0_12] : memref<2x128xf32, #tpu.memory_space<vmem>>, vector<1x128xf32>
      %14 = vector.broadcast %13 : vector<1x128xf32> to vector<128x128xf32>
      %15 = arith.mulf %12, %14 : vector<128x128xf32>
      %c1 = arith.constant 1 : index
      %c0_13 = arith.constant 0 : index
      %16 = vector.load %arg5[%c1, %c0_13] : memref<2x128xf32, #tpu.memory_space<vmem>>, vector<1x128xf32>
      %17 = vector.broadcast %16 : vector<1x128xf32> to vector<128x128xf32>
      %18 = arith.addf %15, %17 : vector<128x128xf32>
      %cst_14 = arith.constant 0.000000e+00 : f32
      %19 = vector.broadcast %cst_14 : f32 to vector<128x128xf32>
      %20 = arith.maximumf %18, %19 : vector<128x128xf32>
      %21 = arith.truncf %20 : vector<128x128xf32> to vector<128x128xbf16>
      %c0_15 = arith.constant 0 : index
      %c0_16 = arith.constant 0 : index
      %22 = vector.load %arg6[%c0_15, %c0_16] : memref<128x128xbf16, #tpu.memory_space<vmem>>, vector<128x128xbf16>
      tpu.vector_store %arg6[%c0_15, %c0_16], %21 {strides = array<i32>} : memref<128x128xbf16, #tpu.memory_space<vmem>>, vector<128x128xbf16>,
    } else {
    }
    return
  }
  func.func @transform_0(%arg0: i32, %arg1: i32, %arg2: i32) -> (i32, i32) {
    %c0_i32 = arith.constant 0 : i32
    return %arg0, %arg2 : i32, i32
  }
  func.func @transform_1(%arg0: i32, %arg1: i32, %arg2: i32) -> (i32, i32) {
    %c0_i32 = arith.constant 0 : i32
    return %arg2, %arg1 : i32, i32
  }
  func.func @transform_2(%arg0: i32, %arg1: i32, %arg2: i32) -> (i32, i32) {
    %c0_i32 = arith.constant 0 : i32
    %c0_i32_0 = arith.constant 0 : i32
    return %c0_i32, %arg1 : i32, i32
  }
  func.func @transform_3(%arg0: i32, %arg1: i32, %arg2: i32) -> (i32, i32) {
    %c0_i32 = arith.constant 0 : i32
    return %arg0, %arg1 : i32, i32
  }
}

module attributes {stable_mosaic.version = 11 : i64} {
  func.func @_fused_matmul_kernel(%arg0: i32, %arg1: i32, %arg2: i32, %arg3: memref<128x128xbf16, #tpu.memory_space<vmem>>, %arg4: memref<128x128xbf16, #tpu.memory_space<vmem>>, %arg5: memref<2x128xf32, #tpu.memory_space<vmem>>, %arg6: memref<128x128xbf16, #tpu.memory_space<vmem>>, %arg7: memref<128x128xf32, #tpu.memory_space<vmem>>) attributes {dimension_semantics = [#tpu.dimension_semantics<parallel>, #tpu.dimension_semantics<parallel>, #tpu.dimension_semantics<arbitrary>], iteration_bounds = array<i64: 1, 1, 1>, scalar_prefetch = 0 : i64, scratch_operands = 1 : i64, tpu.core_type = #tpu.core_type<tc>, window_params = [{transform_indices = @transform_0, window_bounds = array<i64: 128, 128>}, {transform_indices = @transform_1, window_bounds = array<i64: 128, 128>}, {transform_indices = @transform_2, window_bounds = array<i64: 2, 128>}, {transform_indices = @transform_3, window_bounds = array<i64: 128, 128>}]} {
    %c0_i32 = arith.constant 0 : i32
    %0 = arith.cmpi eq, %arg2, %c0_i32 : i32
    %1 = arith.extui %0 : i1 to i32
    %c0_i32_0 = arith.constant 0 : i32
    %2 = arith.cmpi ne, %1, %c0_i32_0 : i32
    scf.if %2 {
      %cst_10 = arith.constant 0.000000e+00 : f32
      %12 = vector.broadcast %cst_10 : f32 to vector<128x128xf32>
      %c0_11 = arith.constant 0 : index
      %c0_12 = arith.constant 0 : index
      %13 = vector.load %arg7[%c0_11, %c0_12] : memref<128x128xf32, #tpu.memory_space<vmem>>, vector<128x128xf32>
      tpu.vector_store %arg7[%c0_11, %c0_12], %12 {strides = array<i32>} : memref<128x128xf32, #tpu.memory_space<vmem>>, vector<128x128xf32>,
    } else {
    }
    %c0 = arith.constant 0 : index
    %c0_1 = arith.constant 0 : index
    %3 = vector.load %arg7[%c0, %c0_1] : memref<128x128xf32, #tpu.memory_space<vmem>>, vector<128x128xf32>
    %c0_2 = arith.constant 0 : index
    %c0_3 = arith.constant 0 : index
    %4 = vector.load %arg3[%c0_2, %c0_3] : memref<128x128xbf16, #tpu.memory_space<vmem>>, vector<128x128xbf16>
    %c0_4 = arith.constant 0 : index
    %c0_5 = arith.constant 0 : index
    %5 = vector.load %arg4[%c0_4, %c0_5] : memref<128x128xbf16, #tpu.memory_space<vmem>>, vector<128x128xbf16>
    %cst = arith.constant dense<0.000000e+00> : vector<128x128xf32>
    %6 = tpu.matmul %4, %5, %cst {dimension_numbers = #tpu.dot_dimension_numbers<[1], [0], [0], [1], [0, 0, 1, 1], [], []>} : vector<128x128xbf16>, vector<128x128xbf16>, vector<128x128xf32> -> vector<128x128xf32>
    %7 = arith.addf %3, %6 : vector<128x128xf32>
    %c0_6 = arith.constant 0 : index
    %c0_7 = arith.constant 0 : index
    %8 = vector.load %arg7[%c0_6, %c0_7] : memref<128x128xf32, #tpu.memory_space<vmem>>, vector<128x128xf32>
    tpu.vector_store %arg7[%c0_6, %c0_7], %7 {strides = array<i32>} : memref<128x128xf32, #tpu.memory_space<vmem>>, vector<128x128xf32>,
    %c0_i32_8 = arith.constant 0 : i32
    %9 = arith.cmpi eq, %arg2, %c0_i32_8 : i32
    %10 = arith.extui %9 : i1 to i32
    %c0_i32_9 = arith.constant 0 : i32
    %11 = arith.cmpi ne, %10, %c0_i32_9 : i32
    scf.if %11 {
      %c0_10 = arith.constant 0 : index
      %c0_11 = arith.constant 0 : index
      %12 = vector.load %arg7[%c0_10, %c0_11] : memref<128x128xf32, #tpu.memory_space<vmem>>, vector<128x128xf32>
      %c0_12 = arith.constant 0 : index
      %c0_13 = arith.constant 0 : index
      %13 = vector.load %arg5[%c0_12, %c0_13] : memref<2x128xf32, #tpu.memory_space<vmem>>, vector<1x128xf32>
      %14 = vector.broadcast %13 : vector<1x128xf32> to vector<128x128xf32>
      %15 = arith.mulf %12, %14 : vector<128x128xf32>
      %c1 = arith.constant 1 : index
      %c0_14 = arith.constant 0 : index
      %16 = vector.load %arg5[%c1, %c0_14] : memref<2x128xf32, #tpu.memory_space<vmem>>, vector<1x128xf32>
      %17 = vector.broadcast %16 : vector<1x128xf32> to vector<128x128xf32>
      %18 = arith.addf %15, %17 : vector<128x128xf32>
      %cst_15 = arith.constant 0.000000e+00 : f32
      %19 = vector.broadcast %cst_15 : f32 to vector<128x128xf32>
      %20 = arith.maximumf %18, %19 : vector<128x128xf32>
      %21 = arith.truncf %20 : vector<128x128xf32> to vector<128x128xbf16>
      %c0_16 = arith.constant 0 : index
      %c0_17 = arith.constant 0 : index
      %22 = vector.load %arg6[%c0_16, %c0_17] : memref<128x128xbf16, #tpu.memory_space<vmem>>, vector<128x128xbf16>
      tpu.vector_store %arg6[%c0_16, %c0_17], %21 {strides = array<i32>} : memref<128x128xbf16, #tpu.memory_space<vmem>>, vector<128x128xbf16>,
    } else {
    }
    return
  }
  func.func @transform_0(%arg0: i32, %arg1: i32, %arg2: i32) -> (i32, i32) {
    %c0_i32 = arith.constant 0 : i32
    return %arg0, %arg2 : i32, i32
  }
  func.func @transform_1(%arg0: i32, %arg1: i32, %arg2: i32) -> (i32, i32) {
    %c0_i32 = arith.constant 0 : i32
    return %arg2, %arg1 : i32, i32
  }
  func.func @transform_2(%arg0: i32, %arg1: i32, %arg2: i32) -> (i32, i32) {
    %c0_i32 = arith.constant 0 : i32
    %c0_i32_0 = arith.constant 0 : i32
    return %c0_i32, %arg1 : i32, i32
  }
  func.func @transform_3(%arg0: i32, %arg1: i32, %arg2: i32) -> (i32, i32) {
    %c0_i32 = arith.constant 0 : i32
    return %arg0, %arg1 : i32, i32
  }
}

module attributes {stable_mosaic.version = 11 : i64} {
  func.func @_fused_matmul_kernel(%arg0: i32, %arg1: i32, %arg2: i32, %arg3: memref<128x128xbf16, #tpu.memory_space<vmem>>, %arg4: memref<128x128xbf16, #tpu.memory_space<vmem>>, %arg5: memref<2x128xf32, #tpu.memory_space<vmem>>, %arg6: memref<128x128xbf16, #tpu.memory_space<vmem>>, %arg7: memref<128x128xf32, #tpu.memory_space<vmem>>) attributes {dimension_semantics = [#tpu.dimension_semantics<parallel>, #tpu.dimension_semantics<parallel>, #tpu.dimension_semantics<arbitrary>], iteration_bounds = array<i64: 1, 1, 5>, scalar_prefetch = 0 : i64, scratch_operands = 1 : i64, tpu.core_type = #tpu.core_type<tc>, window_params = [{transform_indices = @transform_0, window_bounds = array<i64: 128, 128>}, {transform_indices = @transform_1, window_bounds = array<i64: 128, 128>}, {transform_indices = @transform_2, window_bounds = array<i64: 2, 128>}, {transform_indices = @transform_3, window_bounds = array<i64: 128, 128>}]} {
    %c0_i32 = arith.constant 0 : i32
    %0 = arith.cmpi eq, %arg2, %c0_i32 : i32
    %1 = arith.extui %0 : i1 to i32
    %c0_i32_0 = arith.constant 0 : i32
    %2 = arith.cmpi ne, %1, %c0_i32_0 : i32
    scf.if %2 {
      %cst_9 = arith.constant 0.000000e+00 : f32
      %12 = vector.broadcast %cst_9 : f32 to vector<128x128xf32>
      %c0_10 = arith.constant 0 : index
      %c0_11 = arith.constant 0 : index
      %13 = vector.load %arg7[%c0_10, %c0_11] : memref<128x128xf32, #tpu.memory_space<vmem>>, vector<128x128xf32>
      tpu.vector_store %arg7[%c0_10, %c0_11], %12 {strides = array<i32>} : memref<128x128xf32, #tpu.memory_space<vmem>>, vector<128x128xf32>,
    } else {
    }
    %c0 = arith.constant 0 : index
    %c0_1 = arith.constant 0 : index
    %3 = vector.load %arg7[%c0, %c0_1] : memref<128x128xf32, #tpu.memory_space<vmem>>, vector<128x128xf32>
    %c0_2 = arith.constant 0 : index
    %c0_3 = arith.constant 0 : index
    %4 = vector.load %arg3[%c0_2, %c0_3] : memref<128x128xbf16, #tpu.memory_space<vmem>>, vector<128x128xbf16>
    %c0_4 = arith.constant 0 : index
    %c0_5 = arith.constant 0 : index
    %5 = vector.load %arg4[%c0_4, %c0_5] : memref<128x128xbf16, #tpu.memory_space<vmem>>, vector<128x128xbf16>
    %cst = arith.constant dense<0.000000e+00> : vector<128x128xf32>
    %6 = tpu.matmul %4, %5, %cst {dimension_numbers = #tpu.dot_dimension_numbers<[1], [0], [0], [1], [0, 0, 1, 1], [], []>} : vector<128x128xbf16>, vector<128x128xbf16>, vector<128x128xf32> -> vector<128x128xf32>
    %7 = arith.addf %3, %6 : vector<128x128xf32>
    %c0_6 = arith.constant 0 : index
    %c0_7 = arith.constant 0 : index
    %8 = vector.load %arg7[%c0_6, %c0_7] : memref<128x128xf32, #tpu.memory_space<vmem>>, vector<128x128xf32>
    tpu.vector_store %arg7[%c0_6, %c0_7], %7 {strides = array<i32>} : memref<128x128xf32, #tpu.memory_space<vmem>>, vector<128x128xf32>,
    %c4_i32 = arith.constant 4 : i32
    %9 = arith.cmpi eq, %arg2, %c4_i32 : i32
    %10 = arith.extui %9 : i1 to i32
    %c0_i32_8 = arith.constant 0 : i32
    %11 = arith.cmpi ne, %10, %c0_i32_8 : i32
    scf.if %11 {
      %c0_9 = arith.constant 0 : index
      %c0_10 = arith.constant 0 : index
      %12 = vector.load %arg7[%c0_9, %c0_10] : memref<128x128xf32, #tpu.memory_space<vmem>>, vector<128x128xf32>
      %c0_11 = arith.constant 0 : index
      %c0_12 = arith.constant 0 : index
      %13 = vector.load %arg5[%c0_11, %c0_12] : memref<2x128xf32, #tpu.memory_space<vmem>>, vector<1x128xf32>
      %14 = vector.broadcast %13 : vector<1x128xf32> to vector<128x128xf32>
      %15 = arith.mulf %12, %14 : vector<128x128xf32>
      %c1 = arith.constant 1 : index
      %c0_13 = arith.constant 0 : index
      %16 = vector.load %arg5[%c1, %c0_13] : memref<2x128xf32, #tpu.memory_space<vmem>>, vector<1x128xf32>
      %17 = vector.broadcast %16 : vector<1x128xf32> to vector<128x128xf32>
      %18 = arith.addf %15, %17 : vector<128x128xf32>
      %cst_14 = arith.constant 0.000000e+00 : f32
      %19 = vector.broadcast %cst_14 : f32 to vector<128x128xf32>
      %20 = arith.maximumf %18, %19 : vector<128x128xf32>
      %21 = arith.truncf %20 : vector<128x128xf32> to vector<128x128xbf16>
      %c0_15 = arith.constant 0 : index
      %c0_16 = arith.constant 0 : index
      %22 = vector.load %arg6[%c0_15, %c0_16] : memref<128x128xbf16, #tpu.memory_space<vmem>>, vector<128x128xbf16>
      tpu.vector_store %arg6[%c0_15, %c0_16], %21 {strides = array<i32>} : memref<128x128xbf16, #tpu.memory_space<vmem>>, vector<128x128xbf16>,
    } else {
    }
    return
  }
  func.func @transform_0(%arg0: i32, %arg1: i32, %arg2: i32) -> (i32, i32) {
    %c0_i32 = arith.constant 0 : i32
    return %arg0, %arg2 : i32, i32
  }
  func.func @transform_1(%arg0: i32, %arg1: i32, %arg2: i32) -> (i32, i32) {
    %c0_i32 = arith.constant 0 : i32
    return %arg2, %arg1 : i32, i32
  }
  func.func @transform_2(%arg0: i32, %arg1: i32, %arg2: i32) -> (i32, i32) {
    %c0_i32 = arith.constant 0 : i32
    %c0_i32_0 = arith.constant 0 : i32
    return %c0_i32, %arg1 : i32, i32
  }
  func.func @transform_3(%arg0: i32, %arg1: i32, %arg2: i32) -> (i32, i32) {
    %c0_i32 = arith.constant 0 : i32
    return %arg0, %arg1 : i32, i32
  }
}

module attributes {stable_mosaic.version = 11 : i64} {
  func.func @_fused_matmul_kernel(%arg0: i32, %arg1: i32, %arg2: i32, %arg3: memref<128x256xbf16, #tpu.memory_space<vmem>>, %arg4: memref<256x256xbf16, #tpu.memory_space<vmem>>, %arg5: memref<2x256xf32, #tpu.memory_space<vmem>>, %arg6: memref<128x256xbf16, #tpu.memory_space<vmem>>, %arg7: memref<128x256xf32, #tpu.memory_space<vmem>>) attributes {dimension_semantics = [#tpu.dimension_semantics<parallel>, #tpu.dimension_semantics<parallel>, #tpu.dimension_semantics<arbitrary>], iteration_bounds = array<i64: 1, 1, 9>, scalar_prefetch = 0 : i64, scratch_operands = 1 : i64, tpu.core_type = #tpu.core_type<tc>, window_params = [{transform_indices = @transform_0, window_bounds = array<i64: 128, 256>}, {transform_indices = @transform_1, window_bounds = array<i64: 256, 256>}, {transform_indices = @transform_2, window_bounds = array<i64: 2, 256>}, {transform_indices = @transform_3, window_bounds = array<i64: 128, 256>}]} {
    %c0_i32 = arith.constant 0 : i32
    %0 = arith.cmpi eq, %arg2, %c0_i32 : i32
    %1 = arith.extui %0 : i1 to i32
    %c0_i32_0 = arith.constant 0 : i32
    %2 = arith.cmpi ne, %1, %c0_i32_0 : i32
    scf.if %2 {
      %cst_9 = arith.constant 0.000000e+00 : f32
      %12 = vector.broadcast %cst_9 : f32 to vector<128x256xf32>
      %c0_10 = arith.constant 0 : index
      %c0_11 = arith.constant 0 : index
      %13 = vector.load %arg7[%c0_10, %c0_11] : memref<128x256xf32, #tpu.memory_space<vmem>>, vector<128x256xf32>
      tpu.vector_store %arg7[%c0_10, %c0_11], %12 {strides = array<i32>} : memref<128x256xf32, #tpu.memory_space<vmem>>, vector<128x256xf32>,
    } else {
    }
    %c0 = arith.constant 0 : index
    %c0_1 = arith.constant 0 : index
    %3 = vector.load %arg7[%c0, %c0_1] : memref<128x256xf32, #tpu.memory_space<vmem>>, vector<128x256xf32>
    %c0_2 = arith.constant 0 : index
    %c0_3 = arith.constant 0 : index
    %4 = vector.load %arg3[%c0_2, %c0_3] : memref<128x256xbf16, #tpu.memory_space<vmem>>, vector<128x256xbf16>
    %c0_4 = arith.constant 0 : index
    %c0_5 = arith.constant 0 : index
    %5 = vector.load %arg4[%c0_4, %c0_5] : memref<256x256xbf16, #tpu.memory_space<vmem>>, vector<256x256xbf16>
    %cst = arith.constant dense<0.000000e+00> : vector<128x256xf32>
    %6 = tpu.matmul %4, %5, %cst {dimension_numbers = #tpu.dot_dimension_numbers<[1], [0], [0], [1], [0, 0, 1, 1], [], []>} : vector<128x256xbf16>, vector<256x256xbf16>, vector<128x256xf32> -> vector<128x256xf32>
    %7 = arith.addf %3, %6 : vector<128x256xf32>
    %c0_6 = arith.constant 0 : index
    %c0_7 = arith.constant 0 : index
    %8 = vector.load %arg7[%c0_6, %c0_7] : memref<128x256xf32, #tpu.memory_space<vmem>>, vector<128x256xf32>
    tpu.vector_store %arg7[%c0_6, %c0_7], %7 {strides = array<i32>} : memref<128x256xf32, #tpu.memory_space<vmem>>, vector<128x256xf32>,
    %c8_i32 = arith.constant 8 : i32
    %9 = arith.cmpi eq, %arg2, %c8_i32 : i32
    %10 = arith.extui %9 : i1 to i32
    %c0_i32_8 = arith.constant 0 : i32
    %11 = arith.cmpi ne, %10, %c0_i32_8 : i32
    scf.if %11 {
      %c0_9 = arith.constant 0 : index
      %c0_10 = arith.constant 0 : index
      %12 = vector.load %arg7[%c0_9, %c0_10] : memref<128x256xf32, #tpu.memory_space<vmem>>, vector<128x256xf32>
      %c0_11 = arith.constant 0 : index
      %c0_12 = arith.constant 0 : index
      %13 = vector.load %arg5[%c0_11, %c0_12] : memref<2x256xf32, #tpu.memory_space<vmem>>, vector<1x256xf32>
      %14 = vector.broadcast %13 : vector<1x256xf32> to vector<128x256xf32>
      %15 = arith.mulf %12, %14 : vector<128x256xf32>
      %c1 = arith.constant 1 : index
      %c0_13 = arith.constant 0 : index
      %16 = vector.load %arg5[%c1, %c0_13] : memref<2x256xf32, #tpu.memory_space<vmem>>, vector<1x256xf32>
      %17 = vector.broadcast %16 : vector<1x256xf32> to vector<128x256xf32>
      %18 = arith.addf %15, %17 : vector<128x256xf32>
      %cst_14 = arith.constant 0.000000e+00 : f32
      %19 = vector.broadcast %cst_14 : f32 to vector<128x256xf32>
      %20 = arith.maximumf %18, %19 : vector<128x256xf32>
      %21 = arith.truncf %20 : vector<128x256xf32> to vector<128x256xbf16>
      %c0_15 = arith.constant 0 : index
      %c0_16 = arith.constant 0 : index
      %22 = vector.load %arg6[%c0_15, %c0_16] : memref<128x256xbf16, #tpu.memory_space<vmem>>, vector<128x256xbf16>
      tpu.vector_store %arg6[%c0_15, %c0_16], %21 {strides = array<i32>} : memref<128x256xbf16, #tpu.memory_space<vmem>>, vector<128x256xbf16>,
    } else {
    }
    return
  }
  func.func @transform_0(%arg0: i32, %arg1: i32, %arg2: i32) -> (i32, i32) {
    %c0_i32 = arith.constant 0 : i32
    return %arg0, %arg2 : i32, i32
  }
  func.func @transform_1(%arg0: i32, %arg1: i32, %arg2: i32) -> (i32, i32) {
    %c0_i32 = arith.constant 0 : i32
    return %arg2, %arg1 : i32, i32
  }
  func.func @transform_2(%arg0: i32, %arg1: i32, %arg2: i32) -> (i32, i32) {
    %c0_i32 = arith.constant 0 : i32
    %c0_i32_0 = arith.constant 0 : i32
    return %c0_i32, %arg1 : i32, i32
  }
  func.func @transform_3(%arg0: i32, %arg1: i32, %arg2: i32) -> (i32, i32) {
    %c0_i32 = arith.constant 0 : i32
    return %arg0, %arg1 : i32, i32
  }
}

module attributes {stable_mosaic.version = 11 : i64} {
  func.func @_fused_matmul_kernel(%arg0: i32, %arg1: i32, %arg2: i32, %arg3: memref<128x128xbf16, #tpu.memory_space<vmem>>, %arg4: memref<128x256xbf16, #tpu.memory_space<vmem>>, %arg5: memref<2x256xf32, #tpu.memory_space<vmem>>, %arg6: memref<128x256xbf16, #tpu.memory_space<vmem>>, %arg7: memref<128x256xf32, #tpu.memory_space<vmem>>) attributes {dimension_semantics = [#tpu.dimension_semantics<parallel>, #tpu.dimension_semantics<parallel>, #tpu.dimension_semantics<arbitrary>], iteration_bounds = array<i64: 1, 2, 1>, scalar_prefetch = 0 : i64, scratch_operands = 1 : i64, tpu.core_type = #tpu.core_type<tc>, window_params = [{transform_indices = @transform_0, window_bounds = array<i64: 128, 128>}, {transform_indices = @transform_1, window_bounds = array<i64: 128, 256>}, {transform_indices = @transform_2, window_bounds = array<i64: 2, 256>}, {transform_indices = @transform_3, window_bounds = array<i64: 128, 256>}]} {
    %c0_i32 = arith.constant 0 : i32
    %0 = arith.cmpi eq, %arg2, %c0_i32 : i32
    %1 = arith.extui %0 : i1 to i32
    %c0_i32_0 = arith.constant 0 : i32
    %2 = arith.cmpi ne, %1, %c0_i32_0 : i32
    scf.if %2 {
      %cst_10 = arith.constant 0.000000e+00 : f32
      %12 = vector.broadcast %cst_10 : f32 to vector<128x256xf32>
      %c0_11 = arith.constant 0 : index
      %c0_12 = arith.constant 0 : index
      %13 = vector.load %arg7[%c0_11, %c0_12] : memref<128x256xf32, #tpu.memory_space<vmem>>, vector<128x256xf32>
      tpu.vector_store %arg7[%c0_11, %c0_12], %12 {strides = array<i32>} : memref<128x256xf32, #tpu.memory_space<vmem>>, vector<128x256xf32>,
    } else {
    }
    %c0 = arith.constant 0 : index
    %c0_1 = arith.constant 0 : index
    %3 = vector.load %arg7[%c0, %c0_1] : memref<128x256xf32, #tpu.memory_space<vmem>>, vector<128x256xf32>
    %c0_2 = arith.constant 0 : index
    %c0_3 = arith.constant 0 : index
    %4 = vector.load %arg3[%c0_2, %c0_3] : memref<128x128xbf16, #tpu.memory_space<vmem>>, vector<128x128xbf16>
    %c0_4 = arith.constant 0 : index
    %c0_5 = arith.constant 0 : index
    %5 = vector.load %arg4[%c0_4, %c0_5] : memref<128x256xbf16, #tpu.memory_space<vmem>>, vector<128x256xbf16>
    %cst = arith.constant dense<0.000000e+00> : vector<128x256xf32>
    %6 = tpu.matmul %4, %5, %cst {dimension_numbers = #tpu.dot_dimension_numbers<[1], [0], [0], [1], [0, 0, 1, 1], [], []>} : vector<128x128xbf16>, vector<128x256xbf16>, vector<128x256xf32> -> vector<128x256xf32>
    %7 = arith.addf %3, %6 : vector<128x256xf32>
    %c0_6 = arith.constant 0 : index
    %c0_7 = arith.constant 0 : index
    %8 = vector.load %arg7[%c0_6, %c0_7] : memref<128x256xf32, #tpu.memory_space<vmem>>, vector<128x256xf32>
    tpu.vector_store %arg7[%c0_6, %c0_7], %7 {strides = array<i32>} : memref<128x256xf32, #tpu.memory_space<vmem>>, vector<128x256xf32>,
    %c0_i32_8 = arith.constant 0 : i32
    %9 = arith.cmpi eq, %arg2, %c0_i32_8 : i32
    %10 = arith.extui %9 : i1 to i32
    %c0_i32_9 = arith.constant 0 : i32
    %11 = arith.cmpi ne, %10, %c0_i32_9 : i32
    scf.if %11 {
      %c0_10 = arith.constant 0 : index
      %c0_11 = arith.constant 0 : index
      %12 = vector.load %arg7[%c0_10, %c0_11] : memref<128x256xf32, #tpu.memory_space<vmem>>, vector<128x256xf32>
      %c0_12 = arith.constant 0 : index
      %c0_13 = arith.constant 0 : index
      %13 = vector.load %arg5[%c0_12, %c0_13] : memref<2x256xf32, #tpu.memory_space<vmem>>, vector<1x256xf32>
      %14 = vector.broadcast %13 : vector<1x256xf32> to vector<128x256xf32>
      %15 = arith.mulf %12, %14 : vector<128x256xf32>
      %c1 = arith.constant 1 : index
      %c0_14 = arith.constant 0 : index
      %16 = vector.load %arg5[%c1, %c0_14] : memref<2x256xf32, #tpu.memory_space<vmem>>, vector<1x256xf32>
      %17 = vector.broadcast %16 : vector<1x256xf32> to vector<128x256xf32>
      %18 = arith.addf %15, %17 : vector<128x256xf32>
      %cst_15 = arith.constant 0.000000e+00 : f32
      %19 = vector.broadcast %cst_15 : f32 to vector<128x256xf32>
      %20 = arith.maximumf %18, %19 : vector<128x256xf32>
      %21 = arith.truncf %20 : vector<128x256xf32> to vector<128x256xbf16>
      %c0_16 = arith.constant 0 : index
      %c0_17 = arith.constant 0 : index
      %22 = vector.load %arg6[%c0_16, %c0_17] : memref<128x256xbf16, #tpu.memory_space<vmem>>, vector<128x256xbf16>
      tpu.vector_store %arg6[%c0_16, %c0_17], %21 {strides = array<i32>} : memref<128x256xbf16, #tpu.memory_space<vmem>>, vector<128x256xbf16>,
    } else {
    }
    return
  }
  func.func @transform_0(%arg0: i32, %arg1: i32, %arg2: i32) -> (i32, i32) {
    %c0_i32 = arith.constant 0 : i32
    return %arg0, %arg2 : i32, i32
  }
  func.func @transform_1(%arg0: i32, %arg1: i32, %arg2: i32) -> (i32, i32) {
    %c0_i32 = arith.constant 0 : i32
    return %arg2, %arg1 : i32, i32
  }
  func.func @transform_2(%arg0: i32, %arg1: i32, %arg2: i32) -> (i32, i32) {
    %c0_i32 = arith.constant 0 : i32
    %c0_i32_0 = arith.constant 0 : i32
    return %c0_i32, %arg1 : i32, i32
  }
  func.func @transform_3(%arg0: i32, %arg1: i32, %arg2: i32) -> (i32, i32) {
    %c0_i32 = arith.constant 0 : i32
    return %arg0, %arg1 : i32, i32
  }
}

module attributes {stable_mosaic.version = 11 : i64} {
  func.func @_fused_matmul_kernel(%arg0: i32, %arg1: i32, %arg2: i32, %arg3: memref<128x256xbf16, #tpu.memory_space<vmem>>, %arg4: memref<256x128xbf16, #tpu.memory_space<vmem>>, %arg5: memref<2x128xf32, #tpu.memory_space<vmem>>, %arg6: memref<128x128xbf16, #tpu.memory_space<vmem>>, %arg7: memref<128x128xf32, #tpu.memory_space<vmem>>) attributes {dimension_semantics = [#tpu.dimension_semantics<parallel>, #tpu.dimension_semantics<parallel>, #tpu.dimension_semantics<arbitrary>], iteration_bounds = array<i64: 1, 1, 9>, scalar_prefetch = 0 : i64, scratch_operands = 1 : i64, tpu.core_type = #tpu.core_type<tc>, window_params = [{transform_indices = @transform_0, window_bounds = array<i64: 128, 256>}, {transform_indices = @transform_1, window_bounds = array<i64: 256, 128>}, {transform_indices = @transform_2, window_bounds = array<i64: 2, 128>}, {transform_indices = @transform_3, window_bounds = array<i64: 128, 128>}]} {
    %c0_i32 = arith.constant 0 : i32
    %0 = arith.cmpi eq, %arg2, %c0_i32 : i32
    %1 = arith.extui %0 : i1 to i32
    %c0_i32_0 = arith.constant 0 : i32
    %2 = arith.cmpi ne, %1, %c0_i32_0 : i32
    scf.if %2 {
      %cst_9 = arith.constant 0.000000e+00 : f32
      %12 = vector.broadcast %cst_9 : f32 to vector<128x128xf32>
      %c0_10 = arith.constant 0 : index
      %c0_11 = arith.constant 0 : index
      %13 = vector.load %arg7[%c0_10, %c0_11] : memref<128x128xf32, #tpu.memory_space<vmem>>, vector<128x128xf32>
      tpu.vector_store %arg7[%c0_10, %c0_11], %12 {strides = array<i32>} : memref<128x128xf32, #tpu.memory_space<vmem>>, vector<128x128xf32>,
    } else {
    }
    %c0 = arith.constant 0 : index
    %c0_1 = arith.constant 0 : index
    %3 = vector.load %arg7[%c0, %c0_1] : memref<128x128xf32, #tpu.memory_space<vmem>>, vector<128x128xf32>
    %c0_2 = arith.constant 0 : index
    %c0_3 = arith.constant 0 : index
    %4 = vector.load %arg3[%c0_2, %c0_3] : memref<128x256xbf16, #tpu.memory_space<vmem>>, vector<128x256xbf16>
    %c0_4 = arith.constant 0 : index
    %c0_5 = arith.constant 0 : index
    %5 = vector.load %arg4[%c0_4, %c0_5] : memref<256x128xbf16, #tpu.memory_space<vmem>>, vector<256x128xbf16>
    %cst = arith.constant dense<0.000000e+00> : vector<128x128xf32>
    %6 = tpu.matmul %4, %5, %cst {dimension_numbers = #tpu.dot_dimension_numbers<[1], [0], [0], [1], [0, 0, 1, 1], [], []>} : vector<128x256xbf16>, vector<256x128xbf16>, vector<128x128xf32> -> vector<128x128xf32>
    %7 = arith.addf %3, %6 : vector<128x128xf32>
    %c0_6 = arith.constant 0 : index
    %c0_7 = arith.constant 0 : index
    %8 = vector.load %arg7[%c0_6, %c0_7] : memref<128x128xf32, #tpu.memory_space<vmem>>, vector<128x128xf32>
    tpu.vector_store %arg7[%c0_6, %c0_7], %7 {strides = array<i32>} : memref<128x128xf32, #tpu.memory_space<vmem>>, vector<128x128xf32>,
    %c8_i32 = arith.constant 8 : i32
    %9 = arith.cmpi eq, %arg2, %c8_i32 : i32
    %10 = arith.extui %9 : i1 to i32
    %c0_i32_8 = arith.constant 0 : i32
    %11 = arith.cmpi ne, %10, %c0_i32_8 : i32
    scf.if %11 {
      %c0_9 = arith.constant 0 : index
      %c0_10 = arith.constant 0 : index
      %12 = vector.load %arg7[%c0_9, %c0_10] : memref<128x128xf32, #tpu.memory_space<vmem>>, vector<128x128xf32>
      %c0_11 = arith.constant 0 : index
      %c0_12 = arith.constant 0 : index
      %13 = vector.load %arg5[%c0_11, %c0_12] : memref<2x128xf32, #tpu.memory_space<vmem>>, vector<1x128xf32>
      %14 = vector.broadcast %13 : vector<1x128xf32> to vector<128x128xf32>
      %15 = arith.mulf %12, %14 : vector<128x128xf32>
      %c1 = arith.constant 1 : index
      %c0_13 = arith.constant 0 : index
      %16 = vector.load %arg5[%c1, %c0_13] : memref<2x128xf32, #tpu.memory_space<vmem>>, vector<1x128xf32>
      %17 = vector.broadcast %16 : vector<1x128xf32> to vector<128x128xf32>
      %18 = arith.addf %15, %17 : vector<128x128xf32>
      %cst_14 = arith.constant 0.000000e+00 : f32
      %19 = vector.broadcast %cst_14 : f32 to vector<128x128xf32>
      %20 = arith.maximumf %18, %19 : vector<128x128xf32>
      %21 = arith.truncf %20 : vector<128x128xf32> to vector<128x128xbf16>
      %c0_15 = arith.constant 0 : index
      %c0_16 = arith.constant 0 : index
      %22 = vector.load %arg6[%c0_15, %c0_16] : memref<128x128xbf16, #tpu.memory_space<vmem>>, vector<128x128xbf16>
      tpu.vector_store %arg6[%c0_15, %c0_16], %21 {strides = array<i32>} : memref<128x128xbf16, #tpu.memory_space<vmem>>, vector<128x128xbf16>,
    } else {
    }
    return
  }
  func.func @transform_0(%arg0: i32, %arg1: i32, %arg2: i32) -> (i32, i32) {
    %c0_i32 = arith.constant 0 : i32
    return %arg0, %arg2 : i32, i32
  }
  func.func @transform_1(%arg0: i32, %arg1: i32, %arg2: i32) -> (i32, i32) {
    %c0_i32 = arith.constant 0 : i32
    return %arg2, %arg1 : i32, i32
  }
  func.func @transform_2(%arg0: i32, %arg1: i32, %arg2: i32) -> (i32, i32) {
    %c0_i32 = arith.constant 0 : i32
    %c0_i32_0 = arith.constant 0 : i32
    return %c0_i32, %arg1 : i32, i32
  }
  func.func @transform_3(%arg0: i32, %arg1: i32, %arg2: i32) -> (i32, i32) {
    %c0_i32 = arith.constant 0 : i32
    return %arg0, %arg1 : i32, i32
  }
}

module attributes {stable_mosaic.version = 11 : i64} {
  func.func @_fused_matmul_kernel(%arg0: i32, %arg1: i32, %arg2: i32, %arg3: memref<256x128xbf16, #tpu.memory_space<vmem>>, %arg4: memref<128x128xbf16, #tpu.memory_space<vmem>>, %arg5: memref<2x128xf32, #tpu.memory_space<vmem>>, %arg6: memref<256x128xf32, #tpu.memory_space<vmem>>, %arg7: memref<256x128xf32, #tpu.memory_space<vmem>>) attributes {dimension_semantics = [#tpu.dimension_semantics<parallel>, #tpu.dimension_semantics<parallel>, #tpu.dimension_semantics<arbitrary>], iteration_bounds = array<i64: 2, 1, 1>, scalar_prefetch = 0 : i64, scratch_operands = 1 : i64, tpu.core_type = #tpu.core_type<tc>, window_params = [{transform_indices = @transform_0, window_bounds = array<i64: 256, 128>}, {transform_indices = @transform_1, window_bounds = array<i64: 128, 128>}, {transform_indices = @transform_2, window_bounds = array<i64: 2, 128>}, {transform_indices = @transform_3, window_bounds = array<i64: 256, 128>}]} {
    %c0_i32 = arith.constant 0 : i32
    %0 = arith.cmpi eq, %arg2, %c0_i32 : i32
    %1 = arith.extui %0 : i1 to i32
    %c0_i32_0 = arith.constant 0 : i32
    %2 = arith.cmpi ne, %1, %c0_i32_0 : i32
    scf.if %2 {
      %cst_10 = arith.constant 0.000000e+00 : f32
      %12 = vector.broadcast %cst_10 : f32 to vector<256x128xf32>
      %c0_11 = arith.constant 0 : index
      %c0_12 = arith.constant 0 : index
      %13 = vector.load %arg7[%c0_11, %c0_12] : memref<256x128xf32, #tpu.memory_space<vmem>>, vector<256x128xf32>
      tpu.vector_store %arg7[%c0_11, %c0_12], %12 {strides = array<i32>} : memref<256x128xf32, #tpu.memory_space<vmem>>, vector<256x128xf32>,
    } else {
    }
    %c0 = arith.constant 0 : index
    %c0_1 = arith.constant 0 : index
    %3 = vector.load %arg7[%c0, %c0_1] : memref<256x128xf32, #tpu.memory_space<vmem>>, vector<256x128xf32>
    %c0_2 = arith.constant 0 : index
    %c0_3 = arith.constant 0 : index
    %4 = vector.load %arg3[%c0_2, %c0_3] : memref<256x128xbf16, #tpu.memory_space<vmem>>, vector<256x128xbf16>
    %c0_4 = arith.constant 0 : index
    %c0_5 = arith.constant 0 : index
    %5 = vector.load %arg4[%c0_4, %c0_5] : memref<128x128xbf16, #tpu.memory_space<vmem>>, vector<128x128xbf16>
    %cst = arith.constant dense<0.000000e+00> : vector<256x128xf32>
    %6 = tpu.matmul %4, %5, %cst {dimension_numbers = #tpu.dot_dimension_numbers<[1], [0], [0], [1], [0, 0, 1, 1], [], []>} : vector<256x128xbf16>, vector<128x128xbf16>, vector<256x128xf32> -> vector<256x128xf32>
    %7 = arith.addf %3, %6 : vector<256x128xf32>
    %c0_6 = arith.constant 0 : index
    %c0_7 = arith.constant 0 : index
    %8 = vector.load %arg7[%c0_6, %c0_7] : memref<256x128xf32, #tpu.memory_space<vmem>>, vector<256x128xf32>
    tpu.vector_store %arg7[%c0_6, %c0_7], %7 {strides = array<i32>} : memref<256x128xf32, #tpu.memory_space<vmem>>, vector<256x128xf32>,
    %c0_i32_8 = arith.constant 0 : i32
    %9 = arith.cmpi eq, %arg2, %c0_i32_8 : i32
    %10 = arith.extui %9 : i1 to i32
    %c0_i32_9 = arith.constant 0 : i32
    %11 = arith.cmpi ne, %10, %c0_i32_9 : i32
    scf.if %11 {
      %c0_10 = arith.constant 0 : index
      %c0_11 = arith.constant 0 : index
      %12 = vector.load %arg7[%c0_10, %c0_11] : memref<256x128xf32, #tpu.memory_space<vmem>>, vector<256x128xf32>
      %c0_12 = arith.constant 0 : index
      %c0_13 = arith.constant 0 : index
      %13 = vector.load %arg5[%c0_12, %c0_13] : memref<2x128xf32, #tpu.memory_space<vmem>>, vector<1x128xf32>
      %14 = vector.broadcast %13 : vector<1x128xf32> to vector<256x128xf32>
      %15 = arith.mulf %12, %14 : vector<256x128xf32>
      %c1 = arith.constant 1 : index
      %c0_14 = arith.constant 0 : index
      %16 = vector.load %arg5[%c1, %c0_14] : memref<2x128xf32, #tpu.memory_space<vmem>>, vector<1x128xf32>
      %17 = vector.broadcast %16 : vector<1x128xf32> to vector<256x128xf32>
      %18 = arith.addf %15, %17 : vector<256x128xf32>
      %19 = arith.negf %18 : vector<256x128xf32>
      %20 = math.exp %19 : vector<256x128xf32>
      %cst_15 = arith.constant 1.000000e+00 : f32
      %21 = vector.broadcast %cst_15 : f32 to vector<256x128xf32>
      %22 = arith.addf %21, %20 : vector<256x128xf32>
      %23 = arith.divf %21, %22 : vector<256x128xf32>
      %c0_16 = arith.constant 0 : index
      %c0_17 = arith.constant 0 : index
      %24 = vector.load %arg6[%c0_16, %c0_17] : memref<256x128xf32, #tpu.memory_space<vmem>>, vector<256x128xf32>
      tpu.vector_store %arg6[%c0_16, %c0_17], %23 {strides = array<i32>} : memref<256x128xf32, #tpu.memory_space<vmem>>, vector<256x128xf32>,
    } else {
    }
    return
  }
  func.func @transform_0(%arg0: i32, %arg1: i32, %arg2: i32) -> (i32, i32) {
    %c0_i32 = arith.constant 0 : i32
    return %arg0, %arg2 : i32, i32
  }
  func.func @transform_1(%arg0: i32, %arg1: i32, %arg2: i32) -> (i32, i32) {
    %c0_i32 = arith.constant 0 : i32
    return %arg2, %arg1 : i32, i32
  }
  func.func @transform_2(%arg0: i32, %arg1: i32, %arg2: i32) -> (i32, i32) {
    %c0_i32 = arith.constant 0 : i32
    %c0_i32_0 = arith.constant 0 : i32
    return %c0_i32, %arg1 : i32, i32
  }
  func.func @transform_3(%arg0: i32, %arg1: i32, %arg2: i32) -> (i32, i32) {
    %c0_i32 = arith.constant 0 : i32
    return %arg0, %arg1 : i32, i32
  }
}

</mosaic_0001>

<llo_original>
// kernel: db_forward.9
$region0: #{db_forward.9}
  #allocation0 [shape = 'u32[]', space=smem, size = 0x4, offset = 0x4, fixed_abs, tag = 'smem constant byte address 0x4 - core index']
  #allocation1 [shape = 'u32[144,128]{1,0:T(1,128)}', space=vmem, size = 0x12000, scoped, tag = 'internal scratch']
  #allocation2 [shape = 'f32[128,128]{1,0:T(8,128)}', space=vmem, size = 0x10000, scoped, tag = 'scratch operand']
  %s0 = inlined_call_operand.vmem [shape: bf16[128,384], index: 0, kind: input, shape index: {}]
  %s1 = inlined_call_operand.vmem [shape: bf16[384,128], index: 1, kind: input, shape index: {}]
  %s2 = inlined_call_operand.vmem [shape: f32[2,128], index: 2, kind: input, shape index: {}]
  %s3 = inlined_call_operand.vmem [shape: bf16[128,128], index: 3, kind: output, shape index: {}]
  %s4 = sld [smem:[#allocation0]]
  $region94: #{db_forward.9} parent=0
    _
  %s6 = ssub.s32 1, %s4
  %s7 = scalar_select 0, %s6, %s4
  $region1: #{db_forward.9} parent=0
    #allocation3 [shape = 'u8[65536]{0}', space=vmem, size = 0x10000, scoped, tag = 'input window, operand 0']
    loop: start=0, step=1, limit=5
    $region2: #{db_forward.9} parent=1 // loop_pre_header
      _
    $region3: #{db_forward.9} parent=1 // loop_header
      %s9 = sphi 0, %s13
      %p10 = scmp.ge.s32.totalorder %s9, 5
      %s16 = sphi 0, %s35
      %s17 = sphi 0, %s31
      %s18 = sphi 0, %s27
      %s19 = sphi 0, %s16
      %s20 = sphi 0, %s17
      %s21 = sphi 0, %s18
      %s22 = sphi 0, %s19
      %s23 = sphi 0, %s20
      %s24 = sphi 0, %s21
      %s40 = sphi 0, %s42
      %s43 = sphi 0, %s40
      %s44 = sphi 0, %s43
      %s60 = sphi 0, %s44
      %s68 = sphi 0, %s70
      %s71 = sphi 0, %s68
      %s72 = sphi 0, %s71
      %s88 = sphi 0, %s72
      %s94 = sphi 0, %s96
      %s97 = sphi 0, %s94
      %s98 = sphi 0, %s97
      %s114 = sphi 0, %s98
      %s122 = sphi 0, %s124
      %s125 = sphi 0, %s122
      %s126 = sphi 0, %s125
      %s142 = sphi 0, %s126
    $region4: #{db_forward.9} parent=1 // loop_header_branch
      %12 = sbr.rel (%p10) target = $region8
    $region5: #{db_forward.9} parent=1 // loop_body
      %s14 = ssub.s32 %s9, 1
      %s15 = ssub.s32 %s9, 2
      %s25 = sadd.s32 1, %s18
      %p26 = scmp.ge.s32.totalorder %s25, 3
      %s27 = scalar_select %p26, 0, %s25
      %s28 = sadd.s32 1, %s17
      %s29 = scalar_select %p26, %s28, %s17
      %p30 = scmp.ge.s32.totalorder %s29, 1
      %s31 = scalar_select %p30, 0, %s29
      %s32 = sadd.s32 1, %s16
      %s33 = scalar_select %p30, %s32, %s16
      %p34 = scmp.ge.s32.totalorder %s33, 1
      %s35 = scalar_select %p34, 0, %s33
      %s36 = ssub.s32 %s16, %s35
      %s37 = ssub.s32 %s18, %s27
      %s38 = sor.u32 %s36, %s37
      %p39 = scmp.eq.s32.totalorder %s38, 0
      %s41 = sadd.s32 %s40, 1
      %s42 = scalar_select %p39, %s40, %s41
      %p45 = pneg %p39
      %p46 = scmp.eq.s32.totalorder %s9, 2
      %p47 = por %p45, %p46
      %p48 = scmp.ne.s32.totalorder %s40, %s43
      %p49 = scmp.eq.s32.totalorder %s9, 0
      %p50 = por %p48, %p49
      %p51 = scmp.ne.s32.totalorder %s40, %s43
      %p52 = scmp.eq.s32.totalorder %s14, 2
      %p53 = por %p51, %p52
      %p54 = scmp.ne.s32.totalorder %s43, %s44
      %p55 = scmp.eq.s32.totalorder %s14, 0
      %p56 = por %p54, %p55
      %p57 = scmp.ne.s32.totalorder %s43, %s44
      %p58 = scmp.eq.s32.totalorder %s15, 2
      %p59 = por %p57, %p58
      %p61 = scmp.ne.s32.totalorder %s44, %s60
      %p62 = scmp.eq.s32.totalorder %s15, 0
      %p63 = por %p61, %p62
      %s64 = ssub.s32 %s18, %s27
      %s65 = ssub.s32 %s17, %s31
      %s66 = sor.u32 %s64, %s65
      %p67 = scmp.eq.s32.totalorder %s66, 0
      %s69 = sadd.s32 %s68, 1
      %s70 = scalar_select %p67, %s68, %s69
      %p73 = pneg %p67
      %p74 = scmp.eq.s32.totalorder %s9, 2
      %p75 = por %p73, %p74
      %p76 = scmp.ne.s32.totalorder %s68, %s71
      %p77 = scmp.eq.s32.totalorder %s9, 0
      %p78 = por %p76, %p77
      %p79 = scmp.ne.s32.totalorder %s68, %s71
      %p80 = scmp.eq.s32.totalorder %s14, 2
      %p81 = por %p79, %p80
      %p82 = scmp.ne.s32.totalorder %s71, %s72
      %p83 = scmp.eq.s32.totalorder %s14, 0
      %p84 = por %p82, %p83
      %p85 = scmp.ne.s32.totalorder %s71, %s72
      %p86 = scmp.eq.s32.totalorder %s15, 2
      %p87 = por %p85, %p86
      %p89 = scmp.ne.s32.totalorder %s72, %s88
      %p90 = scmp.eq.s32.totalorder %s15, 0
      %p91 = por %p89, %p90
      %s92 = ssub.s32 %s17, %s31
      %p93 = scmp.eq.s32.totalorder %s92, 0
      %s95 = sadd.s32 %s94, 1
      %s96 = scalar_select %p93, %s94, %s95
      %p99 = pneg %p93
      %p100 = scmp.eq.s32.totalorder %s9, 2
      %p101 = por %p99, %p100
      %p102 = scmp.ne.s32.totalorder %s94, %s97
      %p103 = scmp.eq.s32.totalorder %s9, 0
      %p104 = por %p102, %p103
      %p105 = scmp.ne.s32.totalorder %s94, %s97
      %p106 = scmp.eq.s32.totalorder %s14, 2
      %p107 = por %p105, %p106
      %p108 = scmp.ne.s32.totalorder %s97, %s98
      %p109 = scmp.eq.s32.totalorder %s14, 0
      %p110 = por %p108, %p109
      %p111 = scmp.ne.s32.totalorder %s97, %s98
      %p112 = scmp.eq.s32.totalorder %s15, 2
      %p113 = por %p111, %p112
      %p115 = scmp.ne.s32.totalorder %s98, %s114
      %p116 = scmp.eq.s32.totalorder %s15, 0
      %p117 = por %p115, %p116
      %s118 = ssub.s32 %s16, %s35
      %s119 = ssub.s32 %s17, %s31
      %s120 = sor.u32 %s118, %s119
      %p121 = scmp.eq.s32.totalorder %s120, 0
      %s123 = sadd.s32 %s122, 1
      %s124 = scalar_select %p121, %s122, %s123
      %p127 = pneg %p121
      %p128 = scmp.eq.s32.totalorder %s9, 2
      %p129 = por %p127, %p128
      %p130 = scmp.ne.s32.totalorder %s122, %s125
      %p131 = scmp.eq.s32.totalorder %s9, 0
      %p132 = por %p130, %p131
      %p133 = scmp.ne.s32.totalorder %s122, %s125
      %p134 = scmp.eq.s32.totalorder %s14, 2
      %p135 = por %p133, %p134
      %p136 = scmp.ne.s32.totalorder %s125, %s126
      %p137 = scmp.eq.s32.totalorder %s14, 0
      %p138 = por %p136, %p137
      %p139 = scmp.ne.s32.totalorder %s125, %s126
      %p140 = scmp.eq.s32.totalorder %s15, 2
      %p141 = por %p139, %p140
      %p143 = scmp.ne.s32.totalorder %s126, %s142
      %p144 = scmp.eq.s32.totalorder %s15, 0
      %p145 = por %p143, %p144
      %p146 = scmp.le.s32.totalorder 1, %s9
      %p147 = scmp.lt.s32.totalorder %s9, 4
      %p148 = pnand %p146, %p147
      %p149 = pneg %p148
      // Predicated region
      $region9: #{db_forward.9} parent=5 // pred_check
        _
      $region10: #{db_forward.9} parent=5 // pred_check_branch
        %151 = sbr.rel (%p148) target = $region12
      $region11: #{db_forward.9} parent=5 // pred_region
        %s152 = ssub.s32 %s9, 1
        // Predicated region
        $region13: #{db_forward.9} parent=11 // pred_check
          %p153 = pneg %p110
        $region14: #{db_forward.9} parent=11 // pred_check_branch
          %155 = sbr.rel (%p153) target = $region16
        $region15: #{db_forward.9} parent=11 // pred_region
          %p156 = scmp.lt.s32.totalorder %s20, 0
          %s157 = scalar_select %p156, %s20, 0
          %s158 = smul.addr %s157, 2
          %s159 = scalar_lea.vmem %s2, %s158
        $region16: #{db_forward.9} parent=11 // pred_fallthru
          _
      $region12: #{db_forward.9} parent=5 // pred_fallthru
        _
      %p160 = scmp.lt.s32.totalorder %s9, 3
      // Predicated region
      $region17: #{db_forward.9} parent=5 // pred_check
        %p161 = pneg %p160
      $region18: #{db_forward.9} parent=5 // pred_check_branch
        %163 = sbr.rel (%p161) target = $region20
      $region19: #{db_forward.9} parent=5 // pred_region
        // Predicated region
        $region21: #{db_forward.9} parent=19 // pred_check
          %p164 = pneg %p50
        $region22: #{db_forward.9} parent=19 // pred_check_branch
          %166 = sbr.rel (%p164) target = $region24
        $region23: #{db_forward.9} parent=19 // pred_region
          %s167 = sand.u32 %s40, 1
          %s168 = sand.u32 %s40, 1
          %s169 = smul.addr %s168, 64
          %s170 = scalar_lea.vmem [#allocation3], %s169
          %s171 = smul.u32 16, %s16
          %s172 = smul.addr %s171, 3
          %s173 = sadd.s32 %s18, %s172
          %s174 = smul.addr %s173, 4
          %s175 = scalar_lea.vmem %s0, %s174
          // Predicated region
          $region25: #{db_forward.9} parent=23 // pred_check
            _
          $region26: #{db_forward.9} parent=23 // pred_check_branch
            %177 = sbr.rel (0) target = $region28
          $region27: #{db_forward.9} parent=23 // pred_region
            // Predicated region
            $region29: #{db_forward.9} parent=27 // pred_check
              _
            $region30: #{db_forward.9} parent=27 // pred_check_branch
              %179 = sbr.rel target = $region32
            $region31: #{db_forward.9} parent=27 // pred_region
              // Predicated region
              $region44: #{db_forward.9} parent=31 // pred_check
                _
              $region45: #{db_forward.9} parent=31 // pred_check_branch
                %225 = sbr.rel (0) target = $region47
              $region46: #{db_forward.9} parent=31 // pred_region
                loop: start=0, step=1, limit=1
                $region48: #{db_forward.9} parent=46 // loop_pre_header
                  _
                $region49: #{db_forward.9} parent=46 // loop_header
                  %s227 = sphi 0, %s231
                  %p228 = scmp.ge.s32.totalorder %s227, 1
                  %s232 = sphi %s175, %s175
                  %s233 = sphi %s170, %s170
                $region50: #{db_forward.9} parent=46 // loop_header_branch
                  %230 = sbr.rel (%p228) target = $region54
                $region51: #{db_forward.9} parent=46 // loop_body
                  _
                $region52: #{db_forward.9} parent=46 // loop_footer
                  %s231 = sadd.s32 1, %s227
                $region53: #{db_forward.9} parent=46 // loop_footer_branch
                  %226 = sbr.rel target = $region49
                $region54: #{db_forward.9} parent=46 // loop_exit
                  _
                %s235 = ssub.s32 16, 1
                loop: start=0, step=1, limit=1
                $region55: #{db_forward.9} parent=46 // loop_pre_header
                  _
                $region56: #{db_forward.9} parent=46 // loop_header
                  %s237 = sphi 0, %s241
                  %p238 = scmp.ge.s32.totalorder %s237, 1
                  %s242 = sphi %s175, %s175
                  %s243 = sphi %s170, %s170
                $region57: #{db_forward.9} parent=46 // loop_header_branch
                  %240 = sbr.rel (%p238) target = $region61
                $region58: #{db_forward.9} parent=46 // loop_body
                  %v244 = vld [vmem:[%s242] sm:%s235]
                  %245 = vst [vmem:[%s243] sm:%s235] %v244
                  %v246 = vld [vmem:[%s242 + $0xc] sm:%s235]
                  %247 = vst [vmem:[%s243 + $0x4] sm:%s235] %v246
                  %v248 = vld [vmem:[%s242 + $0x18] sm:%s235]
                  %249 = vst [vmem:[%s243 + $0x8] sm:%s235] %v248
                  %v250 = vld [vmem:[%s242 + $0x24] sm:%s235]
                  %251 = vst [vmem:[%s243 + $0xc] sm:%s235] %v250
                  %v252 = vld [vmem:[%s242 + $0x30] sm:%s235]
                  %253 = vst [vmem:[%s243 + $0x10] sm:%s235] %v252
                  %v254 = vld [vmem:[%s242 + $0x3c] sm:%s235]
                  %255 = vst [vmem:[%s243 + $0x14] sm:%s235] %v254
                  %v256 = vld [vmem:[%s242 + $0x48] sm:%s235]
                  %257 = vst [vmem:[%s243 + $0x18] sm:%s235] %v256
                  %v258 = vld [vmem:[%s242 + $0x54] sm:%s235]
                  %259 = vst [vmem:[%s243 + $0x1c] sm:%s235] %v258
                  %v260 = vld [vmem:[%s242 + $0x60] sm:%s235]
                  %261 = vst [vmem:[%s243 + $0x20] sm:%s235] %v260
                  %v262 = vld [vmem:[%s242 + $0x6c] sm:%s235]
                  %263 = vst [vmem:[%s243 + $0x24] sm:%s235] %v262
                  %v264 = vld [vmem:[%s242 + $0x78] sm:%s235]
                  %265 = vst [vmem:[%s243 + $0x28] sm:%s235] %v264
                  %v266 = vld [vmem:[%s242 + $0x84] sm:%s235]
                  %267 = vst [vmem:[%s243 + $0x2c] sm:%s235] %v266
                  %v268 = vld [vmem:[%s242 + $0x90] sm:%s235]
                  %269 = vst [vmem:[%s243 + $0x30] sm:%s235] %v268
                  %v270 = vld [vmem:[%s242 + $0x9c] sm:%s235]
                  %271 = vst [vmem:[%s243 + $0x34] sm:%s235] %v270
                  %v272 = vld [vmem:[%s242 + $0xa8] sm:%s235]
                  %273 = vst [vmem:[%s243 + $0x38] sm:%s235] %v272
                  %v274 = vld [vmem:[%s242 + $0xb4] sm:%s235]
                  %275 = vst [vmem:[%s243 + $0x3c] sm:%s235] %v274
                $region59: #{db_forward.9} parent=46 // loop_footer
                  %s241 = sadd.s32 1, %s237
                $region60: #{db_forward.9} parent=46 // loop_footer_branch
                  %236 = sbr.rel target = $region56
                $region61: #{db_forward.9} parent=46 // loop_exit
                  _
              $region47: #{db_forward.9} parent=31 // pred_fallthru
                _
            $region32: #{db_forward.9} parent=27 // pred_fallthru
              _
            // Predicated region
            $region33: #{db_forward.9} parent=27 // pred_check
              _
            $region34: #{db_forward.9} parent=27 // pred_check_branch
              %181 = sbr.rel (0) target = $region36
            $region35: #{db_forward.9} parent=27 // pred_region
              %s183 = ssub.s32 16, 1
              loop: start=0, step=1, limit=1
              $region37: #{db_forward.9} parent=35 // loop_pre_header
                _
              $region38: #{db_forward.9} parent=35 // loop_header
                %s185 = sphi 0, %s189
                %p186 = scmp.ge.s32.totalorder %s185, 1
                %s190 = sphi %s175, %s175
                %s191 = sphi %s170, %s170
              $region39: #{db_forward.9} parent=35 // loop_header_branch
                %188 = sbr.rel (%p186) target = $region43
              $region40: #{db_forward.9} parent=35 // loop_body
                %v192 = vld [vmem:[%s190] sm:%s183]
                %193 = vst [vmem:[%s191] sm:%s183] %v192
                %v194 = vld [vmem:[%s190 + $0xc] sm:%s183]
                %195 = vst [vmem:[%s191 + $0x4] sm:%s183] %v194
                %v196 = vld [vmem:[%s190 + $0x18] sm:%s183]
                %197 = vst [vmem:[%s191 + $0x8] sm:%s183] %v196
                %v198 = vld [vmem:[%s190 + $0x24] sm:%s183]
                %199 = vst [vmem:[%s191 + $0xc] sm:%s183] %v198
                %v200 = vld [vmem:[%s190 + $0x30] sm:%s183]
                %201 = vst [vmem:[%s191 + $0x10] sm:%s183] %v200
                %v202 = vld [vmem:[%s190 + $0x3c] sm:%s183]
                %203 = vst [vmem:[%s191 + $0x14] sm:%s183] %v202
                %v204 = vld [vmem:[%s190 + $0x48] sm:%s183]
                %205 = vst [vmem:[%s191 + $0x18] sm:%s183] %v204
                %v206 = vld [vmem:[%s190 + $0x54] sm:%s183]
                %207 = vst [vmem:[%s191 + $0x1c] sm:%s183] %v206
                %v208 = vld [vmem:[%s190 + $0x60] sm:%s183]
                %209 = vst [vmem:[%s191 + $0x20] sm:%s183] %v208
                %v210 = vld [vmem:[%s190 + $0x6c] sm:%s183]
                %211 = vst [vmem:[%s191 + $0x24] sm:%s183] %v210
                %v212 = vld [vmem:[%s190 + $0x78] sm:%s183]
                %213 = vst [vmem:[%s191 + $0x28] sm:%s183] %v212
                %v214 = vld [vmem:[%s190 + $0x84] sm:%s183]
                %215 = vst [vmem:[%s191 + $0x2c] sm:%s183] %v214
                %v216 = vld [vmem:[%s190 + $0x90] sm:%s183]
                %217 = vst [vmem:[%s191 + $0x30] sm:%s183] %v216
                %v218 = vld [vmem:[%s190 + $0x9c] sm:%s183]
                %219 = vst [vmem:[%s191 + $0x34] sm:%s183] %v218
                %v220 = vld [vmem:[%s190 + $0xa8] sm:%s183]
                %221 = vst [vmem:[%s191 + $0x38] sm:%s183] %v220
                %v222 = vld [vmem:[%s190 + $0xb4] sm:%s183]
                %223 = vst [vmem:[%s191 + $0x3c] sm:%s183] %v222
              $region41: #{db_forward.9} parent=35 // loop_footer
                %s189 = sadd.s32 1, %s185
              $region42: #{db_forward.9} parent=35 // loop_footer_branch
                %184 = sbr.rel target = $region38
              $region43: #{db_forward.9} parent=35 // loop_exit
                _
            $region36: #{db_forward.9} parent=27 // pred_fallthru
              _
          $region28: #{db_forward.9} parent=23 // pred_fallthru
            _
          %276 = vnop
        $region24: #{db_forward.9} parent=19 // pred_fallthru
          _
        // Predicated region
        $region62: #{db_forward.9} parent=19 // pred_check
          %p277 = pneg %p78
        $region63: #{db_forward.9} parent=19 // pred_check_branch
          %279 = sbr.rel (%p277) target = $region65
        $region64: #{db_forward.9} parent=19 // pred_region
          %s280 = smul.u32 16, %s18
          %p281 = scmp.lt.s32.totalorder %s280, 47
          %s282 = scalar_select %p281, %s280, 47
          %p283 = scmp.lt.s32.totalorder %s17, 0
          %s284 = scalar_select %p283, %s17, 0
          %s285 = sadd.s32 %s284, %s282
          %s286 = smul.addr %s285, 4
          %s287 = scalar_lea.vmem %s1, %s286
          %s288 = smul.u32 16, %s18
        $region65: #{db_forward.9} parent=19 // pred_fallthru
          _
      $region20: #{db_forward.9} parent=5 // pred_fallthru
        _
      %p289 = scmp.le.s32.totalorder 1, %s9
      %p290 = scmp.lt.s32.totalorder %s9, 4
      %p291 = pnand %p289, %p290
      %p292 = pneg %p291
      // Predicated region
      $region66: #{db_forward.9} parent=5 // pred_check
        _
      $region67: #{db_forward.9} parent=5 // pred_check_branch
        %294 = sbr.rel (%p291) target = $region69
      $region68: #{db_forward.9} parent=5 // pred_region
        %s295 = ssub.s32 %s9, 1
        %s296 = sand.u32 %s43, 1
        %s297 = sand.u32 %s43, 1
        %s298 = smul.addr %s297, 64
        %s299 = scalar_lea.vmem [#allocation3], %s298
        // Predicated region
        $region70: #{db_forward.9} parent=68 // pred_check
          %p300 = pneg %p56
        $region71: #{db_forward.9} parent=68 // pred_check_branch
          %302 = sbr.rel (%p300) target = $region73
        $region72: #{db_forward.9} parent=68 // pred_region
          _
        $region73: #{db_forward.9} parent=68 // pred_fallthru
          _
        %s303 = sand.u32 %s43, 1
        %s304 = sand.u32 %s43, 1
        %s305 = smul.addr %s304, 64
        %s306 = scalar_lea.vmem [#allocation3], %s305
        %p307 = pneg %p56
        %p308 = pneg %p53
        %s309 = smul.u32 16, %s21
        %p310 = scmp.lt.s32.totalorder %s309, 47
        %s311 = scalar_select %p310, %s309, 47
        %p312 = scmp.lt.s32.totalorder %s20, 0
        %s313 = scalar_select %p312, %s20, 0
        %s314 = sadd.s32 %s313, %s311
        %s315 = smul.addr %s314, 4
        %s316 = scalar_lea.vmem %s1, %s315
        %p317 = pneg %p84
        %p318 = pneg %p81
        %p319 = scmp.lt.s32.totalorder %s20, 0
        %s320 = scalar_select %p319, %s20, 0
        %s321 = smul.addr %s320, 2
        %s322 = scalar_lea.vmem %s2, %s321
        %p323 = pneg %p110
        %p324 = pneg %p107
        %p325 = pneg %p138
        %p326 = pneg %p135
        %s327 = smul.u32 16, %s19
        %p328 = scmp.lt.s32.totalorder %s327, 15
        %s329 = scalar_select %p328, %s327, 15
        %p330 = scmp.lt.s32.totalorder %s20, 0
        %s331 = scalar_select %p330, %s20, 0
        %s332 = sadd.s32 %s331, %s329
        %s333 = smul.addr %s332, 4
        %s334 = scalar_lea.vmem %s3, %s333
        %s335 = smul.u32 16, %s19
        %s336 = smul.u32 16, %s21
        %p337 = scmp.lt.s32.totalorder %s336, 47
        %s338 = scalar_select %p337, %s336, 47
        %p339 = scmp.lt.s32.totalorder %s20, 0
        %s340 = scalar_select %p339, %s20, 0
        %s341 = sadd.s32 %s340, %s338
        %s342 = smul.addr %s341, 4
        %s343 = scalar_lea.vmem %s1, %s342
        %s344 = smul.u32 16, %s21
        %p345 = scmp.lt.s32.totalorder %s20, 0
        %s346 = scalar_select %p345, %s20, 0
        %s347 = smul.addr %s346, 2
        %s348 = scalar_lea.vmem %s2, %s347
        %s349 = smul.u32 16, %s19
        %p350 = scmp.lt.s32.totalorder %s349, 15
        %s351 = scalar_select %p350, %s349, 15
        %p352 = scmp.lt.s32.totalorder %s20, 0
        %s353 = scalar_select %p352, %s20, 0
        %s354 = sadd.s32 %s353, %s351
        %s355 = smul.addr %s354, 4
        %s356 = scalar_lea.vmem %s3, %s355
        %s357 = smul.u32 16, %s19
        %p359 = scmp.eq.s32.totalorder %s21, 0
        // Predicated region
        $region74: #{db_forward.9} parent=68 // pred_check
          %p360 = pneg %p359
        $region75: #{db_forward.9} parent=68 // pred_check_branch
          %362 = sbr.rel (%p360) target = $region77
        $region76: #{db_forward.9} parent=68 // pred_region
          %363 = vst [vmem:[#allocation2] sm:$0xff] 0.0
          %364 = vst [vmem:[#allocation2 + $0x8] sm:$0xff] 0.0
          %365 = vst [vmem:[#allocation2 + $0x10] sm:$0xff] 0.0
          %366 = vst [vmem:[#allocation2 + $0x18] sm:$0xff] 0.0
          %367 = vst [vmem:[#allocation2 + $0x20] sm:$0xff] 0.0
          %368 = vst [vmem:[#allocation2 + $0x28] sm:$0xff] 0.0
          %369 = vst [vmem:[#allocation2 + $0x30] sm:$0xff] 0.0
          %370 = vst [vmem:[#allocation2 + $0x38] sm:$0xff] 0.0
          %371 = vst [vmem:[#allocation2 + $0x40] sm:$0xff] 0.0
          %372 = vst [vmem:[#allocation2 + $0x48] sm:$0xff] 0.0
          %373 = vst [vmem:[#allocation2 + $0x50] sm:$0xff] 0.0
          %374 = vst [vmem:[#allocation2 + $0x58] sm:$0xff] 0.0
          %375 = vst [vmem:[#allocation2 + $0x60] sm:$0xff] 0.0
          %376 = vst [vmem:[#allocation2 + $0x68] sm:$0xff] 0.0
          %377 = vst [vmem:[#allocation2 + $0x70] sm:$0xff] 0.0
          %378 = vst [vmem:[#allocation2 + $0x78] sm:$0xff] 0.0
        $region77: #{db_forward.9} parent=68 // pred_fallthru
          _
        %v379 = vld [vmem:[#allocation2] sm:$0xff]
        %v380 = vld [vmem:[#allocation2 + $0x8] sm:$0xff]
        %v381 = vld [vmem:[#allocation2 + $0x10] sm:$0xff]
        %v382 = vld [vmem:[#allocation2 + $0x18] sm:$0xff]
        %v383 = vld [vmem:[#allocation2 + $0x20] sm:$0xff]
        %v384 = vld [vmem:[#allocation2 + $0x28] sm:$0xff]
        %v385 = vld [vmem:[#allocation2 + $0x30] sm:$0xff]
        %v386 = vld [vmem:[#allocation2 + $0x38] sm:$0xff]
        %v387 = vld [vmem:[#allocation2 + $0x40] sm:$0xff]
        %v388 = vld [vmem:[#allocation2 + $0x48] sm:$0xff]
        %v389 = vld [vmem:[#allocation2 + $0x50] sm:$0xff]
        %v390 = vld [vmem:[#allocation2 + $0x58] sm:$0xff]
        %v391 = vld [vmem:[#allocation2 + $0x60] sm:$0xff]
        %v392 = vld [vmem:[#allocation2 + $0x68] sm:$0xff]
        %v393 = vld [vmem:[#allocation2 + $0x70] sm:$0xff]
        %v394 = vld [vmem:[#allocation2 + $0x78] sm:$0xff]
        %v395 = vld [vmem:[%s299] sm:$0xf]
        %v396 = vld [vmem:[%s299 + $0x4] sm:$0xf]
        %v397 = vld [vmem:[%s299 + $0x8] sm:$0xf]
        %v398 = vld [vmem:[%s299 + $0xc] sm:$0xf]
        %v399 = vld [vmem:[%s299 + $0x10] sm:$0xf]
        %v400 = vld [vmem:[%s299 + $0x14] sm:$0xf]
        %v401 = vld [vmem:[%s299 + $0x18] sm:$0xf]
        %v402 = vld [vmem:[%s299 + $0x1c] sm:$0xf]
        %v403 = vld [vmem:[%s299 + $0x20] sm:$0xf]
        %v404 = vld [vmem:[%s299 + $0x24] sm:$0xf]
        %v405 = vld [vmem:[%s299 + $0x28] sm:$0xf]
        %v406 = vld [vmem:[%s299 + $0x2c] sm:$0xf]
        %v407 = vld [vmem:[%s299 + $0x30] sm:$0xf]
        %v408 = vld [vmem:[%s299 + $0x34] sm:$0xf]
        %v409 = vld [vmem:[%s299 + $0x38] sm:$0xf]
        %v410 = vld [vmem:[%s299 + $0x3c] sm:$0xf]
        %v411 = vld [vmem:[%s343] sm:$0xf]
        %v412 = vld [vmem:[%s343 + $0x4] sm:$0xf]
        %v413 = vld [vmem:[%s343 + $0x8] sm:$0xf]
        %v414 = vld [vmem:[%s343 + $0xc] sm:$0xf]
        %v415 = vld [vmem:[%s343 + $0x10] sm:$0xf]
        %v416 = vld [vmem:[%s343 + $0x14] sm:$0xf]
        %v417 = vld [vmem:[%s343 + $0x18] sm:$0xf]
        %v418 = vld [vmem:[%s343 + $0x1c] sm:$0xf]
        %v419 = vld [vmem:[%s343 + $0x20] sm:$0xf]
        %v420 = vld [vmem:[%s343 + $0x24] sm:$0xf]
        %v421 = vld [vmem:[%s343 + $0x28] sm:$0xf]
        %v422 = vld [vmem:[%s343 + $0x2c] sm:$0xf]
        %v423 = vld [vmem:[%s343 + $0x30] sm:$0xf]
        %v424 = vld [vmem:[%s343 + $0x34] sm:$0xf]
        %v425 = vld [vmem:[%s343 + $0x38] sm:$0xf]
        %v426 = vld [vmem:[%s343 + $0x3c] sm:$0xf]
        %v443 = vunpack.c.l.b16 %v395
        %v444 = vunpack.c.l.b16 %v396
        %v445 = vunpack.c.l.b16 %v397
        %v446 = vunpack.c.l.b16 %v398
        %v447 = vunpack.c.l.b16 %v399
        %v448 = vunpack.c.l.b16 %v400
        %v449 = vunpack.c.l.b16 %v401
        %v450 = vunpack.c.l.b16 %v402
        %v451 = vunpack.c.l.b16 %v403
        %v452 = vunpack.c.l.b16 %v404
        %v453 = vunpack.c.l.b16 %v405
        %v454 = vunpack.c.l.b16 %v406
        %v455 = vunpack.c.l.b16 %v407
        %v456 = vunpack.c.l.b16 %v408
        %v457 = vunpack.c.l.b16 %v409
        %v458 = vunpack.c.l.b16 %v410
        %v459 = vpack.c.b16 %v444, %v443
        %v460 = vpack.c.b16 %v446, %v445
        %v461 = vpack.c.b16 %v448, %v447
        %v462 = vpack.c.b16 %v450, %v449
        %v463 = vpack.c.b16 %v452, %v451
        %v464 = vpack.c.b16 %v454, %v453
        %v465 = vpack.c.b16 %v456, %v455
        %v466 = vpack.c.b16 %v458, %v457
        %v491 = vunpack.c.l.b16 %v411
        %v492 = vunpack.c.l.b16 %v412
        %v493 = vunpack.c.l.b16 %v413
        %v494 = vunpack.c.l.b16 %v414
        %v495 = vunpack.c.l.b16 %v415
        %v496 = vunpack.c.l.b16 %v416
        %v497 = vunpack.c.l.b16 %v417
        %v498 = vunpack.c.l.b16 %v418
        %v499 = vunpack.c.l.b16 %v419
        %v500 = vunpack.c.l.b16 %v420
        %v501 = vunpack.c.l.b16 %v421
        %v502 = vunpack.c.l.b16 %v422
        %v503 = vunpack.c.l.b16 %v423
        %v504 = vunpack.c.l.b16 %v424
        %v505 = vunpack.c.l.b16 %v425
        %v506 = vunpack.c.l.b16 %v426
        %v507 = vpack.c.b16 %v492, %v491
        %v508 = vpack.c.b16 %v494, %v493
        %v509 = vpack.c.b16 %v496, %v495
        %v510 = vpack.c.b16 %v498, %v497
        %v511 = vpack.c.b16 %v500, %v499
        %v512 = vpack.c.b16 %v502, %v501
        %v513 = vpack.c.b16 %v504, %v503
        %v514 = vpack.c.b16 %v506, %v505
        %523 = vmatprep.subr.bf16.mxu0 0
        %524 = vmatpush1.bf16.msra.mxu0 %v514
        %525 = vmatprep.subr.bf16.mxu0 0
        %526 = vmatpush1.bf16.msra.mxu0 %v513
        %527 = vmatprep.subr.bf16.mxu0 0
        %528 = vmatpush1.bf16.msra.mxu0 %v512
        %529 = vmatprep.subr.bf16.mxu0 0
        %530 = vmatpush1.bf16.msra.mxu0 %v511
        %531 = vmatprep.subr.bf16.mxu0 0
        %532 = vmatpush1.bf16.msra.mxu0 %v510
        %533 = vmatprep.subr.bf16.mxu0 0
        %534 = vmatpush1.bf16.msra.mxu0 %v509
        %535 = vmatprep.subr.bf16.mxu0 0
        %536 = vmatpush1.bf16.msra.mxu0 %v508
        %537 = vmatprep.subr.bf16.mxu0 0
        %538 = vmatpush1.bf16.msra.mxu0 %v507
        %539 = vmatprep.subr.bf16.mxu0 0
        %540 = vmatpush2.bf16.msra.mxu0 0
        %541 = vmatprep.subr.bf16.mxu0 0
        %542 = vmatpush2.bf16.msra.mxu0 0
        %543 = vmatprep.subr.bf16.mxu0 0
        %544 = vmatpush2.bf16.msra.mxu0 0
        %545 = vmatprep.subr.bf16.mxu0 0
        %546 = vmatpush2.bf16.msra.mxu0 0
        %547 = vmatprep.subr.bf16.mxu0 0
        %548 = vmatpush2.bf16.msra.mxu0 0
        %549 = vmatprep.subr.bf16.mxu0 0
        %550 = vmatpush2.bf16.msra.mxu0 0
        %551 = vmatprep.subr.bf16.mxu0 0
        %552 = vmatpush2.bf16.msra.mxu0 0
        %553 = vmatprep.subr.bf16.mxu0 0
        %554 = vmatpush2.bf16.msra.mxu0 0
        %555 = vmatprep.mubr.bf16.mxu0 0
        %556 = vmatmul.mubr.bf16.gmra.mxu0 %v459
        %v557 = vpop.f32.mrf.mxu0
        %v558 = vadd.f32 0.0, %v557
        %v559 = vpop.f32.mrf.mxu0
        %v560 = vpop.f32.mrf.mxu0
        %v561 = vadd.f32 0.0, %v560
        %v562 = vpop.f32.mrf.mxu0
        %563 = vmatprep.mubr.bf16.mxu0 0
        %564 = vmatmul.mubr.bf16.gmra.mxu0 %v460
        %v565 = vpop.f32.mrf.mxu0
        %v566 = vadd.f32 0.0, %v565
        %v567 = vpop.f32.mrf.mxu0
        %v568 = vpop.f32.mrf.mxu0
        %v569 = vadd.f32 0.0, %v568
        %v570 = vpop.f32.mrf.mxu0
        %571 = vmatprep.mubr.bf16.mxu0 0
        %572 = vmatmul.mubr.bf16.gmra.mxu0 %v461
        %v573 = vpop.f32.mrf.mxu0
        %v574 = vadd.f32 0.0, %v573
        %v575 = vpop.f32.mrf.mxu0
        %v576 = vpop.f32.mrf.mxu0
        %v577 = vadd.f32 0.0, %v576
        %v578 = vpop.f32.mrf.mxu0
        %579 = vmatprep.mubr.bf16.mxu0 0
        %580 = vmatmul.mubr.bf16.gmra.mxu0 %v462
        %v581 = vpop.f32.mrf.mxu0
        %v582 = vadd.f32 0.0, %v581
        %v583 = vpop.f32.mrf.mxu0
        %v584 = vpop.f32.mrf.mxu0
        %v585 = vadd.f32 0.0, %v584
        %v586 = vpop.f32.mrf.mxu0
        %587 = vmatprep.mubr.bf16.mxu0 0
        %588 = vmatmul.mubr.bf16.gmra.mxu0 %v463
        %v589 = vpop.f32.mrf.mxu0
        %v590 = vadd.f32 0.0, %v589
        %v591 = vpop.f32.mrf.mxu0
        %v592 = vpop.f32.mrf.mxu0
        %v593 = vadd.f32 0.0, %v592
        %v594 = vpop.f32.mrf.mxu0
        %595 = vmatprep.mubr.bf16.mxu0 0
        %596 = vmatmul.mubr.bf16.gmra.mxu0 %v464
        %v597 = vpop.f32.mrf.mxu0
        %v598 = vadd.f32 0.0, %v597
        %v599 = vpop.f32.mrf.mxu0
        %v600 = vpop.f32.mrf.mxu0
        %v601 = vadd.f32 0.0, %v600
        %v602 = vpop.f32.mrf.mxu0
        %603 = vmatprep.mubr.bf16.mxu0 0
        %604 = vmatmul.mubr.bf16.gmra.mxu0 %v465
        %v605 = vpop.f32.mrf.mxu0
        %v606 = vadd.f32 0.0, %v605
        %v607 = vpop.f32.mrf.mxu0
        %v608 = vpop.f32.mrf.mxu0
        %v609 = vadd.f32 0.0, %v608
        %v610 = vpop.f32.mrf.mxu0
        %611 = vmatprep.mubr.bf16.mxu0 0
        %612 = vmatmul.mubr.bf16.gmra.mxu0 %v466
        %v613 = vpop.f32.mrf.mxu0
        %v614 = vadd.f32 0.0, %v613
        %v615 = vpop.f32.mrf.mxu0
        %v616 = vpop.f32.mrf.mxu0
        %v617 = vadd.f32 0.0, %v616
        %v618 = vpop.f32.mrf.mxu0
        %619 = vdwg.mxu0
        %v620 = vadd.f32 %v379, %v558
        %v621 = vadd.f32 %v380, %v561
        %v622 = vadd.f32 %v381, %v566
        %v623 = vadd.f32 %v382, %v569
        %v624 = vadd.f32 %v383, %v574
        %v625 = vadd.f32 %v384, %v577
        %v626 = vadd.f32 %v385, %v582
        %v627 = vadd.f32 %v386, %v585
        %v628 = vadd.f32 %v387, %v590
        %v629 = vadd.f32 %v388, %v593
        %v630 = vadd.f32 %v389, %v598
        %v631 = vadd.f32 %v390, %v601
        %v632 = vadd.f32 %v391, %v606
        %v633 = vadd.f32 %v392, %v609
        %v634 = vadd.f32 %v393, %v614
        %v635 = vadd.f32 %v394, %v617
        %636 = vst [vmem:[#allocation2] sm:$0xff] %v620
        %637 = vst [vmem:[#allocation2 + $0x8] sm:$0xff] %v621
        %638 = vst [vmem:[#allocation2 + $0x10] sm:$0xff] %v622
        %639 = vst [vmem:[#allocation2 + $0x18] sm:$0xff] %v623
        %640 = vst [vmem:[#allocation2 + $0x20] sm:$0xff] %v624
        %641 = vst [vmem:[#allocation2 + $0x28] sm:$0xff] %v625
        %642 = vst [vmem:[#allocation2 + $0x30] sm:$0xff] %v626
        %643 = vst [vmem:[#allocation2 + $0x38] sm:$0xff] %v627
        %644 = vst [vmem:[#allocation2 + $0x40] sm:$0xff] %v628
        %645 = vst [vmem:[#allocation2 + $0x48] sm:$0xff] %v629
        %646 = vst [vmem:[#allocation2 + $0x50] sm:$0xff] %v630
        %647 = vst [vmem:[#allocation2 + $0x58] sm:$0xff] %v631
        %648 = vst [vmem:[#allocation2 + $0x60] sm:$0xff] %v632
        %649 = vst [vmem:[#allocation2 + $0x68] sm:$0xff] %v633
        %650 = vst [vmem:[#allocation2 + $0x70] sm:$0xff] %v634
        %651 = vst [vmem:[#allocation2 + $0x78] sm:$0xff] %v635
        %p652 = scmp.eq.s32.totalorder %s21, 2
        // Predicated region
        $region78: #{db_forward.9} parent=68 // pred_check
          %p653 = pneg %p652
        $region79: #{db_forward.9} parent=68 // pred_check_branch
          %655 = sbr.rel (%p653) target = $region81
        $region80: #{db_forward.9} parent=68 // pred_region
          %v656 = vld [vmem:[#allocation2] sm:$0xff]
          %v657 = vld [vmem:[#allocation2 + $0x8] sm:$0xff]
          %v658 = vld [vmem:[#allocation2 + $0x10] sm:$0xff]
          %v659 = vld [vmem:[#allocation2 + $0x18] sm:$0xff]
          %v660 = vld [vmem:[#allocation2 + $0x20] sm:$0xff]
          %v661 = vld [vmem:[#allocation2 + $0x28] sm:$0xff]
          %v662 = vld [vmem:[#allocation2 + $0x30] sm:$0xff]
          %v663 = vld [vmem:[#allocation2 + $0x38] sm:$0xff]
          %v664 = vld [vmem:[#allocation2 + $0x40] sm:$0xff]
          %v665 = vld [vmem:[#allocation2 + $0x48] sm:$0xff]
          %v666 = vld [vmem:[#allocation2 + $0x50] sm:$0xff]
          %v667 = vld [vmem:[#allocation2 + $0x58] sm:$0xff]
          %v668 = vld [vmem:[#allocation2 + $0x60] sm:$0xff]
          %v669 = vld [vmem:[#allocation2 + $0x68] sm:$0xff]
          %v670 = vld [vmem:[#allocation2 + $0x70] sm:$0xff]
          %v671 = vld [vmem:[#allocation2 + $0x78] sm:$0xff]
          %v672 = vld [vmem:[%s348] sm:$0x1]
          %v673 = vlaneseq
          %v674 = vshrl.u32 %v673, 7
          %v675 = vsub.s32 0, %v674
          %v676 = vrot.slane %v672, %v675
          %v677 = vmul.f32 %v656, %v676
          %v678 = vmul.f32 %v657, %v676
          %v679 = vmul.f32 %v658, %v676
          %v680 = vmul.f32 %v659, %v676
          %v681 = vmul.f32 %v660, %v676
          %v682 = vmul.f32 %v661, %v676
          %v683 = vmul.f32 %v662, %v676
          %v684 = vmul.f32 %v663, %v676
          %v685 = vmul.f32 %v664, %v676
          %v686 = vmul.f32 %v665, %v676
          %v687 = vmul.f32 %v666, %v676
          %v688 = vmul.f32 %v667, %v676
          %v689 = vmul.f32 %v668, %v676
          %v690 = vmul.f32 %v669, %v676
          %v691 = vmul.f32 %v670, %v676
          %v692 = vmul.f32 %v671, %v676
          %v693 = vld [vmem:[%s348 + $0x1] sm:$0x1]
          %v694 = vlaneseq
          %v695 = vshrl.u32 %v694, 7
          %v696 = vsub.s32 0, %v695
          %v697 = vrot.slane %v693, %v696
          %v698 = vadd.f32 %v677, %v697
          %v699 = vadd.f32 %v678, %v697
          %v700 = vadd.f32 %v679, %v697
          %v701 = vadd.f32 %v680, %v697
          %v702 = vadd.f32 %v681, %v697
          %v703 = vadd.f32 %v682, %v697
          %v704 = vadd.f32 %v683, %v697
          %v705 = vadd.f32 %v684, %v697
          %v706 = vadd.f32 %v685, %v697
          %v707 = vadd.f32 %v686, %v697
          %v708 = vadd.f32 %v687, %v697
          %v709 = vadd.f32 %v688, %v697
          %v710 = vadd.f32 %v689, %v697
          %v711 = vadd.f32 %v690, %v697
          %v712 = vadd.f32 %v691, %v697
          %v713 = vadd.f32 %v692, %v697
          %v714 = vmax.f32 %v698, 0.0
          %v715 = vmax.f32 %v699, 0.0
          %v716 = vmax.f32 %v700, 0.0
          %v717 = vmax.f32 %v701, 0.0
          %v718 = vmax.f32 %v702, 0.0
          %v719 = vmax.f32 %v703, 0.0
          %v720 = vmax.f32 %v704, 0.0
          %v721 = vmax.f32 %v705, 0.0
          %v722 = vmax.f32 %v706, 0.0
          %v723 = vmax.f32 %v707, 0.0
          %v724 = vmax.f32 %v708, 0.0
          %v725 = vmax.f32 %v709, 0.0
          %v726 = vmax.f32 %v710, 0.0
          %v727 = vmax.f32 %v711, 0.0
          %v728 = vmax.f32 %v712, 0.0
          %v729 = vmax.f32 %v713, 0.0
          %v730 = vpack.c.bf16 %v715, %v714
          %v731 = vpack.c.bf16 %v717, %v716
          %v732 = vpack.c.bf16 %v719, %v718
          %v733 = vpack.c.bf16 %v721, %v720
          %v734 = vpack.c.bf16 %v723, %v722
          %v735 = vpack.c.bf16 %v725, %v724
          %v736 = vpack.c.bf16 %v727, %v726
          %v737 = vpack.c.bf16 %v729, %v728
          %v746 = vunpack.c.l.b16 %v730
          %v747 = vunpack.c.h.b16 %v730
          %v748 = vunpack.c.l.b16 %v731
          %v749 = vunpack.c.h.b16 %v731
          %v750 = vunpack.c.l.b16 %v732
          %v751 = vunpack.c.h.b16 %v732
          %v752 = vunpack.c.l.b16 %v733
          %v753 = vunpack.c.h.b16 %v733
          %v754 = vunpack.c.l.b16 %v734
          %v755 = vunpack.c.h.b16 %v734
          %v756 = vunpack.c.l.b16 %v735
          %v757 = vunpack.c.h.b16 %v735
          %v758 = vunpack.c.l.b16 %v736
          %v759 = vunpack.c.h.b16 %v736
          %v760 = vunpack.c.l.b16 %v737
          %v761 = vunpack.c.h.b16 %v737
          %v762 = vpack.c.b16 %v746, %v746
          %v763 = vpack.c.b16 %v747, %v747
          %v764 = vpack.c.b16 %v748, %v748
          %v765 = vpack.c.b16 %v749, %v749
          %v766 = vpack.c.b16 %v750, %v750
          %v767 = vpack.c.b16 %v751, %v751
          %v768 = vpack.c.b16 %v752, %v752
          %v769 = vpack.c.b16 %v753, %v753
          %v770 = vpack.c.b16 %v754, %v754
          %v771 = vpack.c.b16 %v755, %v755
          %v772 = vpack.c.b16 %v756, %v756
          %v773 = vpack.c.b16 %v757, %v757
          %v774 = vpack.c.b16 %v758, %v758
          %v775 = vpack.c.b16 %v759, %v759
          %v776 = vpack.c.b16 %v760, %v760
          %v777 = vpack.c.b16 %v761, %v761
          %794 = vst [vmem:[%s356] sm:$0xf] %v762
          %795 = vst [vmem:[%s356 + $0x4] sm:$0xf] %v763
          %796 = vst [vmem:[%s356 + $0x8] sm:$0xf] %v764
          %797 = vst [vmem:[%s356 + $0xc] sm:$0xf] %v765
          %798 = vst [vmem:[%s356 + $0x10] sm:$0xf] %v766
          %799 = vst [vmem:[%s356 + $0x14] sm:$0xf] %v767
          %800 = vst [vmem:[%s356 + $0x18] sm:$0xf] %v768
          %801 = vst [vmem:[%s356 + $0x1c] sm:$0xf] %v769
          %802 = vst [vmem:[%s356 + $0x20] sm:$0xf] %v770
          %803 = vst [vmem:[%s356 + $0x24] sm:$0xf] %v771
          %804 = vst [vmem:[%s356 + $0x28] sm:$0xf] %v772
          %805 = vst [vmem:[%s356 + $0x2c] sm:$0xf] %v773
          %806 = vst [vmem:[%s356 + $0x30] sm:$0xf] %v774
          %807 = vst [vmem:[%s356 + $0x34] sm:$0xf] %v775
          %808 = vst [vmem:[%s356 + $0x38] sm:$0xf] %v776
          %809 = vst [vmem:[%s356 + $0x3c] sm:$0xf] %v777
        $region81: #{db_forward.9} parent=68 // pred_fallthru
          _
        %s810 = smul.u32 16, %s19
        %p811 = scmp.lt.s32.totalorder %s810, 15
        %s812 = scalar_select %p811, %s810, 15
        %p813 = scmp.lt.s32.totalorder %s20, 0
        %s814 = scalar_select %p813, %s20, 0
        %s815 = sadd.s32 %s814, %s812
        %s816 = smul.addr %s815, 4
        %s817 = scalar_lea.vmem %s3, %s816
        // Predicated region
        $region82: #{db_forward.9} parent=68 // pred_check
          %p818 = pneg %p135
        $region83: #{db_forward.9} parent=68 // pred_check_branch
          %820 = sbr.rel (%p818) target = $region85
        $region84: #{db_forward.9} parent=68 // pred_region
          %s821 = smul.u32 16, %s19
        $region85: #{db_forward.9} parent=68 // pred_fallthru
          _
        // Predicated region
        $region86: #{db_forward.9} parent=68 // pred_check
          %p822 = pneg %p135
        $region87: #{db_forward.9} parent=68 // pred_check_branch
          %824 = sbr.rel (%p822) target = $region89
        $region88: #{db_forward.9} parent=68 // pred_region
          %s825 = smul.u32 16, %s19
          %p826 = scmp.lt.s32.totalorder %s825, 15
          %s827 = scalar_select %p826, %s825, 15
          %p828 = scmp.lt.s32.totalorder %s20, 0
          %s829 = scalar_select %p828, %s20, 0
          %s830 = sadd.s32 %s829, %s827
          %s831 = smul.addr %s830, 4
          %s832 = scalar_lea.vmem %s3, %s831
        $region89: #{db_forward.9} parent=68 // pred_fallthru
          _
      $region69: #{db_forward.9} parent=5 // pred_fallthru
        _
      %p833 = scmp.le.s32.totalorder 2, %s9
      // Predicated region
      $region90: #{db_forward.9} parent=5 // pred_check
        %p834 = pneg %p833
      $region91: #{db_forward.9} parent=5 // pred_check_branch
        %836 = sbr.rel (%p834) target = $region93
      $region92: #{db_forward.9} parent=5 // pred_region
        %s837 = ssub.s32 %s9, 2
      $region93: #{db_forward.9} parent=5 // pred_fallthru
        _
    $region6: #{db_forward.9} parent=1 // loop_footer
      %s13 = sadd.s32 1, %s9
    $region7: #{db_forward.9} parent=1 // loop_footer_branch
      %8 = sbr.rel target = $region3
    $region8: #{db_forward.9} parent=1 // loop_exit
      _

// kernel: db_forward.8
$region0: #{db_forward.8}
  #allocation0 [shape = 'u32[]', space=smem, size = 0x4, offset = 0x4, fixed_abs, tag = 'smem constant byte address 0x4 - core index']
  #allocation1 [shape = 'u32[144,128]{1,0:T(1,128)}', space=vmem, size = 0x12000, scoped, tag = 'internal scratch']
  #allocation2 [shape = 'f32[256,128]{1,0:T(8,128)}', space=vmem, size = 0x20000, scoped, tag = 'scratch operand']
  %s0 = inlined_call_operand.vmem [shape: bf16[512,128], index: 0, kind: input, shape index: {}]
  %s1 = inlined_call_operand.hbm [shape: bf16[128,128], index: 1, kind: input, shape index: {}]
  %s2 = inlined_call_operand.hbm [shape: f32[2,128], index: 2, kind: input, shape index: {}]
  %s3 = inlined_call_operand.vmem [shape: bf16[512,128], index: 3, kind: output, shape index: {}]
  %s4 = sld [smem:[#allocation0]]
  $region61: #{db_forward.8} parent=0
    _
  %s6 = ssub.s32 1, %s4
  %s7 = scalar_select 0, %s6, %s4
  $region1: #{db_forward.8} parent=0
    #allocation3 [shape = 'u8[32768]{0}', space=vmem, size = 0x8000, scoped, tag = 'input window, operand 1, single buffered']
    #allocation4 [shape = 's32[2]{0}', space=sflag, size = 0x8, scoped, tag = 'scoped memory for db_forward.8']
    #allocation5 [shape = 'u8[1024]{0}', space=vmem, size = 0x400, scoped, tag = 'input window, operand 2, single buffered']
    #allocation6 [shape = 's32[1]{0}', space=sflag, size = 0x4, scoped, tag = 'scoped memory for db_forward.8']
    %8 = vsyncpa [#allocation4], 0
    %9 = vsyncpa [#allocation6], 0
    loop: start=0, step=1, limit=4
    $region2: #{db_forward.8} parent=1 // loop_pre_header
      _
    $region3: #{db_forward.8} parent=1 // loop_header
      %s11 = sphi 0, %s15
      %p12 = scmp.ge.s32.totalorder %s11, 4
      %s18 = sphi 0, %s37
      %s19 = sphi 0, %s33
      %s20 = sphi 0, %s29
      %s21 = sphi 0, %s18
      %s22 = sphi 0, %s19
      %s23 = sphi 0, %s20
      %s24 = sphi 0, %s21
      %s25 = sphi 0, %s22
      %s26 = sphi 0, %s23
      %s42 = sphi 0, %s44
      %s45 = sphi 0, %s42
      %s46 = sphi 0, %s45
      %s62 = sphi 0, %s46
      %s70 = sphi 0, %s72
      %s73 = sphi 0, %s70
      %s74 = sphi 0, %s73
      %s90 = sphi 0, %s74
      %s96 = sphi 0, %s98
      %s99 = sphi 0, %s96
      %s100 = sphi 0, %s99
      %s116 = sphi 0, %s100
      %s124 = sphi 0, %s126
      %s127 = sphi 0, %s124
      %s128 = sphi 0, %s127
      %s144 = sphi 0, %s128
    $region4: #{db_forward.8} parent=1 // loop_header_branch
      %14 = sbr.rel (%p12) target = $region8
    $region5: #{db_forward.8} parent=1 // loop_body
      %s16 = ssub.s32 %s11, 1
      %s17 = ssub.s32 %s11, 2
      %s27 = sadd.s32 1, %s20
      %p28 = scmp.ge.s32.totalorder %s27, 1
      %s29 = scalar_select %p28, 0, %s27
      %s30 = sadd.s32 1, %s19
      %s31 = scalar_select %p28, %s30, %s19
      %p32 = scmp.ge.s32.totalorder %s31, 1
      %s33 = scalar_select %p32, 0, %s31
      %s34 = sadd.s32 1, %s18
      %s35 = scalar_select %p32, %s34, %s18
      %p36 = scmp.ge.s32.totalorder %s35, 2
      %s37 = scalar_select %p36, 0, %s35
      %s38 = ssub.s32 %s18, %s37
      %s39 = ssub.s32 %s20, %s29
      %s40 = sor.u32 %s38, %s39
      %p41 = scmp.eq.s32.totalorder %s40, 0
      %s43 = sadd.s32 %s42, 1
      %s44 = scalar_select %p41, %s42, %s43
      %p47 = pneg %p41
      %p48 = scmp.eq.s32.totalorder %s11, 1
      %p49 = por %p47, %p48
      %p50 = scmp.ne.s32.totalorder %s42, %s45
      %p51 = scmp.eq.s32.totalorder %s11, 0
      %p52 = por %p50, %p51
      %p53 = scmp.ne.s32.totalorder %s42, %s45
      %p54 = scmp.eq.s32.totalorder %s16, 1
      %p55 = por %p53, %p54
      %p56 = scmp.ne.s32.totalorder %s45, %s46
      %p57 = scmp.eq.s32.totalorder %s16, 0
      %p58 = por %p56, %p57
      %p59 = scmp.ne.s32.totalorder %s45, %s46
      %p60 = scmp.eq.s32.totalorder %s17, 1
      %p61 = por %p59, %p60
      %p63 = scmp.ne.s32.totalorder %s46, %s62
      %p64 = scmp.eq.s32.totalorder %s17, 0
      %p65 = por %p63, %p64
      %s66 = ssub.s32 %s20, %s29
      %s67 = ssub.s32 %s19, %s33
      %s68 = sor.u32 %s66, %s67
      %p69 = scmp.eq.s32.totalorder %s68, 0
      %s71 = sadd.s32 %s70, 1
      %s72 = scalar_select %p69, %s70, %s71
      %p75 = pneg %p69
      %p76 = scmp.eq.s32.totalorder %s11, 1
      %p77 = por %p75, %p76
      %p78 = scmp.ne.s32.totalorder %s70, %s73
      %p79 = scmp.eq.s32.totalorder %s11, 0
      %p80 = por %p78, %p79
      %p81 = scmp.ne.s32.totalorder %s70, %s73
      %p82 = scmp.eq.s32.totalorder %s16, 1
      %p83 = por %p81, %p82
      %p84 = scmp.ne.s32.totalorder %s73, %s74
      %p85 = scmp.eq.s32.totalorder %s16, 0
      %p86 = por %p84, %p85
      %p87 = scmp.ne.s32.totalorder %s73, %s74
      %p88 = scmp.eq.s32.totalorder %s17, 1
      %p89 = por %p87, %p88
      %p91 = scmp.ne.s32.totalorder %s74, %s90
      %p92 = scmp.eq.s32.totalorder %s17, 0
      %p93 = por %p91, %p92
      %s94 = ssub.s32 %s19, %s33
      %p95 = scmp.eq.s32.totalorder %s94, 0
      %s97 = sadd.s32 %s96, 1
      %s98 = scalar_select %p95, %s96, %s97
      %p101 = pneg %p95
      %p102 = scmp.eq.s32.totalorder %s11, 1
      %p103 = por %p101, %p102
      %p104 = scmp.ne.s32.totalorder %s96, %s99
      %p105 = scmp.eq.s32.totalorder %s11, 0
      %p106 = por %p104, %p105
      %p107 = scmp.ne.s32.totalorder %s96, %s99
      %p108 = scmp.eq.s32.totalorder %s16, 1
      %p109 = por %p107, %p108
      %p110 = scmp.ne.s32.totalorder %s99, %s100
      %p111 = scmp.eq.s32.totalorder %s16, 0
      %p112 = por %p110, %p111
      %p113 = scmp.ne.s32.totalorder %s99, %s100
      %p114 = scmp.eq.s32.totalorder %s17, 1
      %p115 = por %p113, %p114
      %p117 = scmp.ne.s32.totalorder %s100, %s116
      %p118 = scmp.eq.s32.totalorder %s17, 0
      %p119 = por %p117, %p118
      %s120 = ssub.s32 %s18, %s37
      %s121 = ssub.s32 %s19, %s33
      %s122 = sor.u32 %s120, %s121
      %p123 = scmp.eq.s32.totalorder %s122, 0
      %s125 = sadd.s32 %s124, 1
      %s126 = scalar_select %p123, %s124, %s125
      %p129 = pneg %p123
      %p130 = scmp.eq.s32.totalorder %s11, 1
      %p131 = por %p129, %p130
      %p132 = scmp.ne.s32.totalorder %s124, %s127
      %p133 = scmp.eq.s32.totalorder %s11, 0
      %p134 = por %p132, %p133
      %p135 = scmp.ne.s32.totalorder %s124, %s127
      %p136 = scmp.eq.s32.totalorder %s16, 1
      %p137 = por %p135, %p136
      %p138 = scmp.ne.s32.totalorder %s127, %s128
      %p139 = scmp.eq.s32.totalorder %s16, 0
      %p140 = por %p138, %p139
      %p141 = scmp.ne.s32.totalorder %s127, %s128
      %p142 = scmp.eq.s32.totalorder %s17, 1
      %p143 = por %p141, %p142
      %p145 = scmp.ne.s32.totalorder %s128, %s144
      %p146 = scmp.eq.s32.totalorder %s17, 0
      %p147 = por %p145, %p146
      %p148 = scmp.le.s32.totalorder 1, %s11
      %p149 = scmp.lt.s32.totalorder %s11, 3
      %p150 = pnand %p148, %p149
      %p151 = pneg %p150
      // Predicated region
      $region9: #{db_forward.8} parent=5 // pred_check
        _
      $region10: #{db_forward.8} parent=5 // pred_check_branch
        %153 = sbr.rel (%p150) target = $region12
      $region11: #{db_forward.8} parent=5 // pred_region
        %s154 = ssub.s32 %s11, 1
        // Predicated region
        $region13: #{db_forward.8} parent=11 // pred_check
          %p155 = pneg %p86
        $region14: #{db_forward.8} parent=11 // pred_check_branch
          %157 = sbr.rel (%p155) target = $region16
        $region15: #{db_forward.8} parent=11 // pred_region
          %s158 = smul.u32 16, %s23
          %s160 = ssub.s32 1024, 1024
          %161 = vsyncadd [#allocation4], %s160
          %s162 = sadd.s32 %s22, %s158
          %s163 = smul.addr %s162, 64
          %s164 = scalar_lea.hbm %s1, %s163
          %s165 = sshll.u32 [#allocation3], 4
          %s166 = int_to_ptr.vmem [resolvable:$true] %s165
          %171 = dma.hbm_to_vmem [thread:$0]  %s164, 1024, %s166, [#allocation4], 64, 64, 4
        $region16: #{db_forward.8} parent=11 // pred_fallthru
          _
        // Predicated region
        $region17: #{db_forward.8} parent=11 // pred_check
          %p172 = pneg %p112
        $region18: #{db_forward.8} parent=11 // pred_check_branch
          %174 = sbr.rel (%p172) target = $region20
        $region19: #{db_forward.8} parent=11 // pred_region
          %s176 = ssub.s32 32, 32
          %177 = vsyncadd [#allocation6], %s176
          %s178 = smul.addr %s22, 32
          %s179 = scalar_lea.hbm %s2, %s178
          %s181 = sshll.u32 [#allocation5], 4
          %s182 = int_to_ptr.vmem [resolvable:$true] %s181
          %184 = dma.hbm_to_vmem [thread:$0]  %s179, 32, %s182, [#allocation6]
        $region20: #{db_forward.8} parent=11 // pred_fallthru
          _
      $region12: #{db_forward.8} parent=5 // pred_fallthru
        _
      %p185 = scmp.lt.s32.totalorder %s11, 2
      // Predicated region
      $region21: #{db_forward.8} parent=5 // pred_check
        %p186 = pneg %p185
      $region22: #{db_forward.8} parent=5 // pred_check_branch
        %188 = sbr.rel (%p186) target = $region24
      $region23: #{db_forward.8} parent=5 // pred_region
        // Predicated region
        $region25: #{db_forward.8} parent=23 // pred_check
          %p189 = pneg %p52
        $region26: #{db_forward.8} parent=23 // pred_check_branch
          %191 = sbr.rel (%p189) target = $region28
        $region27: #{db_forward.8} parent=23 // pred_region
          %s192 = smul.u32 32, %s18
          %p193 = scmp.lt.s32.totalorder %s192, 63
          %s194 = scalar_select %p193, %s192, 63
          %p195 = scmp.lt.s32.totalorder %s20, 0
          %s196 = scalar_select %p195, %s20, 0
          %s197 = sadd.s32 %s196, %s194
          %s198 = smul.addr %s197, 4
          %s199 = scalar_lea.vmem %s0, %s198
          %s200 = smul.u32 32, %s18
        $region28: #{db_forward.8} parent=23 // pred_fallthru
          _
      $region24: #{db_forward.8} parent=5 // pred_fallthru
        _
      %p201 = scmp.le.s32.totalorder 1, %s11
      %p202 = scmp.lt.s32.totalorder %s11, 3
      %p203 = pnand %p201, %p202
      %p204 = pneg %p203
      // Predicated region
      $region29: #{db_forward.8} parent=5 // pred_check
        _
      $region30: #{db_forward.8} parent=5 // pred_check_branch
        %206 = sbr.rel (%p203) target = $region32
      $region31: #{db_forward.8} parent=5 // pred_region
        %s207 = ssub.s32 %s11, 1
        // Predicated region
        $region33: #{db_forward.8} parent=31 // pred_check
          %p208 = pneg %p86
        $region34: #{db_forward.8} parent=31 // pred_check_branch
          %210 = sbr.rel (%p208) target = $region36
        $region35: #{db_forward.8} parent=31 // pred_region
          %211 = dma.done [#allocation4], 1024
        $region36: #{db_forward.8} parent=31 // pred_fallthru
          _
        // Predicated region
        $region37: #{db_forward.8} parent=31 // pred_check
          %p212 = pneg %p112
        $region38: #{db_forward.8} parent=31 // pred_check_branch
          %214 = sbr.rel (%p212) target = $region40
        $region39: #{db_forward.8} parent=31 // pred_region
          %215 = dma.done [#allocation6], 32
        $region40: #{db_forward.8} parent=31 // pred_fallthru
          _
        %s216 = smul.u32 32, %s21
        %p217 = scmp.lt.s32.totalorder %s216, 63
        %s218 = scalar_select %p217, %s216, 63
        %p219 = scmp.lt.s32.totalorder %s23, 0
        %s220 = scalar_select %p219, %s23, 0
        %s221 = sadd.s32 %s220, %s218
        %s222 = smul.addr %s221, 4
        %s223 = scalar_lea.vmem %s0, %s222
        %p224 = pneg %p58
        %p225 = pneg %p55
        %p226 = pneg %p86
        %p227 = pneg %p83
        %p228 = pneg %p112
        %p229 = pneg %p109
        %p230 = pneg %p140
        %p231 = pneg %p137
        %s232 = smul.u32 32, %s21
        %p233 = scmp.lt.s32.totalorder %s232, 63
        %s234 = scalar_select %p233, %s232, 63
        %p235 = scmp.lt.s32.totalorder %s22, 0
        %s236 = scalar_select %p235, %s22, 0
        %s237 = sadd.s32 %s236, %s234
        %s238 = smul.addr %s237, 4
        %s239 = scalar_lea.vmem %s3, %s238
        %s240 = smul.u32 32, %s21
        %p241 = scmp.lt.s32.totalorder %s240, 63
        %s242 = scalar_select %p241, %s240, 63
        %p243 = scmp.lt.s32.totalorder %s23, 0
        %s244 = scalar_select %p243, %s23, 0
        %s245 = sadd.s32 %s244, %s242
        %s246 = smul.addr %s245, 4
        %s247 = scalar_lea.vmem %s0, %s246
        %s248 = smul.u32 32, %s21
        %s249 = smul.u32 16, %s23
        %s250 = smul.u32 32, %s21
        %p251 = scmp.lt.s32.totalorder %s250, 63
        %s252 = scalar_select %p251, %s250, 63
        %p253 = scmp.lt.s32.totalorder %s22, 0
        %s254 = scalar_select %p253, %s22, 0
        %s255 = sadd.s32 %s254, %s252
        %s256 = smul.addr %s255, 4
        %s257 = scalar_lea.vmem %s3, %s256
        %s258 = smul.u32 32, %s21
        %p260 = scmp.eq.s32.totalorder %s23, 0
        // Predicated region
        $region41: #{db_forward.8} parent=31 // pred_check
          %p261 = pneg %p260
        $region42: #{db_forward.8} parent=31 // pred_check_branch
          %263 = sbr.rel (%p261) target = $region44
        $region43: #{db_forward.8} parent=31 // pred_region
          %264 = vst [vmem:[#allocation2] sm:$0xff] 0.0
          %265 = vst [vmem:[#allocation2 + $0x8] sm:$0xff] 0.0
          %266 = vst [vmem:[#allocation2 + $0x10] sm:$0xff] 0.0
          %267 = vst [vmem:[#allocation2 + $0x18] sm:$0xff] 0.0
          %268 = vst [vmem:[#allocation2 + $0x20] sm:$0xff] 0.0
          %269 = vst [vmem:[#allocation2 + $0x28] sm:$0xff] 0.0
          %270 = vst [vmem:[#allocation2 + $0x30] sm:$0xff] 0.0
          %271 = vst [vmem:[#allocation2 + $0x38] sm:$0xff] 0.0
          %272 = vst [vmem:[#allocation2 + $0x40] sm:$0xff] 0.0
          %273 = vst [vmem:[#allocation2 + $0x48] sm:$0xff] 0.0
          %274 = vst [vmem:[#allocation2 + $0x50] sm:$0xff] 0.0
          %275 = vst [vmem:[#allocation2 + $0x58] sm:$0xff] 0.0
          %276 = vst [vmem:[#allocation2 + $0x60] sm:$0xff] 0.0
          %277 = vst [vmem:[#allocation2 + $0x68] sm:$0xff] 0.0
          %278 = vst [vmem:[#allocation2 + $0x70] sm:$0xff] 0.0
          %279 = vst [vmem:[#allocation2 + $0x78] sm:$0xff] 0.0
          %280 = vst [vmem:[#allocation2 + $0x80] sm:$0xff] 0.0
          %281 = vst [vmem:[#allocation2 + $0x88] sm:$0xff] 0.0
          %282 = vst [vmem:[#allocation2 + $0x90] sm:$0xff] 0.0
          %283 = vst [vmem:[#allocation2 + $0x98] sm:$0xff] 0.0
          %284 = vst [vmem:[#allocation2 + $0xa0] sm:$0xff] 0.0
          %285 = vst [vmem:[#allocation2 + $0xa8] sm:$0xff] 0.0
          %286 = vst [vmem:[#allocation2 + $0xb0] sm:$0xff] 0.0
          %287 = vst [vmem:[#allocation2 + $0xb8] sm:$0xff] 0.0
          %288 = vst [vmem:[#allocation2 + $0xc0] sm:$0xff] 0.0
          %289 = vst [vmem:[#allocation2 + $0xc8] sm:$0xff] 0.0
          %290 = vst [vmem:[#allocation2 + $0xd0] sm:$0xff] 0.0
          %291 = vst [vmem:[#allocation2 + $0xd8] sm:$0xff] 0.0
          %292 = vst [vmem:[#allocation2 + $0xe0] sm:$0xff] 0.0
          %293 = vst [vmem:[#allocation2 + $0xe8] sm:$0xff] 0.0
          %294 = vst [vmem:[#allocation2 + $0xf0] sm:$0xff] 0.0
          %295 = vst [vmem:[#allocation2 + $0xf8] sm:$0xff] 0.0
        $region44: #{db_forward.8} parent=31 // pred_fallthru
          _
        %v296 = vld [vmem:[#allocation2] sm:$0xff]
        %v297 = vld [vmem:[#allocation2 + $0x8] sm:$0xff]
        %v298 = vld [vmem:[#allocation2 + $0x10] sm:$0xff]
        %v299 = vld [vmem:[#allocation2 + $0x18] sm:$0xff]
        %v300 = vld [vmem:[#allocation2 + $0x20] sm:$0xff]
        %v301 = vld [vmem:[#allocation2 + $0x28] sm:$0xff]
        %v302 = vld [vmem:[#allocation2 + $0x30] sm:$0xff]
        %v303 = vld [vmem:[#allocation2 + $0x38] sm:$0xff]
        %v304 = vld [vmem:[#allocation2 + $0x40] sm:$0xff]
        %v305 = vld [vmem:[#allocation2 + $0x48] sm:$0xff]
        %v306 = vld [vmem:[#allocation2 + $0x50] sm:$0xff]
        %v307 = vld [vmem:[#allocation2 + $0x58] sm:$0xff]
        %v308 = vld [vmem:[#allocation2 + $0x60] sm:$0xff]
        %v309 = vld [vmem:[#allocation2 + $0x68] sm:$0xff]
        %v310 = vld [vmem:[#allocation2 + $0x70] sm:$0xff]
        %v311 = vld [vmem:[#allocation2 + $0x78] sm:$0xff]
        %v312 = vld [vmem:[#allocation2 + $0x80] sm:$0xff]
        %v313 = vld [vmem:[#allocation2 + $0x88] sm:$0xff]
        %v314 = vld [vmem:[#allocation2 + $0x90] sm:$0xff]
        %v315 = vld [vmem:[#allocation2 + $0x98] sm:$0xff]
        %v316 = vld [vmem:[#allocation2 + $0xa0] sm:$0xff]
        %v317 = vld [vmem:[#allocation2 + $0xa8] sm:$0xff]
        %v318 = vld [vmem:[#allocation2 + $0xb0] sm:$0xff]
        %v319 = vld [vmem:[#allocation2 + $0xb8] sm:$0xff]
        %v320 = vld [vmem:[#allocation2 + $0xc0] sm:$0xff]
        %v321 = vld [vmem:[#allocation2 + $0xc8] sm:$0xff]
        %v322 = vld [vmem:[#allocation2 + $0xd0] sm:$0xff]
        %v323 = vld [vmem:[#allocation2 + $0xd8] sm:$0xff]
        %v324 = vld [vmem:[#allocation2 + $0xe0] sm:$0xff]
        %v325 = vld [vmem:[#allocation2 + $0xe8] sm:$0xff]
        %v326 = vld [vmem:[#allocation2 + $0xf0] sm:$0xff]
        %v327 = vld [vmem:[#allocation2 + $0xf8] sm:$0xff]
        %v328 = vld [vmem:[%s247] sm:$0xf]
        %v329 = vld [vmem:[%s247 + $0x4] sm:$0xf]
        %v330 = vld [vmem:[%s247 + $0x8] sm:$0xf]
        %v331 = vld [vmem:[%s247 + $0xc] sm:$0xf]
        %v332 = vld [vmem:[%s247 + $0x10] sm:$0xf]
        %v333 = vld [vmem:[%s247 + $0x14] sm:$0xf]
        %v334 = vld [vmem:[%s247 + $0x18] sm:$0xf]
        %v335 = vld [vmem:[%s247 + $0x1c] sm:$0xf]
        %v336 = vld [vmem:[%s247 + $0x20] sm:$0xf]
        %v337 = vld [vmem:[%s247 + $0x24] sm:$0xf]
        %v338 = vld [vmem:[%s247 + $0x28] sm:$0xf]
        %v339 = vld [vmem:[%s247 + $0x2c] sm:$0xf]
        %v340 = vld [vmem:[%s247 + $0x30] sm:$0xf]
        %v341 = vld [vmem:[%s247 + $0x34] sm:$0xf]
        %v342 = vld [vmem:[%s247 + $0x38] sm:$0xf]
        %v343 = vld [vmem:[%s247 + $0x3c] sm:$0xf]
        %v344 = vld [vmem:[%s247 + $0x40] sm:$0xf]
        %v345 = vld [vmem:[%s247 + $0x44] sm:$0xf]
        %v346 = vld [vmem:[%s247 + $0x48] sm:$0xf]
        %v347 = vld [vmem:[%s247 + $0x4c] sm:$0xf]
        %v348 = vld [vmem:[%s247 + $0x50] sm:$0xf]
        %v349 = vld [vmem:[%s247 + $0x54] sm:$0xf]
        %v350 = vld [vmem:[%s247 + $0x58] sm:$0xf]
        %v351 = vld [vmem:[%s247 + $0x5c] sm:$0xf]
        %v352 = vld [vmem:[%s247 + $0x60] sm:$0xf]
        %v353 = vld [vmem:[%s247 + $0x64] sm:$0xf]
        %v354 = vld [vmem:[%s247 + $0x68] sm:$0xf]
        %v355 = vld [vmem:[%s247 + $0x6c] sm:$0xf]
        %v356 = vld [vmem:[%s247 + $0x70] sm:$0xf]
        %v357 = vld [vmem:[%s247 + $0x74] sm:$0xf]
        %v358 = vld [vmem:[%s247 + $0x78] sm:$0xf]
        %v359 = vld [vmem:[%s247 + $0x7c] sm:$0xf]
        %v360 = vld [vmem:[#allocation3] sm:$0xf]
        %v361 = vld [vmem:[#allocation3 + $0x4] sm:$0xf]
        %v362 = vld [vmem:[#allocation3 + $0x8] sm:$0xf]
        %v363 = vld [vmem:[#allocation3 + $0xc] sm:$0xf]
        %v364 = vld [vmem:[#allocation3 + $0x10] sm:$0xf]
        %v365 = vld [vmem:[#allocation3 + $0x14] sm:$0xf]
        %v366 = vld [vmem:[#allocation3 + $0x18] sm:$0xf]
        %v367 = vld [vmem:[#allocation3 + $0x1c] sm:$0xf]
        %v368 = vld [vmem:[#allocation3 + $0x20] sm:$0xf]
        %v369 = vld [vmem:[#allocation3 + $0x24] sm:$0xf]
        %v370 = vld [vmem:[#allocation3 + $0x28] sm:$0xf]
        %v371 = vld [vmem:[#allocation3 + $0x2c] sm:$0xf]
        %v372 = vld [vmem:[#allocation3 + $0x30] sm:$0xf]
        %v373 = vld [vmem:[#allocation3 + $0x34] sm:$0xf]
        %v374 = vld [vmem:[#allocation3 + $0x38] sm:$0xf]
        %v375 = vld [vmem:[#allocation3 + $0x3c] sm:$0xf]
        %v408 = vunpack.c.l.b16 %v328
        %v409 = vunpack.c.l.b16 %v329
        %v410 = vunpack.c.l.b16 %v330
        %v411 = vunpack.c.l.b16 %v331
        %v412 = vunpack.c.l.b16 %v332
        %v413 = vunpack.c.l.b16 %v333
        %v414 = vunpack.c.l.b16 %v334
        %v415 = vunpack.c.l.b16 %v335
        %v416 = vunpack.c.l.b16 %v336
        %v417 = vunpack.c.l.b16 %v337
        %v418 = vunpack.c.l.b16 %v338
        %v419 = vunpack.c.l.b16 %v339
        %v420 = vunpack.c.l.b16 %v340
        %v421 = vunpack.c.l.b16 %v341
        %v422 = vunpack.c.l.b16 %v342
        %v423 = vunpack.c.l.b16 %v343
        %v424 = vunpack.c.l.b16 %v344
        %v425 = vunpack.c.l.b16 %v345
        %v426 = vunpack.c.l.b16 %v346
        %v427 = vunpack.c.l.b16 %v347
        %v428 = vunpack.c.l.b16 %v348
        %v429 = vunpack.c.l.b16 %v349
        %v430 = vunpack.c.l.b16 %v350
        %v431 = vunpack.c.l.b16 %v351
        %v432 = vunpack.c.l.b16 %v352
        %v433 = vunpack.c.l.b16 %v353
        %v434 = vunpack.c.l.b16 %v354
        %v435 = vunpack.c.l.b16 %v355
        %v436 = vunpack.c.l.b16 %v356
        %v437 = vunpack.c.l.b16 %v357
        %v438 = vunpack.c.l.b16 %v358
        %v439 = vunpack.c.l.b16 %v359
        %v440 = vpack.c.b16 %v409, %v408
        %v441 = vpack.c.b16 %v411, %v410
        %v442 = vpack.c.b16 %v413, %v412
        %v443 = vpack.c.b16 %v415, %v414
        %v444 = vpack.c.b16 %v417, %v416
        %v445 = vpack.c.b16 %v419, %v418
        %v446 = vpack.c.b16 %v421, %v420
        %v447 = vpack.c.b16 %v423, %v422
        %v448 = vpack.c.b16 %v425, %v424
        %v449 = vpack.c.b16 %v427, %v426
        %v450 = vpack.c.b16 %v429, %v428
        %v451 = vpack.c.b16 %v431, %v430
        %v452 = vpack.c.b16 %v433, %v432
        %v453 = vpack.c.b16 %v435, %v434
        %v454 = vpack.c.b16 %v437, %v436
        %v455 = vpack.c.b16 %v439, %v438
        %v488 = vunpack.c.l.b16 %v360
        %v489 = vunpack.c.l.b16 %v361
        %v490 = vunpack.c.l.b16 %v362
        %v491 = vunpack.c.l.b16 %v363
        %v492 = vunpack.c.l.b16 %v364
        %v493 = vunpack.c.l.b16 %v365
        %v494 = vunpack.c.l.b16 %v366
        %v495 = vunpack.c.l.b16 %v367
        %v496 = vunpack.c.l.b16 %v368
        %v497 = vunpack.c.l.b16 %v369
        %v498 = vunpack.c.l.b16 %v370
        %v499 = vunpack.c.l.b16 %v371
        %v500 = vunpack.c.l.b16 %v372
        %v501 = vunpack.c.l.b16 %v373
        %v502 = vunpack.c.l.b16 %v374
        %v503 = vunpack.c.l.b16 %v375
        %v504 = vpack.c.b16 %v489, %v488
        %v505 = vpack.c.b16 %v491, %v490
        %v506 = vpack.c.b16 %v493, %v492
        %v507 = vpack.c.b16 %v495, %v494
        %v508 = vpack.c.b16 %v497, %v496
        %v509 = vpack.c.b16 %v499, %v498
        %v510 = vpack.c.b16 %v501, %v500
        %v511 = vpack.c.b16 %v503, %v502
        %520 = vmatprep.subr.bf16.mxu0 0
        %521 = vmatpush1.bf16.msra.mxu0 %v511
        %522 = vmatprep.subr.bf16.mxu0 0
        %523 = vmatpush1.bf16.msra.mxu0 %v510
        %524 = vmatprep.subr.bf16.mxu0 0
        %525 = vmatpush1.bf16.msra.mxu0 %v509
        %526 = vmatprep.subr.bf16.mxu0 0
        %527 = vmatpush1.bf16.msra.mxu0 %v508
        %528 = vmatprep.subr.bf16.mxu0 0
        %529 = vmatpush1.bf16.msra.mxu0 %v507
        %530 = vmatprep.subr.bf16.mxu0 0
        %531 = vmatpush1.bf16.msra.mxu0 %v506
        %532 = vmatprep.subr.bf16.mxu0 0
        %533 = vmatpush1.bf16.msra.mxu0 %v505
        %534 = vmatprep.subr.bf16.mxu0 0
        %535 = vmatpush1.bf16.msra.mxu0 %v504
        %536 = vmatprep.subr.bf16.mxu0 0
        %537 = vmatpush2.bf16.msra.mxu0 0
        %538 = vmatprep.subr.bf16.mxu0 0
        %539 = vmatpush2.bf16.msra.mxu0 0
        %540 = vmatprep.subr.bf16.mxu0 0
        %541 = vmatpush2.bf16.msra.mxu0 0
        %542 = vmatprep.subr.bf16.mxu0 0
        %543 = vmatpush2.bf16.msra.mxu0 0
        %544 = vmatprep.subr.bf16.mxu0 0
        %545 = vmatpush2.bf16.msra.mxu0 0
        %546 = vmatprep.subr.bf16.mxu0 0
        %547 = vmatpush2.bf16.msra.mxu0 0
        %548 = vmatprep.subr.bf16.mxu0 0
        %549 = vmatpush2.bf16.msra.mxu0 0
        %550 = vmatprep.subr.bf16.mxu0 0
        %551 = vmatpush2.bf16.msra.mxu0 0
        %552 = vmatprep.mubr.bf16.mxu0 0
        %553 = vmatmul.mubr.bf16.gmra.mxu0 %v440
        %v554 = vpop.f32.mrf.mxu0
        %v555 = vadd.f32 0.0, %v554
        %v556 = vpop.f32.mrf.mxu0
        %v557 = vpop.f32.mrf.mxu0
        %v558 = vadd.f32 0.0, %v557
        %v559 = vpop.f32.mrf.mxu0
        %560 = vmatprep.mubr.bf16.mxu0 0
        %561 = vmatmul.mubr.bf16.gmra.mxu0 %v441
        %v562 = vpop.f32.mrf.mxu0
        %v563 = vadd.f32 0.0, %v562
        %v564 = vpop.f32.mrf.mxu0
        %v565 = vpop.f32.mrf.mxu0
        %v566 = vadd.f32 0.0, %v565
        %v567 = vpop.f32.mrf.mxu0
        %568 = vmatprep.mubr.bf16.mxu0 0
        %569 = vmatmul.mubr.bf16.gmra.mxu0 %v442
        %v570 = vpop.f32.mrf.mxu0
        %v571 = vadd.f32 0.0, %v570
        %v572 = vpop.f32.mrf.mxu0
        %v573 = vpop.f32.mrf.mxu0
        %v574 = vadd.f32 0.0, %v573
        %v575 = vpop.f32.mrf.mxu0
        %576 = vmatprep.mubr.bf16.mxu0 0
        %577 = vmatmul.mubr.bf16.gmra.mxu0 %v443
        %v578 = vpop.f32.mrf.mxu0
        %v579 = vadd.f32 0.0, %v578
        %v580 = vpop.f32.mrf.mxu0
        %v581 = vpop.f32.mrf.mxu0
        %v582 = vadd.f32 0.0, %v581
        %v583 = vpop.f32.mrf.mxu0
        %584 = vmatprep.mubr.bf16.mxu0 0
        %585 = vmatmul.mubr.bf16.gmra.mxu0 %v444
        %v586 = vpop.f32.mrf.mxu0
        %v587 = vadd.f32 0.0, %v586
        %v588 = vpop.f32.mrf.mxu0
        %v589 = vpop.f32.mrf.mxu0
        %v590 = vadd.f32 0.0, %v589
        %v591 = vpop.f32.mrf.mxu0
        %592 = vmatprep.mubr.bf16.mxu0 0
        %593 = vmatmul.mubr.bf16.gmra.mxu0 %v445
        %v594 = vpop.f32.mrf.mxu0
        %v595 = vadd.f32 0.0, %v594
        %v596 = vpop.f32.mrf.mxu0
        %v597 = vpop.f32.mrf.mxu0
        %v598 = vadd.f32 0.0, %v597
        %v599 = vpop.f32.mrf.mxu0
        %600 = vmatprep.mubr.bf16.mxu0 0
        %601 = vmatmul.mubr.bf16.gmra.mxu0 %v446
        %v602 = vpop.f32.mrf.mxu0
        %v603 = vadd.f32 0.0, %v602
        %v604 = vpop.f32.mrf.mxu0
        %v605 = vpop.f32.mrf.mxu0
        %v606 = vadd.f32 0.0, %v605
        %v607 = vpop.f32.mrf.mxu0
        %608 = vmatprep.mubr.bf16.mxu0 0
        %609 = vmatmul.mubr.bf16.gmra.mxu0 %v447
        %v610 = vpop.f32.mrf.mxu0
        %v611 = vadd.f32 0.0, %v610
        %v612 = vpop.f32.mrf.mxu0
        %v613 = vpop.f32.mrf.mxu0
        %v614 = vadd.f32 0.0, %v613
        %v615 = vpop.f32.mrf.mxu0
        %616 = vmatprep.mubr.bf16.mxu0 0
        %617 = vmatmul.mubr.bf16.gmra.mxu0 %v448
        %v618 = vpop.f32.mrf.mxu0
        %v619 = vadd.f32 0.0, %v618
        %v620 = vpop.f32.mrf.mxu0
        %v621 = vpop.f32.mrf.mxu0
        %v622 = vadd.f32 0.0, %v621
        %v623 = vpop.f32.mrf.mxu0
        %624 = vmatprep.mubr.bf16.mxu0 0
        %625 = vmatmul.mubr.bf16.gmra.mxu0 %v449
        %v626 = vpop.f32.mrf.mxu0
        %v627 = vadd.f32 0.0, %v626
        %v628 = vpop.f32.mrf.mxu0
        %v629 = vpop.f32.mrf.mxu0
        %v630 = vadd.f32 0.0, %v629
        %v631 = vpop.f32.mrf.mxu0
        %632 = vmatprep.mubr.bf16.mxu0 0
        %633 = vmatmul.mubr.bf16.gmra.mxu0 %v450
        %v634 = vpop.f32.mrf.mxu0
        %v635 = vadd.f32 0.0, %v634
        %v636 = vpop.f32.mrf.mxu0
        %v637 = vpop.f32.mrf.mxu0
        %v638 = vadd.f32 0.0, %v637
        %v639 = vpop.f32.mrf.mxu0
        %640 = vmatprep.mubr.bf16.mxu0 0
        %641 = vmatmul.mubr.bf16.gmra.mxu0 %v451
        %v642 = vpop.f32.mrf.mxu0
        %v643 = vadd.f32 0.0, %v642
        %v644 = vpop.f32.mrf.mxu0
        %v645 = vpop.f32.mrf.mxu0
        %v646 = vadd.f32 0.0, %v645
        %v647 = vpop.f32.mrf.mxu0
        %648 = vmatprep.mubr.bf16.mxu0 0
        %649 = vmatmul.mubr.bf16.gmra.mxu0 %v452
        %v650 = vpop.f32.mrf.mxu0
        %v651 = vadd.f32 0.0, %v650
        %v652 = vpop.f32.mrf.mxu0
        %v653 = vpop.f32.mrf.mxu0
        %v654 = vadd.f32 0.0, %v653
        %v655 = vpop.f32.mrf.mxu0
        %656 = vmatprep.mubr.bf16.mxu0 0
        %657 = vmatmul.mubr.bf16.gmra.mxu0 %v453
        %v658 = vpop.f32.mrf.mxu0
        %v659 = vadd.f32 0.0, %v658
        %v660 = vpop.f32.mrf.mxu0
        %v661 = vpop.f32.mrf.mxu0
        %v662 = vadd.f32 0.0, %v661
        %v663 = vpop.f32.mrf.mxu0
        %664 = vmatprep.mubr.bf16.mxu0 0
        %665 = vmatmul.mubr.bf16.gmra.mxu0 %v454
        %v666 = vpop.f32.mrf.mxu0
        %v667 = vadd.f32 0.0, %v666
        %v668 = vpop.f32.mrf.mxu0
        %v669 = vpop.f32.mrf.mxu0
        %v670 = vadd.f32 0.0, %v669
        %v671 = vpop.f32.mrf.mxu0
        %672 = vmatprep.mubr.bf16.mxu0 0
        %673 = vmatmul.mubr.bf16.gmra.mxu0 %v455
        %v674 = vpop.f32.mrf.mxu0
        %v675 = vadd.f32 0.0, %v674
        %v676 = vpop.f32.mrf.mxu0
        %v677 = vpop.f32.mrf.mxu0
        %v678 = vadd.f32 0.0, %v677
        %v679 = vpop.f32.mrf.mxu0
        %680 = vdwg.mxu0
        %v681 = vadd.f32 %v296, %v555
        %v682 = vadd.f32 %v297, %v558
        %v683 = vadd.f32 %v298, %v563
        %v684 = vadd.f32 %v299, %v566
        %v685 = vadd.f32 %v300, %v571
        %v686 = vadd.f32 %v301, %v574
        %v687 = vadd.f32 %v302, %v579
        %v688 = vadd.f32 %v303, %v582
        %v689 = vadd.f32 %v304, %v587
        %v690 = vadd.f32 %v305, %v590
        %v691 = vadd.f32 %v306, %v595
        %v692 = vadd.f32 %v307, %v598
        %v693 = vadd.f32 %v308, %v603
        %v694 = vadd.f32 %v309, %v606
        %v695 = vadd.f32 %v310, %v611
        %v696 = vadd.f32 %v311, %v614
        %v697 = vadd.f32 %v312, %v619
        %v698 = vadd.f32 %v313, %v622
        %v699 = vadd.f32 %v314, %v627
        %v700 = vadd.f32 %v315, %v630
        %v701 = vadd.f32 %v316, %v635
        %v702 = vadd.f32 %v317, %v638
        %v703 = vadd.f32 %v318, %v643
        %v704 = vadd.f32 %v319, %v646
        %v705 = vadd.f32 %v320, %v651
        %v706 = vadd.f32 %v321, %v654
        %v707 = vadd.f32 %v322, %v659
        %v708 = vadd.f32 %v323, %v662
        %v709 = vadd.f32 %v324, %v667
        %v710 = vadd.f32 %v325, %v670
        %v711 = vadd.f32 %v326, %v675
        %v712 = vadd.f32 %v327, %v678
        %713 = vst [vmem:[#allocation2] sm:$0xff] %v681
        %714 = vst [vmem:[#allocation2 + $0x8] sm:$0xff] %v682
        %715 = vst [vmem:[#allocation2 + $0x10] sm:$0xff] %v683
        %716 = vst [vmem:[#allocation2 + $0x18] sm:$0xff] %v684
        %717 = vst [vmem:[#allocation2 + $0x20] sm:$0xff] %v685
        %718 = vst [vmem:[#allocation2 + $0x28] sm:$0xff] %v686
        %719 = vst [vmem:[#allocation2 + $0x30] sm:$0xff] %v687
        %720 = vst [vmem:[#allocation2 + $0x38] sm:$0xff] %v688
        %721 = vst [vmem:[#allocation2 + $0x40] sm:$0xff] %v689
        %722 = vst [vmem:[#allocation2 + $0x48] sm:$0xff] %v690
        %723 = vst [vmem:[#allocation2 + $0x50] sm:$0xff] %v691
        %724 = vst [vmem:[#allocation2 + $0x58] sm:$0xff] %v692
        %725 = vst [vmem:[#allocation2 + $0x60] sm:$0xff] %v693
        %726 = vst [vmem:[#allocation2 + $0x68] sm:$0xff] %v694
        %727 = vst [vmem:[#allocation2 + $0x70] sm:$0xff] %v695
        %728 = vst [vmem:[#allocation2 + $0x78] sm:$0xff] %v696
        %729 = vst [vmem:[#allocation2 + $0x80] sm:$0xff] %v697
        %730 = vst [vmem:[#allocation2 + $0x88] sm:$0xff] %v698
        %731 = vst [vmem:[#allocation2 + $0x90] sm:$0xff] %v699
        %732 = vst [vmem:[#allocation2 + $0x98] sm:$0xff] %v700
        %733 = vst [vmem:[#allocation2 + $0xa0] sm:$0xff] %v701
        %734 = vst [vmem:[#allocation2 + $0xa8] sm:$0xff] %v702
        %735 = vst [vmem:[#allocation2 + $0xb0] sm:$0xff] %v703
        %736 = vst [vmem:[#allocation2 + $0xb8] sm:$0xff] %v704
        %737 = vst [vmem:[#allocation2 + $0xc0] sm:$0xff] %v705
        %738 = vst [vmem:[#allocation2 + $0xc8] sm:$0xff] %v706
        %739 = vst [vmem:[#allocation2 + $0xd0] sm:$0xff] %v707
        %740 = vst [vmem:[#allocation2 + $0xd8] sm:$0xff] %v708
        %741 = vst [vmem:[#allocation2 + $0xe0] sm:$0xff] %v709
        %742 = vst [vmem:[#allocation2 + $0xe8] sm:$0xff] %v710
        %743 = vst [vmem:[#allocation2 + $0xf0] sm:$0xff] %v711
        %744 = vst [vmem:[#allocation2 + $0xf8] sm:$0xff] %v712
        // Predicated region
        $region45: #{db_forward.8} parent=31 // pred_check
          %p745 = pneg %p260
        $region46: #{db_forward.8} parent=31 // pred_check_branch
          %747 = sbr.rel (%p745) target = $region48
        $region47: #{db_forward.8} parent=31 // pred_region
          %v748 = vld [vmem:[#allocation2] sm:$0xff]
          %v749 = vld [vmem:[#allocation2 + $0x8] sm:$0xff]
          %v750 = vld [vmem:[#allocation2 + $0x10] sm:$0xff]
          %v751 = vld [vmem:[#allocation2 + $0x18] sm:$0xff]
          %v752 = vld [vmem:[#allocation2 + $0x20] sm:$0xff]
          %v753 = vld [vmem:[#allocation2 + $0x28] sm:$0xff]
          %v754 = vld [vmem:[#allocation2 + $0x30] sm:$0xff]
          %v755 = vld [vmem:[#allocation2 + $0x38] sm:$0xff]
          %v756 = vld [vmem:[#allocation2 + $0x40] sm:$0xff]
          %v757 = vld [vmem:[#allocation2 + $0x48] sm:$0xff]
          %v758 = vld [vmem:[#allocation2 + $0x50] sm:$0xff]
          %v759 = vld [vmem:[#allocation2 + $0x58] sm:$0xff]
          %v760 = vld [vmem:[#allocation2 + $0x60] sm:$0xff]
          %v761 = vld [vmem:[#allocation2 + $0x68] sm:$0xff]
          %v762 = vld [vmem:[#allocation2 + $0x70] sm:$0xff]
          %v763 = vld [vmem:[#allocation2 + $0x78] sm:$0xff]
          %v764 = vld [vmem:[#allocation2 + $0x80] sm:$0xff]
          %v765 = vld [vmem:[#allocation2 + $0x88] sm:$0xff]
          %v766 = vld [vmem:[#allocation2 + $0x90] sm:$0xff]
          %v767 = vld [vmem:[#allocation2 + $0x98] sm:$0xff]
          %v768 = vld [vmem:[#allocation2 + $0xa0] sm:$0xff]
          %v769 = vld [vmem:[#allocation2 + $0xa8] sm:$0xff]
          %v770 = vld [vmem:[#allocation2 + $0xb0] sm:$0xff]
          %v771 = vld [vmem:[#allocation2 + $0xb8] sm:$0xff]
          %v772 = vld [vmem:[#allocation2 + $0xc0] sm:$0xff]
          %v773 = vld [vmem:[#allocation2 + $0xc8] sm:$0xff]
          %v774 = vld [vmem:[#allocation2 + $0xd0] sm:$0xff]
          %v775 = vld [vmem:[#allocation2 + $0xd8] sm:$0xff]
          %v776 = vld [vmem:[#allocation2 + $0xe0] sm:$0xff]
          %v777 = vld [vmem:[#allocation2 + $0xe8] sm:$0xff]
          %v778 = vld [vmem:[#allocation2 + $0xf0] sm:$0xff]
          %v779 = vld [vmem:[#allocation2 + $0xf8] sm:$0xff]
          %v780 = vld [vmem:[#allocation5] sm:$0x1]
          %v781 = vlaneseq
          %v782 = vshrl.u32 %v781, 7
          %v783 = vsub.s32 0, %v782
          %v784 = vrot.slane %v780, %v783
          %v785 = vmul.f32 %v748, %v784
          %v786 = vmul.f32 %v749, %v784
          %v787 = vmul.f32 %v750, %v784
          %v788 = vmul.f32 %v751, %v784
          %v789 = vmul.f32 %v752, %v784
          %v790 = vmul.f32 %v753, %v784
          %v791 = vmul.f32 %v754, %v784
          %v792 = vmul.f32 %v755, %v784
          %v793 = vmul.f32 %v756, %v784
          %v794 = vmul.f32 %v757, %v784
          %v795 = vmul.f32 %v758, %v784
          %v796 = vmul.f32 %v759, %v784
          %v797 = vmul.f32 %v760, %v784
          %v798 = vmul.f32 %v761, %v784
          %v799 = vmul.f32 %v762, %v784
          %v800 = vmul.f32 %v763, %v784
          %v801 = vmul.f32 %v764, %v784
          %v802 = vmul.f32 %v765, %v784
          %v803 = vmul.f32 %v766, %v784
          %v804 = vmul.f32 %v767, %v784
          %v805 = vmul.f32 %v768, %v784
          %v806 = vmul.f32 %v769, %v784
          %v807 = vmul.f32 %v770, %v784
          %v808 = vmul.f32 %v771, %v784
          %v809 = vmul.f32 %v772, %v784
          %v810 = vmul.f32 %v773, %v784
          %v811 = vmul.f32 %v774, %v784
          %v812 = vmul.f32 %v775, %v784
          %v813 = vmul.f32 %v776, %v784
          %v814 = vmul.f32 %v777, %v784
          %v815 = vmul.f32 %v778, %v784
          %v816 = vmul.f32 %v779, %v784
          %v817 = vld [vmem:[#allocation5 + $0x1] sm:$0x1]
          %v818 = vlaneseq
          %v819 = vshrl.u32 %v818, 7
          %v820 = vsub.s32 0, %v819
          %v821 = vrot.slane %v817, %v820
          %v822 = vadd.f32 %v785, %v821
          %v823 = vadd.f32 %v786, %v821
          %v824 = vadd.f32 %v787, %v821
          %v825 = vadd.f32 %v788, %v821
          %v826 = vadd.f32 %v789, %v821
          %v827 = vadd.f32 %v790, %v821
          %v828 = vadd.f32 %v791, %v821
          %v829 = vadd.f32 %v792, %v821
          %v830 = vadd.f32 %v793, %v821
          %v831 = vadd.f32 %v794, %v821
          %v832 = vadd.f32 %v795, %v821
          %v833 = vadd.f32 %v796, %v821
          %v834 = vadd.f32 %v797, %v821
          %v835 = vadd.f32 %v798, %v821
          %v836 = vadd.f32 %v799, %v821
          %v837 = vadd.f32 %v800, %v821
          %v838 = vadd.f32 %v801, %v821
          %v839 = vadd.f32 %v802, %v821
          %v840 = vadd.f32 %v803, %v821
          %v841 = vadd.f32 %v804, %v821
          %v842 = vadd.f32 %v805, %v821
          %v843 = vadd.f32 %v806, %v821
          %v844 = vadd.f32 %v807, %v821
          %v845 = vadd.f32 %v808, %v821
          %v846 = vadd.f32 %v809, %v821
          %v847 = vadd.f32 %v810, %v821
          %v848 = vadd.f32 %v811, %v821
          %v849 = vadd.f32 %v812, %v821
          %v850 = vadd.f32 %v813, %v821
          %v851 = vadd.f32 %v814, %v821
          %v852 = vadd.f32 %v815, %v821
          %v853 = vadd.f32 %v816, %v821
          %v854 = vmax.f32 %v822, 0.0
          %v855 = vmax.f32 %v823, 0.0
          %v856 = vmax.f32 %v824, 0.0
          %v857 = vmax.f32 %v825, 0.0
          %v858 = vmax.f32 %v826, 0.0
          %v859 = vmax.f32 %v827, 0.0
          %v860 = vmax.f32 %v828, 0.0
          %v861 = vmax.f32 %v829, 0.0
          %v862 = vmax.f32 %v830, 0.0
          %v863 = vmax.f32 %v831, 0.0
          %v864 = vmax.f32 %v832, 0.0
          %v865 = vmax.f32 %v833, 0.0
          %v866 = vmax.f32 %v834, 0.0
          %v867 = vmax.f32 %v835, 0.0
          %v868 = vmax.f32 %v836, 0.0
          %v869 = vmax.f32 %v837, 0.0
          %v870 = vmax.f32 %v838, 0.0
          %v871 = vmax.f32 %v839, 0.0
          %v872 = vmax.f32 %v840, 0.0
          %v873 = vmax.f32 %v841, 0.0
          %v874 = vmax.f32 %v842, 0.0
          %v875 = vmax.f32 %v843, 0.0
          %v876 = vmax.f32 %v844, 0.0
          %v877 = vmax.f32 %v845, 0.0
          %v878 = vmax.f32 %v846, 0.0
          %v879 = vmax.f32 %v847, 0.0
          %v880 = vmax.f32 %v848, 0.0
          %v881 = vmax.f32 %v849, 0.0
          %v882 = vmax.f32 %v850, 0.0
          %v883 = vmax.f32 %v851, 0.0
          %v884 = vmax.f32 %v852, 0.0
          %v885 = vmax.f32 %v853, 0.0
          %v886 = vpack.c.bf16 %v855, %v854
          %v887 = vpack.c.bf16 %v857, %v856
          %v888 = vpack.c.bf16 %v859, %v858
          %v889 = vpack.c.bf16 %v861, %v860
          %v890 = vpack.c.bf16 %v863, %v862
          %v891 = vpack.c.bf16 %v865, %v864
          %v892 = vpack.c.bf16 %v867, %v866
          %v893 = vpack.c.bf16 %v869, %v868
          %v894 = vpack.c.bf16 %v871, %v870
          %v895 = vpack.c.bf16 %v873, %v872
          %v896 = vpack.c.bf16 %v875, %v874
          %v897 = vpack.c.bf16 %v877, %v876
          %v898 = vpack.c.bf16 %v879, %v878
          %v899 = vpack.c.bf16 %v881, %v880
          %v900 = vpack.c.bf16 %v883, %v882
          %v901 = vpack.c.bf16 %v885, %v884
          %v918 = vunpack.c.l.b16 %v886
          %v919 = vunpack.c.h.b16 %v886
          %v920 = vunpack.c.l.b16 %v887
          %v921 = vunpack.c.h.b16 %v887
          %v922 = vunpack.c.l.b16 %v888
          %v923 = vunpack.c.h.b16 %v888
          %v924 = vunpack.c.l.b16 %v889
          %v925 = vunpack.c.h.b16 %v889
          %v926 = vunpack.c.l.b16 %v890
          %v927 = vunpack.c.h.b16 %v890
          %v928 = vunpack.c.l.b16 %v891
          %v929 = vunpack.c.h.b16 %v891
          %v930 = vunpack.c.l.b16 %v892
          %v931 = vunpack.c.h.b16 %v892
          %v932 = vunpack.c.l.b16 %v893
          %v933 = vunpack.c.h.b16 %v893
          %v934 = vunpack.c.l.b16 %v894
          %v935 = vunpack.c.h.b16 %v894
          %v936 = vunpack.c.l.b16 %v895
          %v937 = vunpack.c.h.b16 %v895
          %v938 = vunpack.c.l.b16 %v896
          %v939 = vunpack.c.h.b16 %v896
          %v940 = vunpack.c.l.b16 %v897
          %v941 = vunpack.c.h.b16 %v897
          %v942 = vunpack.c.l.b16 %v898
          %v943 = vunpack.c.h.b16 %v898
          %v944 = vunpack.c.l.b16 %v899
          %v945 = vunpack.c.h.b16 %v899
          %v946 = vunpack.c.l.b16 %v900
          %v947 = vunpack.c.h.b16 %v900
          %v948 = vunpack.c.l.b16 %v901
          %v949 = vunpack.c.h.b16 %v901
          %v950 = vpack.c.b16 %v918, %v918
          %v951 = vpack.c.b16 %v919, %v919
          %v952 = vpack.c.b16 %v920, %v920
          %v953 = vpack.c.b16 %v921, %v921
          %v954 = vpack.c.b16 %v922, %v922
          %v955 = vpack.c.b16 %v923, %v923
          %v956 = vpack.c.b16 %v924, %v924
          %v957 = vpack.c.b16 %v925, %v925
          %v958 = vpack.c.b16 %v926, %v926
          %v959 = vpack.c.b16 %v927, %v927
          %v960 = vpack.c.b16 %v928, %v928
          %v961 = vpack.c.b16 %v929, %v929
          %v962 = vpack.c.b16 %v930, %v930
          %v963 = vpack.c.b16 %v931, %v931
          %v964 = vpack.c.b16 %v932, %v932
          %v965 = vpack.c.b16 %v933, %v933
          %v966 = vpack.c.b16 %v934, %v934
          %v967 = vpack.c.b16 %v935, %v935
          %v968 = vpack.c.b16 %v936, %v936
          %v969 = vpack.c.b16 %v937, %v937
          %v970 = vpack.c.b16 %v938, %v938
          %v971 = vpack.c.b16 %v939, %v939
          %v972 = vpack.c.b16 %v940, %v940
          %v973 = vpack.c.b16 %v941, %v941
          %v974 = vpack.c.b16 %v942, %v942
          %v975 = vpack.c.b16 %v943, %v943
          %v976 = vpack.c.b16 %v944, %v944
          %v977 = vpack.c.b16 %v945, %v945
          %v978 = vpack.c.b16 %v946, %v946
          %v979 = vpack.c.b16 %v947, %v947
          %v980 = vpack.c.b16 %v948, %v948
          %v981 = vpack.c.b16 %v949, %v949
          %1014 = vst [vmem:[%s257] sm:$0xf] %v950
          %1015 = vst [vmem:[%s257 + $0x4] sm:$0xf] %v951
          %1016 = vst [vmem:[%s257 + $0x8] sm:$0xf] %v952
          %1017 = vst [vmem:[%s257 + $0xc] sm:$0xf] %v953
          %1018 = vst [vmem:[%s257 + $0x10] sm:$0xf] %v954
          %1019 = vst [vmem:[%s257 + $0x14] sm:$0xf] %v955
          %1020 = vst [vmem:[%s257 + $0x18] sm:$0xf] %v956
          %1021 = vst [vmem:[%s257 + $0x1c] sm:$0xf] %v957
          %1022 = vst [vmem:[%s257 + $0x20] sm:$0xf] %v958
          %1023 = vst [vmem:[%s257 + $0x24] sm:$0xf] %v959
          %1024 = vst [vmem:[%s257 + $0x28] sm:$0xf] %v960
          %1025 = vst [vmem:[%s257 + $0x2c] sm:$0xf] %v961
          %1026 = vst [vmem:[%s257 + $0x30] sm:$0xf] %v962
          %1027 = vst [vmem:[%s257 + $0x34] sm:$0xf] %v963
          %1028 = vst [vmem:[%s257 + $0x38] sm:$0xf] %v964
          %1029 = vst [vmem:[%s257 + $0x3c] sm:$0xf] %v965
          %1030 = vst [vmem:[%s257 + $0x40] sm:$0xf] %v966
          %1031 = vst [vmem:[%s257 + $0x44] sm:$0xf] %v967
          %1032 = vst [vmem:[%s257 + $0x48] sm:$0xf] %v968
          %1033 = vst [vmem:[%s257 + $0x4c] sm:$0xf] %v969
          %1034 = vst [vmem:[%s257 + $0x50] sm:$0xf] %v970
          %1035 = vst [vmem:[%s257 + $0x54] sm:$0xf] %v971
          %1036 = vst [vmem:[%s257 + $0x58] sm:$0xf] %v972
          %1037 = vst [vmem:[%s257 + $0x5c] sm:$0xf] %v973
          %1038 = vst [vmem:[%s257 + $0x60] sm:$0xf] %v974
          %1039 = vst [vmem:[%s257 + $0x64] sm:$0xf] %v975
          %1040 = vst [vmem:[%s257 + $0x68] sm:$0xf] %v976
          %1041 = vst [vmem:[%s257 + $0x6c] sm:$0xf] %v977
          %1042 = vst [vmem:[%s257 + $0x70] sm:$0xf] %v978
          %1043 = vst [vmem:[%s257 + $0x74] sm:$0xf] %v979
          %1044 = vst [vmem:[%s257 + $0x78] sm:$0xf] %v980
          %1045 = vst [vmem:[%s257 + $0x7c] sm:$0xf] %v981
        $region48: #{db_forward.8} parent=31 // pred_fallthru
          _
        %s1046 = smul.u32 32, %s21
        %p1047 = scmp.lt.s32.totalorder %s1046, 63
        %s1048 = scalar_select %p1047, %s1046, 63
        %p1049 = scmp.lt.s32.totalorder %s22, 0
        %s1050 = scalar_select %p1049, %s22, 0
        %s1051 = sadd.s32 %s1050, %s1048
        %s1052 = smul.addr %s1051, 4
        %s1053 = scalar_lea.vmem %s3, %s1052
        // Predicated region
        $region49: #{db_forward.8} parent=31 // pred_check
          %p1054 = pneg %p137
        $region50: #{db_forward.8} parent=31 // pred_check_branch
          %1056 = sbr.rel (%p1054) target = $region52
        $region51: #{db_forward.8} parent=31 // pred_region
          %s1057 = smul.u32 32, %s21
        $region52: #{db_forward.8} parent=31 // pred_fallthru
          _
      $region32: #{db_forward.8} parent=5 // pred_fallthru
        _
      %p1058 = scmp.le.s32.totalorder 2, %s11
      // Predicated region
      $region53: #{db_forward.8} parent=5 // pred_check
        %p1059 = pneg %p1058
      $region54: #{db_forward.8} parent=5 // pred_check_branch
        %1061 = sbr.rel (%p1059) target = $region56
      $region55: #{db_forward.8} parent=5 // pred_region
        %s1062 = ssub.s32 %s11, 2
        // Predicated region
        $region57: #{db_forward.8} parent=55 // pred_check
          %p1063 = pneg %p143
        $region58: #{db_forward.8} parent=55 // pred_check_branch
          %1065 = sbr.rel (%p1063) target = $region60
        $region59: #{db_forward.8} parent=55 // pred_region
          %s1066 = smul.u32 32, %s24
          %p1067 = scmp.lt.s32.totalorder %s1066, 63
          %s1068 = scalar_select %p1067, %s1066, 63
          %p1069 = scmp.lt.s32.totalorder %s25, 0
          %s1070 = scalar_select %p1069, %s25, 0
          %s1071 = sadd.s32 %s1070, %s1068
          %s1072 = smul.addr %s1071, 4
          %s1073 = scalar_lea.vmem %s3, %s1072
        $region60: #{db_forward.8} parent=55 // pred_fallthru
          _
      $region56: #{db_forward.8} parent=5 // pred_fallthru
        _
    $region6: #{db_forward.8} parent=1 // loop_footer
      %s15 = sadd.s32 1, %s11
    $region7: #{db_forward.8} parent=1 // loop_footer_branch
      %10 = sbr.rel target = $region3
    $region8: #{db_forward.8} parent=1 // loop_exit
      _
    %1074 = vsyncpa [#allocation4], 1
    %s1075 = scalar_lea.sflag [#allocation4], 1
    %1076 = vsyncpa %s1075, 1
    %1077 = vsyncpa [#allocation6], 1

// kernel: db_forward.10
$region0: #{db_forward.10}
  #allocation0 [shape = 'u32[]', space=smem, size = 0x4, offset = 0x4, fixed_abs, tag = 'smem constant byte address 0x4 - core index']
  #allocation1 [shape = 'u32[144,128]{1,0:T(1,128)}', space=vmem, size = 0x12000, scoped, tag = 'internal scratch']
  #allocation2 [shape = 'f32[128,128]{1,0:T(8,128)}', space=vmem, size = 0x10000, scoped, tag = 'scratch operand']
  %s0 = inlined_call_operand.vmem [shape: bf16[128,128], index: 0, kind: input, shape index: {}]
  %s1 = inlined_call_operand.vmem [shape: bf16[128,128], index: 1, kind: input, shape index: {}]
  %s2 = inlined_call_operand.vmem [shape: f32[2,128], index: 2, kind: input, shape index: {}]
  %s3 = inlined_call_operand.vmem [shape: bf16[128,128], index: 3, kind: output, shape index: {}]
  %s4 = sld [smem:[#allocation0]]
  $region30: #{db_forward.10} parent=0
    _
  %s6 = ssub.s32 1, %s4
  %s7 = scalar_select 0, %s6, %s4
  // Predicated region
  $region2: #{db_forward.10} parent=0 // pred_check
    _
  $region3: #{db_forward.10} parent=0 // pred_check_branch
    %9 = sbr.rel (0) target = $region5
  $region4: #{db_forward.10} parent=0 // pred_region
    _
  $region5: #{db_forward.10} parent=0 // pred_fallthru
    _
  // Predicated region
  $region6: #{db_forward.10} parent=0 // pred_check
    _
  $region7: #{db_forward.10} parent=0 // pred_check_branch
    %11 = sbr.rel (0) target = $region9
  $region8: #{db_forward.10} parent=0 // pred_region
    _
  $region9: #{db_forward.10} parent=0 // pred_fallthru
    _
  // Predicated region
  $region10: #{db_forward.10} parent=0 // pred_check
    _
  $region11: #{db_forward.10} parent=0 // pred_check_branch
    %13 = sbr.rel (0) target = $region13
  $region12: #{db_forward.10} parent=0 // pred_region
    _
  $region13: #{db_forward.10} parent=0 // pred_fallthru
    _
  %p15 = scmp.eq.s32.totalorder 0, 0
  // Predicated region
  $region14: #{db_forward.10} parent=0 // pred_check
    %p16 = pneg %p15
  $region15: #{db_forward.10} parent=0 // pred_check_branch
    %18 = sbr.rel (%p16) target = $region17
  $region16: #{db_forward.10} parent=0 // pred_region
    %19 = vst [vmem:[#allocation2] sm:$0xff] 0.0
    %20 = vst [vmem:[#allocation2 + $0x8] sm:$0xff] 0.0
    %21 = vst [vmem:[#allocation2 + $0x10] sm:$0xff] 0.0
    %22 = vst [vmem:[#allocation2 + $0x18] sm:$0xff] 0.0
    %23 = vst [vmem:[#allocation2 + $0x20] sm:$0xff] 0.0
    %24 = vst [vmem:[#allocation2 + $0x28] sm:$0xff] 0.0
    %25 = vst [vmem:[#allocation2 + $0x30] sm:$0xff] 0.0
    %26 = vst [vmem:[#allocation2 + $0x38] sm:$0xff] 0.0
    %27 = vst [vmem:[#allocation2 + $0x40] sm:$0xff] 0.0
    %28 = vst [vmem:[#allocation2 + $0x48] sm:$0xff] 0.0
    %29 = vst [vmem:[#allocation2 + $0x50] sm:$0xff] 0.0
    %30 = vst [vmem:[#allocation2 + $0x58] sm:$0xff] 0.0
    %31 = vst [vmem:[#allocation2 + $0x60] sm:$0xff] 0.0
    %32 = vst [vmem:[#allocation2 + $0x68] sm:$0xff] 0.0
    %33 = vst [vmem:[#allocation2 + $0x70] sm:$0xff] 0.0
    %34 = vst [vmem:[#allocation2 + $0x78] sm:$0xff] 0.0
  $region17: #{db_forward.10} parent=0 // pred_fallthru
    _
  %v35 = vld [vmem:[#allocation2] sm:$0xff]
  %v36 = vld [vmem:[#allocation2 + $0x8] sm:$0xff]
  %v37 = vld [vmem:[#allocation2 + $0x10] sm:$0xff]
  %v38 = vld [vmem:[#allocation2 + $0x18] sm:$0xff]
  %v39 = vld [vmem:[#allocation2 + $0x20] sm:$0xff]
  %v40 = vld [vmem:[#allocation2 + $0x28] sm:$0xff]
  %v41 = vld [vmem:[#allocation2 + $0x30] sm:$0xff]
  %v42 = vld [vmem:[#allocation2 + $0x38] sm:$0xff]
  %v43 = vld [vmem:[#allocation2 + $0x40] sm:$0xff]
  %v44 = vld [vmem:[#allocation2 + $0x48] sm:$0xff]
  %v45 = vld [vmem:[#allocation2 + $0x50] sm:$0xff]
  %v46 = vld [vmem:[#allocation2 + $0x58] sm:$0xff]
  %v47 = vld [vmem:[#allocation2 + $0x60] sm:$0xff]
  %v48 = vld [vmem:[#allocation2 + $0x68] sm:$0xff]
  %v49 = vld [vmem:[#allocation2 + $0x70] sm:$0xff]
  %v50 = vld [vmem:[#allocation2 + $0x78] sm:$0xff]
  %v51 = vld [vmem:[%s0] sm:$0xf]
  %v52 = vld [vmem:[%s0 + $0x4] sm:$0xf]
  %v53 = vld [vmem:[%s0 + $0x8] sm:$0xf]
  %v54 = vld [vmem:[%s0 + $0xc] sm:$0xf]
  %v55 = vld [vmem:[%s0 + $0x10] sm:$0xf]
  %v56 = vld [vmem:[%s0 + $0x14] sm:$0xf]
  %v57 = vld [vmem:[%s0 + $0x18] sm:$0xf]
  %v58 = vld [vmem:[%s0 + $0x1c] sm:$0xf]
  %v59 = vld [vmem:[%s0 + $0x20] sm:$0xf]
  %v60 = vld [vmem:[%s0 + $0x24] sm:$0xf]
  %v61 = vld [vmem:[%s0 + $0x28] sm:$0xf]
  %v62 = vld [vmem:[%s0 + $0x2c] sm:$0xf]
  %v63 = vld [vmem:[%s0 + $0x30] sm:$0xf]
  %v64 = vld [vmem:[%s0 + $0x34] sm:$0xf]
  %v65 = vld [vmem:[%s0 + $0x38] sm:$0xf]
  %v66 = vld [vmem:[%s0 + $0x3c] sm:$0xf]
  %v67 = vld [vmem:[%s1] sm:$0xf]
  %v68 = vld [vmem:[%s1 + $0x4] sm:$0xf]
  %v69 = vld [vmem:[%s1 + $0x8] sm:$0xf]
  %v70 = vld [vmem:[%s1 + $0xc] sm:$0xf]
  %v71 = vld [vmem:[%s1 + $0x10] sm:$0xf]
  %v72 = vld [vmem:[%s1 + $0x14] sm:$0xf]
  %v73 = vld [vmem:[%s1 + $0x18] sm:$0xf]
  %v74 = vld [vmem:[%s1 + $0x1c] sm:$0xf]
  %v75 = vld [vmem:[%s1 + $0x20] sm:$0xf]
  %v76 = vld [vmem:[%s1 + $0x24] sm:$0xf]
  %v77 = vld [vmem:[%s1 + $0x28] sm:$0xf]
  %v78 = vld [vmem:[%s1 + $0x2c] sm:$0xf]
  %v79 = vld [vmem:[%s1 + $0x30] sm:$0xf]
  %v80 = vld [vmem:[%s1 + $0x34] sm:$0xf]
  %v81 = vld [vmem:[%s1 + $0x38] sm:$0xf]
  %v82 = vld [vmem:[%s1 + $0x3c] sm:$0xf]
  %v99 = vunpack.c.l.b16 %v51
  %v100 = vunpack.c.l.b16 %v52
  %v101 = vunpack.c.l.b16 %v53
  %v102 = vunpack.c.l.b16 %v54
  %v103 = vunpack.c.l.b16 %v55
  %v104 = vunpack.c.l.b16 %v56
  %v105 = vunpack.c.l.b16 %v57
  %v106 = vunpack.c.l.b16 %v58
  %v107 = vunpack.c.l.b16 %v59
  %v108 = vunpack.c.l.b16 %v60
  %v109 = vunpack.c.l.b16 %v61
  %v110 = vunpack.c.l.b16 %v62
  %v111 = vunpack.c.l.b16 %v63
  %v112 = vunpack.c.l.b16 %v64
  %v113 = vunpack.c.l.b16 %v65
  %v114 = vunpack.c.l.b16 %v66
  %v115 = vpack.c.b16 %v100, %v99
  %v116 = vpack.c.b16 %v102, %v101
  %v117 = vpack.c.b16 %v104, %v103
  %v118 = vpack.c.b16 %v106, %v105
  %v119 = vpack.c.b16 %v108, %v107
  %v120 = vpack.c.b16 %v110, %v109
  %v121 = vpack.c.b16 %v112, %v111
  %v122 = vpack.c.b16 %v114, %v113
  %v147 = vunpack.c.l.b16 %v67
  %v148 = vunpack.c.l.b16 %v68
  %v149 = vunpack.c.l.b16 %v69
  %v150 = vunpack.c.l.b16 %v70
  %v151 = vunpack.c.l.b16 %v71
  %v152 = vunpack.c.l.b16 %v72
  %v153 = vunpack.c.l.b16 %v73
  %v154 = vunpack.c.l.b16 %v74
  %v155 = vunpack.c.l.b16 %v75
  %v156 = vunpack.c.l.b16 %v76
  %v157 = vunpack.c.l.b16 %v77
  %v158 = vunpack.c.l.b16 %v78
  %v159 = vunpack.c.l.b16 %v79
  %v160 = vunpack.c.l.b16 %v80
  %v161 = vunpack.c.l.b16 %v81
  %v162 = vunpack.c.l.b16 %v82
  %v163 = vpack.c.b16 %v148, %v147
  %v164 = vpack.c.b16 %v150, %v149
  %v165 = vpack.c.b16 %v152, %v151
  %v166 = vpack.c.b16 %v154, %v153
  %v167 = vpack.c.b16 %v156, %v155
  %v168 = vpack.c.b16 %v158, %v157
  %v169 = vpack.c.b16 %v160, %v159
  %v170 = vpack.c.b16 %v162, %v161
  %179 = vmatprep.subr.bf16.mxu0 0
  %180 = vmatpush1.bf16.msra.mxu0 %v170
  %181 = vmatprep.subr.bf16.mxu0 0
  %182 = vmatpush1.bf16.msra.mxu0 %v169
  %183 = vmatprep.subr.bf16.mxu0 0
  %184 = vmatpush1.bf16.msra.mxu0 %v168
  %185 = vmatprep.subr.bf16.mxu0 0
  %186 = vmatpush1.bf16.msra.mxu0 %v167
  %187 = vmatprep.subr.bf16.mxu0 0
  %188 = vmatpush1.bf16.msra.mxu0 %v166
  %189 = vmatprep.subr.bf16.mxu0 0
  %190 = vmatpush1.bf16.msra.mxu0 %v165
  %191 = vmatprep.subr.bf16.mxu0 0
  %192 = vmatpush1.bf16.msra.mxu0 %v164
  %193 = vmatprep.subr.bf16.mxu0 0
  %194 = vmatpush1.bf16.msra.mxu0 %v163
  %195 = vmatprep.subr.bf16.mxu0 0
  %196 = vmatpush2.bf16.msra.mxu0 0
  %197 = vmatprep.subr.bf16.mxu0 0
  %198 = vmatpush2.bf16.msra.mxu0 0
  %199 = vmatprep.subr.bf16.mxu0 0
  %200 = vmatpush2.bf16.msra.mxu0 0
  %201 = vmatprep.subr.bf16.mxu0 0
  %202 = vmatpush2.bf16.msra.mxu0 0
  %203 = vmatprep.subr.bf16.mxu0 0
  %204 = vmatpush2.bf16.msra.mxu0 0
  %205 = vmatprep.subr.bf16.mxu0 0
  %206 = vmatpush2.bf16.msra.mxu0 0
  %207 = vmatprep.subr.bf16.mxu0 0
  %208 = vmatpush2.bf16.msra.mxu0 0
  %209 = vmatprep.subr.bf16.mxu0 0
  %210 = vmatpush2.bf16.msra.mxu0 0
  %211 = vmatprep.mubr.bf16.mxu0 0
  %212 = vmatmul.mubr.bf16.gmra.mxu0 %v115
  %v213 = vpop.f32.mrf.mxu0
  %v214 = vadd.f32 0.0, %v213
  %v215 = vpop.f32.mrf.mxu0
  %v216 = vpop.f32.mrf.mxu0
  %v217 = vadd.f32 0.0, %v216
  %v218 = vpop.f32.mrf.mxu0
  %219 = vmatprep.mubr.bf16.mxu0 0
  %220 = vmatmul.mubr.bf16.gmra.mxu0 %v116
  %v221 = vpop.f32.mrf.mxu0
  %v222 = vadd.f32 0.0, %v221
  %v223 = vpop.f32.mrf.mxu0
  %v224 = vpop.f32.mrf.mxu0
  %v225 = vadd.f32 0.0, %v224
  %v226 = vpop.f32.mrf.mxu0
  %227 = vmatprep.mubr.bf16.mxu0 0
  %228 = vmatmul.mubr.bf16.gmra.mxu0 %v117
  %v229 = vpop.f32.mrf.mxu0
  %v230 = vadd.f32 0.0, %v229
  %v231 = vpop.f32.mrf.mxu0
  %v232 = vpop.f32.mrf.mxu0
  %v233 = vadd.f32 0.0, %v232
  %v234 = vpop.f32.mrf.mxu0
  %235 = vmatprep.mubr.bf16.mxu0 0
  %236 = vmatmul.mubr.bf16.gmra.mxu0 %v118
  %v237 = vpop.f32.mrf.mxu0
  %v238 = vadd.f32 0.0, %v237
  %v239 = vpop.f32.mrf.mxu0
  %v240 = vpop.f32.mrf.mxu0
  %v241 = vadd.f32 0.0, %v240
  %v242 = vpop.f32.mrf.mxu0
  %243 = vmatprep.mubr.bf16.mxu0 0
  %244 = vmatmul.mubr.bf16.gmra.mxu0 %v119
  %v245 = vpop.f32.mrf.mxu0
  %v246 = vadd.f32 0.0, %v245
  %v247 = vpop.f32.mrf.mxu0
  %v248 = vpop.f32.mrf.mxu0
  %v249 = vadd.f32 0.0, %v248
  %v250 = vpop.f32.mrf.mxu0
  %251 = vmatprep.mubr.bf16.mxu0 0
  %252 = vmatmul.mubr.bf16.gmra.mxu0 %v120
  %v253 = vpop.f32.mrf.mxu0
  %v254 = vadd.f32 0.0, %v253
  %v255 = vpop.f32.mrf.mxu0
  %v256 = vpop.f32.mrf.mxu0
  %v257 = vadd.f32 0.0, %v256
  %v258 = vpop.f32.mrf.mxu0
  %259 = vmatprep.mubr.bf16.mxu0 0
  %260 = vmatmul.mubr.bf16.gmra.mxu0 %v121
  %v261 = vpop.f32.mrf.mxu0
  %v262 = vadd.f32 0.0, %v261
  %v263 = vpop.f32.mrf.mxu0
  %v264 = vpop.f32.mrf.mxu0
  %v265 = vadd.f32 0.0, %v264
  %v266 = vpop.f32.mrf.mxu0
  %267 = vmatprep.mubr.bf16.mxu0 0
  %268 = vmatmul.mubr.bf16.gmra.mxu0 %v122
  %v269 = vpop.f32.mrf.mxu0
  %v270 = vadd.f32 0.0, %v269
  %v271 = vpop.f32.mrf.mxu0
  %v272 = vpop.f32.mrf.mxu0
  %v273 = vadd.f32 0.0, %v272
  %v274 = vpop.f32.mrf.mxu0
  %275 = vdwg.mxu0
  %v276 = vadd.f32 %v35, %v214
  %v277 = vadd.f32 %v36, %v217
  %v278 = vadd.f32 %v37, %v222
  %v279 = vadd.f32 %v38, %v225
  %v280 = vadd.f32 %v39, %v230
  %v281 = vadd.f32 %v40, %v233
  %v282 = vadd.f32 %v41, %v238
  %v283 = vadd.f32 %v42, %v241
  %v284 = vadd.f32 %v43, %v246
  %v285 = vadd.f32 %v44, %v249
  %v286 = vadd.f32 %v45, %v254
  %v287 = vadd.f32 %v46, %v257
  %v288 = vadd.f32 %v47, %v262
  %v289 = vadd.f32 %v48, %v265
  %v290 = vadd.f32 %v49, %v270
  %v291 = vadd.f32 %v50, %v273
  %292 = vst [vmem:[#allocation2] sm:$0xff] %v276
  %293 = vst [vmem:[#allocation2 + $0x8] sm:$0xff] %v277
  %294 = vst [vmem:[#allocation2 + $0x10] sm:$0xff] %v278
  %295 = vst [vmem:[#allocation2 + $0x18] sm:$0xff] %v279
  %296 = vst [vmem:[#allocation2 + $0x20] sm:$0xff] %v280
  %297 = vst [vmem:[#allocation2 + $0x28] sm:$0xff] %v281
  %298 = vst [vmem:[#allocation2 + $0x30] sm:$0xff] %v282
  %299 = vst [vmem:[#allocation2 + $0x38] sm:$0xff] %v283
  %300 = vst [vmem:[#allocation2 + $0x40] sm:$0xff] %v284
  %301 = vst [vmem:[#allocation2 + $0x48] sm:$0xff] %v285
  %302 = vst [vmem:[#allocation2 + $0x50] sm:$0xff] %v286
  %303 = vst [vmem:[#allocation2 + $0x58] sm:$0xff] %v287
  %304 = vst [vmem:[#allocation2 + $0x60] sm:$0xff] %v288
  %305 = vst [vmem:[#allocation2 + $0x68] sm:$0xff] %v289
  %306 = vst [vmem:[#allocation2 + $0x70] sm:$0xff] %v290
  %307 = vst [vmem:[#allocation2 + $0x78] sm:$0xff] %v291
  // Predicated region
  $region18: #{db_forward.10} parent=0 // pred_check
    %p308 = pneg %p15
  $region19: #{db_forward.10} parent=0 // pred_check_branch
    %310 = sbr.rel (%p308) target = $region21
  $region20: #{db_forward.10} parent=0 // pred_region
    %v311 = vld [vmem:[#allocation2] sm:$0xff]
    %v312 = vld [vmem:[#allocation2 + $0x8] sm:$0xff]
    %v313 = vld [vmem:[#allocation2 + $0x10] sm:$0xff]
    %v314 = vld [vmem:[#allocation2 + $0x18] sm:$0xff]
    %v315 = vld [vmem:[#allocation2 + $0x20] sm:$0xff]
    %v316 = vld [vmem:[#allocation2 + $0x28] sm:$0xff]
    %v317 = vld [vmem:[#allocation2 + $0x30] sm:$0xff]
    %v318 = vld [vmem:[#allocation2 + $0x38] sm:$0xff]
    %v319 = vld [vmem:[#allocation2 + $0x40] sm:$0xff]
    %v320 = vld [vmem:[#allocation2 + $0x48] sm:$0xff]
    %v321 = vld [vmem:[#allocation2 + $0x50] sm:$0xff]
    %v322 = vld [vmem:[#allocation2 + $0x58] sm:$0xff]
    %v323 = vld [vmem:[#allocation2 + $0x60] sm:$0xff]
    %v324 = vld [vmem:[#allocation2 + $0x68] sm:$0xff]
    %v325 = vld [vmem:[#allocation2 + $0x70] sm:$0xff]
    %v326 = vld [vmem:[#allocation2 + $0x78] sm:$0xff]
    %v327 = vld [vmem:[%s2] sm:$0x1]
    %v328 = vlaneseq
    %v329 = vshrl.u32 %v328, 7
    %v330 = vsub.s32 0, %v329
    %v331 = vrot.slane %v327, %v330
    %v332 = vmul.f32 %v311, %v331
    %v333 = vmul.f32 %v312, %v331
    %v334 = vmul.f32 %v313, %v331
    %v335 = vmul.f32 %v314, %v331
    %v336 = vmul.f32 %v315, %v331
    %v337 = vmul.f32 %v316, %v331
    %v338 = vmul.f32 %v317, %v331
    %v339 = vmul.f32 %v318, %v331
    %v340 = vmul.f32 %v319, %v331
    %v341 = vmul.f32 %v320, %v331
    %v342 = vmul.f32 %v321, %v331
    %v343 = vmul.f32 %v322, %v331
    %v344 = vmul.f32 %v323, %v331
    %v345 = vmul.f32 %v324, %v331
    %v346 = vmul.f32 %v325, %v331
    %v347 = vmul.f32 %v326, %v331
    %v348 = vld [vmem:[%s2 + $0x1] sm:$0x1]
    %v349 = vlaneseq
    %v350 = vshrl.u32 %v349, 7
    %v351 = vsub.s32 0, %v350
    %v352 = vrot.slane %v348, %v351
    %v353 = vadd.f32 %v332, %v352
    %v354 = vadd.f32 %v333, %v352
    %v355 = vadd.f32 %v334, %v352
    %v356 = vadd.f32 %v335, %v352
    %v357 = vadd.f32 %v336, %v352
    %v358 = vadd.f32 %v337, %v352
    %v359 = vadd.f32 %v338, %v352
    %v360 = vadd.f32 %v339, %v352
    %v361 = vadd.f32 %v340, %v352
    %v362 = vadd.f32 %v341, %v352
    %v363 = vadd.f32 %v342, %v352
    %v364 = vadd.f32 %v343, %v352
    %v365 = vadd.f32 %v344, %v352
    %v366 = vadd.f32 %v345, %v352
    %v367 = vadd.f32 %v346, %v352
    %v368 = vadd.f32 %v347, %v352
    %v369 = vmax.f32 %v353, 0.0
    %v370 = vmax.f32 %v354, 0.0
    %v371 = vmax.f32 %v355, 0.0
    %v372 = vmax.f32 %v356, 0.0
    %v373 = vmax.f32 %v357, 0.0
    %v374 = vmax.f32 %v358, 0.0
    %v375 = vmax.f32 %v359, 0.0
    %v376 = vmax.f32 %v360, 0.0
    %v377 = vmax.f32 %v361, 0.0
    %v378 = vmax.f32 %v362, 0.0
    %v379 = vmax.f32 %v363, 0.0
    %v380 = vmax.f32 %v364, 0.0
    %v381 = vmax.f32 %v365, 0.0
    %v382 = vmax.f32 %v366, 0.0
    %v383 = vmax.f32 %v367, 0.0
    %v384 = vmax.f32 %v368, 0.0
    %v385 = vpack.c.bf16 %v370, %v369
    %v386 = vpack.c.bf16 %v372, %v371
    %v387 = vpack.c.bf16 %v374, %v373
    %v388 = vpack.c.bf16 %v376, %v375
    %v389 = vpack.c.bf16 %v378, %v377
    %v390 = vpack.c.bf16 %v380, %v379
    %v391 = vpack.c.bf16 %v382, %v381
    %v392 = vpack.c.bf16 %v384, %v383
    %v401 = vunpack.c.l.b16 %v385
    %v402 = vunpack.c.h.b16 %v385
    %v403 = vunpack.c.l.b16 %v386
    %v404 = vunpack.c.h.b16 %v386
    %v405 = vunpack.c.l.b16 %v387
    %v406 = vunpack.c.h.b16 %v387
    %v407 = vunpack.c.l.b16 %v388
    %v408 = vunpack.c.h.b16 %v388
    %v409 = vunpack.c.l.b16 %v389
    %v410 = vunpack.c.h.b16 %v389
    %v411 = vunpack.c.l.b16 %v390
    %v412 = vunpack.c.h.b16 %v390
    %v413 = vunpack.c.l.b16 %v391
    %v414 = vunpack.c.h.b16 %v391
    %v415 = vunpack.c.l.b16 %v392
    %v416 = vunpack.c.h.b16 %v392
    %v417 = vpack.c.b16 %v401, %v401
    %v418 = vpack.c.b16 %v402, %v402
    %v419 = vpack.c.b16 %v403, %v403
    %v420 = vpack.c.b16 %v404, %v404
    %v421 = vpack.c.b16 %v405, %v405
    %v422 = vpack.c.b16 %v406, %v406
    %v423 = vpack.c.b16 %v407, %v407
    %v424 = vpack.c.b16 %v408, %v408
    %v425 = vpack.c.b16 %v409, %v409
    %v426 = vpack.c.b16 %v410, %v410
    %v427 = vpack.c.b16 %v411, %v411
    %v428 = vpack.c.b16 %v412, %v412
    %v429 = vpack.c.b16 %v413, %v413
    %v430 = vpack.c.b16 %v414, %v414
    %v431 = vpack.c.b16 %v415, %v415
    %v432 = vpack.c.b16 %v416, %v416
    %449 = vst [vmem:[%s3] sm:$0xf] %v417
    %450 = vst [vmem:[%s3 + $0x4] sm:$0xf] %v418
    %451 = vst [vmem:[%s3 + $0x8] sm:$0xf] %v419
    %452 = vst [vmem:[%s3 + $0xc] sm:$0xf] %v420
    %453 = vst [vmem:[%s3 + $0x10] sm:$0xf] %v421
    %454 = vst [vmem:[%s3 + $0x14] sm:$0xf] %v422
    %455 = vst [vmem:[%s3 + $0x18] sm:$0xf] %v423
    %456 = vst [vmem:[%s3 + $0x1c] sm:$0xf] %v424
    %457 = vst [vmem:[%s3 + $0x20] sm:$0xf] %v425
    %458 = vst [vmem:[%s3 + $0x24] sm:$0xf] %v426
    %459 = vst [vmem:[%s3 + $0x28] sm:$0xf] %v427
    %460 = vst [vmem:[%s3 + $0x2c] sm:$0xf] %v428
    %461 = vst [vmem:[%s3 + $0x30] sm:$0xf] %v429
    %462 = vst [vmem:[%s3 + $0x34] sm:$0xf] %v430
    %463 = vst [vmem:[%s3 + $0x38] sm:$0xf] %v431
    %464 = vst [vmem:[%s3 + $0x3c] sm:$0xf] %v432
  $region21: #{db_forward.10} parent=0 // pred_fallthru
    _
  // Predicated region
  $region22: #{db_forward.10} parent=0 // pred_check
    _
  $region23: #{db_forward.10} parent=0 // pred_check_branch
    %466 = sbr.rel (0) target = $region25
  $region24: #{db_forward.10} parent=0 // pred_region
    _
  $region25: #{db_forward.10} parent=0 // pred_fallthru
    _
  // Predicated region
  $region26: #{db_forward.10} parent=0 // pred_check
    _
  $region27: #{db_forward.10} parent=0 // pred_check_branch
    %468 = sbr.rel (0) target = $region29
  $region28: #{db_forward.10} parent=0 // pred_region
    _
  $region29: #{db_forward.10} parent=0 // pred_fallthru
    _

// kernel: db_forward.11
$region0: #{db_forward.11}
  #allocation0 [shape = 'u32[]', space=smem, size = 0x4, offset = 0x4, fixed_abs, tag = 'smem constant byte address 0x4 - core index']
  #allocation1 [shape = 'u32[144,128]{1,0:T(1,128)}', space=vmem, size = 0x12000, scoped, tag = 'internal scratch']
  #allocation2 [shape = 'f32[128,128]{1,0:T(8,128)}', space=vmem, size = 0x10000, scoped, tag = 'scratch operand']
  %s0 = inlined_call_operand.vmem [shape: bf16[128,640], index: 0, kind: input, shape index: {}]
  %s1 = inlined_call_operand.vmem [shape: bf16[640,128], index: 1, kind: input, shape index: {}]
  %s2 = inlined_call_operand.vmem [shape: f32[2,128], index: 2, kind: input, shape index: {}]
  %s3 = inlined_call_operand.vmem [shape: bf16[128,128], index: 3, kind: output, shape index: {}]
  %s4 = sld [smem:[#allocation0]]
  $region94: #{db_forward.11} parent=0
    _
  %s6 = ssub.s32 1, %s4
  %s7 = scalar_select 0, %s6, %s4
  $region1: #{db_forward.11} parent=0
    #allocation3 [shape = 'u8[65536]{0}', space=vmem, size = 0x10000, scoped, tag = 'input window, operand 0']
    loop: start=0, step=1, limit=7
    $region2: #{db_forward.11} parent=1 // loop_pre_header
      _
    $region3: #{db_forward.11} parent=1 // loop_header
      %s9 = sphi 0, %s13
      %p10 = scmp.ge.s32.totalorder %s9, 7
      %s16 = sphi 0, %s35
      %s17 = sphi 0, %s31
      %s18 = sphi 0, %s27
      %s19 = sphi 0, %s16
      %s20 = sphi 0, %s17
      %s21 = sphi 0, %s18
      %s22 = sphi 0, %s19
      %s23 = sphi 0, %s20
      %s24 = sphi 0, %s21
      %s40 = sphi 0, %s42
      %s43 = sphi 0, %s40
      %s44 = sphi 0, %s43
      %s60 = sphi 0, %s44
      %s68 = sphi 0, %s70
      %s71 = sphi 0, %s68
      %s72 = sphi 0, %s71
      %s88 = sphi 0, %s72
      %s94 = sphi 0, %s96
      %s97 = sphi 0, %s94
      %s98 = sphi 0, %s97
      %s114 = sphi 0, %s98
      %s122 = sphi 0, %s124
      %s125 = sphi 0, %s122
      %s126 = sphi 0, %s125
      %s142 = sphi 0, %s126
    $region4: #{db_forward.11} parent=1 // loop_header_branch
      %12 = sbr.rel (%p10) target = $region8
    $region5: #{db_forward.11} parent=1 // loop_body
      %s14 = ssub.s32 %s9, 1
      %s15 = ssub.s32 %s9, 2
      %s25 = sadd.s32 1, %s18
      %p26 = scmp.ge.s32.totalorder %s25, 5
      %s27 = scalar_select %p26, 0, %s25
      %s28 = sadd.s32 1, %s17
      %s29 = scalar_select %p26, %s28, %s17
      %p30 = scmp.ge.s32.totalorder %s29, 1
      %s31 = scalar_select %p30, 0, %s29
      %s32 = sadd.s32 1, %s16
      %s33 = scalar_select %p30, %s32, %s16
      %p34 = scmp.ge.s32.totalorder %s33, 1
      %s35 = scalar_select %p34, 0, %s33
      %s36 = ssub.s32 %s16, %s35
      %s37 = ssub.s32 %s18, %s27
      %s38 = sor.u32 %s36, %s37
      %p39 = scmp.eq.s32.totalorder %s38, 0
      %s41 = sadd.s32 %s40, 1
      %s42 = scalar_select %p39, %s40, %s41
      %p45 = pneg %p39
      %p46 = scmp.eq.s32.totalorder %s9, 4
      %p47 = por %p45, %p46
      %p48 = scmp.ne.s32.totalorder %s40, %s43
      %p49 = scmp.eq.s32.totalorder %s9, 0
      %p50 = por %p48, %p49
      %p51 = scmp.ne.s32.totalorder %s40, %s43
      %p52 = scmp.eq.s32.totalorder %s14, 4
      %p53 = por %p51, %p52
      %p54 = scmp.ne.s32.totalorder %s43, %s44
      %p55 = scmp.eq.s32.totalorder %s14, 0
      %p56 = por %p54, %p55
      %p57 = scmp.ne.s32.totalorder %s43, %s44
      %p58 = scmp.eq.s32.totalorder %s15, 4
      %p59 = por %p57, %p58
      %p61 = scmp.ne.s32.totalorder %s44, %s60
      %p62 = scmp.eq.s32.totalorder %s15, 0
      %p63 = por %p61, %p62
      %s64 = ssub.s32 %s18, %s27
      %s65 = ssub.s32 %s17, %s31
      %s66 = sor.u32 %s64, %s65
      %p67 = scmp.eq.s32.totalorder %s66, 0
      %s69 = sadd.s32 %s68, 1
      %s70 = scalar_select %p67, %s68, %s69
      %p73 = pneg %p67
      %p74 = scmp.eq.s32.totalorder %s9, 4
      %p75 = por %p73, %p74
      %p76 = scmp.ne.s32.totalorder %s68, %s71
      %p77 = scmp.eq.s32.totalorder %s9, 0
      %p78 = por %p76, %p77
      %p79 = scmp.ne.s32.totalorder %s68, %s71
      %p80 = scmp.eq.s32.totalorder %s14, 4
      %p81 = por %p79, %p80
      %p82 = scmp.ne.s32.totalorder %s71, %s72
      %p83 = scmp.eq.s32.totalorder %s14, 0
      %p84 = por %p82, %p83
      %p85 = scmp.ne.s32.totalorder %s71, %s72
      %p86 = scmp.eq.s32.totalorder %s15, 4
      %p87 = por %p85, %p86
      %p89 = scmp.ne.s32.totalorder %s72, %s88
      %p90 = scmp.eq.s32.totalorder %s15, 0
      %p91 = por %p89, %p90
      %s92 = ssub.s32 %s17, %s31
      %p93 = scmp.eq.s32.totalorder %s92, 0
      %s95 = sadd.s32 %s94, 1
      %s96 = scalar_select %p93, %s94, %s95
      %p99 = pneg %p93
      %p100 = scmp.eq.s32.totalorder %s9, 4
      %p101 = por %p99, %p100
      %p102 = scmp.ne.s32.totalorder %s94, %s97
      %p103 = scmp.eq.s32.totalorder %s9, 0
      %p104 = por %p102, %p103
      %p105 = scmp.ne.s32.totalorder %s94, %s97
      %p106 = scmp.eq.s32.totalorder %s14, 4
      %p107 = por %p105, %p106
      %p108 = scmp.ne.s32.totalorder %s97, %s98
      %p109 = scmp.eq.s32.totalorder %s14, 0
      %p110 = por %p108, %p109
      %p111 = scmp.ne.s32.totalorder %s97, %s98
      %p112 = scmp.eq.s32.totalorder %s15, 4
      %p113 = por %p111, %p112
      %p115 = scmp.ne.s32.totalorder %s98, %s114
      %p116 = scmp.eq.s32.totalorder %s15, 0
      %p117 = por %p115, %p116
      %s118 = ssub.s32 %s16, %s35
      %s119 = ssub.s32 %s17, %s31
      %s120 = sor.u32 %s118, %s119
      %p121 = scmp.eq.s32.totalorder %s120, 0
      %s123 = sadd.s32 %s122, 1
      %s124 = scalar_select %p121, %s122, %s123
      %p127 = pneg %p121
      %p128 = scmp.eq.s32.totalorder %s9, 4
      %p129 = por %p127, %p128
      %p130 = scmp.ne.s32.totalorder %s122, %s125
      %p131 = scmp.eq.s32.totalorder %s9, 0
      %p132 = por %p130, %p131
      %p133 = scmp.ne.s32.totalorder %s122, %s125
      %p134 = scmp.eq.s32.totalorder %s14, 4
      %p135 = por %p133, %p134
      %p136 = scmp.ne.s32.totalorder %s125, %s126
      %p137 = scmp.eq.s32.totalorder %s14, 0
      %p138 = por %p136, %p137
      %p139 = scmp.ne.s32.totalorder %s125, %s126
      %p140 = scmp.eq.s32.totalorder %s15, 4
      %p141 = por %p139, %p140
      %p143 = scmp.ne.s32.totalorder %s126, %s142
      %p144 = scmp.eq.s32.totalorder %s15, 0
      %p145 = por %p143, %p144
      %p146 = scmp.le.s32.totalorder 1, %s9
      %p147 = scmp.lt.s32.totalorder %s9, 6
      %p148 = pnand %p146, %p147
      %p149 = pneg %p148
      // Predicated region
      $region9: #{db_forward.11} parent=5 // pred_check
        _
      $region10: #{db_forward.11} parent=5 // pred_check_branch
        %151 = sbr.rel (%p148) target = $region12
      $region11: #{db_forward.11} parent=5 // pred_region
        %s152 = ssub.s32 %s9, 1
        // Predicated region
        $region13: #{db_forward.11} parent=11 // pred_check
          %p153 = pneg %p110
        $region14: #{db_forward.11} parent=11 // pred_check_branch
          %155 = sbr.rel (%p153) target = $region16
        $region15: #{db_forward.11} parent=11 // pred_region
          %p156 = scmp.lt.s32.totalorder %s20, 0
          %s157 = scalar_select %p156, %s20, 0
          %s158 = smul.addr %s157, 2
          %s159 = scalar_lea.vmem %s2, %s158
        $region16: #{db_forward.11} parent=11 // pred_fallthru
          _
      $region12: #{db_forward.11} parent=5 // pred_fallthru
        _
      %p160 = scmp.lt.s32.totalorder %s9, 5
      // Predicated region
      $region17: #{db_forward.11} parent=5 // pred_check
        %p161 = pneg %p160
      $region18: #{db_forward.11} parent=5 // pred_check_branch
        %163 = sbr.rel (%p161) target = $region20
      $region19: #{db_forward.11} parent=5 // pred_region
        // Predicated region
        $region21: #{db_forward.11} parent=19 // pred_check
          %p164 = pneg %p50
        $region22: #{db_forward.11} parent=19 // pred_check_branch
          %166 = sbr.rel (%p164) target = $region24
        $region23: #{db_forward.11} parent=19 // pred_region
          %s167 = sand.u32 %s40, 1
          %s168 = sand.u32 %s40, 1
          %s169 = smul.addr %s168, 64
          %s170 = scalar_lea.vmem [#allocation3], %s169
          %s171 = smul.u32 16, %s16
          %s172 = smul.addr %s171, 5
          %s173 = sadd.s32 %s18, %s172
          %s174 = smul.addr %s173, 4
          %s175 = scalar_lea.vmem %s0, %s174
          // Predicated region
          $region25: #{db_forward.11} parent=23 // pred_check
            _
          $region26: #{db_forward.11} parent=23 // pred_check_branch
            %177 = sbr.rel (0) target = $region28
          $region27: #{db_forward.11} parent=23 // pred_region
            // Predicated region
            $region29: #{db_forward.11} parent=27 // pred_check
              _
            $region30: #{db_forward.11} parent=27 // pred_check_branch
              %179 = sbr.rel target = $region32
            $region31: #{db_forward.11} parent=27 // pred_region
              // Predicated region
              $region44: #{db_forward.11} parent=31 // pred_check
                _
              $region45: #{db_forward.11} parent=31 // pred_check_branch
                %225 = sbr.rel (0) target = $region47
              $region46: #{db_forward.11} parent=31 // pred_region
                loop: start=0, step=1, limit=1
                $region48: #{db_forward.11} parent=46 // loop_pre_header
                  _
                $region49: #{db_forward.11} parent=46 // loop_header
                  %s227 = sphi 0, %s231
                  %p228 = scmp.ge.s32.totalorder %s227, 1
                  %s232 = sphi %s175, %s175
                  %s233 = sphi %s170, %s170
                $region50: #{db_forward.11} parent=46 // loop_header_branch
                  %230 = sbr.rel (%p228) target = $region54
                $region51: #{db_forward.11} parent=46 // loop_body
                  _
                $region52: #{db_forward.11} parent=46 // loop_footer
                  %s231 = sadd.s32 1, %s227
                $region53: #{db_forward.11} parent=46 // loop_footer_branch
                  %226 = sbr.rel target = $region49
                $region54: #{db_forward.11} parent=46 // loop_exit
                  _
                %s235 = ssub.s32 16, 1
                loop: start=0, step=1, limit=1
                $region55: #{db_forward.11} parent=46 // loop_pre_header
                  _
                $region56: #{db_forward.11} parent=46 // loop_header
                  %s237 = sphi 0, %s241
                  %p238 = scmp.ge.s32.totalorder %s237, 1
                  %s242 = sphi %s175, %s175
                  %s243 = sphi %s170, %s170
                $region57: #{db_forward.11} parent=46 // loop_header_branch
                  %240 = sbr.rel (%p238) target = $region61
                $region58: #{db_forward.11} parent=46 // loop_body
                  %v244 = vld [vmem:[%s242] sm:%s235]
                  %245 = vst [vmem:[%s243] sm:%s235] %v244
                  %v246 = vld [vmem:[%s242 + $0x14] sm:%s235]
                  %247 = vst [vmem:[%s243 + $0x4] sm:%s235] %v246
                  %v248 = vld [vmem:[%s242 + $0x28] sm:%s235]
                  %249 = vst [vmem:[%s243 + $0x8] sm:%s235] %v248
                  %v250 = vld [vmem:[%s242 + $0x3c] sm:%s235]
                  %251 = vst [vmem:[%s243 + $0xc] sm:%s235] %v250
                  %v252 = vld [vmem:[%s242 + $0x50] sm:%s235]
                  %253 = vst [vmem:[%s243 + $0x10] sm:%s235] %v252
                  %v254 = vld [vmem:[%s242 + $0x64] sm:%s235]
                  %255 = vst [vmem:[%s243 + $0x14] sm:%s235] %v254
                  %v256 = vld [vmem:[%s242 + $0x78] sm:%s235]
                  %257 = vst [vmem:[%s243 + $0x18] sm:%s235] %v256
                  %v258 = vld [vmem:[%s242 + $0x8c] sm:%s235]
                  %259 = vst [vmem:[%s243 + $0x1c] sm:%s235] %v258
                  %v260 = vld [vmem:[%s242 + $0xa0] sm:%s235]
                  %261 = vst [vmem:[%s243 + $0x20] sm:%s235] %v260
                  %v262 = vld [vmem:[%s242 + $0xb4] sm:%s235]
                  %263 = vst [vmem:[%s243 + $0x24] sm:%s235] %v262
                  %v264 = vld [vmem:[%s242 + $0xc8] sm:%s235]
                  %265 = vst [vmem:[%s243 + $0x28] sm:%s235] %v264
                  %v266 = vld [vmem:[%s242 + $0xdc] sm:%s235]
                  %267 = vst [vmem:[%s243 + $0x2c] sm:%s235] %v266
                  %v268 = vld [vmem:[%s242 + $0xf0] sm:%s235]
                  %269 = vst [vmem:[%s243 + $0x30] sm:%s235] %v268
                  %v270 = vld [vmem:[%s242 + $0x104] sm:%s235]
                  %271 = vst [vmem:[%s243 + $0x34] sm:%s235] %v270
                  %v272 = vld [vmem:[%s242 + $0x118] sm:%s235]
                  %273 = vst [vmem:[%s243 + $0x38] sm:%s235] %v272
                  %v274 = vld [vmem:[%s242 + $0x12c] sm:%s235]
                  %275 = vst [vmem:[%s243 + $0x3c] sm:%s235] %v274
                $region59: #{db_forward.11} parent=46 // loop_footer
                  %s241 = sadd.s32 1, %s237
                $region60: #{db_forward.11} parent=46 // loop_footer_branch
                  %236 = sbr.rel target = $region56
                $region61: #{db_forward.11} parent=46 // loop_exit
                  _
              $region47: #{db_forward.11} parent=31 // pred_fallthru
                _
            $region32: #{db_forward.11} parent=27 // pred_fallthru
              _
            // Predicated region
            $region33: #{db_forward.11} parent=27 // pred_check
              _
            $region34: #{db_forward.11} parent=27 // pred_check_branch
              %181 = sbr.rel (0) target = $region36
            $region35: #{db_forward.11} parent=27 // pred_region
              %s183 = ssub.s32 16, 1
              loop: start=0, step=1, limit=1
              $region37: #{db_forward.11} parent=35 // loop_pre_header
                _
              $region38: #{db_forward.11} parent=35 // loop_header
                %s185 = sphi 0, %s189
                %p186 = scmp.ge.s32.totalorder %s185, 1
                %s190 = sphi %s175, %s175
                %s191 = sphi %s170, %s170
              $region39: #{db_forward.11} parent=35 // loop_header_branch
                %188 = sbr.rel (%p186) target = $region43
              $region40: #{db_forward.11} parent=35 // loop_body
                %v192 = vld [vmem:[%s190] sm:%s183]
                %193 = vst [vmem:[%s191] sm:%s183] %v192
                %v194 = vld [vmem:[%s190 + $0x14] sm:%s183]
                %195 = vst [vmem:[%s191 + $0x4] sm:%s183] %v194
                %v196 = vld [vmem:[%s190 + $0x28] sm:%s183]
                %197 = vst [vmem:[%s191 + $0x8] sm:%s183] %v196
                %v198 = vld [vmem:[%s190 + $0x3c] sm:%s183]
                %199 = vst [vmem:[%s191 + $0xc] sm:%s183] %v198
                %v200 = vld [vmem:[%s190 + $0x50] sm:%s183]
                %201 = vst [vmem:[%s191 + $0x10] sm:%s183] %v200
                %v202 = vld [vmem:[%s190 + $0x64] sm:%s183]
                %203 = vst [vmem:[%s191 + $0x14] sm:%s183] %v202
                %v204 = vld [vmem:[%s190 + $0x78] sm:%s183]
                %205 = vst [vmem:[%s191 + $0x18] sm:%s183] %v204
                %v206 = vld [vmem:[%s190 + $0x8c] sm:%s183]
                %207 = vst [vmem:[%s191 + $0x1c] sm:%s183] %v206
                %v208 = vld [vmem:[%s190 + $0xa0] sm:%s183]
                %209 = vst [vmem:[%s191 + $0x20] sm:%s183] %v208
                %v210 = vld [vmem:[%s190 + $0xb4] sm:%s183]
                %211 = vst [vmem:[%s191 + $0x24] sm:%s183] %v210
                %v212 = vld [vmem:[%s190 + $0xc8] sm:%s183]
                %213 = vst [vmem:[%s191 + $0x28] sm:%s183] %v212
                %v214 = vld [vmem:[%s190 + $0xdc] sm:%s183]
                %215 = vst [vmem:[%s191 + $0x2c] sm:%s183] %v214
                %v216 = vld [vmem:[%s190 + $0xf0] sm:%s183]
                %217 = vst [vmem:[%s191 + $0x30] sm:%s183] %v216
                %v218 = vld [vmem:[%s190 + $0x104] sm:%s183]
                %219 = vst [vmem:[%s191 + $0x34] sm:%s183] %v218
                %v220 = vld [vmem:[%s190 + $0x118] sm:%s183]
                %221 = vst [vmem:[%s191 + $0x38] sm:%s183] %v220
                %v222 = vld [vmem:[%s190 + $0x12c] sm:%s183]
                %223 = vst [vmem:[%s191 + $0x3c] sm:%s183] %v222
              $region41: #{db_forward.11} parent=35 // loop_footer
                %s189 = sadd.s32 1, %s185
              $region42: #{db_forward.11} parent=35 // loop_footer_branch
                %184 = sbr.rel target = $region38
              $region43: #{db_forward.11} parent=35 // loop_exit
                _
            $region36: #{db_forward.11} parent=27 // pred_fallthru
              _
          $region28: #{db_forward.11} parent=23 // pred_fallthru
            _
          %276 = vnop
        $region24: #{db_forward.11} parent=19 // pred_fallthru
          _
        // Predicated region
        $region62: #{db_forward.11} parent=19 // pred_check
          %p277 = pneg %p78
        $region63: #{db_forward.11} parent=19 // pred_check_branch
          %279 = sbr.rel (%p277) target = $region65
        $region64: #{db_forward.11} parent=19 // pred_region
          %s280 = smul.u32 16, %s18
          %p281 = scmp.lt.s32.totalorder %s280, 79
          %s282 = scalar_select %p281, %s280, 79
          %p283 = scmp.lt.s32.totalorder %s17, 0
          %s284 = scalar_select %p283, %s17, 0
          %s285 = sadd.s32 %s284, %s282
          %s286 = smul.addr %s285, 4
          %s287 = scalar_lea.vmem %s1, %s286
          %s288 = smul.u32 16, %s18
        $region65: #{db_forward.11} parent=19 // pred_fallthru
          _
      $region20: #{db_forward.11} parent=5 // pred_fallthru
        _
      %p289 = scmp.le.s32.totalorder 1, %s9
      %p290 = scmp.lt.s32.totalorder %s9, 6
      %p291 = pnand %p289, %p290
      %p292 = pneg %p291
      // Predicated region
      $region66: #{db_forward.11} parent=5 // pred_check
        _
      $region67: #{db_forward.11} parent=5 // pred_check_branch
        %294 = sbr.rel (%p291) target = $region69
      $region68: #{db_forward.11} parent=5 // pred_region
        %s295 = ssub.s32 %s9, 1
        %s296 = sand.u32 %s43, 1
        %s297 = sand.u32 %s43, 1
        %s298 = smul.addr %s297, 64
        %s299 = scalar_lea.vmem [#allocation3], %s298
        // Predicated region
        $region70: #{db_forward.11} parent=68 // pred_check
          %p300 = pneg %p56
        $region71: #{db_forward.11} parent=68 // pred_check_branch
          %302 = sbr.rel (%p300) target = $region73
        $region72: #{db_forward.11} parent=68 // pred_region
          _
        $region73: #{db_forward.11} parent=68 // pred_fallthru
          _
        %s303 = sand.u32 %s43, 1
        %s304 = sand.u32 %s43, 1
        %s305 = smul.addr %s304, 64
        %s306 = scalar_lea.vmem [#allocation3], %s305
        %p307 = pneg %p56
        %p308 = pneg %p53
        %s309 = smul.u32 16, %s21
        %p310 = scmp.lt.s32.totalorder %s309, 79
        %s311 = scalar_select %p310, %s309, 79
        %p312 = scmp.lt.s32.totalorder %s20, 0
        %s313 = scalar_select %p312, %s20, 0
        %s314 = sadd.s32 %s313, %s311
        %s315 = smul.addr %s314, 4
        %s316 = scalar_lea.vmem %s1, %s315
        %p317 = pneg %p84
        %p318 = pneg %p81
        %p319 = scmp.lt.s32.totalorder %s20, 0
        %s320 = scalar_select %p319, %s20, 0
        %s321 = smul.addr %s320, 2
        %s322 = scalar_lea.vmem %s2, %s321
        %p323 = pneg %p110
        %p324 = pneg %p107
        %p325 = pneg %p138
        %p326 = pneg %p135
        %s327 = smul.u32 16, %s19
        %p328 = scmp.lt.s32.totalorder %s327, 15
        %s329 = scalar_select %p328, %s327, 15
        %p330 = scmp.lt.s32.totalorder %s20, 0
        %s331 = scalar_select %p330, %s20, 0
        %s332 = sadd.s32 %s331, %s329
        %s333 = smul.addr %s332, 4
        %s334 = scalar_lea.vmem %s3, %s333
        %s335 = smul.u32 16, %s19
        %s336 = smul.u32 16, %s21
        %p337 = scmp.lt.s32.totalorder %s336, 79
        %s338 = scalar_select %p337, %s336, 79
        %p339 = scmp.lt.s32.totalorder %s20, 0
        %s340 = scalar_select %p339, %s20, 0
        %s341 = sadd.s32 %s340, %s338
        %s342 = smul.addr %s341, 4
        %s343 = scalar_lea.vmem %s1, %s342
        %s344 = smul.u32 16, %s21
        %p345 = scmp.lt.s32.totalorder %s20, 0
        %s346 = scalar_select %p345, %s20, 0
        %s347 = smul.addr %s346, 2
        %s348 = scalar_lea.vmem %s2, %s347
        %s349 = smul.u32 16, %s19
        %p350 = scmp.lt.s32.totalorder %s349, 15
        %s351 = scalar_select %p350, %s349, 15
        %p352 = scmp.lt.s32.totalorder %s20, 0
        %s353 = scalar_select %p352, %s20, 0
        %s354 = sadd.s32 %s353, %s351
        %s355 = smul.addr %s354, 4
        %s356 = scalar_lea.vmem %s3, %s355
        %s357 = smul.u32 16, %s19
        %p359 = scmp.eq.s32.totalorder %s21, 0
        // Predicated region
        $region74: #{db_forward.11} parent=68 // pred_check
          %p360 = pneg %p359
        $region75: #{db_forward.11} parent=68 // pred_check_branch
          %362 = sbr.rel (%p360) target = $region77
        $region76: #{db_forward.11} parent=68 // pred_region
          %363 = vst [vmem:[#allocation2] sm:$0xff] 0.0
          %364 = vst [vmem:[#allocation2 + $0x8] sm:$0xff] 0.0
          %365 = vst [vmem:[#allocation2 + $0x10] sm:$0xff] 0.0
          %366 = vst [vmem:[#allocation2 + $0x18] sm:$0xff] 0.0
          %367 = vst [vmem:[#allocation2 + $0x20] sm:$0xff] 0.0
          %368 = vst [vmem:[#allocation2 + $0x28] sm:$0xff] 0.0
          %369 = vst [vmem:[#allocation2 + $0x30] sm:$0xff] 0.0
          %370 = vst [vmem:[#allocation2 + $0x38] sm:$0xff] 0.0
          %371 = vst [vmem:[#allocation2 + $0x40] sm:$0xff] 0.0
          %372 = vst [vmem:[#allocation2 + $0x48] sm:$0xff] 0.0
          %373 = vst [vmem:[#allocation2 + $0x50] sm:$0xff] 0.0
          %374 = vst [vmem:[#allocation2 + $0x58] sm:$0xff] 0.0
          %375 = vst [vmem:[#allocation2 + $0x60] sm:$0xff] 0.0
          %376 = vst [vmem:[#allocation2 + $0x68] sm:$0xff] 0.0
          %377 = vst [vmem:[#allocation2 + $0x70] sm:$0xff] 0.0
          %378 = vst [vmem:[#allocation2 + $0x78] sm:$0xff] 0.0
        $region77: #{db_forward.11} parent=68 // pred_fallthru
          _
        %v379 = vld [vmem:[#allocation2] sm:$0xff]
        %v380 = vld [vmem:[#allocation2 + $0x8] sm:$0xff]
        %v381 = vld [vmem:[#allocation2 + $0x10] sm:$0xff]
        %v382 = vld [vmem:[#allocation2 + $0x18] sm:$0xff]
        %v383 = vld [vmem:[#allocation2 + $0x20] sm:$0xff]
        %v384 = vld [vmem:[#allocation2 + $0x28] sm:$0xff]
        %v385 = vld [vmem:[#allocation2 + $0x30] sm:$0xff]
        %v386 = vld [vmem:[#allocation2 + $0x38] sm:$0xff]
        %v387 = vld [vmem:[#allocation2 + $0x40] sm:$0xff]
        %v388 = vld [vmem:[#allocation2 + $0x48] sm:$0xff]
        %v389 = vld [vmem:[#allocation2 + $0x50] sm:$0xff]
        %v390 = vld [vmem:[#allocation2 + $0x58] sm:$0xff]
        %v391 = vld [vmem:[#allocation2 + $0x60] sm:$0xff]
        %v392 = vld [vmem:[#allocation2 + $0x68] sm:$0xff]
        %v393 = vld [vmem:[#allocation2 + $0x70] sm:$0xff]
        %v394 = vld [vmem:[#allocation2 + $0x78] sm:$0xff]
        %v395 = vld [vmem:[%s299] sm:$0xf]
        %v396 = vld [vmem:[%s299 + $0x4] sm:$0xf]
        %v397 = vld [vmem:[%s299 + $0x8] sm:$0xf]
        %v398 = vld [vmem:[%s299 + $0xc] sm:$0xf]
        %v399 = vld [vmem:[%s299 + $0x10] sm:$0xf]
        %v400 = vld [vmem:[%s299 + $0x14] sm:$0xf]
        %v401 = vld [vmem:[%s299 + $0x18] sm:$0xf]
        %v402 = vld [vmem:[%s299 + $0x1c] sm:$0xf]
        %v403 = vld [vmem:[%s299 + $0x20] sm:$0xf]
        %v404 = vld [vmem:[%s299 + $0x24] sm:$0xf]
        %v405 = vld [vmem:[%s299 + $0x28] sm:$0xf]
        %v406 = vld [vmem:[%s299 + $0x2c] sm:$0xf]
        %v407 = vld [vmem:[%s299 + $0x30] sm:$0xf]
        %v408 = vld [vmem:[%s299 + $0x34] sm:$0xf]
        %v409 = vld [vmem:[%s299 + $0x38] sm:$0xf]
        %v410 = vld [vmem:[%s299 + $0x3c] sm:$0xf]
        %v411 = vld [vmem:[%s343] sm:$0xf]
        %v412 = vld [vmem:[%s343 + $0x4] sm:$0xf]
        %v413 = vld [vmem:[%s343 + $0x8] sm:$0xf]
        %v414 = vld [vmem:[%s343 + $0xc] sm:$0xf]
        %v415 = vld [vmem:[%s343 + $0x10] sm:$0xf]
        %v416 = vld [vmem:[%s343 + $0x14] sm:$0xf]
        %v417 = vld [vmem:[%s343 + $0x18] sm:$0xf]
        %v418 = vld [vmem:[%s343 + $0x1c] sm:$0xf]
        %v419 = vld [vmem:[%s343 + $0x20] sm:$0xf]
        %v420 = vld [vmem:[%s343 + $0x24] sm:$0xf]
        %v421 = vld [vmem:[%s343 + $0x28] sm:$0xf]
        %v422 = vld [vmem:[%s343 + $0x2c] sm:$0xf]
        %v423 = vld [vmem:[%s343 + $0x30] sm:$0xf]
        %v424 = vld [vmem:[%s343 + $0x34] sm:$0xf]
        %v425 = vld [vmem:[%s343 + $0x38] sm:$0xf]
        %v426 = vld [vmem:[%s343 + $0x3c] sm:$0xf]
        %v443 = vunpack.c.l.b16 %v395
        %v444 = vunpack.c.l.b16 %v396
        %v445 = vunpack.c.l.b16 %v397
        %v446 = vunpack.c.l.b16 %v398
        %v447 = vunpack.c.l.b16 %v399
        %v448 = vunpack.c.l.b16 %v400
        %v449 = vunpack.c.l.b16 %v401
        %v450 = vunpack.c.l.b16 %v402
        %v451 = vunpack.c.l.b16 %v403
        %v452 = vunpack.c.l.b16 %v404
        %v453 = vunpack.c.l.b16 %v405
        %v454 = vunpack.c.l.b16 %v406
        %v455 = vunpack.c.l.b16 %v407
        %v456 = vunpack.c.l.b16 %v408
        %v457 = vunpack.c.l.b16 %v409
        %v458 = vunpack.c.l.b16 %v410
        %v459 = vpack.c.b16 %v444, %v443
        %v460 = vpack.c.b16 %v446, %v445
        %v461 = vpack.c.b16 %v448, %v447
        %v462 = vpack.c.b16 %v450, %v449
        %v463 = vpack.c.b16 %v452, %v451
        %v464 = vpack.c.b16 %v454, %v453
        %v465 = vpack.c.b16 %v456, %v455
        %v466 = vpack.c.b16 %v458, %v457
        %v491 = vunpack.c.l.b16 %v411
        %v492 = vunpack.c.l.b16 %v412
        %v493 = vunpack.c.l.b16 %v413
        %v494 = vunpack.c.l.b16 %v414
        %v495 = vunpack.c.l.b16 %v415
        %v496 = vunpack.c.l.b16 %v416
        %v497 = vunpack.c.l.b16 %v417
        %v498 = vunpack.c.l.b16 %v418
        %v499 = vunpack.c.l.b16 %v419
        %v500 = vunpack.c.l.b16 %v420
        %v501 = vunpack.c.l.b16 %v421
        %v502 = vunpack.c.l.b16 %v422
        %v503 = vunpack.c.l.b16 %v423
        %v504 = vunpack.c.l.b16 %v424
        %v505 = vunpack.c.l.b16 %v425
        %v506 = vunpack.c.l.b16 %v426
        %v507 = vpack.c.b16 %v492, %v491
        %v508 = vpack.c.b16 %v494, %v493
        %v509 = vpack.c.b16 %v496, %v495
        %v510 = vpack.c.b16 %v498, %v497
        %v511 = vpack.c.b16 %v500, %v499
        %v512 = vpack.c.b16 %v502, %v501
        %v513 = vpack.c.b16 %v504, %v503
        %v514 = vpack.c.b16 %v506, %v505
        %523 = vmatprep.subr.bf16.mxu0 0
        %524 = vmatpush1.bf16.msra.mxu0 %v514
        %525 = vmatprep.subr.bf16.mxu0 0
        %526 = vmatpush1.bf16.msra.mxu0 %v513
        %527 = vmatprep.subr.bf16.mxu0 0
        %528 = vmatpush1.bf16.msra.mxu0 %v512
        %529 = vmatprep.subr.bf16.mxu0 0
        %530 = vmatpush1.bf16.msra.mxu0 %v511
        %531 = vmatprep.subr.bf16.mxu0 0
        %532 = vmatpush1.bf16.msra.mxu0 %v510
        %533 = vmatprep.subr.bf16.mxu0 0
        %534 = vmatpush1.bf16.msra.mxu0 %v509
        %535 = vmatprep.subr.bf16.mxu0 0
        %536 = vmatpush1.bf16.msra.mxu0 %v508
        %537 = vmatprep.subr.bf16.mxu0 0
        %538 = vmatpush1.bf16.msra.mxu0 %v507
        %539 = vmatprep.subr.bf16.mxu0 0
        %540 = vmatpush2.bf16.msra.mxu0 0
        %541 = vmatprep.subr.bf16.mxu0 0
        %542 = vmatpush2.bf16.msra.mxu0 0
        %543 = vmatprep.subr.bf16.mxu0 0
        %544 = vmatpush2.bf16.msra.mxu0 0
        %545 = vmatprep.subr.bf16.mxu0 0
        %546 = vmatpush2.bf16.msra.mxu0 0
        %547 = vmatprep.subr.bf16.mxu0 0
        %548 = vmatpush2.bf16.msra.mxu0 0
        %549 = vmatprep.subr.bf16.mxu0 0
        %550 = vmatpush2.bf16.msra.mxu0 0
        %551 = vmatprep.subr.bf16.mxu0 0
        %552 = vmatpush2.bf16.msra.mxu0 0
        %553 = vmatprep.subr.bf16.mxu0 0
        %554 = vmatpush2.bf16.msra.mxu0 0
        %555 = vmatprep.mubr.bf16.mxu0 0
        %556 = vmatmul.mubr.bf16.gmra.mxu0 %v459
        %v557 = vpop.f32.mrf.mxu0
        %v558 = vadd.f32 0.0, %v557
        %v559 = vpop.f32.mrf.mxu0
        %v560 = vpop.f32.mrf.mxu0
        %v561 = vadd.f32 0.0, %v560
        %v562 = vpop.f32.mrf.mxu0
        %563 = vmatprep.mubr.bf16.mxu0 0
        %564 = vmatmul.mubr.bf16.gmra.mxu0 %v460
        %v565 = vpop.f32.mrf.mxu0
        %v566 = vadd.f32 0.0, %v565
        %v567 = vpop.f32.mrf.mxu0
        %v568 = vpop.f32.mrf.mxu0
        %v569 = vadd.f32 0.0, %v568
        %v570 = vpop.f32.mrf.mxu0
        %571 = vmatprep.mubr.bf16.mxu0 0
        %572 = vmatmul.mubr.bf16.gmra.mxu0 %v461
        %v573 = vpop.f32.mrf.mxu0
        %v574 = vadd.f32 0.0, %v573
        %v575 = vpop.f32.mrf.mxu0
        %v576 = vpop.f32.mrf.mxu0
        %v577 = vadd.f32 0.0, %v576
        %v578 = vpop.f32.mrf.mxu0
        %579 = vmatprep.mubr.bf16.mxu0 0
        %580 = vmatmul.mubr.bf16.gmra.mxu0 %v462
        %v581 = vpop.f32.mrf.mxu0
        %v582 = vadd.f32 0.0, %v581
        %v583 = vpop.f32.mrf.mxu0
        %v584 = vpop.f32.mrf.mxu0
        %v585 = vadd.f32 0.0, %v584
        %v586 = vpop.f32.mrf.mxu0
        %587 = vmatprep.mubr.bf16.mxu0 0
        %588 = vmatmul.mubr.bf16.gmra.mxu0 %v463
        %v589 = vpop.f32.mrf.mxu0
        %v590 = vadd.f32 0.0, %v589
        %v591 = vpop.f32.mrf.mxu0
        %v592 = vpop.f32.mrf.mxu0
        %v593 = vadd.f32 0.0, %v592
        %v594 = vpop.f32.mrf.mxu0
        %595 = vmatprep.mubr.bf16.mxu0 0
        %596 = vmatmul.mubr.bf16.gmra.mxu0 %v464
        %v597 = vpop.f32.mrf.mxu0
        %v598 = vadd.f32 0.0, %v597
        %v599 = vpop.f32.mrf.mxu0
        %v600 = vpop.f32.mrf.mxu0
        %v601 = vadd.f32 0.0, %v600
        %v602 = vpop.f32.mrf.mxu0
        %603 = vmatprep.mubr.bf16.mxu0 0
        %604 = vmatmul.mubr.bf16.gmra.mxu0 %v465
        %v605 = vpop.f32.mrf.mxu0
        %v606 = vadd.f32 0.0, %v605
        %v607 = vpop.f32.mrf.mxu0
        %v608 = vpop.f32.mrf.mxu0
        %v609 = vadd.f32 0.0, %v608
        %v610 = vpop.f32.mrf.mxu0
        %611 = vmatprep.mubr.bf16.mxu0 0
        %612 = vmatmul.mubr.bf16.gmra.mxu0 %v466
        %v613 = vpop.f32.mrf.mxu0
        %v614 = vadd.f32 0.0, %v613
        %v615 = vpop.f32.mrf.mxu0
        %v616 = vpop.f32.mrf.mxu0
        %v617 = vadd.f32 0.0, %v616
        %v618 = vpop.f32.mrf.mxu0
        %619 = vdwg.mxu0
        %v620 = vadd.f32 %v379, %v558
        %v621 = vadd.f32 %v380, %v561
        %v622 = vadd.f32 %v381, %v566
        %v623 = vadd.f32 %v382, %v569
        %v624 = vadd.f32 %v383, %v574
        %v625 = vadd.f32 %v384, %v577
        %v626 = vadd.f32 %v385, %v582
        %v627 = vadd.f32 %v386, %v585
        %v628 = vadd.f32 %v387, %v590
        %v629 = vadd.f32 %v388, %v593
        %v630 = vadd.f32 %v389, %v598
        %v631 = vadd.f32 %v390, %v601
        %v632 = vadd.f32 %v391, %v606
        %v633 = vadd.f32 %v392, %v609
        %v634 = vadd.f32 %v393, %v614
        %v635 = vadd.f32 %v394, %v617
        %636 = vst [vmem:[#allocation2] sm:$0xff] %v620
        %637 = vst [vmem:[#allocation2 + $0x8] sm:$0xff] %v621
        %638 = vst [vmem:[#allocation2 + $0x10] sm:$0xff] %v622
        %639 = vst [vmem:[#allocation2 + $0x18] sm:$0xff] %v623
        %640 = vst [vmem:[#allocation2 + $0x20] sm:$0xff] %v624
        %641 = vst [vmem:[#allocation2 + $0x28] sm:$0xff] %v625
        %642 = vst [vmem:[#allocation2 + $0x30] sm:$0xff] %v626
        %643 = vst [vmem:[#allocation2 + $0x38] sm:$0xff] %v627
        %644 = vst [vmem:[#allocation2 + $0x40] sm:$0xff] %v628
        %645 = vst [vmem:[#allocation2 + $0x48] sm:$0xff] %v629
        %646 = vst [vmem:[#allocation2 + $0x50] sm:$0xff] %v630
        %647 = vst [vmem:[#allocation2 + $0x58] sm:$0xff] %v631
        %648 = vst [vmem:[#allocation2 + $0x60] sm:$0xff] %v632
        %649 = vst [vmem:[#allocation2 + $0x68] sm:$0xff] %v633
        %650 = vst [vmem:[#allocation2 + $0x70] sm:$0xff] %v634
        %651 = vst [vmem:[#allocation2 + $0x78] sm:$0xff] %v635
        %p652 = scmp.eq.s32.totalorder %s21, 4
        // Predicated region
        $region78: #{db_forward.11} parent=68 // pred_check
          %p653 = pneg %p652
        $region79: #{db_forward.11} parent=68 // pred_check_branch
          %655 = sbr.rel (%p653) target = $region81
        $region80: #{db_forward.11} parent=68 // pred_region
          %v656 = vld [vmem:[#allocation2] sm:$0xff]
          %v657 = vld [vmem:[#allocation2 + $0x8] sm:$0xff]
          %v658 = vld [vmem:[#allocation2 + $0x10] sm:$0xff]
          %v659 = vld [vmem:[#allocation2 + $0x18] sm:$0xff]
          %v660 = vld [vmem:[#allocation2 + $0x20] sm:$0xff]
          %v661 = vld [vmem:[#allocation2 + $0x28] sm:$0xff]
          %v662 = vld [vmem:[#allocation2 + $0x30] sm:$0xff]
          %v663 = vld [vmem:[#allocation2 + $0x38] sm:$0xff]
          %v664 = vld [vmem:[#allocation2 + $0x40] sm:$0xff]
          %v665 = vld [vmem:[#allocation2 + $0x48] sm:$0xff]
          %v666 = vld [vmem:[#allocation2 + $0x50] sm:$0xff]
          %v667 = vld [vmem:[#allocation2 + $0x58] sm:$0xff]
          %v668 = vld [vmem:[#allocation2 + $0x60] sm:$0xff]
          %v669 = vld [vmem:[#allocation2 + $0x68] sm:$0xff]
          %v670 = vld [vmem:[#allocation2 + $0x70] sm:$0xff]
          %v671 = vld [vmem:[#allocation2 + $0x78] sm:$0xff]
          %v672 = vld [vmem:[%s348] sm:$0x1]
          %v673 = vlaneseq
          %v674 = vshrl.u32 %v673, 7
          %v675 = vsub.s32 0, %v674
          %v676 = vrot.slane %v672, %v675
          %v677 = vmul.f32 %v656, %v676
          %v678 = vmul.f32 %v657, %v676
          %v679 = vmul.f32 %v658, %v676
          %v680 = vmul.f32 %v659, %v676
          %v681 = vmul.f32 %v660, %v676
          %v682 = vmul.f32 %v661, %v676
          %v683 = vmul.f32 %v662, %v676
          %v684 = vmul.f32 %v663, %v676
          %v685 = vmul.f32 %v664, %v676
          %v686 = vmul.f32 %v665, %v676
          %v687 = vmul.f32 %v666, %v676
          %v688 = vmul.f32 %v667, %v676
          %v689 = vmul.f32 %v668, %v676
          %v690 = vmul.f32 %v669, %v676
          %v691 = vmul.f32 %v670, %v676
          %v692 = vmul.f32 %v671, %v676
          %v693 = vld [vmem:[%s348 + $0x1] sm:$0x1]
          %v694 = vlaneseq
          %v695 = vshrl.u32 %v694, 7
          %v696 = vsub.s32 0, %v695
          %v697 = vrot.slane %v693, %v696
          %v698 = vadd.f32 %v677, %v697
          %v699 = vadd.f32 %v678, %v697
          %v700 = vadd.f32 %v679, %v697
          %v701 = vadd.f32 %v680, %v697
          %v702 = vadd.f32 %v681, %v697
          %v703 = vadd.f32 %v682, %v697
          %v704 = vadd.f32 %v683, %v697
          %v705 = vadd.f32 %v684, %v697
          %v706 = vadd.f32 %v685, %v697
          %v707 = vadd.f32 %v686, %v697
          %v708 = vadd.f32 %v687, %v697
          %v709 = vadd.f32 %v688, %v697
          %v710 = vadd.f32 %v689, %v697
          %v711 = vadd.f32 %v690, %v697
          %v712 = vadd.f32 %v691, %v697
          %v713 = vadd.f32 %v692, %v697
          %v714 = vmax.f32 %v698, 0.0
          %v715 = vmax.f32 %v699, 0.0
          %v716 = vmax.f32 %v700, 0.0
          %v717 = vmax.f32 %v701, 0.0
          %v718 = vmax.f32 %v702, 0.0
          %v719 = vmax.f32 %v703, 0.0
          %v720 = vmax.f32 %v704, 0.0
          %v721 = vmax.f32 %v705, 0.0
          %v722 = vmax.f32 %v706, 0.0
          %v723 = vmax.f32 %v707, 0.0
          %v724 = vmax.f32 %v708, 0.0
          %v725 = vmax.f32 %v709, 0.0
          %v726 = vmax.f32 %v710, 0.0
          %v727 = vmax.f32 %v711, 0.0
          %v728 = vmax.f32 %v712, 0.0
          %v729 = vmax.f32 %v713, 0.0
          %v730 = vpack.c.bf16 %v715, %v714
          %v731 = vpack.c.bf16 %v717, %v716
          %v732 = vpack.c.bf16 %v719, %v718
          %v733 = vpack.c.bf16 %v721, %v720
          %v734 = vpack.c.bf16 %v723, %v722
          %v735 = vpack.c.bf16 %v725, %v724
          %v736 = vpack.c.bf16 %v727, %v726
          %v737 = vpack.c.bf16 %v729, %v728
          %v746 = vunpack.c.l.b16 %v730
          %v747 = vunpack.c.h.b16 %v730
          %v748 = vunpack.c.l.b16 %v731
          %v749 = vunpack.c.h.b16 %v731
          %v750 = vunpack.c.l.b16 %v732
          %v751 = vunpack.c.h.b16 %v732
          %v752 = vunpack.c.l.b16 %v733
          %v753 = vunpack.c.h.b16 %v733
          %v754 = vunpack.c.l.b16 %v734
          %v755 = vunpack.c.h.b16 %v734
          %v756 = vunpack.c.l.b16 %v735
          %v757 = vunpack.c.h.b16 %v735
          %v758 = vunpack.c.l.b16 %v736
          %v759 = vunpack.c.h.b16 %v736
          %v760 = vunpack.c.l.b16 %v737
          %v761 = vunpack.c.h.b16 %v737
          %v762 = vpack.c.b16 %v746, %v746
          %v763 = vpack.c.b16 %v747, %v747
          %v764 = vpack.c.b16 %v748, %v748
          %v765 = vpack.c.b16 %v749, %v749
          %v766 = vpack.c.b16 %v750, %v750
          %v767 = vpack.c.b16 %v751, %v751
          %v768 = vpack.c.b16 %v752, %v752
          %v769 = vpack.c.b16 %v753, %v753
          %v770 = vpack.c.b16 %v754, %v754
          %v771 = vpack.c.b16 %v755, %v755
          %v772 = vpack.c.b16 %v756, %v756
          %v773 = vpack.c.b16 %v757, %v757
          %v774 = vpack.c.b16 %v758, %v758
          %v775 = vpack.c.b16 %v759, %v759
          %v776 = vpack.c.b16 %v760, %v760
          %v777 = vpack.c.b16 %v761, %v761
          %794 = vst [vmem:[%s356] sm:$0xf] %v762
          %795 = vst [vmem:[%s356 + $0x4] sm:$0xf] %v763
          %796 = vst [vmem:[%s356 + $0x8] sm:$0xf] %v764
          %797 = vst [vmem:[%s356 + $0xc] sm:$0xf] %v765
          %798 = vst [vmem:[%s356 + $0x10] sm:$0xf] %v766
          %799 = vst [vmem:[%s356 + $0x14] sm:$0xf] %v767
          %800 = vst [vmem:[%s356 + $0x18] sm:$0xf] %v768
          %801 = vst [vmem:[%s356 + $0x1c] sm:$0xf] %v769
          %802 = vst [vmem:[%s356 + $0x20] sm:$0xf] %v770
          %803 = vst [vmem:[%s356 + $0x24] sm:$0xf] %v771
          %804 = vst [vmem:[%s356 + $0x28] sm:$0xf] %v772
          %805 = vst [vmem:[%s356 + $0x2c] sm:$0xf] %v773
          %806 = vst [vmem:[%s356 + $0x30] sm:$0xf] %v774
          %807 = vst [vmem:[%s356 + $0x34] sm:$0xf] %v775
          %808 = vst [vmem:[%s356 + $0x38] sm:$0xf] %v776
          %809 = vst [vmem:[%s356 + $0x3c] sm:$0xf] %v777
        $region81: #{db_forward.11} parent=68 // pred_fallthru
          _
        %s810 = smul.u32 16, %s19
        %p811 = scmp.lt.s32.totalorder %s810, 15
        %s812 = scalar_select %p811, %s810, 15
        %p813 = scmp.lt.s32.totalorder %s20, 0
        %s814 = scalar_select %p813, %s20, 0
        %s815 = sadd.s32 %s814, %s812
        %s816 = smul.addr %s815, 4
        %s817 = scalar_lea.vmem %s3, %s816
        // Predicated region
        $region82: #{db_forward.11} parent=68 // pred_check
          %p818 = pneg %p135
        $region83: #{db_forward.11} parent=68 // pred_check_branch
          %820 = sbr.rel (%p818) target = $region85
        $region84: #{db_forward.11} parent=68 // pred_region
          %s821 = smul.u32 16, %s19
        $region85: #{db_forward.11} parent=68 // pred_fallthru
          _
        // Predicated region
        $region86: #{db_forward.11} parent=68 // pred_check
          %p822 = pneg %p135
        $region87: #{db_forward.11} parent=68 // pred_check_branch
          %824 = sbr.rel (%p822) target = $region89
        $region88: #{db_forward.11} parent=68 // pred_region
          %s825 = smul.u32 16, %s19
          %p826 = scmp.lt.s32.totalorder %s825, 15
          %s827 = scalar_select %p826, %s825, 15
          %p828 = scmp.lt.s32.totalorder %s20, 0
          %s829 = scalar_select %p828, %s20, 0
          %s830 = sadd.s32 %s829, %s827
          %s831 = smul.addr %s830, 4
          %s832 = scalar_lea.vmem %s3, %s831
        $region89: #{db_forward.11} parent=68 // pred_fallthru
          _
      $region69: #{db_forward.11} parent=5 // pred_fallthru
        _
      %p833 = scmp.le.s32.totalorder 2, %s9
      // Predicated region
      $region90: #{db_forward.11} parent=5 // pred_check
        %p834 = pneg %p833
      $region91: #{db_forward.11} parent=5 // pred_check_branch
        %836 = sbr.rel (%p834) target = $region93
      $region92: #{db_forward.11} parent=5 // pred_region
        %s837 = ssub.s32 %s9, 2
      $region93: #{db_forward.11} parent=5 // pred_fallthru
        _
    $region6: #{db_forward.11} parent=1 // loop_footer
      %s13 = sadd.s32 1, %s9
    $region7: #{db_forward.11} parent=1 // loop_footer_branch
      %8 = sbr.rel target = $region3
    $region8: #{db_forward.11} parent=1 // loop_exit
      _

// kernel: db_forward.12
$region0: #{db_forward.12}
  #allocation0 [shape = 'u32[]', space=smem, size = 0x4, offset = 0x4, fixed_abs, tag = 'smem constant byte address 0x4 - core index']
  #allocation1 [shape = 'u32[144,128]{1,0:T(1,128)}', space=vmem, size = 0x12000, scoped, tag = 'internal scratch']
  #allocation2 [shape = 'f32[128,256]{1,0:T(8,128)}', space=vmem, size = 0x20000, scoped, tag = 'scratch operand']
  %s0 = inlined_call_operand.vmem [shape: bf16[128,2304], index: 0, kind: input, shape index: {}]
  %s1 = inlined_call_operand.vmem [shape: bf16[2304,256], index: 1, kind: input, shape index: {}]
  %s2 = inlined_call_operand.vmem [shape: f32[2,256], index: 2, kind: input, shape index: {}]
  %s3 = inlined_call_operand.vmem [shape: bf16[128,256], index: 3, kind: output, shape index: {}]
  %s4 = sld [smem:[#allocation0]]
  $region91: #{db_forward.12} parent=0
    _
  %s6 = ssub.s32 1, %s4
  %s7 = scalar_select 0, %s6, %s4
  $region1: #{db_forward.12} parent=0
    #allocation3 [shape = 'u8[131072]{0}', space=vmem, size = 0x20000, scoped, tag = 'input window, operand 0']
    loop: start=0, step=1, limit=11
    $region2: #{db_forward.12} parent=1 // loop_pre_header
      _
    $region3: #{db_forward.12} parent=1 // loop_header
      %s9 = sphi 0, %s13
      %p10 = scmp.ge.s32.totalorder %s9, 11
      %s16 = sphi 0, %s35
      %s17 = sphi 0, %s31
      %s18 = sphi 0, %s27
      %s19 = sphi 0, %s16
      %s20 = sphi 0, %s17
      %s21 = sphi 0, %s18
      %s22 = sphi 0, %s19
      %s23 = sphi 0, %s20
      %s24 = sphi 0, %s21
      %s40 = sphi 0, %s42
      %s43 = sphi 0, %s40
      %s44 = sphi 0, %s43
      %s60 = sphi 0, %s44
      %s68 = sphi 0, %s70
      %s71 = sphi 0, %s68
      %s72 = sphi 0, %s71
      %s88 = sphi 0, %s72
      %s94 = sphi 0, %s96
      %s97 = sphi 0, %s94
      %s98 = sphi 0, %s97
      %s114 = sphi 0, %s98
      %s122 = sphi 0, %s124
      %s125 = sphi 0, %s122
      %s126 = sphi 0, %s125
      %s142 = sphi 0, %s126
    $region4: #{db_forward.12} parent=1 // loop_header_branch
      %12 = sbr.rel (%p10) target = $region8
    $region5: #{db_forward.12} parent=1 // loop_body
      %s14 = ssub.s32 %s9, 1
      %s15 = ssub.s32 %s9, 2
      %s25 = sadd.s32 1, %s18
      %p26 = scmp.ge.s32.totalorder %s25, 9
      %s27 = scalar_select %p26, 0, %s25
      %s28 = sadd.s32 1, %s17
      %s29 = scalar_select %p26, %s28, %s17
      %p30 = scmp.ge.s32.totalorder %s29, 1
      %s31 = scalar_select %p30, 0, %s29
      %s32 = sadd.s32 1, %s16
      %s33 = scalar_select %p30, %s32, %s16
      %p34 = scmp.ge.s32.totalorder %s33, 1
      %s35 = scalar_select %p34, 0, %s33
      %s36 = ssub.s32 %s16, %s35
      %s37 = ssub.s32 %s18, %s27
      %s38 = sor.u32 %s36, %s37
      %p39 = scmp.eq.s32.totalorder %s38, 0
      %s41 = sadd.s32 %s40, 1
      %s42 = scalar_select %p39, %s40, %s41
      %p45 = pneg %p39
      %p46 = scmp.eq.s32.totalorder %s9, 8
      %p47 = por %p45, %p46
      %p48 = scmp.ne.s32.totalorder %s40, %s43
      %p49 = scmp.eq.s32.totalorder %s9, 0
      %p50 = por %p48, %p49
      %p51 = scmp.ne.s32.totalorder %s40, %s43
      %p52 = scmp.eq.s32.totalorder %s14, 8
      %p53 = por %p51, %p52
      %p54 = scmp.ne.s32.totalorder %s43, %s44
      %p55 = scmp.eq.s32.totalorder %s14, 0
      %p56 = por %p54, %p55
      %p57 = scmp.ne.s32.totalorder %s43, %s44
      %p58 = scmp.eq.s32.totalorder %s15, 8
      %p59 = por %p57, %p58
      %p61 = scmp.ne.s32.totalorder %s44, %s60
      %p62 = scmp.eq.s32.totalorder %s15, 0
      %p63 = por %p61, %p62
      %s64 = ssub.s32 %s18, %s27
      %s65 = ssub.s32 %s17, %s31
      %s66 = sor.u32 %s64, %s65
      %p67 = scmp.eq.s32.totalorder %s66, 0
      %s69 = sadd.s32 %s68, 1
      %s70 = scalar_select %p67, %s68, %s69
      %p73 = pneg %p67
      %p74 = scmp.eq.s32.totalorder %s9, 8
      %p75 = por %p73, %p74
      %p76 = scmp.ne.s32.totalorder %s68, %s71
      %p77 = scmp.eq.s32.totalorder %s9, 0
      %p78 = por %p76, %p77
      %p79 = scmp.ne.s32.totalorder %s68, %s71
      %p80 = scmp.eq.s32.totalorder %s14, 8
      %p81 = por %p79, %p80
      %p82 = scmp.ne.s32.totalorder %s71, %s72
      %p83 = scmp.eq.s32.totalorder %s14, 0
      %p84 = por %p82, %p83
      %p85 = scmp.ne.s32.totalorder %s71, %s72
      %p86 = scmp.eq.s32.totalorder %s15, 8
      %p87 = por %p85, %p86
      %p89 = scmp.ne.s32.totalorder %s72, %s88
      %p90 = scmp.eq.s32.totalorder %s15, 0
      %p91 = por %p89, %p90
      %s92 = ssub.s32 %s17, %s31
      %p93 = scmp.eq.s32.totalorder %s92, 0
      %s95 = sadd.s32 %s94, 1
      %s96 = scalar_select %p93, %s94, %s95
      %p99 = pneg %p93
      %p100 = scmp.eq.s32.totalorder %s9, 8
      %p101 = por %p99, %p100
      %p102 = scmp.ne.s32.totalorder %s94, %s97
      %p103 = scmp.eq.s32.totalorder %s9, 0
      %p104 = por %p102, %p103
      %p105 = scmp.ne.s32.totalorder %s94, %s97
      %p106 = scmp.eq.s32.totalorder %s14, 8
      %p107 = por %p105, %p106
      %p108 = scmp.ne.s32.totalorder %s97, %s98
      %p109 = scmp.eq.s32.totalorder %s14, 0
      %p110 = por %p108, %p109
      %p111 = scmp.ne.s32.totalorder %s97, %s98
      %p112 = scmp.eq.s32.totalorder %s15, 8
      %p113 = por %p111, %p112
      %p115 = scmp.ne.s32.totalorder %s98, %s114
      %p116 = scmp.eq.s32.totalorder %s15, 0
      %p117 = por %p115, %p116
      %s118 = ssub.s32 %s16, %s35
      %s119 = ssub.s32 %s17, %s31
      %s120 = sor.u32 %s118, %s119
      %p121 = scmp.eq.s32.totalorder %s120, 0
      %s123 = sadd.s32 %s122, 1
      %s124 = scalar_select %p121, %s122, %s123
      %p127 = pneg %p121
      %p128 = scmp.eq.s32.totalorder %s9, 8
      %p129 = por %p127, %p128
      %p130 = scmp.ne.s32.totalorder %s122, %s125
      %p131 = scmp.eq.s32.totalorder %s9, 0
      %p132 = por %p130, %p131
      %p133 = scmp.ne.s32.totalorder %s122, %s125
      %p134 = scmp.eq.s32.totalorder %s14, 8
      %p135 = por %p133, %p134
      %p136 = scmp.ne.s32.totalorder %s125, %s126
      %p137 = scmp.eq.s32.totalorder %s14, 0
      %p138 = por %p136, %p137
      %p139 = scmp.ne.s32.totalorder %s125, %s126
      %p140 = scmp.eq.s32.totalorder %s15, 8
      %p141 = por %p139, %p140
      %p143 = scmp.ne.s32.totalorder %s126, %s142
      %p144 = scmp.eq.s32.totalorder %s15, 0
      %p145 = por %p143, %p144
      %p146 = scmp.le.s32.totalorder 1, %s9
      %p147 = scmp.lt.s32.totalorder %s9, 10
      %p148 = pnand %p146, %p147
      %p149 = pneg %p148
      // Predicated region
      $region9: #{db_forward.12} parent=5 // pred_check
        _
      $region10: #{db_forward.12} parent=5 // pred_check_branch
        %151 = sbr.rel (%p148) target = $region12
      $region11: #{db_forward.12} parent=5 // pred_region
        %s152 = ssub.s32 %s9, 1
        // Predicated region
        $region13: #{db_forward.12} parent=11 // pred_check
          %p153 = pneg %p110
        $region14: #{db_forward.12} parent=11 // pred_check_branch
          %155 = sbr.rel (%p153) target = $region16
        $region15: #{db_forward.12} parent=11 // pred_region
          %s156 = smul.u32 2, %s20
          %p157 = scmp.lt.s32.totalorder %s156, 1
          %s158 = scalar_select %p157, %s156, 1
          %s159 = smul.addr %s158, 2
          %s160 = scalar_lea.vmem %s2, %s159
          %s161 = smul.u32 2, %s20
        $region16: #{db_forward.12} parent=11 // pred_fallthru
          _
      $region12: #{db_forward.12} parent=5 // pred_fallthru
        _
      %p162 = scmp.lt.s32.totalorder %s9, 9
      // Predicated region
      $region17: #{db_forward.12} parent=5 // pred_check
        %p163 = pneg %p162
      $region18: #{db_forward.12} parent=5 // pred_check_branch
        %165 = sbr.rel (%p163) target = $region20
      $region19: #{db_forward.12} parent=5 // pred_region
        // Predicated region
        $region21: #{db_forward.12} parent=19 // pred_check
          %p166 = pneg %p50
        $region22: #{db_forward.12} parent=19 // pred_check_branch
          %168 = sbr.rel (%p166) target = $region24
        $region23: #{db_forward.12} parent=19 // pred_region
          %s169 = sand.u32 %s40, 1
          %s170 = sand.u32 %s40, 1
          %s171 = smul.addr %s170, 128
          %s172 = scalar_lea.vmem [#allocation3], %s171
          %s173 = smul.u32 16, %s16
          %s174 = smul.u32 2, %s18
          %s175 = smul.addr %s173, 18
          %s176 = sadd.s32 %s174, %s175
          %s177 = smul.addr %s176, 4
          %s178 = scalar_lea.vmem %s0, %s177
          // Predicated region
          $region25: #{db_forward.12} parent=23 // pred_check
            _
          $region26: #{db_forward.12} parent=23 // pred_check_branch
            %180 = sbr.rel (0) target = $region28
          $region27: #{db_forward.12} parent=23 // pred_region
            // Predicated region
            $region29: #{db_forward.12} parent=27 // pred_check
              _
            $region30: #{db_forward.12} parent=27 // pred_check_branch
              %182 = sbr.rel (0) target = $region32
            $region31: #{db_forward.12} parent=27 // pred_region
              // Predicated region
              $region44: #{db_forward.12} parent=31 // pred_check
                _
              $region45: #{db_forward.12} parent=31 // pred_check_branch
                %228 = sbr.rel (0) target = $region47
              $region46: #{db_forward.12} parent=31 // pred_region
                loop: start=0, step=1, limit=1
                $region48: #{db_forward.12} parent=46 // loop_pre_header
                  _
                $region49: #{db_forward.12} parent=46 // loop_header
                  %s230 = sphi 0, %s234
                  %p231 = scmp.ge.s32.totalorder %s230, 1
                  %s235 = sphi %s178, %s178
                  %s236 = sphi %s172, %s172
                $region50: #{db_forward.12} parent=46 // loop_header_branch
                  %233 = sbr.rel (%p231) target = $region54
                $region51: #{db_forward.12} parent=46 // loop_body
                  %v237 = vld [vmem:[%s235] sm:$0xff]
                  %238 = vst [vmem:[%s236] sm:$0xff] %v237
                  %v239 = vld [vmem:[%s235 + $0x48] sm:$0xff]
                  %240 = vst [vmem:[%s236 + $0x8] sm:$0xff] %v239
                  %v241 = vld [vmem:[%s235 + $0x90] sm:$0xff]
                  %242 = vst [vmem:[%s236 + $0x10] sm:$0xff] %v241
                  %v243 = vld [vmem:[%s235 + $0xd8] sm:$0xff]
                  %244 = vst [vmem:[%s236 + $0x18] sm:$0xff] %v243
                  %v245 = vld [vmem:[%s235 + $0x120] sm:$0xff]
                  %246 = vst [vmem:[%s236 + $0x20] sm:$0xff] %v245
                  %v247 = vld [vmem:[%s235 + $0x168] sm:$0xff]
                  %248 = vst [vmem:[%s236 + $0x28] sm:$0xff] %v247
                  %v249 = vld [vmem:[%s235 + $0x1b0] sm:$0xff]
                  %250 = vst [vmem:[%s236 + $0x30] sm:$0xff] %v249
                  %v251 = vld [vmem:[%s235 + $0x1f8] sm:$0xff]
                  %252 = vst [vmem:[%s236 + $0x38] sm:$0xff] %v251
                  %v253 = vld [vmem:[%s235 + $0x240] sm:$0xff]
                  %254 = vst [vmem:[%s236 + $0x40] sm:$0xff] %v253
                  %v255 = vld [vmem:[%s235 + $0x288] sm:$0xff]
                  %256 = vst [vmem:[%s236 + $0x48] sm:$0xff] %v255
                  %v257 = vld [vmem:[%s235 + $0x2d0] sm:$0xff]
                  %258 = vst [vmem:[%s236 + $0x50] sm:$0xff] %v257
                  %v259 = vld [vmem:[%s235 + $0x318] sm:$0xff]
                  %260 = vst [vmem:[%s236 + $0x58] sm:$0xff] %v259
                  %v261 = vld [vmem:[%s235 + $0x360] sm:$0xff]
                  %262 = vst [vmem:[%s236 + $0x60] sm:$0xff] %v261
                  %v263 = vld [vmem:[%s235 + $0x3a8] sm:$0xff]
                  %264 = vst [vmem:[%s236 + $0x68] sm:$0xff] %v263
                  %v265 = vld [vmem:[%s235 + $0x3f0] sm:$0xff]
                  %266 = vst [vmem:[%s236 + $0x70] sm:$0xff] %v265
                  %v267 = vld [vmem:[%s235 + $0x438] sm:$0xff]
                  %268 = vst [vmem:[%s236 + $0x78] sm:$0xff] %v267
                $region52: #{db_forward.12} parent=46 // loop_footer
                  %s234 = sadd.s32 1, %s230
                $region53: #{db_forward.12} parent=46 // loop_footer_branch
                  %229 = sbr.rel target = $region49
                $region54: #{db_forward.12} parent=46 // loop_exit
                  _
              $region47: #{db_forward.12} parent=31 // pred_fallthru
                _
              // Predicated region
              $region55: #{db_forward.12} parent=31 // pred_check
                _
              $region56: #{db_forward.12} parent=31 // pred_check_branch
                %270 = sbr.rel target = $region58
              $region57: #{db_forward.12} parent=31 // pred_region
                _
              $region58: #{db_forward.12} parent=31 // pred_fallthru
                _
            $region32: #{db_forward.12} parent=27 // pred_fallthru
              _
            // Predicated region
            $region33: #{db_forward.12} parent=27 // pred_check
              _
            $region34: #{db_forward.12} parent=27 // pred_check_branch
              %184 = sbr.rel target = $region36
            $region35: #{db_forward.12} parent=27 // pred_region
              %s186 = ssub.s32 256, 1
              loop: start=0, step=1, limit=1
              $region37: #{db_forward.12} parent=35 // loop_pre_header
                _
              $region38: #{db_forward.12} parent=35 // loop_header
                %s188 = sphi 0, %s192
                %p189 = scmp.ge.s32.totalorder %s188, 1
                %s193 = sphi %s178, %s178
                %s194 = sphi %s172, %s172
              $region39: #{db_forward.12} parent=35 // loop_header_branch
                %191 = sbr.rel (%p189) target = $region43
              $region40: #{db_forward.12} parent=35 // loop_body
                %v195 = vld [vmem:[%s193] sm:%s186]
                %196 = vst [vmem:[%s194] sm:%s186] %v195
                %v197 = vld [vmem:[%s193 + $0x48] sm:%s186]
                %198 = vst [vmem:[%s194 + $0x8] sm:%s186] %v197
                %v199 = vld [vmem:[%s193 + $0x90] sm:%s186]
                %200 = vst [vmem:[%s194 + $0x10] sm:%s186] %v199
                %v201 = vld [vmem:[%s193 + $0xd8] sm:%s186]
                %202 = vst [vmem:[%s194 + $0x18] sm:%s186] %v201
                %v203 = vld [vmem:[%s193 + $0x120] sm:%s186]
                %204 = vst [vmem:[%s194 + $0x20] sm:%s186] %v203
                %v205 = vld [vmem:[%s193 + $0x168] sm:%s186]
                %206 = vst [vmem:[%s194 + $0x28] sm:%s186] %v205
                %v207 = vld [vmem:[%s193 + $0x1b0] sm:%s186]
                %208 = vst [vmem:[%s194 + $0x30] sm:%s186] %v207
                %v209 = vld [vmem:[%s193 + $0x1f8] sm:%s186]
                %210 = vst [vmem:[%s194 + $0x38] sm:%s186] %v209
                %v211 = vld [vmem:[%s193 + $0x240] sm:%s186]
                %212 = vst [vmem:[%s194 + $0x40] sm:%s186] %v211
                %v213 = vld [vmem:[%s193 + $0x288] sm:%s186]
                %214 = vst [vmem:[%s194 + $0x48] sm:%s186] %v213
                %v215 = vld [vmem:[%s193 + $0x2d0] sm:%s186]
                %216 = vst [vmem:[%s194 + $0x50] sm:%s186] %v215
                %v217 = vld [vmem:[%s193 + $0x318] sm:%s186]
                %218 = vst [vmem:[%s194 + $0x58] sm:%s186] %v217
                %v219 = vld [vmem:[%s193 + $0x360] sm:%s186]
                %220 = vst [vmem:[%s194 + $0x60] sm:%s186] %v219
                %v221 = vld [vmem:[%s193 + $0x3a8] sm:%s186]
                %222 = vst [vmem:[%s194 + $0x68] sm:%s186] %v221
                %v223 = vld [vmem:[%s193 + $0x3f0] sm:%s186]
                %224 = vst [vmem:[%s194 + $0x70] sm:%s186] %v223
                %v225 = vld [vmem:[%s193 + $0x438] sm:%s186]
                %226 = vst [vmem:[%s194 + $0x78] sm:%s186] %v225
              $region41: #{db_forward.12} parent=35 // loop_footer
                %s192 = sadd.s32 1, %s188
              $region42: #{db_forward.12} parent=35 // loop_footer_branch
                %187 = sbr.rel target = $region38
              $region43: #{db_forward.12} parent=35 // loop_exit
                _
            $region36: #{db_forward.12} parent=27 // pred_fallthru
              _
          $region28: #{db_forward.12} parent=23 // pred_fallthru
            _
          %271 = vnop
        $region24: #{db_forward.12} parent=19 // pred_fallthru
          _
        // Predicated region
        $region59: #{db_forward.12} parent=19 // pred_check
          %p272 = pneg %p78
        $region60: #{db_forward.12} parent=19 // pred_check_branch
          %274 = sbr.rel (%p272) target = $region62
        $region61: #{db_forward.12} parent=19 // pred_region
          %s275 = smul.u32 32, %s18
          %s276 = smul.u32 2, %s17
          %p277 = scmp.lt.s32.totalorder %s275, 287
          %s278 = scalar_select %p277, %s275, 287
          %p279 = scmp.lt.s32.totalorder %s276, 1
          %s280 = scalar_select %p279, %s276, 1
          %s281 = smul.addr %s278, 2
          %s282 = sadd.s32 %s280, %s281
          %s283 = smul.addr %s282, 4
          %s284 = scalar_lea.vmem %s1, %s283
          %s285 = smul.u32 32, %s18
          %s286 = smul.u32 2, %s17
        $region62: #{db_forward.12} parent=19 // pred_fallthru
          _
      $region20: #{db_forward.12} parent=5 // pred_fallthru
        _
      %p287 = scmp.le.s32.totalorder 1, %s9
      %p288 = scmp.lt.s32.totalorder %s9, 10
      %p289 = pnand %p287, %p288
      %p290 = pneg %p289
      // Predicated region
      $region63: #{db_forward.12} parent=5 // pred_check
        _
      $region64: #{db_forward.12} parent=5 // pred_check_branch
        %292 = sbr.rel (%p289) target = $region66
      $region65: #{db_forward.12} parent=5 // pred_region
        %s293 = ssub.s32 %s9, 1
        %s294 = sand.u32 %s43, 1
        %s295 = sand.u32 %s43, 1
        %s296 = smul.addr %s295, 128
        %s297 = scalar_lea.vmem [#allocation3], %s296
        // Predicated region
        $region67: #{db_forward.12} parent=65 // pred_check
          %p298 = pneg %p56
        $region68: #{db_forward.12} parent=65 // pred_check_branch
          %300 = sbr.rel (%p298) target = $region70
        $region69: #{db_forward.12} parent=65 // pred_region
          _
        $region70: #{db_forward.12} parent=65 // pred_fallthru
          _
        %s301 = sand.u32 %s43, 1
        %s302 = sand.u32 %s43, 1
        %s303 = smul.addr %s302, 128
        %s304 = scalar_lea.vmem [#allocation3], %s303
        %p305 = pneg %p56
        %p306 = pneg %p53
        %s307 = smul.u32 32, %s21
        %s308 = smul.u32 2, %s20
        %p309 = scmp.lt.s32.totalorder %s307, 287
        %s310 = scalar_select %p309, %s307, 287
        %p311 = scmp.lt.s32.totalorder %s308, 1
        %s312 = scalar_select %p311, %s308, 1
        %s313 = smul.addr %s310, 2
        %s314 = sadd.s32 %s312, %s313
        %s315 = smul.addr %s314, 4
        %s316 = scalar_lea.vmem %s1, %s315
        %p317 = pneg %p84
        %p318 = pneg %p81
        %s319 = smul.u32 2, %s20
        %p320 = scmp.lt.s32.totalorder %s319, 1
        %s321 = scalar_select %p320, %s319, 1
        %s322 = smul.addr %s321, 2
        %s323 = scalar_lea.vmem %s2, %s322
        %p324 = pneg %p110
        %p325 = pneg %p107
        %p326 = pneg %p138
        %p327 = pneg %p135
        %s328 = smul.u32 16, %s19
        %s329 = smul.u32 2, %s20
        %p330 = scmp.lt.s32.totalorder %s328, 15
        %s331 = scalar_select %p330, %s328, 15
        %p332 = scmp.lt.s32.totalorder %s329, 1
        %s333 = scalar_select %p332, %s329, 1
        %s334 = smul.addr %s331, 2
        %s335 = sadd.s32 %s333, %s334
        %s336 = smul.addr %s335, 4
        %s337 = scalar_lea.vmem %s3, %s336
        %s338 = smul.u32 16, %s19
        %s339 = smul.u32 2, %s21
        %s340 = smul.u32 32, %s21
        %s341 = smul.u32 2, %s20
        %p342 = scmp.lt.s32.totalorder %s340, 287
        %s343 = scalar_select %p342, %s340, 287
        %p344 = scmp.lt.s32.totalorder %s341, 1
        %s345 = scalar_select %p344, %s341, 1
        %s346 = smul.addr %s343, 2
        %s347 = sadd.s32 %s345, %s346
        %s348 = smul.addr %s347, 4
        %s349 = scalar_lea.vmem %s1, %s348
        %s350 = smul.u32 32, %s21
        %s351 = smul.u32 2, %s20
        %s352 = smul.u32 2, %s20
        %p353 = scmp.lt.s32.totalorder %s352, 1
        %s354 = scalar_select %p353, %s352, 1
        %s355 = smul.addr %s354, 2
        %s356 = scalar_lea.vmem %s2, %s355
        %s357 = smul.u32 2, %s20
        %s358 = smul.u32 16, %s19
        %s359 = smul.u32 2, %s20
        %p360 = scmp.lt.s32.totalorder %s358, 15
        %s361 = scalar_select %p360, %s358, 15
        %p362 = scmp.lt.s32.totalorder %s359, 1
        %s363 = scalar_select %p362, %s359, 1
        %s364 = smul.addr %s361, 2
        %s365 = sadd.s32 %s363, %s364
        %s366 = smul.addr %s365, 4
        %s367 = scalar_lea.vmem %s3, %s366
        %s368 = smul.u32 16, %s19
        %s369 = smul.u32 2, %s20
        %p370 = scmp.eq.s32.totalorder %s21, 0
        // Predicated region
        $region71: #{db_forward.12} parent=65 // pred_check
          %p371 = pneg %p370
        $region72: #{db_forward.12} parent=65 // pred_check_branch
          %373 = sbr.rel (%p371) target = $region74
        $region73: #{db_forward.12} parent=65 // pred_region
          %374 = vst [vmem:[#allocation2] sm:$0xff] 0.0
          %375 = vst [vmem:[#allocation2 + $0x8] sm:$0xff] 0.0
          %376 = vst [vmem:[#allocation2 + $0x10] sm:$0xff] 0.0
          %377 = vst [vmem:[#allocation2 + $0x18] sm:$0xff] 0.0
          %378 = vst [vmem:[#allocation2 + $0x20] sm:$0xff] 0.0
          %379 = vst [vmem:[#allocation2 + $0x28] sm:$0xff] 0.0
          %380 = vst [vmem:[#allocation2 + $0x30] sm:$0xff] 0.0
          %381 = vst [vmem:[#allocation2 + $0x38] sm:$0xff] 0.0
          %382 = vst [vmem:[#allocation2 + $0x40] sm:$0xff] 0.0
          %383 = vst [vmem:[#allocation2 + $0x48] sm:$0xff] 0.0
          %384 = vst [vmem:[#allocation2 + $0x50] sm:$0xff] 0.0
          %385 = vst [vmem:[#allocation2 + $0x58] sm:$0xff] 0.0
          %386 = vst [vmem:[#allocation2 + $0x60] sm:$0xff] 0.0
          %387 = vst [vmem:[#allocation2 + $0x68] sm:$0xff] 0.0
          %388 = vst [vmem:[#allocation2 + $0x70] sm:$0xff] 0.0
          %389 = vst [vmem:[#allocation2 + $0x78] sm:$0xff] 0.0
          %390 = vst [vmem:[#allocation2 + $0x80] sm:$0xff] 0.0
          %391 = vst [vmem:[#allocation2 + $0x88] sm:$0xff] 0.0
          %392 = vst [vmem:[#allocation2 + $0x90] sm:$0xff] 0.0
          %393 = vst [vmem:[#allocation2 + $0x98] sm:$0xff] 0.0
          %394 = vst [vmem:[#allocation2 + $0xa0] sm:$0xff] 0.0
          %395 = vst [vmem:[#allocation2 + $0xa8] sm:$0xff] 0.0
          %396 = vst [vmem:[#allocation2 + $0xb0] sm:$0xff] 0.0
          %397 = vst [vmem:[#allocation2 + $0xb8] sm:$0xff] 0.0
          %398 = vst [vmem:[#allocation2 + $0xc0] sm:$0xff] 0.0
          %399 = vst [vmem:[#allocation2 + $0xc8] sm:$0xff] 0.0
          %400 = vst [vmem:[#allocation2 + $0xd0] sm:$0xff] 0.0
          %401 = vst [vmem:[#allocation2 + $0xd8] sm:$0xff] 0.0
          %402 = vst [vmem:[#allocation2 + $0xe0] sm:$0xff] 0.0
          %403 = vst [vmem:[#allocation2 + $0xe8] sm:$0xff] 0.0
          %404 = vst [vmem:[#allocation2 + $0xf0] sm:$0xff] 0.0
          %405 = vst [vmem:[#allocation2 + $0xf8] sm:$0xff] 0.0
        $region74: #{db_forward.12} parent=65 // pred_fallthru
          _
        %v406 = vld [vmem:[#allocation2] sm:$0xff]
        %v407 = vld [vmem:[#allocation2 + $0x8] sm:$0xff]
        %v408 = vld [vmem:[#allocation2 + $0x10] sm:$0xff]
        %v409 = vld [vmem:[#allocation2 + $0x18] sm:$0xff]
        %v410 = vld [vmem:[#allocation2 + $0x20] sm:$0xff]
        %v411 = vld [vmem:[#allocation2 + $0x28] sm:$0xff]
        %v412 = vld [vmem:[#allocation2 + $0x30] sm:$0xff]
        %v413 = vld [vmem:[#allocation2 + $0x38] sm:$0xff]
        %v414 = vld [vmem:[#allocation2 + $0x40] sm:$0xff]
        %v415 = vld [vmem:[#allocation2 + $0x48] sm:$0xff]
        %v416 = vld [vmem:[#allocation2 + $0x50] sm:$0xff]
        %v417 = vld [vmem:[#allocation2 + $0x58] sm:$0xff]
        %v418 = vld [vmem:[#allocation2 + $0x60] sm:$0xff]
        %v419 = vld [vmem:[#allocation2 + $0x68] sm:$0xff]
        %v420 = vld [vmem:[#allocation2 + $0x70] sm:$0xff]
        %v421 = vld [vmem:[#allocation2 + $0x78] sm:$0xff]
        %v422 = vld [vmem:[#allocation2 + $0x80] sm:$0xff]
        %v423 = vld [vmem:[#allocation2 + $0x88] sm:$0xff]
        %v424 = vld [vmem:[#allocation2 + $0x90] sm:$0xff]
        %v425 = vld [vmem:[#allocation2 + $0x98] sm:$0xff]
        %v426 = vld [vmem:[#allocation2 + $0xa0] sm:$0xff]
        %v427 = vld [vmem:[#allocation2 + $0xa8] sm:$0xff]
        %v428 = vld [vmem:[#allocation2 + $0xb0] sm:$0xff]
        %v429 = vld [vmem:[#allocation2 + $0xb8] sm:$0xff]
        %v430 = vld [vmem:[#allocation2 + $0xc0] sm:$0xff]
        %v431 = vld [vmem:[#allocation2 + $0xc8] sm:$0xff]
        %v432 = vld [vmem:[#allocation2 + $0xd0] sm:$0xff]
        %v433 = vld [vmem:[#allocation2 + $0xd8] sm:$0xff]
        %v434 = vld [vmem:[#allocation2 + $0xe0] sm:$0xff]
        %v435 = vld [vmem:[#allocation2 + $0xe8] sm:$0xff]
        %v436 = vld [vmem:[#allocation2 + $0xf0] sm:$0xff]
        %v437 = vld [vmem:[#allocation2 + $0xf8] sm:$0xff]
        %v438 = vld [vmem:[%s297] sm:$0xff]
        %v439 = vld [vmem:[%s297 + $0x8] sm:$0xff]
        %v440 = vld [vmem:[%s297 + $0x10] sm:$0xff]
        %v441 = vld [vmem:[%s297 + $0x18] sm:$0xff]
        %v442 = vld [vmem:[%s297 + $0x20] sm:$0xff]
        %v443 = vld [vmem:[%s297 + $0x28] sm:$0xff]
        %v444 = vld [vmem:[%s297 + $0x30] sm:$0xff]
        %v445 = vld [vmem:[%s297 + $0x38] sm:$0xff]
        %v446 = vld [vmem:[%s297 + $0x40] sm:$0xff]
        %v447 = vld [vmem:[%s297 + $0x48] sm:$0xff]
        %v448 = vld [vmem:[%s297 + $0x50] sm:$0xff]
        %v449 = vld [vmem:[%s297 + $0x58] sm:$0xff]
        %v450 = vld [vmem:[%s297 + $0x60] sm:$0xff]
        %v451 = vld [vmem:[%s297 + $0x68] sm:$0xff]
        %v452 = vld [vmem:[%s297 + $0x70] sm:$0xff]
        %v453 = vld [vmem:[%s297 + $0x78] sm:$0xff]
        %v454 = vld [vmem:[%s349] sm:$0xff]
        %v455 = vld [vmem:[%s349 + $0x8] sm:$0xff]
        %v456 = vld [vmem:[%s349 + $0x10] sm:$0xff]
        %v457 = vld [vmem:[%s349 + $0x18] sm:$0xff]
        %v458 = vld [vmem:[%s349 + $0x20] sm:$0xff]
        %v459 = vld [vmem:[%s349 + $0x28] sm:$0xff]
        %v460 = vld [vmem:[%s349 + $0x30] sm:$0xff]
        %v461 = vld [vmem:[%s349 + $0x38] sm:$0xff]
        %v462 = vld [vmem:[%s349 + $0x40] sm:$0xff]
        %v463 = vld [vmem:[%s349 + $0x48] sm:$0xff]
        %v464 = vld [vmem:[%s349 + $0x50] sm:$0xff]
        %v465 = vld [vmem:[%s349 + $0x58] sm:$0xff]
        %v466 = vld [vmem:[%s349 + $0x60] sm:$0xff]
        %v467 = vld [vmem:[%s349 + $0x68] sm:$0xff]
        %v468 = vld [vmem:[%s349 + $0x70] sm:$0xff]
        %v469 = vld [vmem:[%s349 + $0x78] sm:$0xff]
        %v470 = vld [vmem:[%s349 + $0x80] sm:$0xff]
        %v471 = vld [vmem:[%s349 + $0x88] sm:$0xff]
        %v472 = vld [vmem:[%s349 + $0x90] sm:$0xff]
        %v473 = vld [vmem:[%s349 + $0x98] sm:$0xff]
        %v474 = vld [vmem:[%s349 + $0xa0] sm:$0xff]
        %v475 = vld [vmem:[%s349 + $0xa8] sm:$0xff]
        %v476 = vld [vmem:[%s349 + $0xb0] sm:$0xff]
        %v477 = vld [vmem:[%s349 + $0xb8] sm:$0xff]
        %v478 = vld [vmem:[%s349 + $0xc0] sm:$0xff]
        %v479 = vld [vmem:[%s349 + $0xc8] sm:$0xff]
        %v480 = vld [vmem:[%s349 + $0xd0] sm:$0xff]
        %v481 = vld [vmem:[%s349 + $0xd8] sm:$0xff]
        %v482 = vld [vmem:[%s349 + $0xe0] sm:$0xff]
        %v483 = vld [vmem:[%s349 + $0xe8] sm:$0xff]
        %v484 = vld [vmem:[%s349 + $0xf0] sm:$0xff]
        %v485 = vld [vmem:[%s349 + $0xf8] sm:$0xff]
        %v502 = vunpack.c.l.b16 %v438
        %v503 = vunpack.c.h.b16 %v438
        %v504 = vunpack.c.l.b16 %v439
        %v505 = vunpack.c.h.b16 %v439
        %v506 = vunpack.c.l.b16 %v440
        %v507 = vunpack.c.h.b16 %v440
        %v508 = vunpack.c.l.b16 %v441
        %v509 = vunpack.c.h.b16 %v441
        %v510 = vunpack.c.l.b16 %v442
        %v511 = vunpack.c.h.b16 %v442
        %v512 = vunpack.c.l.b16 %v443
        %v513 = vunpack.c.h.b16 %v443
        %v514 = vunpack.c.l.b16 %v444
        %v515 = vunpack.c.h.b16 %v444
        %v516 = vunpack.c.l.b16 %v445
        %v517 = vunpack.c.h.b16 %v445
        %v518 = vunpack.c.l.b16 %v446
        %v519 = vunpack.c.h.b16 %v446
        %v520 = vunpack.c.l.b16 %v447
        %v521 = vunpack.c.h.b16 %v447
        %v522 = vunpack.c.l.b16 %v448
        %v523 = vunpack.c.h.b16 %v448
        %v524 = vunpack.c.l.b16 %v449
        %v525 = vunpack.c.h.b16 %v449
        %v526 = vunpack.c.l.b16 %v450
        %v527 = vunpack.c.h.b16 %v450
        %v528 = vunpack.c.l.b16 %v451
        %v529 = vunpack.c.h.b16 %v451
        %v530 = vunpack.c.l.b16 %v452
        %v531 = vunpack.c.h.b16 %v452
        %v532 = vunpack.c.l.b16 %v453
        %v533 = vunpack.c.h.b16 %v453
        %v534 = vpack.c.b16 %v504, %v502
        %v535 = vpack.c.b16 %v505, %v503
        %v536 = vpack.c.b16 %v508, %v506
        %v537 = vpack.c.b16 %v509, %v507
        %v538 = vpack.c.b16 %v512, %v510
        %v539 = vpack.c.b16 %v513, %v511
        %v540 = vpack.c.b16 %v516, %v514
        %v541 = vpack.c.b16 %v517, %v515
        %v542 = vpack.c.b16 %v520, %v518
        %v543 = vpack.c.b16 %v521, %v519
        %v544 = vpack.c.b16 %v524, %v522
        %v545 = vpack.c.b16 %v525, %v523
        %v546 = vpack.c.b16 %v528, %v526
        %v547 = vpack.c.b16 %v529, %v527
        %v548 = vpack.c.b16 %v532, %v530
        %v549 = vpack.c.b16 %v533, %v531
        %v598 = vunpack.c.l.b16 %v454
        %v599 = vunpack.c.h.b16 %v454
        %v600 = vunpack.c.l.b16 %v455
        %v601 = vunpack.c.h.b16 %v455
        %v602 = vunpack.c.l.b16 %v456
        %v603 = vunpack.c.h.b16 %v456
        %v604 = vunpack.c.l.b16 %v457
        %v605 = vunpack.c.h.b16 %v457
        %v606 = vunpack.c.l.b16 %v458
        %v607 = vunpack.c.h.b16 %v458
        %v608 = vunpack.c.l.b16 %v459
        %v609 = vunpack.c.h.b16 %v459
        %v610 = vunpack.c.l.b16 %v460
        %v611 = vunpack.c.h.b16 %v460
        %v612 = vunpack.c.l.b16 %v461
        %v613 = vunpack.c.h.b16 %v461
        %v614 = vunpack.c.l.b16 %v462
        %v615 = vunpack.c.h.b16 %v462
        %v616 = vunpack.c.l.b16 %v463
        %v617 = vunpack.c.h.b16 %v463
        %v618 = vunpack.c.l.b16 %v464
        %v619 = vunpack.c.h.b16 %v464
        %v620 = vunpack.c.l.b16 %v465
        %v621 = vunpack.c.h.b16 %v465
        %v622 = vunpack.c.l.b16 %v466
        %v623 = vunpack.c.h.b16 %v466
        %v624 = vunpack.c.l.b16 %v467
        %v625 = vunpack.c.h.b16 %v467
        %v626 = vunpack.c.l.b16 %v468
        %v627 = vunpack.c.h.b16 %v468
        %v628 = vunpack.c.l.b16 %v469
        %v629 = vunpack.c.h.b16 %v469
        %v630 = vunpack.c.l.b16 %v470
        %v631 = vunpack.c.h.b16 %v470
        %v632 = vunpack.c.l.b16 %v471
        %v633 = vunpack.c.h.b16 %v471
        %v634 = vunpack.c.l.b16 %v472
        %v635 = vunpack.c.h.b16 %v472
        %v636 = vunpack.c.l.b16 %v473
        %v637 = vunpack.c.h.b16 %v473
        %v638 = vunpack.c.l.b16 %v474
        %v639 = vunpack.c.h.b16 %v474
        %v640 = vunpack.c.l.b16 %v475
        %v641 = vunpack.c.h.b16 %v475
        %v642 = vunpack.c.l.b16 %v476
        %v643 = vunpack.c.h.b16 %v476
        %v644 = vunpack.c.l.b16 %v477
        %v645 = vunpack.c.h.b16 %v477
        %v646 = vunpack.c.l.b16 %v478
        %v647 = vunpack.c.h.b16 %v478
        %v648 = vunpack.c.l.b16 %v479
        %v649 = vunpack.c.h.b16 %v479
        %v650 = vunpack.c.l.b16 %v480
        %v651 = vunpack.c.h.b16 %v480
        %v652 = vunpack.c.l.b16 %v481
        %v653 = vunpack.c.h.b16 %v481
        %v654 = vunpack.c.l.b16 %v482
        %v655 = vunpack.c.h.b16 %v482
        %v656 = vunpack.c.l.b16 %v483
        %v657 = vunpack.c.h.b16 %v483
        %v658 = vunpack.c.l.b16 %v484
        %v659 = vunpack.c.h.b16 %v484
        %v660 = vunpack.c.l.b16 %v485
        %v661 = vunpack.c.h.b16 %v485
        %v662 = vpack.c.b16 %v600, %v598
        %v663 = vpack.c.b16 %v601, %v599
        %v664 = vpack.c.b16 %v604, %v602
        %v665 = vpack.c.b16 %v605, %v603
        %v666 = vpack.c.b16 %v608, %v606
        %v667 = vpack.c.b16 %v609, %v607
        %v668 = vpack.c.b16 %v612, %v610
        %v669 = vpack.c.b16 %v613, %v611
        %v670 = vpack.c.b16 %v616, %v614
        %v671 = vpack.c.b16 %v617, %v615
        %v672 = vpack.c.b16 %v620, %v618
        %v673 = vpack.c.b16 %v621, %v619
        %v674 = vpack.c.b16 %v624, %v622
        %v675 = vpack.c.b16 %v625, %v623
        %v676 = vpack.c.b16 %v628, %v626
        %v677 = vpack.c.b16 %v629, %v627
        %v678 = vpack.c.b16 %v632, %v630
        %v679 = vpack.c.b16 %v633, %v631
        %v680 = vpack.c.b16 %v636, %v634
        %v681 = vpack.c.b16 %v637, %v635
        %v682 = vpack.c.b16 %v640, %v638
        %v683 = vpack.c.b16 %v641, %v639
        %v684 = vpack.c.b16 %v644, %v642
        %v685 = vpack.c.b16 %v645, %v643
        %v686 = vpack.c.b16 %v648, %v646
        %v687 = vpack.c.b16 %v649, %v647
        %v688 = vpack.c.b16 %v652, %v650
        %v689 = vpack.c.b16 %v653, %v651
        %v690 = vpack.c.b16 %v656, %v654
        %v691 = vpack.c.b16 %v657, %v655
        %v692 = vpack.c.b16 %v660, %v658
        %v693 = vpack.c.b16 %v661, %v659
        %726 = vmatprep.subr.bf16.mxu0 %v677
        %727 = vmatpush1.bf16.msra.mxu0 %v676
        %728 = vmatprep.subr.bf16.mxu0 %v675
        %729 = vmatpush1.bf16.msra.mxu0 %v674
        %730 = vmatprep.subr.bf16.mxu0 %v673
        %731 = vmatpush1.bf16.msra.mxu0 %v672
        %732 = vmatprep.subr.bf16.mxu0 %v671
        %733 = vmatpush1.bf16.msra.mxu0 %v670
        %734 = vmatprep.subr.bf16.mxu0 %v669
        %735 = vmatpush1.bf16.msra.mxu0 %v668
        %736 = vmatprep.subr.bf16.mxu0 %v667
        %737 = vmatpush1.bf16.msra.mxu0 %v666
        %738 = vmatprep.subr.bf16.mxu0 %v665
        %739 = vmatpush1.bf16.msra.mxu0 %v664
        %740 = vmatprep.subr.bf16.mxu0 %v663
        %741 = vmatpush1.bf16.msra.mxu0 %v662
        %742 = vmatprep.subr.bf16.mxu0 %v693
        %743 = vmatpush2.bf16.msra.mxu0 %v692
        %744 = vmatprep.subr.bf16.mxu0 %v691
        %745 = vmatpush2.bf16.msra.mxu0 %v690
        %746 = vmatprep.subr.bf16.mxu0 %v689
        %747 = vmatpush2.bf16.msra.mxu0 %v688
        %748 = vmatprep.subr.bf16.mxu0 %v687
        %749 = vmatpush2.bf16.msra.mxu0 %v686
        %750 = vmatprep.subr.bf16.mxu0 %v685
        %751 = vmatpush2.bf16.msra.mxu0 %v684
        %752 = vmatprep.subr.bf16.mxu0 %v683
        %753 = vmatpush2.bf16.msra.mxu0 %v682
        %754 = vmatprep.subr.bf16.mxu0 %v681
        %755 = vmatpush2.bf16.msra.mxu0 %v680
        %756 = vmatprep.subr.bf16.mxu0 %v679
        %757 = vmatpush2.bf16.msra.mxu0 %v678
        %758 = vmatprep.mubr.bf16.mxu0 %v535
        %759 = vmatmul.mubr.bf16.gmra.mxu0 %v534
        %v760 = vpop.f32.mrf.mxu0
        %v761 = vadd.f32 0.0, %v760
        %v762 = vpop.f32.mrf.mxu0
        %v763 = vadd.f32 0.0, %v762
        %v764 = vpop.f32.mrf.mxu0
        %v765 = vadd.f32 0.0, %v764
        %v766 = vpop.f32.mrf.mxu0
        %v767 = vadd.f32 0.0, %v766
        %768 = vmatprep.mubr.bf16.mxu0 %v537
        %769 = vmatmul.mubr.bf16.gmra.mxu0 %v536
        %v770 = vpop.f32.mrf.mxu0
        %v771 = vadd.f32 0.0, %v770
        %v772 = vpop.f32.mrf.mxu0
        %v773 = vadd.f32 0.0, %v772
        %v774 = vpop.f32.mrf.mxu0
        %v775 = vadd.f32 0.0, %v774
        %v776 = vpop.f32.mrf.mxu0
        %v777 = vadd.f32 0.0, %v776
        %778 = vmatprep.mubr.bf16.mxu0 %v539
        %779 = vmatmul.mubr.bf16.gmra.mxu0 %v538
        %v780 = vpop.f32.mrf.mxu0
        %v781 = vadd.f32 0.0, %v780
        %v782 = vpop.f32.mrf.mxu0
        %v783 = vadd.f32 0.0, %v782
        %v784 = vpop.f32.mrf.mxu0
        %v785 = vadd.f32 0.0, %v784
        %v786 = vpop.f32.mrf.mxu0
        %v787 = vadd.f32 0.0, %v786
        %788 = vmatprep.mubr.bf16.mxu0 %v541
        %789 = vmatmul.mubr.bf16.gmra.mxu0 %v540
        %v790 = vpop.f32.mrf.mxu0
        %v791 = vadd.f32 0.0, %v790
        %v792 = vpop.f32.mrf.mxu0
        %v793 = vadd.f32 0.0, %v792
        %v794 = vpop.f32.mrf.mxu0
        %v795 = vadd.f32 0.0, %v794
        %v796 = vpop.f32.mrf.mxu0
        %v797 = vadd.f32 0.0, %v796
        %798 = vmatprep.mubr.bf16.mxu0 %v543
        %799 = vmatmul.mubr.bf16.gmra.mxu0 %v542
        %v800 = vpop.f32.mrf.mxu0
        %v801 = vadd.f32 0.0, %v800
        %v802 = vpop.f32.mrf.mxu0
        %v803 = vadd.f32 0.0, %v802
        %v804 = vpop.f32.mrf.mxu0
        %v805 = vadd.f32 0.0, %v804
        %v806 = vpop.f32.mrf.mxu0
        %v807 = vadd.f32 0.0, %v806
        %808 = vmatprep.mubr.bf16.mxu0 %v545
        %809 = vmatmul.mubr.bf16.gmra.mxu0 %v544
        %v810 = vpop.f32.mrf.mxu0
        %v811 = vadd.f32 0.0, %v810
        %v812 = vpop.f32.mrf.mxu0
        %v813 = vadd.f32 0.0, %v812
        %v814 = vpop.f32.mrf.mxu0
        %v815 = vadd.f32 0.0, %v814
        %v816 = vpop.f32.mrf.mxu0
        %v817 = vadd.f32 0.0, %v816
        %818 = vmatprep.mubr.bf16.mxu0 %v547
        %819 = vmatmul.mubr.bf16.gmra.mxu0 %v546
        %v820 = vpop.f32.mrf.mxu0
        %v821 = vadd.f32 0.0, %v820
        %v822 = vpop.f32.mrf.mxu0
        %v823 = vadd.f32 0.0, %v822
        %v824 = vpop.f32.mrf.mxu0
        %v825 = vadd.f32 0.0, %v824
        %v826 = vpop.f32.mrf.mxu0
        %v827 = vadd.f32 0.0, %v826
        %828 = vmatprep.mubr.bf16.mxu0 %v549
        %829 = vmatmul.mubr.bf16.gmra.mxu0 %v548
        %v830 = vpop.f32.mrf.mxu0
        %v831 = vadd.f32 0.0, %v830
        %v832 = vpop.f32.mrf.mxu0
        %v833 = vadd.f32 0.0, %v832
        %v834 = vpop.f32.mrf.mxu0
        %v835 = vadd.f32 0.0, %v834
        %v836 = vpop.f32.mrf.mxu0
        %v837 = vadd.f32 0.0, %v836
        %838 = vdwg.mxu0
        %v839 = vadd.f32 %v406, %v761
        %v840 = vadd.f32 %v407, %v763
        %v841 = vadd.f32 %v408, %v765
        %v842 = vadd.f32 %v409, %v767
        %v843 = vadd.f32 %v410, %v771
        %v844 = vadd.f32 %v411, %v773
        %v845 = vadd.f32 %v412, %v775
        %v846 = vadd.f32 %v413, %v777
        %v847 = vadd.f32 %v414, %v781
        %v848 = vadd.f32 %v415, %v783
        %v849 = vadd.f32 %v416, %v785
        %v850 = vadd.f32 %v417, %v787
        %v851 = vadd.f32 %v418, %v791
        %v852 = vadd.f32 %v419, %v793
        %v853 = vadd.f32 %v420, %v795
        %v854 = vadd.f32 %v421, %v797
        %v855 = vadd.f32 %v422, %v801
        %v856 = vadd.f32 %v423, %v803
        %v857 = vadd.f32 %v424, %v805
        %v858 = vadd.f32 %v425, %v807
        %v859 = vadd.f32 %v426, %v811
        %v860 = vadd.f32 %v427, %v813
        %v861 = vadd.f32 %v428, %v815
        %v862 = vadd.f32 %v429, %v817
        %v863 = vadd.f32 %v430, %v821
        %v864 = vadd.f32 %v431, %v823
        %v865 = vadd.f32 %v432, %v825
        %v866 = vadd.f32 %v433, %v827
        %v867 = vadd.f32 %v434, %v831
        %v868 = vadd.f32 %v435, %v833
        %v869 = vadd.f32 %v436, %v835
        %v870 = vadd.f32 %v437, %v837
        %871 = vst [vmem:[#allocation2] sm:$0xff] %v839
        %872 = vst [vmem:[#allocation2 + $0x8] sm:$0xff] %v840
        %873 = vst [vmem:[#allocation2 + $0x10] sm:$0xff] %v841
        %874 = vst [vmem:[#allocation2 + $0x18] sm:$0xff] %v842
        %875 = vst [vmem:[#allocation2 + $0x20] sm:$0xff] %v843
        %876 = vst [vmem:[#allocation2 + $0x28] sm:$0xff] %v844
        %877 = vst [vmem:[#allocation2 + $0x30] sm:$0xff] %v845
        %878 = vst [vmem:[#allocation2 + $0x38] sm:$0xff] %v846
        %879 = vst [vmem:[#allocation2 + $0x40] sm:$0xff] %v847
        %880 = vst [vmem:[#allocation2 + $0x48] sm:$0xff] %v848
        %881 = vst [vmem:[#allocation2 + $0x50] sm:$0xff] %v849
        %882 = vst [vmem:[#allocation2 + $0x58] sm:$0xff] %v850
        %883 = vst [vmem:[#allocation2 + $0x60] sm:$0xff] %v851
        %884 = vst [vmem:[#allocation2 + $0x68] sm:$0xff] %v852
        %885 = vst [vmem:[#allocation2 + $0x70] sm:$0xff] %v853
        %886 = vst [vmem:[#allocation2 + $0x78] sm:$0xff] %v854
        %887 = vst [vmem:[#allocation2 + $0x80] sm:$0xff] %v855
        %888 = vst [vmem:[#allocation2 + $0x88] sm:$0xff] %v856
        %889 = vst [vmem:[#allocation2 + $0x90] sm:$0xff] %v857
        %890 = vst [vmem:[#allocation2 + $0x98] sm:$0xff] %v858
        %891 = vst [vmem:[#allocation2 + $0xa0] sm:$0xff] %v859
        %892 = vst [vmem:[#allocation2 + $0xa8] sm:$0xff] %v860
        %893 = vst [vmem:[#allocation2 + $0xb0] sm:$0xff] %v861
        %894 = vst [vmem:[#allocation2 + $0xb8] sm:$0xff] %v862
        %895 = vst [vmem:[#allocation2 + $0xc0] sm:$0xff] %v863
        %896 = vst [vmem:[#allocation2 + $0xc8] sm:$0xff] %v864
        %897 = vst [vmem:[#allocation2 + $0xd0] sm:$0xff] %v865
        %898 = vst [vmem:[#allocation2 + $0xd8] sm:$0xff] %v866
        %899 = vst [vmem:[#allocation2 + $0xe0] sm:$0xff] %v867
        %900 = vst [vmem:[#allocation2 + $0xe8] sm:$0xff] %v868
        %901 = vst [vmem:[#allocation2 + $0xf0] sm:$0xff] %v869
        %902 = vst [vmem:[#allocation2 + $0xf8] sm:$0xff] %v870
        %p903 = scmp.eq.s32.totalorder %s21, 8
        // Predicated region
        $region75: #{db_forward.12} parent=65 // pred_check
          %p904 = pneg %p903
        $region76: #{db_forward.12} parent=65 // pred_check_branch
          %906 = sbr.rel (%p904) target = $region78
        $region77: #{db_forward.12} parent=65 // pred_region
          %v907 = vld [vmem:[#allocation2] sm:$0xff]
          %v908 = vld [vmem:[#allocation2 + $0x8] sm:$0xff]
          %v909 = vld [vmem:[#allocation2 + $0x10] sm:$0xff]
          %v910 = vld [vmem:[#allocation2 + $0x18] sm:$0xff]
          %v911 = vld [vmem:[#allocation2 + $0x20] sm:$0xff]
          %v912 = vld [vmem:[#allocation2 + $0x28] sm:$0xff]
          %v913 = vld [vmem:[#allocation2 + $0x30] sm:$0xff]
          %v914 = vld [vmem:[#allocation2 + $0x38] sm:$0xff]
          %v915 = vld [vmem:[#allocation2 + $0x40] sm:$0xff]
          %v916 = vld [vmem:[#allocation2 + $0x48] sm:$0xff]
          %v917 = vld [vmem:[#allocation2 + $0x50] sm:$0xff]
          %v918 = vld [vmem:[#allocation2 + $0x58] sm:$0xff]
          %v919 = vld [vmem:[#allocation2 + $0x60] sm:$0xff]
          %v920 = vld [vmem:[#allocation2 + $0x68] sm:$0xff]
          %v921 = vld [vmem:[#allocation2 + $0x70] sm:$0xff]
          %v922 = vld [vmem:[#allocation2 + $0x78] sm:$0xff]
          %v923 = vld [vmem:[#allocation2 + $0x80] sm:$0xff]
          %v924 = vld [vmem:[#allocation2 + $0x88] sm:$0xff]
          %v925 = vld [vmem:[#allocation2 + $0x90] sm:$0xff]
          %v926 = vld [vmem:[#allocation2 + $0x98] sm:$0xff]
          %v927 = vld [vmem:[#allocation2 + $0xa0] sm:$0xff]
          %v928 = vld [vmem:[#allocation2 + $0xa8] sm:$0xff]
          %v929 = vld [vmem:[#allocation2 + $0xb0] sm:$0xff]
          %v930 = vld [vmem:[#allocation2 + $0xb8] sm:$0xff]
          %v931 = vld [vmem:[#allocation2 + $0xc0] sm:$0xff]
          %v932 = vld [vmem:[#allocation2 + $0xc8] sm:$0xff]
          %v933 = vld [vmem:[#allocation2 + $0xd0] sm:$0xff]
          %v934 = vld [vmem:[#allocation2 + $0xd8] sm:$0xff]
          %v935 = vld [vmem:[#allocation2 + $0xe0] sm:$0xff]
          %v936 = vld [vmem:[#allocation2 + $0xe8] sm:$0xff]
          %v937 = vld [vmem:[#allocation2 + $0xf0] sm:$0xff]
          %v938 = vld [vmem:[#allocation2 + $0xf8] sm:$0xff]
          %v939 = vld [vmem:[%s356] ss:$2 sm:$0x3]
          %v941 = vlaneseq
          %v942 = vshrl.u32 %v941, 7
          %v943 = vsub.s32 0, %v942
          %v944 = vrot.slane %v939, %v943
          %v945 = vlaneseq
          %v946 = vshrl.u32 %v945, 7
          %v947 = vsub.s32 1, %v946
          %v948 = vrot.slane %v939, %v947
          %v951 = vmul.f32 %v907, %v944
          %v952 = vmul.f32 %v908, %v948
          %v953 = vmul.f32 %v909, %v944
          %v954 = vmul.f32 %v910, %v948
          %v955 = vmul.f32 %v911, %v944
          %v956 = vmul.f32 %v912, %v948
          %v957 = vmul.f32 %v913, %v944
          %v958 = vmul.f32 %v914, %v948
          %v959 = vmul.f32 %v915, %v944
          %v960 = vmul.f32 %v916, %v948
          %v961 = vmul.f32 %v917, %v944
          %v962 = vmul.f32 %v918, %v948
          %v963 = vmul.f32 %v919, %v944
          %v964 = vmul.f32 %v920, %v948
          %v965 = vmul.f32 %v921, %v944
          %v966 = vmul.f32 %v922, %v948
          %v967 = vmul.f32 %v923, %v944
          %v968 = vmul.f32 %v924, %v948
          %v969 = vmul.f32 %v925, %v944
          %v970 = vmul.f32 %v926, %v948
          %v971 = vmul.f32 %v927, %v944
          %v972 = vmul.f32 %v928, %v948
          %v973 = vmul.f32 %v929, %v944
          %v974 = vmul.f32 %v930, %v948
          %v975 = vmul.f32 %v931, %v944
          %v976 = vmul.f32 %v932, %v948
          %v977 = vmul.f32 %v933, %v944
          %v978 = vmul.f32 %v934, %v948
          %v979 = vmul.f32 %v935, %v944
          %v980 = vmul.f32 %v936, %v948
          %v981 = vmul.f32 %v937, %v944
          %v982 = vmul.f32 %v938, %v948
          %s983 = scalar_lea.vmem %s356, 1
          %v984 = vld [vmem:[%s983] ss:$2 sm:$0x3]
          %v986 = vlaneseq
          %v987 = vshrl.u32 %v986, 7
          %v988 = vsub.s32 0, %v987
          %v989 = vrot.slane %v984, %v988
          %v990 = vlaneseq
          %v991 = vshrl.u32 %v990, 7
          %v992 = vsub.s32 1, %v991
          %v993 = vrot.slane %v984, %v992
          %v996 = vadd.f32 %v951, %v989
          %v997 = vadd.f32 %v952, %v993
          %v998 = vadd.f32 %v953, %v989
          %v999 = vadd.f32 %v954, %v993
          %v1000 = vadd.f32 %v955, %v989
          %v1001 = vadd.f32 %v956, %v993
          %v1002 = vadd.f32 %v957, %v989
          %v1003 = vadd.f32 %v958, %v993
          %v1004 = vadd.f32 %v959, %v989
          %v1005 = vadd.f32 %v960, %v993
          %v1006 = vadd.f32 %v961, %v989
          %v1007 = vadd.f32 %v962, %v993
          %v1008 = vadd.f32 %v963, %v989
          %v1009 = vadd.f32 %v964, %v993
          %v1010 = vadd.f32 %v965, %v989
          %v1011 = vadd.f32 %v966, %v993
          %v1012 = vadd.f32 %v967, %v989
          %v1013 = vadd.f32 %v968, %v993
          %v1014 = vadd.f32 %v969, %v989
          %v1015 = vadd.f32 %v970, %v993
          %v1016 = vadd.f32 %v971, %v989
          %v1017 = vadd.f32 %v972, %v993
          %v1018 = vadd.f32 %v973, %v989
          %v1019 = vadd.f32 %v974, %v993
          %v1020 = vadd.f32 %v975, %v989
          %v1021 = vadd.f32 %v976, %v993
          %v1022 = vadd.f32 %v977, %v989
          %v1023 = vadd.f32 %v978, %v993
          %v1024 = vadd.f32 %v979, %v989
          %v1025 = vadd.f32 %v980, %v993
          %v1026 = vadd.f32 %v981, %v989
          %v1027 = vadd.f32 %v982, %v993
          %v1028 = vmax.f32 %v996, 0.0
          %v1029 = vmax.f32 %v997, 0.0
          %v1030 = vmax.f32 %v998, 0.0
          %v1031 = vmax.f32 %v999, 0.0
          %v1032 = vmax.f32 %v1000, 0.0
          %v1033 = vmax.f32 %v1001, 0.0
          %v1034 = vmax.f32 %v1002, 0.0
          %v1035 = vmax.f32 %v1003, 0.0
          %v1036 = vmax.f32 %v1004, 0.0
          %v1037 = vmax.f32 %v1005, 0.0
          %v1038 = vmax.f32 %v1006, 0.0
          %v1039 = vmax.f32 %v1007, 0.0
          %v1040 = vmax.f32 %v1008, 0.0
          %v1041 = vmax.f32 %v1009, 0.0
          %v1042 = vmax.f32 %v1010, 0.0
          %v1043 = vmax.f32 %v1011, 0.0
          %v1044 = vmax.f32 %v1012, 0.0
          %v1045 = vmax.f32 %v1013, 0.0
          %v1046 = vmax.f32 %v1014, 0.0
          %v1047 = vmax.f32 %v1015, 0.0
          %v1048 = vmax.f32 %v1016, 0.0
          %v1049 = vmax.f32 %v1017, 0.0
          %v1050 = vmax.f32 %v1018, 0.0
          %v1051 = vmax.f32 %v1019, 0.0
          %v1052 = vmax.f32 %v1020, 0.0
          %v1053 = vmax.f32 %v1021, 0.0
          %v1054 = vmax.f32 %v1022, 0.0
          %v1055 = vmax.f32 %v1023, 0.0
          %v1056 = vmax.f32 %v1024, 0.0
          %v1057 = vmax.f32 %v1025, 0.0
          %v1058 = vmax.f32 %v1026, 0.0
          %v1059 = vmax.f32 %v1027, 0.0
          %v1060 = vpack.c.bf16 %v1030, %v1028
          %v1061 = vpack.c.bf16 %v1031, %v1029
          %v1062 = vpack.c.bf16 %v1034, %v1032
          %v1063 = vpack.c.bf16 %v1035, %v1033
          %v1064 = vpack.c.bf16 %v1038, %v1036
          %v1065 = vpack.c.bf16 %v1039, %v1037
          %v1066 = vpack.c.bf16 %v1042, %v1040
          %v1067 = vpack.c.bf16 %v1043, %v1041
          %v1068 = vpack.c.bf16 %v1046, %v1044
          %v1069 = vpack.c.bf16 %v1047, %v1045
          %v1070 = vpack.c.bf16 %v1050, %v1048
          %v1071 = vpack.c.bf16 %v1051, %v1049
          %v1072 = vpack.c.bf16 %v1054, %v1052
          %v1073 = vpack.c.bf16 %v1055, %v1053
          %v1074 = vpack.c.bf16 %v1058, %v1056
          %v1075 = vpack.c.bf16 %v1059, %v1057
          %v1092 = vunpack.c.l.b16 %v1060
          %v1093 = vunpack.c.l.b16 %v1061
          %v1094 = vunpack.c.h.b16 %v1060
          %v1095 = vunpack.c.h.b16 %v1061
          %v1096 = vunpack.c.l.b16 %v1062
          %v1097 = vunpack.c.l.b16 %v1063
          %v1098 = vunpack.c.h.b16 %v1062
          %v1099 = vunpack.c.h.b16 %v1063
          %v1100 = vunpack.c.l.b16 %v1064
          %v1101 = vunpack.c.l.b16 %v1065
          %v1102 = vunpack.c.h.b16 %v1064
          %v1103 = vunpack.c.h.b16 %v1065
          %v1104 = vunpack.c.l.b16 %v1066
          %v1105 = vunpack.c.l.b16 %v1067
          %v1106 = vunpack.c.h.b16 %v1066
          %v1107 = vunpack.c.h.b16 %v1067
          %v1108 = vunpack.c.l.b16 %v1068
          %v1109 = vunpack.c.l.b16 %v1069
          %v1110 = vunpack.c.h.b16 %v1068
          %v1111 = vunpack.c.h.b16 %v1069
          %v1112 = vunpack.c.l.b16 %v1070
          %v1113 = vunpack.c.l.b16 %v1071
          %v1114 = vunpack.c.h.b16 %v1070
          %v1115 = vunpack.c.h.b16 %v1071
          %v1116 = vunpack.c.l.b16 %v1072
          %v1117 = vunpack.c.l.b16 %v1073
          %v1118 = vunpack.c.h.b16 %v1072
          %v1119 = vunpack.c.h.b16 %v1073
          %v1120 = vunpack.c.l.b16 %v1074
          %v1121 = vunpack.c.l.b16 %v1075
          %v1122 = vunpack.c.h.b16 %v1074
          %v1123 = vunpack.c.h.b16 %v1075
          %v1124 = vpack.c.b16 %v1093, %v1092
          %v1125 = vpack.c.b16 %v1095, %v1094
          %v1126 = vpack.c.b16 %v1097, %v1096
          %v1127 = vpack.c.b16 %v1099, %v1098
          %v1128 = vpack.c.b16 %v1101, %v1100
          %v1129 = vpack.c.b16 %v1103, %v1102
          %v1130 = vpack.c.b16 %v1105, %v1104
          %v1131 = vpack.c.b16 %v1107, %v1106
          %v1132 = vpack.c.b16 %v1109, %v1108
          %v1133 = vpack.c.b16 %v1111, %v1110
          %v1134 = vpack.c.b16 %v1113, %v1112
          %v1135 = vpack.c.b16 %v1115, %v1114
          %v1136 = vpack.c.b16 %v1117, %v1116
          %v1137 = vpack.c.b16 %v1119, %v1118
          %v1138 = vpack.c.b16 %v1121, %v1120
          %v1139 = vpack.c.b16 %v1123, %v1122
          %1156 = vst [vmem:[%s367] sm:$0xff] %v1124
          %1157 = vst [vmem:[%s367 + $0x8] sm:$0xff] %v1125
          %1158 = vst [vmem:[%s367 + $0x10] sm:$0xff] %v1126
          %1159 = vst [vmem:[%s367 + $0x18] sm:$0xff] %v1127
          %1160 = vst [vmem:[%s367 + $0x20] sm:$0xff] %v1128
          %1161 = vst [vmem:[%s367 + $0x28] sm:$0xff] %v1129
          %1162 = vst [vmem:[%s367 + $0x30] sm:$0xff] %v1130
          %1163 = vst [vmem:[%s367 + $0x38] sm:$0xff] %v1131
          %1164 = vst [vmem:[%s367 + $0x40] sm:$0xff] %v1132
          %1165 = vst [vmem:[%s367 + $0x48] sm:$0xff] %v1133
          %1166 = vst [vmem:[%s367 + $0x50] sm:$0xff] %v1134
          %1167 = vst [vmem:[%s367 + $0x58] sm:$0xff] %v1135
          %1168 = vst [vmem:[%s367 + $0x60] sm:$0xff] %v1136
          %1169 = vst [vmem:[%s367 + $0x68] sm:$0xff] %v1137
          %1170 = vst [vmem:[%s367 + $0x70] sm:$0xff] %v1138
          %1171 = vst [vmem:[%s367 + $0x78] sm:$0xff] %v1139
        $region78: #{db_forward.12} parent=65 // pred_fallthru
          _
        %s1172 = smul.u32 16, %s19
        %s1173 = smul.u32 2, %s20
        %p1174 = scmp.lt.s32.totalorder %s1172, 15
        %s1175 = scalar_select %p1174, %s1172, 15
        %p1176 = scmp.lt.s32.totalorder %s1173, 1
        %s1177 = scalar_select %p1176, %s1173, 1
        %s1178 = smul.addr %s1175, 2
        %s1179 = sadd.s32 %s1177, %s1178
        %s1180 = smul.addr %s1179, 4
        %s1181 = scalar_lea.vmem %s3, %s1180
        // Predicated region
        $region79: #{db_forward.12} parent=65 // pred_check
          %p1182 = pneg %p135
        $region80: #{db_forward.12} parent=65 // pred_check_branch
          %1184 = sbr.rel (%p1182) target = $region82
        $region81: #{db_forward.12} parent=65 // pred_region
          %s1185 = smul.u32 16, %s19
          %s1186 = smul.u32 2, %s20
        $region82: #{db_forward.12} parent=65 // pred_fallthru
          _
        // Predicated region
        $region83: #{db_forward.12} parent=65 // pred_check
          %p1187 = pneg %p135
        $region84: #{db_forward.12} parent=65 // pred_check_branch
          %1189 = sbr.rel (%p1187) target = $region86
        $region85: #{db_forward.12} parent=65 // pred_region
          %s1190 = smul.u32 16, %s19
          %s1191 = smul.u32 2, %s20
          %p1192 = scmp.lt.s32.totalorder %s1190, 15
          %s1193 = scalar_select %p1192, %s1190, 15
          %p1194 = scmp.lt.s32.totalorder %s1191, 1
          %s1195 = scalar_select %p1194, %s1191, 1
          %s1196 = smul.addr %s1193, 2
          %s1197 = sadd.s32 %s1195, %s1196
          %s1198 = smul.addr %s1197, 4
          %s1199 = scalar_lea.vmem %s3, %s1198
        $region86: #{db_forward.12} parent=65 // pred_fallthru
          _
      $region66: #{db_forward.12} parent=5 // pred_fallthru
        _
      %p1200 = scmp.le.s32.totalorder 2, %s9
      // Predicated region
      $region87: #{db_forward.12} parent=5 // pred_check
        %p1201 = pneg %p1200
      $region88: #{db_forward.12} parent=5 // pred_check_branch
        %1203 = sbr.rel (%p1201) target = $region90
      $region89: #{db_forward.12} parent=5 // pred_region
        %s1204 = ssub.s32 %s9, 2
      $region90: #{db_forward.12} parent=5 // pred_fallthru
        _
    $region6: #{db_forward.12} parent=1 // loop_footer
      %s13 = sadd.s32 1, %s9
    $region7: #{db_forward.12} parent=1 // loop_footer_branch
      %8 = sbr.rel target = $region3
    $region8: #{db_forward.12} parent=1 // loop_exit
      _

// kernel: db_forward.13
$region0: #{db_forward.13}
  #allocation0 [shape = 'u32[]', space=smem, size = 0x4, offset = 0x4, fixed_abs, tag = 'smem constant byte address 0x4 - core index']
  #allocation1 [shape = 'u32[144,128]{1,0:T(1,128)}', space=vmem, size = 0x12000, scoped, tag = 'internal scratch']
  #allocation2 [shape = 'f32[128,128]{1,0:T(8,128)}', space=vmem, size = 0x10000, scoped, tag = 'scratch operand']
  %s0 = inlined_call_operand.vmem [shape: bf16[128,2304], index: 0, kind: input, shape index: {}]
  %s1 = inlined_call_operand.vmem [shape: bf16[2304,128], index: 1, kind: input, shape index: {}]
  %s2 = inlined_call_operand.vmem [shape: f32[2,128], index: 2, kind: input, shape index: {}]
  %s3 = inlined_call_operand.vmem [shape: bf16[128,128], index: 3, kind: output, shape index: {}]
  %s4 = sld [smem:[#allocation0]]
  $region91: #{db_forward.13} parent=0
    _
  %s6 = ssub.s32 1, %s4
  %s7 = scalar_select 0, %s6, %s4
  $region1: #{db_forward.13} parent=0
    #allocation3 [shape = 'u8[131072]{0}', space=vmem, size = 0x20000, scoped, tag = 'input window, operand 0']
    loop: start=0, step=1, limit=11
    $region2: #{db_forward.13} parent=1 // loop_pre_header
      _
    $region3: #{db_forward.13} parent=1 // loop_header
      %s9 = sphi 0, %s13
      %p10 = scmp.ge.s32.totalorder %s9, 11
      %s16 = sphi 0, %s35
      %s17 = sphi 0, %s31
      %s18 = sphi 0, %s27
      %s19 = sphi 0, %s16
      %s20 = sphi 0, %s17
      %s21 = sphi 0, %s18
      %s22 = sphi 0, %s19
      %s23 = sphi 0, %s20
      %s24 = sphi 0, %s21
      %s40 = sphi 0, %s42
      %s43 = sphi 0, %s40
      %s44 = sphi 0, %s43
      %s60 = sphi 0, %s44
      %s68 = sphi 0, %s70
      %s71 = sphi 0, %s68
      %s72 = sphi 0, %s71
      %s88 = sphi 0, %s72
      %s94 = sphi 0, %s96
      %s97 = sphi 0, %s94
      %s98 = sphi 0, %s97
      %s114 = sphi 0, %s98
      %s122 = sphi 0, %s124
      %s125 = sphi 0, %s122
      %s126 = sphi 0, %s125
      %s142 = sphi 0, %s126
    $region4: #{db_forward.13} parent=1 // loop_header_branch
      %12 = sbr.rel (%p10) target = $region8
    $region5: #{db_forward.13} parent=1 // loop_body
      %s14 = ssub.s32 %s9, 1
      %s15 = ssub.s32 %s9, 2
      %s25 = sadd.s32 1, %s18
      %p26 = scmp.ge.s32.totalorder %s25, 9
      %s27 = scalar_select %p26, 0, %s25
      %s28 = sadd.s32 1, %s17
      %s29 = scalar_select %p26, %s28, %s17
      %p30 = scmp.ge.s32.totalorder %s29, 1
      %s31 = scalar_select %p30, 0, %s29
      %s32 = sadd.s32 1, %s16
      %s33 = scalar_select %p30, %s32, %s16
      %p34 = scmp.ge.s32.totalorder %s33, 1
      %s35 = scalar_select %p34, 0, %s33
      %s36 = ssub.s32 %s16, %s35
      %s37 = ssub.s32 %s18, %s27
      %s38 = sor.u32 %s36, %s37
      %p39 = scmp.eq.s32.totalorder %s38, 0
      %s41 = sadd.s32 %s40, 1
      %s42 = scalar_select %p39, %s40, %s41
      %p45 = pneg %p39
      %p46 = scmp.eq.s32.totalorder %s9, 8
      %p47 = por %p45, %p46
      %p48 = scmp.ne.s32.totalorder %s40, %s43
      %p49 = scmp.eq.s32.totalorder %s9, 0
      %p50 = por %p48, %p49
      %p51 = scmp.ne.s32.totalorder %s40, %s43
      %p52 = scmp.eq.s32.totalorder %s14, 8
      %p53 = por %p51, %p52
      %p54 = scmp.ne.s32.totalorder %s43, %s44
      %p55 = scmp.eq.s32.totalorder %s14, 0
      %p56 = por %p54, %p55
      %p57 = scmp.ne.s32.totalorder %s43, %s44
      %p58 = scmp.eq.s32.totalorder %s15, 8
      %p59 = por %p57, %p58
      %p61 = scmp.ne.s32.totalorder %s44, %s60
      %p62 = scmp.eq.s32.totalorder %s15, 0
      %p63 = por %p61, %p62
      %s64 = ssub.s32 %s18, %s27
      %s65 = ssub.s32 %s17, %s31
      %s66 = sor.u32 %s64, %s65
      %p67 = scmp.eq.s32.totalorder %s66, 0
      %s69 = sadd.s32 %s68, 1
      %s70 = scalar_select %p67, %s68, %s69
      %p73 = pneg %p67
      %p74 = scmp.eq.s32.totalorder %s9, 8
      %p75 = por %p73, %p74
      %p76 = scmp.ne.s32.totalorder %s68, %s71
      %p77 = scmp.eq.s32.totalorder %s9, 0
      %p78 = por %p76, %p77
      %p79 = scmp.ne.s32.totalorder %s68, %s71
      %p80 = scmp.eq.s32.totalorder %s14, 8
      %p81 = por %p79, %p80
      %p82 = scmp.ne.s32.totalorder %s71, %s72
      %p83 = scmp.eq.s32.totalorder %s14, 0
      %p84 = por %p82, %p83
      %p85 = scmp.ne.s32.totalorder %s71, %s72
      %p86 = scmp.eq.s32.totalorder %s15, 8
      %p87 = por %p85, %p86
      %p89 = scmp.ne.s32.totalorder %s72, %s88
      %p90 = scmp.eq.s32.totalorder %s15, 0
      %p91 = por %p89, %p90
      %s92 = ssub.s32 %s17, %s31
      %p93 = scmp.eq.s32.totalorder %s92, 0
      %s95 = sadd.s32 %s94, 1
      %s96 = scalar_select %p93, %s94, %s95
      %p99 = pneg %p93
      %p100 = scmp.eq.s32.totalorder %s9, 8
      %p101 = por %p99, %p100
      %p102 = scmp.ne.s32.totalorder %s94, %s97
      %p103 = scmp.eq.s32.totalorder %s9, 0
      %p104 = por %p102, %p103
      %p105 = scmp.ne.s32.totalorder %s94, %s97
      %p106 = scmp.eq.s32.totalorder %s14, 8
      %p107 = por %p105, %p106
      %p108 = scmp.ne.s32.totalorder %s97, %s98
      %p109 = scmp.eq.s32.totalorder %s14, 0
      %p110 = por %p108, %p109
      %p111 = scmp.ne.s32.totalorder %s97, %s98
      %p112 = scmp.eq.s32.totalorder %s15, 8
      %p113 = por %p111, %p112
      %p115 = scmp.ne.s32.totalorder %s98, %s114
      %p116 = scmp.eq.s32.totalorder %s15, 0
      %p117 = por %p115, %p116
      %s118 = ssub.s32 %s16, %s35
      %s119 = ssub.s32 %s17, %s31
      %s120 = sor.u32 %s118, %s119
      %p121 = scmp.eq.s32.totalorder %s120, 0
      %s123 = sadd.s32 %s122, 1
      %s124 = scalar_select %p121, %s122, %s123
      %p127 = pneg %p121
      %p128 = scmp.eq.s32.totalorder %s9, 8
      %p129 = por %p127, %p128
      %p130 = scmp.ne.s32.totalorder %s122, %s125
      %p131 = scmp.eq.s32.totalorder %s9, 0
      %p132 = por %p130, %p131
      %p133 = scmp.ne.s32.totalorder %s122, %s125
      %p134 = scmp.eq.s32.totalorder %s14, 8
      %p135 = por %p133, %p134
      %p136 = scmp.ne.s32.totalorder %s125, %s126
      %p137 = scmp.eq.s32.totalorder %s14, 0
      %p138 = por %p136, %p137
      %p139 = scmp.ne.s32.totalorder %s125, %s126
      %p140 = scmp.eq.s32.totalorder %s15, 8
      %p141 = por %p139, %p140
      %p143 = scmp.ne.s32.totalorder %s126, %s142
      %p144 = scmp.eq.s32.totalorder %s15, 0
      %p145 = por %p143, %p144
      %p146 = scmp.le.s32.totalorder 1, %s9
      %p147 = scmp.lt.s32.totalorder %s9, 10
      %p148 = pnand %p146, %p147
      %p149 = pneg %p148
      // Predicated region
      $region9: #{db_forward.13} parent=5 // pred_check
        _
      $region10: #{db_forward.13} parent=5 // pred_check_branch
        %151 = sbr.rel (%p148) target = $region12
      $region11: #{db_forward.13} parent=5 // pred_region
        %s152 = ssub.s32 %s9, 1
        // Predicated region
        $region13: #{db_forward.13} parent=11 // pred_check
          %p153 = pneg %p110
        $region14: #{db_forward.13} parent=11 // pred_check_branch
          %155 = sbr.rel (%p153) target = $region16
        $region15: #{db_forward.13} parent=11 // pred_region
          %p156 = scmp.lt.s32.totalorder %s20, 0
          %s157 = scalar_select %p156, %s20, 0
          %s158 = smul.addr %s157, 2
          %s159 = scalar_lea.vmem %s2, %s158
        $region16: #{db_forward.13} parent=11 // pred_fallthru
          _
      $region12: #{db_forward.13} parent=5 // pred_fallthru
        _
      %p160 = scmp.lt.s32.totalorder %s9, 9
      // Predicated region
      $region17: #{db_forward.13} parent=5 // pred_check
        %p161 = pneg %p160
      $region18: #{db_forward.13} parent=5 // pred_check_branch
        %163 = sbr.rel (%p161) target = $region20
      $region19: #{db_forward.13} parent=5 // pred_region
        // Predicated region
        $region21: #{db_forward.13} parent=19 // pred_check
          %p164 = pneg %p50
        $region22: #{db_forward.13} parent=19 // pred_check_branch
          %166 = sbr.rel (%p164) target = $region24
        $region23: #{db_forward.13} parent=19 // pred_region
          %s167 = sand.u32 %s40, 1
          %s168 = sand.u32 %s40, 1
          %s169 = smul.addr %s168, 128
          %s170 = scalar_lea.vmem [#allocation3], %s169
          %s171 = smul.u32 16, %s16
          %s172 = smul.u32 2, %s18
          %s173 = smul.addr %s171, 18
          %s174 = sadd.s32 %s172, %s173
          %s175 = smul.addr %s174, 4
          %s176 = scalar_lea.vmem %s0, %s175
          // Predicated region
          $region25: #{db_forward.13} parent=23 // pred_check
            _
          $region26: #{db_forward.13} parent=23 // pred_check_branch
            %178 = sbr.rel (0) target = $region28
          $region27: #{db_forward.13} parent=23 // pred_region
            // Predicated region
            $region29: #{db_forward.13} parent=27 // pred_check
              _
            $region30: #{db_forward.13} parent=27 // pred_check_branch
              %180 = sbr.rel (0) target = $region32
            $region31: #{db_forward.13} parent=27 // pred_region
              // Predicated region
              $region44: #{db_forward.13} parent=31 // pred_check
                _
              $region45: #{db_forward.13} parent=31 // pred_check_branch
                %226 = sbr.rel (0) target = $region47
              $region46: #{db_forward.13} parent=31 // pred_region
                loop: start=0, step=1, limit=1
                $region48: #{db_forward.13} parent=46 // loop_pre_header
                  _
                $region49: #{db_forward.13} parent=46 // loop_header
                  %s228 = sphi 0, %s232
                  %p229 = scmp.ge.s32.totalorder %s228, 1
                  %s233 = sphi %s176, %s176
                  %s234 = sphi %s170, %s170
                $region50: #{db_forward.13} parent=46 // loop_header_branch
                  %231 = sbr.rel (%p229) target = $region54
                $region51: #{db_forward.13} parent=46 // loop_body
                  %v235 = vld [vmem:[%s233] sm:$0xff]
                  %236 = vst [vmem:[%s234] sm:$0xff] %v235
                  %v237 = vld [vmem:[%s233 + $0x48] sm:$0xff]
                  %238 = vst [vmem:[%s234 + $0x8] sm:$0xff] %v237
                  %v239 = vld [vmem:[%s233 + $0x90] sm:$0xff]
                  %240 = vst [vmem:[%s234 + $0x10] sm:$0xff] %v239
                  %v241 = vld [vmem:[%s233 + $0xd8] sm:$0xff]
                  %242 = vst [vmem:[%s234 + $0x18] sm:$0xff] %v241
                  %v243 = vld [vmem:[%s233 + $0x120] sm:$0xff]
                  %244 = vst [vmem:[%s234 + $0x20] sm:$0xff] %v243
                  %v245 = vld [vmem:[%s233 + $0x168] sm:$0xff]
                  %246 = vst [vmem:[%s234 + $0x28] sm:$0xff] %v245
                  %v247 = vld [vmem:[%s233 + $0x1b0] sm:$0xff]
                  %248 = vst [vmem:[%s234 + $0x30] sm:$0xff] %v247
                  %v249 = vld [vmem:[%s233 + $0x1f8] sm:$0xff]
                  %250 = vst [vmem:[%s234 + $0x38] sm:$0xff] %v249
                  %v251 = vld [vmem:[%s233 + $0x240] sm:$0xff]
                  %252 = vst [vmem:[%s234 + $0x40] sm:$0xff] %v251
                  %v253 = vld [vmem:[%s233 + $0x288] sm:$0xff]
                  %254 = vst [vmem:[%s234 + $0x48] sm:$0xff] %v253
                  %v255 = vld [vmem:[%s233 + $0x2d0] sm:$0xff]
                  %256 = vst [vmem:[%s234 + $0x50] sm:$0xff] %v255
                  %v257 = vld [vmem:[%s233 + $0x318] sm:$0xff]
                  %258 = vst [vmem:[%s234 + $0x58] sm:$0xff] %v257
                  %v259 = vld [vmem:[%s233 + $0x360] sm:$0xff]
                  %260 = vst [vmem:[%s234 + $0x60] sm:$0xff] %v259
                  %v261 = vld [vmem:[%s233 + $0x3a8] sm:$0xff]
                  %262 = vst [vmem:[%s234 + $0x68] sm:$0xff] %v261
                  %v263 = vld [vmem:[%s233 + $0x3f0] sm:$0xff]
                  %264 = vst [vmem:[%s234 + $0x70] sm:$0xff] %v263
                  %v265 = vld [vmem:[%s233 + $0x438] sm:$0xff]
                  %266 = vst [vmem:[%s234 + $0x78] sm:$0xff] %v265
                $region52: #{db_forward.13} parent=46 // loop_footer
                  %s232 = sadd.s32 1, %s228
                $region53: #{db_forward.13} parent=46 // loop_footer_branch
                  %227 = sbr.rel target = $region49
                $region54: #{db_forward.13} parent=46 // loop_exit
                  _
              $region47: #{db_forward.13} parent=31 // pred_fallthru
                _
              // Predicated region
              $region55: #{db_forward.13} parent=31 // pred_check
                _
              $region56: #{db_forward.13} parent=31 // pred_check_branch
                %268 = sbr.rel target = $region58
              $region57: #{db_forward.13} parent=31 // pred_region
                _
              $region58: #{db_forward.13} parent=31 // pred_fallthru
                _
            $region32: #{db_forward.13} parent=27 // pred_fallthru
              _
            // Predicated region
            $region33: #{db_forward.13} parent=27 // pred_check
              _
            $region34: #{db_forward.13} parent=27 // pred_check_branch
              %182 = sbr.rel target = $region36
            $region35: #{db_forward.13} parent=27 // pred_region
              %s184 = ssub.s32 256, 1
              loop: start=0, step=1, limit=1
              $region37: #{db_forward.13} parent=35 // loop_pre_header
                _
              $region38: #{db_forward.13} parent=35 // loop_header
                %s186 = sphi 0, %s190
                %p187 = scmp.ge.s32.totalorder %s186, 1
                %s191 = sphi %s176, %s176
                %s192 = sphi %s170, %s170
              $region39: #{db_forward.13} parent=35 // loop_header_branch
                %189 = sbr.rel (%p187) target = $region43
              $region40: #{db_forward.13} parent=35 // loop_body
                %v193 = vld [vmem:[%s191] sm:%s184]
                %194 = vst [vmem:[%s192] sm:%s184] %v193
                %v195 = vld [vmem:[%s191 + $0x48] sm:%s184]
                %196 = vst [vmem:[%s192 + $0x8] sm:%s184] %v195
                %v197 = vld [vmem:[%s191 + $0x90] sm:%s184]
                %198 = vst [vmem:[%s192 + $0x10] sm:%s184] %v197
                %v199 = vld [vmem:[%s191 + $0xd8] sm:%s184]
                %200 = vst [vmem:[%s192 + $0x18] sm:%s184] %v199
                %v201 = vld [vmem:[%s191 + $0x120] sm:%s184]
                %202 = vst [vmem:[%s192 + $0x20] sm:%s184] %v201
                %v203 = vld [vmem:[%s191 + $0x168] sm:%s184]
                %204 = vst [vmem:[%s192 + $0x28] sm:%s184] %v203
                %v205 = vld [vmem:[%s191 + $0x1b0] sm:%s184]
                %206 = vst [vmem:[%s192 + $0x30] sm:%s184] %v205
                %v207 = vld [vmem:[%s191 + $0x1f8] sm:%s184]
                %208 = vst [vmem:[%s192 + $0x38] sm:%s184] %v207
                %v209 = vld [vmem:[%s191 + $0x240] sm:%s184]
                %210 = vst [vmem:[%s192 + $0x40] sm:%s184] %v209
                %v211 = vld [vmem:[%s191 + $0x288] sm:%s184]
                %212 = vst [vmem:[%s192 + $0x48] sm:%s184] %v211
                %v213 = vld [vmem:[%s191 + $0x2d0] sm:%s184]
                %214 = vst [vmem:[%s192 + $0x50] sm:%s184] %v213
                %v215 = vld [vmem:[%s191 + $0x318] sm:%s184]
                %216 = vst [vmem:[%s192 + $0x58] sm:%s184] %v215
                %v217 = vld [vmem:[%s191 + $0x360] sm:%s184]
                %218 = vst [vmem:[%s192 + $0x60] sm:%s184] %v217
                %v219 = vld [vmem:[%s191 + $0x3a8] sm:%s184]
                %220 = vst [vmem:[%s192 + $0x68] sm:%s184] %v219
                %v221 = vld [vmem:[%s191 + $0x3f0] sm:%s184]
                %222 = vst [vmem:[%s192 + $0x70] sm:%s184] %v221
                %v223 = vld [vmem:[%s191 + $0x438] sm:%s184]
                %224 = vst [vmem:[%s192 + $0x78] sm:%s184] %v223
              $region41: #{db_forward.13} parent=35 // loop_footer
                %s190 = sadd.s32 1, %s186
              $region42: #{db_forward.13} parent=35 // loop_footer_branch
                %185 = sbr.rel target = $region38
              $region43: #{db_forward.13} parent=35 // loop_exit
                _
            $region36: #{db_forward.13} parent=27 // pred_fallthru
              _
          $region28: #{db_forward.13} parent=23 // pred_fallthru
            _
          %269 = vnop
        $region24: #{db_forward.13} parent=19 // pred_fallthru
          _
        // Predicated region
        $region59: #{db_forward.13} parent=19 // pred_check
          %p270 = pneg %p78
        $region60: #{db_forward.13} parent=19 // pred_check_branch
          %272 = sbr.rel (%p270) target = $region62
        $region61: #{db_forward.13} parent=19 // pred_region
          %s273 = smul.u32 32, %s18
          %p274 = scmp.lt.s32.totalorder %s273, 287
          %s275 = scalar_select %p274, %s273, 287
          %p276 = scmp.lt.s32.totalorder %s17, 0
          %s277 = scalar_select %p276, %s17, 0
          %s278 = sadd.s32 %s277, %s275
          %s279 = smul.addr %s278, 4
          %s280 = scalar_lea.vmem %s1, %s279
          %s281 = smul.u32 32, %s18
        $region62: #{db_forward.13} parent=19 // pred_fallthru
          _
      $region20: #{db_forward.13} parent=5 // pred_fallthru
        _
      %p282 = scmp.le.s32.totalorder 1, %s9
      %p283 = scmp.lt.s32.totalorder %s9, 10
      %p284 = pnand %p282, %p283
      %p285 = pneg %p284
      // Predicated region
      $region63: #{db_forward.13} parent=5 // pred_check
        _
      $region64: #{db_forward.13} parent=5 // pred_check_branch
        %287 = sbr.rel (%p284) target = $region66
      $region65: #{db_forward.13} parent=5 // pred_region
        %s288 = ssub.s32 %s9, 1
        %s289 = sand.u32 %s43, 1
        %s290 = sand.u32 %s43, 1
        %s291 = smul.addr %s290, 128
        %s292 = scalar_lea.vmem [#allocation3], %s291
        // Predicated region
        $region67: #{db_forward.13} parent=65 // pred_check
          %p293 = pneg %p56
        $region68: #{db_forward.13} parent=65 // pred_check_branch
          %295 = sbr.rel (%p293) target = $region70
        $region69: #{db_forward.13} parent=65 // pred_region
          _
        $region70: #{db_forward.13} parent=65 // pred_fallthru
          _
        %s296 = sand.u32 %s43, 1
        %s297 = sand.u32 %s43, 1
        %s298 = smul.addr %s297, 128
        %s299 = scalar_lea.vmem [#allocation3], %s298
        %p300 = pneg %p56
        %p301 = pneg %p53
        %s302 = smul.u32 32, %s21
        %p303 = scmp.lt.s32.totalorder %s302, 287
        %s304 = scalar_select %p303, %s302, 287
        %p305 = scmp.lt.s32.totalorder %s20, 0
        %s306 = scalar_select %p305, %s20, 0
        %s307 = sadd.s32 %s306, %s304
        %s308 = smul.addr %s307, 4
        %s309 = scalar_lea.vmem %s1, %s308
        %p310 = pneg %p84
        %p311 = pneg %p81
        %p312 = scmp.lt.s32.totalorder %s20, 0
        %s313 = scalar_select %p312, %s20, 0
        %s314 = smul.addr %s313, 2
        %s315 = scalar_lea.vmem %s2, %s314
        %p316 = pneg %p110
        %p317 = pneg %p107
        %p318 = pneg %p138
        %p319 = pneg %p135
        %s320 = smul.u32 16, %s19
        %p321 = scmp.lt.s32.totalorder %s320, 15
        %s322 = scalar_select %p321, %s320, 15
        %p323 = scmp.lt.s32.totalorder %s20, 0
        %s324 = scalar_select %p323, %s20, 0
        %s325 = sadd.s32 %s324, %s322
        %s326 = smul.addr %s325, 4
        %s327 = scalar_lea.vmem %s3, %s326
        %s328 = smul.u32 16, %s19
        %s329 = smul.u32 2, %s21
        %s330 = smul.u32 32, %s21
        %p331 = scmp.lt.s32.totalorder %s330, 287
        %s332 = scalar_select %p331, %s330, 287
        %p333 = scmp.lt.s32.totalorder %s20, 0
        %s334 = scalar_select %p333, %s20, 0
        %s335 = sadd.s32 %s334, %s332
        %s336 = smul.addr %s335, 4
        %s337 = scalar_lea.vmem %s1, %s336
        %s338 = smul.u32 32, %s21
        %p339 = scmp.lt.s32.totalorder %s20, 0
        %s340 = scalar_select %p339, %s20, 0
        %s341 = smul.addr %s340, 2
        %s342 = scalar_lea.vmem %s2, %s341
        %s343 = smul.u32 16, %s19
        %p344 = scmp.lt.s32.totalorder %s343, 15
        %s345 = scalar_select %p344, %s343, 15
        %p346 = scmp.lt.s32.totalorder %s20, 0
        %s347 = scalar_select %p346, %s20, 0
        %s348 = sadd.s32 %s347, %s345
        %s349 = smul.addr %s348, 4
        %s350 = scalar_lea.vmem %s3, %s349
        %s351 = smul.u32 16, %s19
        %p353 = scmp.eq.s32.totalorder %s21, 0
        // Predicated region
        $region71: #{db_forward.13} parent=65 // pred_check
          %p354 = pneg %p353
        $region72: #{db_forward.13} parent=65 // pred_check_branch
          %356 = sbr.rel (%p354) target = $region74
        $region73: #{db_forward.13} parent=65 // pred_region
          %357 = vst [vmem:[#allocation2] sm:$0xff] 0.0
          %358 = vst [vmem:[#allocation2 + $0x8] sm:$0xff] 0.0
          %359 = vst [vmem:[#allocation2 + $0x10] sm:$0xff] 0.0
          %360 = vst [vmem:[#allocation2 + $0x18] sm:$0xff] 0.0
          %361 = vst [vmem:[#allocation2 + $0x20] sm:$0xff] 0.0
          %362 = vst [vmem:[#allocation2 + $0x28] sm:$0xff] 0.0
          %363 = vst [vmem:[#allocation2 + $0x30] sm:$0xff] 0.0
          %364 = vst [vmem:[#allocation2 + $0x38] sm:$0xff] 0.0
          %365 = vst [vmem:[#allocation2 + $0x40] sm:$0xff] 0.0
          %366 = vst [vmem:[#allocation2 + $0x48] sm:$0xff] 0.0
          %367 = vst [vmem:[#allocation2 + $0x50] sm:$0xff] 0.0
          %368 = vst [vmem:[#allocation2 + $0x58] sm:$0xff] 0.0
          %369 = vst [vmem:[#allocation2 + $0x60] sm:$0xff] 0.0
          %370 = vst [vmem:[#allocation2 + $0x68] sm:$0xff] 0.0
          %371 = vst [vmem:[#allocation2 + $0x70] sm:$0xff] 0.0
          %372 = vst [vmem:[#allocation2 + $0x78] sm:$0xff] 0.0
        $region74: #{db_forward.13} parent=65 // pred_fallthru
          _
        %v373 = vld [vmem:[#allocation2] sm:$0xff]
        %v374 = vld [vmem:[#allocation2 + $0x8] sm:$0xff]
        %v375 = vld [vmem:[#allocation2 + $0x10] sm:$0xff]
        %v376 = vld [vmem:[#allocation2 + $0x18] sm:$0xff]
        %v377 = vld [vmem:[#allocation2 + $0x20] sm:$0xff]
        %v378 = vld [vmem:[#allocation2 + $0x28] sm:$0xff]
        %v379 = vld [vmem:[#allocation2 + $0x30] sm:$0xff]
        %v380 = vld [vmem:[#allocation2 + $0x38] sm:$0xff]
        %v381 = vld [vmem:[#allocation2 + $0x40] sm:$0xff]
        %v382 = vld [vmem:[#allocation2 + $0x48] sm:$0xff]
        %v383 = vld [vmem:[#allocation2 + $0x50] sm:$0xff]
        %v384 = vld [vmem:[#allocation2 + $0x58] sm:$0xff]
        %v385 = vld [vmem:[#allocation2 + $0x60] sm:$0xff]
        %v386 = vld [vmem:[#allocation2 + $0x68] sm:$0xff]
        %v387 = vld [vmem:[#allocation2 + $0x70] sm:$0xff]
        %v388 = vld [vmem:[#allocation2 + $0x78] sm:$0xff]
        %v389 = vld [vmem:[%s292] sm:$0xff]
        %v390 = vld [vmem:[%s292 + $0x8] sm:$0xff]
        %v391 = vld [vmem:[%s292 + $0x10] sm:$0xff]
        %v392 = vld [vmem:[%s292 + $0x18] sm:$0xff]
        %v393 = vld [vmem:[%s292 + $0x20] sm:$0xff]
        %v394 = vld [vmem:[%s292 + $0x28] sm:$0xff]
        %v395 = vld [vmem:[%s292 + $0x30] sm:$0xff]
        %v396 = vld [vmem:[%s292 + $0x38] sm:$0xff]
        %v397 = vld [vmem:[%s292 + $0x40] sm:$0xff]
        %v398 = vld [vmem:[%s292 + $0x48] sm:$0xff]
        %v399 = vld [vmem:[%s292 + $0x50] sm:$0xff]
        %v400 = vld [vmem:[%s292 + $0x58] sm:$0xff]
        %v401 = vld [vmem:[%s292 + $0x60] sm:$0xff]
        %v402 = vld [vmem:[%s292 + $0x68] sm:$0xff]
        %v403 = vld [vmem:[%s292 + $0x70] sm:$0xff]
        %v404 = vld [vmem:[%s292 + $0x78] sm:$0xff]
        %v405 = vld [vmem:[%s337] sm:$0xf]
        %v406 = vld [vmem:[%s337 + $0x4] sm:$0xf]
        %v407 = vld [vmem:[%s337 + $0x8] sm:$0xf]
        %v408 = vld [vmem:[%s337 + $0xc] sm:$0xf]
        %v409 = vld [vmem:[%s337 + $0x10] sm:$0xf]
        %v410 = vld [vmem:[%s337 + $0x14] sm:$0xf]
        %v411 = vld [vmem:[%s337 + $0x18] sm:$0xf]
        %v412 = vld [vmem:[%s337 + $0x1c] sm:$0xf]
        %v413 = vld [vmem:[%s337 + $0x20] sm:$0xf]
        %v414 = vld [vmem:[%s337 + $0x24] sm:$0xf]
        %v415 = vld [vmem:[%s337 + $0x28] sm:$0xf]
        %v416 = vld [vmem:[%s337 + $0x2c] sm:$0xf]
        %v417 = vld [vmem:[%s337 + $0x30] sm:$0xf]
        %v418 = vld [vmem:[%s337 + $0x34] sm:$0xf]
        %v419 = vld [vmem:[%s337 + $0x38] sm:$0xf]
        %v420 = vld [vmem:[%s337 + $0x3c] sm:$0xf]
        %v421 = vld [vmem:[%s337 + $0x40] sm:$0xf]
        %v422 = vld [vmem:[%s337 + $0x44] sm:$0xf]
        %v423 = vld [vmem:[%s337 + $0x48] sm:$0xf]
        %v424 = vld [vmem:[%s337 + $0x4c] sm:$0xf]
        %v425 = vld [vmem:[%s337 + $0x50] sm:$0xf]
        %v426 = vld [vmem:[%s337 + $0x54] sm:$0xf]
        %v427 = vld [vmem:[%s337 + $0x58] sm:$0xf]
        %v428 = vld [vmem:[%s337 + $0x5c] sm:$0xf]
        %v429 = vld [vmem:[%s337 + $0x60] sm:$0xf]
        %v430 = vld [vmem:[%s337 + $0x64] sm:$0xf]
        %v431 = vld [vmem:[%s337 + $0x68] sm:$0xf]
        %v432 = vld [vmem:[%s337 + $0x6c] sm:$0xf]
        %v433 = vld [vmem:[%s337 + $0x70] sm:$0xf]
        %v434 = vld [vmem:[%s337 + $0x74] sm:$0xf]
        %v435 = vld [vmem:[%s337 + $0x78] sm:$0xf]
        %v436 = vld [vmem:[%s337 + $0x7c] sm:$0xf]
        %v453 = vunpack.c.l.b16 %v389
        %v454 = vunpack.c.h.b16 %v389
        %v455 = vunpack.c.l.b16 %v390
        %v456 = vunpack.c.h.b16 %v390
        %v457 = vunpack.c.l.b16 %v391
        %v458 = vunpack.c.h.b16 %v391
        %v459 = vunpack.c.l.b16 %v392
        %v460 = vunpack.c.h.b16 %v392
        %v461 = vunpack.c.l.b16 %v393
        %v462 = vunpack.c.h.b16 %v393
        %v463 = vunpack.c.l.b16 %v394
        %v464 = vunpack.c.h.b16 %v394
        %v465 = vunpack.c.l.b16 %v395
        %v466 = vunpack.c.h.b16 %v395
        %v467 = vunpack.c.l.b16 %v396
        %v468 = vunpack.c.h.b16 %v396
        %v469 = vunpack.c.l.b16 %v397
        %v470 = vunpack.c.h.b16 %v397
        %v471 = vunpack.c.l.b16 %v398
        %v472 = vunpack.c.h.b16 %v398
        %v473 = vunpack.c.l.b16 %v399
        %v474 = vunpack.c.h.b16 %v399
        %v475 = vunpack.c.l.b16 %v400
        %v476 = vunpack.c.h.b16 %v400
        %v477 = vunpack.c.l.b16 %v401
        %v478 = vunpack.c.h.b16 %v401
        %v479 = vunpack.c.l.b16 %v402
        %v480 = vunpack.c.h.b16 %v402
        %v481 = vunpack.c.l.b16 %v403
        %v482 = vunpack.c.h.b16 %v403
        %v483 = vunpack.c.l.b16 %v404
        %v484 = vunpack.c.h.b16 %v404
        %v485 = vpack.c.b16 %v455, %v453
        %v486 = vpack.c.b16 %v456, %v454
        %v487 = vpack.c.b16 %v459, %v457
        %v488 = vpack.c.b16 %v460, %v458
        %v489 = vpack.c.b16 %v463, %v461
        %v490 = vpack.c.b16 %v464, %v462
        %v491 = vpack.c.b16 %v467, %v465
        %v492 = vpack.c.b16 %v468, %v466
        %v493 = vpack.c.b16 %v471, %v469
        %v494 = vpack.c.b16 %v472, %v470
        %v495 = vpack.c.b16 %v475, %v473
        %v496 = vpack.c.b16 %v476, %v474
        %v497 = vpack.c.b16 %v479, %v477
        %v498 = vpack.c.b16 %v480, %v478
        %v499 = vpack.c.b16 %v483, %v481
        %v500 = vpack.c.b16 %v484, %v482
        %v549 = vunpack.c.l.b16 %v405
        %v550 = vunpack.c.l.b16 %v406
        %v551 = vunpack.c.l.b16 %v407
        %v552 = vunpack.c.l.b16 %v408
        %v553 = vunpack.c.l.b16 %v409
        %v554 = vunpack.c.l.b16 %v410
        %v555 = vunpack.c.l.b16 %v411
        %v556 = vunpack.c.l.b16 %v412
        %v557 = vunpack.c.l.b16 %v413
        %v558 = vunpack.c.l.b16 %v414
        %v559 = vunpack.c.l.b16 %v415
        %v560 = vunpack.c.l.b16 %v416
        %v561 = vunpack.c.l.b16 %v417
        %v562 = vunpack.c.l.b16 %v418
        %v563 = vunpack.c.l.b16 %v419
        %v564 = vunpack.c.l.b16 %v420
        %v565 = vunpack.c.l.b16 %v421
        %v566 = vunpack.c.l.b16 %v422
        %v567 = vunpack.c.l.b16 %v423
        %v568 = vunpack.c.l.b16 %v424
        %v569 = vunpack.c.l.b16 %v425
        %v570 = vunpack.c.l.b16 %v426
        %v571 = vunpack.c.l.b16 %v427
        %v572 = vunpack.c.l.b16 %v428
        %v573 = vunpack.c.l.b16 %v429
        %v574 = vunpack.c.l.b16 %v430
        %v575 = vunpack.c.l.b16 %v431
        %v576 = vunpack.c.l.b16 %v432
        %v577 = vunpack.c.l.b16 %v433
        %v578 = vunpack.c.l.b16 %v434
        %v579 = vunpack.c.l.b16 %v435
        %v580 = vunpack.c.l.b16 %v436
        %v581 = vpack.c.b16 %v550, %v549
        %v582 = vpack.c.b16 %v552, %v551
        %v583 = vpack.c.b16 %v554, %v553
        %v584 = vpack.c.b16 %v556, %v555
        %v585 = vpack.c.b16 %v558, %v557
        %v586 = vpack.c.b16 %v560, %v559
        %v587 = vpack.c.b16 %v562, %v561
        %v588 = vpack.c.b16 %v564, %v563
        %v589 = vpack.c.b16 %v566, %v565
        %v590 = vpack.c.b16 %v568, %v567
        %v591 = vpack.c.b16 %v570, %v569
        %v592 = vpack.c.b16 %v572, %v571
        %v593 = vpack.c.b16 %v574, %v573
        %v594 = vpack.c.b16 %v576, %v575
        %v595 = vpack.c.b16 %v578, %v577
        %v596 = vpack.c.b16 %v580, %v579
        %613 = vmatprep.subr.bf16.mxu0 0
        %614 = vmatpush1.bf16.msra.mxu0 %v588
        %615 = vmatprep.subr.bf16.mxu0 0
        %616 = vmatpush1.bf16.msra.mxu0 %v587
        %617 = vmatprep.subr.bf16.mxu0 0
        %618 = vmatpush1.bf16.msra.mxu0 %v586
        %619 = vmatprep.subr.bf16.mxu0 0
        %620 = vmatpush1.bf16.msra.mxu0 %v585
        %621 = vmatprep.subr.bf16.mxu0 0
        %622 = vmatpush1.bf16.msra.mxu0 %v584
        %623 = vmatprep.subr.bf16.mxu0 0
        %624 = vmatpush1.bf16.msra.mxu0 %v583
        %625 = vmatprep.subr.bf16.mxu0 0
        %626 = vmatpush1.bf16.msra.mxu0 %v582
        %627 = vmatprep.subr.bf16.mxu0 0
        %628 = vmatpush1.bf16.msra.mxu0 %v581
        %629 = vmatprep.subr.bf16.mxu0 0
        %630 = vmatpush2.bf16.msra.mxu0 %v596
        %631 = vmatprep.subr.bf16.mxu0 0
        %632 = vmatpush2.bf16.msra.mxu0 %v595
        %633 = vmatprep.subr.bf16.mxu0 0
        %634 = vmatpush2.bf16.msra.mxu0 %v594
        %635 = vmatprep.subr.bf16.mxu0 0
        %636 = vmatpush2.bf16.msra.mxu0 %v593
        %637 = vmatprep.subr.bf16.mxu0 0
        %638 = vmatpush2.bf16.msra.mxu0 %v592
        %639 = vmatprep.subr.bf16.mxu0 0
        %640 = vmatpush2.bf16.msra.mxu0 %v591
        %641 = vmatprep.subr.bf16.mxu0 0
        %642 = vmatpush2.bf16.msra.mxu0 %v590
        %643 = vmatprep.subr.bf16.mxu0 0
        %644 = vmatpush2.bf16.msra.mxu0 %v589
        %645 = vmatprep.mubr.bf16.mxu0 %v486
        %646 = vmatmul.mubr.bf16.gmra.mxu0 %v485
        %v647 = vpop.f32.mrf.mxu0
        %v648 = vadd.f32 0.0, %v647
        %v649 = vpop.f32.mrf.mxu0
        %v650 = vpop.f32.mrf.mxu0
        %v651 = vadd.f32 0.0, %v650
        %v652 = vpop.f32.mrf.mxu0
        %653 = vmatprep.mubr.bf16.mxu0 %v488
        %654 = vmatmul.mubr.bf16.gmra.mxu0 %v487
        %v655 = vpop.f32.mrf.mxu0
        %v656 = vadd.f32 0.0, %v655
        %v657 = vpop.f32.mrf.mxu0
        %v658 = vpop.f32.mrf.mxu0
        %v659 = vadd.f32 0.0, %v658
        %v660 = vpop.f32.mrf.mxu0
        %661 = vmatprep.mubr.bf16.mxu0 %v490
        %662 = vmatmul.mubr.bf16.gmra.mxu0 %v489
        %v663 = vpop.f32.mrf.mxu0
        %v664 = vadd.f32 0.0, %v663
        %v665 = vpop.f32.mrf.mxu0
        %v666 = vpop.f32.mrf.mxu0
        %v667 = vadd.f32 0.0, %v666
        %v668 = vpop.f32.mrf.mxu0
        %669 = vmatprep.mubr.bf16.mxu0 %v492
        %670 = vmatmul.mubr.bf16.gmra.mxu0 %v491
        %v671 = vpop.f32.mrf.mxu0
        %v672 = vadd.f32 0.0, %v671
        %v673 = vpop.f32.mrf.mxu0
        %v674 = vpop.f32.mrf.mxu0
        %v675 = vadd.f32 0.0, %v674
        %v676 = vpop.f32.mrf.mxu0
        %677 = vmatprep.mubr.bf16.mxu0 %v494
        %678 = vmatmul.mubr.bf16.gmra.mxu0 %v493
        %v679 = vpop.f32.mrf.mxu0
        %v680 = vadd.f32 0.0, %v679
        %v681 = vpop.f32.mrf.mxu0
        %v682 = vpop.f32.mrf.mxu0
        %v683 = vadd.f32 0.0, %v682
        %v684 = vpop.f32.mrf.mxu0
        %685 = vmatprep.mubr.bf16.mxu0 %v496
        %686 = vmatmul.mubr.bf16.gmra.mxu0 %v495
        %v687 = vpop.f32.mrf.mxu0
        %v688 = vadd.f32 0.0, %v687
        %v689 = vpop.f32.mrf.mxu0
        %v690 = vpop.f32.mrf.mxu0
        %v691 = vadd.f32 0.0, %v690
        %v692 = vpop.f32.mrf.mxu0
        %693 = vmatprep.mubr.bf16.mxu0 %v498
        %694 = vmatmul.mubr.bf16.gmra.mxu0 %v497
        %v695 = vpop.f32.mrf.mxu0
        %v696 = vadd.f32 0.0, %v695
        %v697 = vpop.f32.mrf.mxu0
        %v698 = vpop.f32.mrf.mxu0
        %v699 = vadd.f32 0.0, %v698
        %v700 = vpop.f32.mrf.mxu0
        %701 = vmatprep.mubr.bf16.mxu0 %v500
        %702 = vmatmul.mubr.bf16.gmra.mxu0 %v499
        %v703 = vpop.f32.mrf.mxu0
        %v704 = vadd.f32 0.0, %v703
        %v705 = vpop.f32.mrf.mxu0
        %v706 = vpop.f32.mrf.mxu0
        %v707 = vadd.f32 0.0, %v706
        %v708 = vpop.f32.mrf.mxu0
        %709 = vdwg.mxu0
        %v710 = vadd.f32 %v373, %v648
        %v711 = vadd.f32 %v374, %v651
        %v712 = vadd.f32 %v375, %v656
        %v713 = vadd.f32 %v376, %v659
        %v714 = vadd.f32 %v377, %v664
        %v715 = vadd.f32 %v378, %v667
        %v716 = vadd.f32 %v379, %v672
        %v717 = vadd.f32 %v380, %v675
        %v718 = vadd.f32 %v381, %v680
        %v719 = vadd.f32 %v382, %v683
        %v720 = vadd.f32 %v383, %v688
        %v721 = vadd.f32 %v384, %v691
        %v722 = vadd.f32 %v385, %v696
        %v723 = vadd.f32 %v386, %v699
        %v724 = vadd.f32 %v387, %v704
        %v725 = vadd.f32 %v388, %v707
        %726 = vst [vmem:[#allocation2] sm:$0xff] %v710
        %727 = vst [vmem:[#allocation2 + $0x8] sm:$0xff] %v711
        %728 = vst [vmem:[#allocation2 + $0x10] sm:$0xff] %v712
        %729 = vst [vmem:[#allocation2 + $0x18] sm:$0xff] %v713
        %730 = vst [vmem:[#allocation2 + $0x20] sm:$0xff] %v714
        %731 = vst [vmem:[#allocation2 + $0x28] sm:$0xff] %v715
        %732 = vst [vmem:[#allocation2 + $0x30] sm:$0xff] %v716
        %733 = vst [vmem:[#allocation2 + $0x38] sm:$0xff] %v717
        %734 = vst [vmem:[#allocation2 + $0x40] sm:$0xff] %v718
        %735 = vst [vmem:[#allocation2 + $0x48] sm:$0xff] %v719
        %736 = vst [vmem:[#allocation2 + $0x50] sm:$0xff] %v720
        %737 = vst [vmem:[#allocation2 + $0x58] sm:$0xff] %v721
        %738 = vst [vmem:[#allocation2 + $0x60] sm:$0xff] %v722
        %739 = vst [vmem:[#allocation2 + $0x68] sm:$0xff] %v723
        %740 = vst [vmem:[#allocation2 + $0x70] sm:$0xff] %v724
        %741 = vst [vmem:[#allocation2 + $0x78] sm:$0xff] %v725
        %p742 = scmp.eq.s32.totalorder %s21, 8
        // Predicated region
        $region75: #{db_forward.13} parent=65 // pred_check
          %p743 = pneg %p742
        $region76: #{db_forward.13} parent=65 // pred_check_branch
          %745 = sbr.rel (%p743) target = $region78
        $region77: #{db_forward.13} parent=65 // pred_region
          %v746 = vld [vmem:[#allocation2] sm:$0xff]
          %v747 = vld [vmem:[#allocation2 + $0x8] sm:$0xff]
          %v748 = vld [vmem:[#allocation2 + $0x10] sm:$0xff]
          %v749 = vld [vmem:[#allocation2 + $0x18] sm:$0xff]
          %v750 = vld [vmem:[#allocation2 + $0x20] sm:$0xff]
          %v751 = vld [vmem:[#allocation2 + $0x28] sm:$0xff]
          %v752 = vld [vmem:[#allocation2 + $0x30] sm:$0xff]
          %v753 = vld [vmem:[#allocation2 + $0x38] sm:$0xff]
          %v754 = vld [vmem:[#allocation2 + $0x40] sm:$0xff]
          %v755 = vld [vmem:[#allocation2 + $0x48] sm:$0xff]
          %v756 = vld [vmem:[#allocation2 + $0x50] sm:$0xff]
          %v757 = vld [vmem:[#allocation2 + $0x58] sm:$0xff]
          %v758 = vld [vmem:[#allocation2 + $0x60] sm:$0xff]
          %v759 = vld [vmem:[#allocation2 + $0x68] sm:$0xff]
          %v760 = vld [vmem:[#allocation2 + $0x70] sm:$0xff]
          %v761 = vld [vmem:[#allocation2 + $0x78] sm:$0xff]
          %v762 = vld [vmem:[%s342] sm:$0x1]
          %v763 = vlaneseq
          %v764 = vshrl.u32 %v763, 7
          %v765 = vsub.s32 0, %v764
          %v766 = vrot.slane %v762, %v765
          %v767 = vmul.f32 %v746, %v766
          %v768 = vmul.f32 %v747, %v766
          %v769 = vmul.f32 %v748, %v766
          %v770 = vmul.f32 %v749, %v766
          %v771 = vmul.f32 %v750, %v766
          %v772 = vmul.f32 %v751, %v766
          %v773 = vmul.f32 %v752, %v766
          %v774 = vmul.f32 %v753, %v766
          %v775 = vmul.f32 %v754, %v766
          %v776 = vmul.f32 %v755, %v766
          %v777 = vmul.f32 %v756, %v766
          %v778 = vmul.f32 %v757, %v766
          %v779 = vmul.f32 %v758, %v766
          %v780 = vmul.f32 %v759, %v766
          %v781 = vmul.f32 %v760, %v766
          %v782 = vmul.f32 %v761, %v766
          %v783 = vld [vmem:[%s342 + $0x1] sm:$0x1]
          %v784 = vlaneseq
          %v785 = vshrl.u32 %v784, 7
          %v786 = vsub.s32 0, %v785
          %v787 = vrot.slane %v783, %v786
          %v788 = vadd.f32 %v767, %v787
          %v789 = vadd.f32 %v768, %v787
          %v790 = vadd.f32 %v769, %v787
          %v791 = vadd.f32 %v770, %v787
          %v792 = vadd.f32 %v771, %v787
          %v793 = vadd.f32 %v772, %v787
          %v794 = vadd.f32 %v773, %v787
          %v795 = vadd.f32 %v774, %v787
          %v796 = vadd.f32 %v775, %v787
          %v797 = vadd.f32 %v776, %v787
          %v798 = vadd.f32 %v777, %v787
          %v799 = vadd.f32 %v778, %v787
          %v800 = vadd.f32 %v779, %v787
          %v801 = vadd.f32 %v780, %v787
          %v802 = vadd.f32 %v781, %v787
          %v803 = vadd.f32 %v782, %v787
          %v804 = vmax.f32 %v788, 0.0
          %v805 = vmax.f32 %v789, 0.0
          %v806 = vmax.f32 %v790, 0.0
          %v807 = vmax.f32 %v791, 0.0
          %v808 = vmax.f32 %v792, 0.0
          %v809 = vmax.f32 %v793, 0.0
          %v810 = vmax.f32 %v794, 0.0
          %v811 = vmax.f32 %v795, 0.0
          %v812 = vmax.f32 %v796, 0.0
          %v813 = vmax.f32 %v797, 0.0
          %v814 = vmax.f32 %v798, 0.0
          %v815 = vmax.f32 %v799, 0.0
          %v816 = vmax.f32 %v800, 0.0
          %v817 = vmax.f32 %v801, 0.0
          %v818 = vmax.f32 %v802, 0.0
          %v819 = vmax.f32 %v803, 0.0
          %v820 = vpack.c.bf16 %v805, %v804
          %v821 = vpack.c.bf16 %v807, %v806
          %v822 = vpack.c.bf16 %v809, %v808
          %v823 = vpack.c.bf16 %v811, %v810
          %v824 = vpack.c.bf16 %v813, %v812
          %v825 = vpack.c.bf16 %v815, %v814
          %v826 = vpack.c.bf16 %v817, %v816
          %v827 = vpack.c.bf16 %v819, %v818
          %v836 = vunpack.c.l.b16 %v820
          %v837 = vunpack.c.h.b16 %v820
          %v838 = vunpack.c.l.b16 %v821
          %v839 = vunpack.c.h.b16 %v821
          %v840 = vunpack.c.l.b16 %v822
          %v841 = vunpack.c.h.b16 %v822
          %v842 = vunpack.c.l.b16 %v823
          %v843 = vunpack.c.h.b16 %v823
          %v844 = vunpack.c.l.b16 %v824
          %v845 = vunpack.c.h.b16 %v824
          %v846 = vunpack.c.l.b16 %v825
          %v847 = vunpack.c.h.b16 %v825
          %v848 = vunpack.c.l.b16 %v826
          %v849 = vunpack.c.h.b16 %v826
          %v850 = vunpack.c.l.b16 %v827
          %v851 = vunpack.c.h.b16 %v827
          %v852 = vpack.c.b16 %v836, %v836
          %v853 = vpack.c.b16 %v837, %v837
          %v854 = vpack.c.b16 %v838, %v838
          %v855 = vpack.c.b16 %v839, %v839
          %v856 = vpack.c.b16 %v840, %v840
          %v857 = vpack.c.b16 %v841, %v841
          %v858 = vpack.c.b16 %v842, %v842
          %v859 = vpack.c.b16 %v843, %v843
          %v860 = vpack.c.b16 %v844, %v844
          %v861 = vpack.c.b16 %v845, %v845
          %v862 = vpack.c.b16 %v846, %v846
          %v863 = vpack.c.b16 %v847, %v847
          %v864 = vpack.c.b16 %v848, %v848
          %v865 = vpack.c.b16 %v849, %v849
          %v866 = vpack.c.b16 %v850, %v850
          %v867 = vpack.c.b16 %v851, %v851
          %884 = vst [vmem:[%s350] sm:$0xf] %v852
          %885 = vst [vmem:[%s350 + $0x4] sm:$0xf] %v853
          %886 = vst [vmem:[%s350 + $0x8] sm:$0xf] %v854
          %887 = vst [vmem:[%s350 + $0xc] sm:$0xf] %v855
          %888 = vst [vmem:[%s350 + $0x10] sm:$0xf] %v856
          %889 = vst [vmem:[%s350 + $0x14] sm:$0xf] %v857
          %890 = vst [vmem:[%s350 + $0x18] sm:$0xf] %v858
          %891 = vst [vmem:[%s350 + $0x1c] sm:$0xf] %v859
          %892 = vst [vmem:[%s350 + $0x20] sm:$0xf] %v860
          %893 = vst [vmem:[%s350 + $0x24] sm:$0xf] %v861
          %894 = vst [vmem:[%s350 + $0x28] sm:$0xf] %v862
          %895 = vst [vmem:[%s350 + $0x2c] sm:$0xf] %v863
          %896 = vst [vmem:[%s350 + $0x30] sm:$0xf] %v864
          %897 = vst [vmem:[%s350 + $0x34] sm:$0xf] %v865
          %898 = vst [vmem:[%s350 + $0x38] sm:$0xf] %v866
          %899 = vst [vmem:[%s350 + $0x3c] sm:$0xf] %v867
        $region78: #{db_forward.13} parent=65 // pred_fallthru
          _
        %s900 = smul.u32 16, %s19
        %p901 = scmp.lt.s32.totalorder %s900, 15
        %s902 = scalar_select %p901, %s900, 15
        %p903 = scmp.lt.s32.totalorder %s20, 0
        %s904 = scalar_select %p903, %s20, 0
        %s905 = sadd.s32 %s904, %s902
        %s906 = smul.addr %s905, 4
        %s907 = scalar_lea.vmem %s3, %s906
        // Predicated region
        $region79: #{db_forward.13} parent=65 // pred_check
          %p908 = pneg %p135
        $region80: #{db_forward.13} parent=65 // pred_check_branch
          %910 = sbr.rel (%p908) target = $region82
        $region81: #{db_forward.13} parent=65 // pred_region
          %s911 = smul.u32 16, %s19
        $region82: #{db_forward.13} parent=65 // pred_fallthru
          _
        // Predicated region
        $region83: #{db_forward.13} parent=65 // pred_check
          %p912 = pneg %p135
        $region84: #{db_forward.13} parent=65 // pred_check_branch
          %914 = sbr.rel (%p912) target = $region86
        $region85: #{db_forward.13} parent=65 // pred_region
          %s915 = smul.u32 16, %s19
          %p916 = scmp.lt.s32.totalorder %s915, 15
          %s917 = scalar_select %p916, %s915, 15
          %p918 = scmp.lt.s32.totalorder %s20, 0
          %s919 = scalar_select %p918, %s20, 0
          %s920 = sadd.s32 %s919, %s917
          %s921 = smul.addr %s920, 4
          %s922 = scalar_lea.vmem %s3, %s921
        $region86: #{db_forward.13} parent=65 // pred_fallthru
          _
      $region66: #{db_forward.13} parent=5 // pred_fallthru
        _
      %p923 = scmp.le.s32.totalorder 2, %s9
      // Predicated region
      $region87: #{db_forward.13} parent=5 // pred_check
        %p924 = pneg %p923
      $region88: #{db_forward.13} parent=5 // pred_check_branch
        %926 = sbr.rel (%p924) target = $region90
      $region89: #{db_forward.13} parent=5 // pred_region
        %s927 = ssub.s32 %s9, 2
      $region90: #{db_forward.13} parent=5 // pred_fallthru
        _
    $region6: #{db_forward.13} parent=1 // loop_footer
      %s13 = sadd.s32 1, %s9
    $region7: #{db_forward.13} parent=1 // loop_footer_branch
      %8 = sbr.rel target = $region3
    $region8: #{db_forward.13} parent=1 // loop_exit
      _

// kernel: db_forward.14
$region0: #{db_forward.14}
  #allocation0 [shape = 'u32[]', space=smem, size = 0x4, offset = 0x4, fixed_abs, tag = 'smem constant byte address 0x4 - core index']
  #allocation1 [shape = 'u32[144,128]{1,0:T(1,128)}', space=vmem, size = 0x12000, scoped, tag = 'internal scratch']
  #allocation2 [shape = 'f32[128,256]{1,0:T(8,128)}', space=vmem, size = 0x20000, scoped, tag = 'scratch operand']
  %s0 = inlined_call_operand.vmem [shape: bf16[128,128], index: 0, kind: input, shape index: {}]
  %s1 = inlined_call_operand.vmem [shape: bf16[128,512], index: 1, kind: input, shape index: {}]
  %s2 = inlined_call_operand.vmem [shape: f32[2,512], index: 2, kind: input, shape index: {}]
  %s3 = inlined_call_operand.vmem [shape: bf16[128,512], index: 3, kind: output, shape index: {}]
  %s4 = sld [smem:[#allocation0]]
  $region125: #{db_forward.14} parent=0
    _
  %s6 = ssub.s32 1, %s4
  %s7 = scalar_select 0, %s6, %s4
  $region1: #{db_forward.14} parent=0
    #allocation3 [shape = 'u8[131072]{0}', space=vmem, size = 0x20000, scoped, tag = 'input window, operand 1']
    #allocation4 [shape = 'u8[131072]{0}', space=vmem, size = 0x20000, scoped, tag = 'output window, operand 0']
    loop: start=0, step=1, limit=4
    $region2: #{db_forward.14} parent=1 // loop_pre_header
      _
    $region3: #{db_forward.14} parent=1 // loop_header
      %s9 = sphi 0, %s13
      %p10 = scmp.ge.s32.totalorder %s9, 4
      %s16 = sphi 0, %s35
      %s17 = sphi 0, %s31
      %s18 = sphi 0, %s27
      %s19 = sphi 0, %s16
      %s20 = sphi 0, %s17
      %s21 = sphi 0, %s18
      %s22 = sphi 0, %s19
      %s23 = sphi 0, %s20
      %s24 = sphi 0, %s21
      %s40 = sphi 0, %s42
      %s43 = sphi 0, %s40
      %s44 = sphi 0, %s43
      %s60 = sphi 0, %s44
      %s68 = sphi 0, %s70
      %s71 = sphi 0, %s68
      %s72 = sphi 0, %s71
      %s88 = sphi 0, %s72
      %s94 = sphi 0, %s96
      %s97 = sphi 0, %s94
      %s98 = sphi 0, %s97
      %s114 = sphi 0, %s98
      %s122 = sphi 0, %s124
      %s125 = sphi 0, %s122
      %s126 = sphi 0, %s125
      %s142 = sphi 0, %s126
    $region4: #{db_forward.14} parent=1 // loop_header_branch
      %12 = sbr.rel (%p10) target = $region8
    $region5: #{db_forward.14} parent=1 // loop_body
      %s14 = ssub.s32 %s9, 1
      %s15 = ssub.s32 %s9, 2
      %s25 = sadd.s32 1, %s18
      %p26 = scmp.ge.s32.totalorder %s25, 1
      %s27 = scalar_select %p26, 0, %s25
      %s28 = sadd.s32 1, %s17
      %s29 = scalar_select %p26, %s28, %s17
      %p30 = scmp.ge.s32.totalorder %s29, 2
      %s31 = scalar_select %p30, 0, %s29
      %s32 = sadd.s32 1, %s16
      %s33 = scalar_select %p30, %s32, %s16
      %p34 = scmp.ge.s32.totalorder %s33, 1
      %s35 = scalar_select %p34, 0, %s33
      %s36 = ssub.s32 %s16, %s35
      %s37 = ssub.s32 %s18, %s27
      %s38 = sor.u32 %s36, %s37
      %p39 = scmp.eq.s32.totalorder %s38, 0
      %s41 = sadd.s32 %s40, 1
      %s42 = scalar_select %p39, %s40, %s41
      %p45 = pneg %p39
      %p46 = scmp.eq.s32.totalorder %s9, 1
      %p47 = por %p45, %p46
      %p48 = scmp.ne.s32.totalorder %s40, %s43
      %p49 = scmp.eq.s32.totalorder %s9, 0
      %p50 = por %p48, %p49
      %p51 = scmp.ne.s32.totalorder %s40, %s43
      %p52 = scmp.eq.s32.totalorder %s14, 1
      %p53 = por %p51, %p52
      %p54 = scmp.ne.s32.totalorder %s43, %s44
      %p55 = scmp.eq.s32.totalorder %s14, 0
      %p56 = por %p54, %p55
      %p57 = scmp.ne.s32.totalorder %s43, %s44
      %p58 = scmp.eq.s32.totalorder %s15, 1
      %p59 = por %p57, %p58
      %p61 = scmp.ne.s32.totalorder %s44, %s60
      %p62 = scmp.eq.s32.totalorder %s15, 0
      %p63 = por %p61, %p62
      %s64 = ssub.s32 %s18, %s27
      %s65 = ssub.s32 %s17, %s31
      %s66 = sor.u32 %s64, %s65
      %p67 = scmp.eq.s32.totalorder %s66, 0
      %s69 = sadd.s32 %s68, 1
      %s70 = scalar_select %p67, %s68, %s69
      %p73 = pneg %p67
      %p74 = scmp.eq.s32.totalorder %s9, 1
      %p75 = por %p73, %p74
      %p76 = scmp.ne.s32.totalorder %s68, %s71
      %p77 = scmp.eq.s32.totalorder %s9, 0
      %p78 = por %p76, %p77
      %p79 = scmp.ne.s32.totalorder %s68, %s71
      %p80 = scmp.eq.s32.totalorder %s14, 1
      %p81 = por %p79, %p80
      %p82 = scmp.ne.s32.totalorder %s71, %s72
      %p83 = scmp.eq.s32.totalorder %s14, 0
      %p84 = por %p82, %p83
      %p85 = scmp.ne.s32.totalorder %s71, %s72
      %p86 = scmp.eq.s32.totalorder %s15, 1
      %p87 = por %p85, %p86
      %p89 = scmp.ne.s32.totalorder %s72, %s88
      %p90 = scmp.eq.s32.totalorder %s15, 0
      %p91 = por %p89, %p90
      %s92 = ssub.s32 %s17, %s31
      %p93 = scmp.eq.s32.totalorder %s92, 0
      %s95 = sadd.s32 %s94, 1
      %s96 = scalar_select %p93, %s94, %s95
      %p99 = pneg %p93
      %p100 = scmp.eq.s32.totalorder %s9, 1
      %p101 = por %p99, %p100
      %p102 = scmp.ne.s32.totalorder %s94, %s97
      %p103 = scmp.eq.s32.totalorder %s9, 0
      %p104 = por %p102, %p103
      %p105 = scmp.ne.s32.totalorder %s94, %s97
      %p106 = scmp.eq.s32.totalorder %s14, 1
      %p107 = por %p105, %p106
      %p108 = scmp.ne.s32.totalorder %s97, %s98
      %p109 = scmp.eq.s32.totalorder %s14, 0
      %p110 = por %p108, %p109
      %p111 = scmp.ne.s32.totalorder %s97, %s98
      %p112 = scmp.eq.s32.totalorder %s15, 1
      %p113 = por %p111, %p112
      %p115 = scmp.ne.s32.totalorder %s98, %s114
      %p116 = scmp.eq.s32.totalorder %s15, 0
      %p117 = por %p115, %p116
      %s118 = ssub.s32 %s16, %s35
      %s119 = ssub.s32 %s17, %s31
      %s120 = sor.u32 %s118, %s119
      %p121 = scmp.eq.s32.totalorder %s120, 0
      %s123 = sadd.s32 %s122, 1
      %s124 = scalar_select %p121, %s122, %s123
      %p127 = pneg %p121
      %p128 = scmp.eq.s32.totalorder %s9, 1
      %p129 = por %p127, %p128
      %p130 = scmp.ne.s32.totalorder %s122, %s125
      %p131 = scmp.eq.s32.totalorder %s9, 0
      %p132 = por %p130, %p131
      %p133 = scmp.ne.s32.totalorder %s122, %s125
      %p134 = scmp.eq.s32.totalorder %s14, 1
      %p135 = por %p133, %p134
      %p136 = scmp.ne.s32.totalorder %s125, %s126
      %p137 = scmp.eq.s32.totalorder %s14, 0
      %p138 = por %p136, %p137
      %p139 = scmp.ne.s32.totalorder %s125, %s126
      %p140 = scmp.eq.s32.totalorder %s15, 1
      %p141 = por %p139, %p140
      %p143 = scmp.ne.s32.totalorder %s126, %s142
      %p144 = scmp.eq.s32.totalorder %s15, 0
      %p145 = por %p143, %p144
      %p146 = scmp.le.s32.totalorder 1, %s9
      %p147 = scmp.lt.s32.totalorder %s9, 3
      %p148 = pnand %p146, %p147
      %p149 = pneg %p148
      // Predicated region
      $region9: #{db_forward.14} parent=5 // pred_check
        _
      $region10: #{db_forward.14} parent=5 // pred_check_branch
        %151 = sbr.rel (%p148) target = $region12
      $region11: #{db_forward.14} parent=5 // pred_region
        %s152 = ssub.s32 %s9, 1
        // Predicated region
        $region13: #{db_forward.14} parent=11 // pred_check
          %p153 = pneg %p56
        $region14: #{db_forward.14} parent=11 // pred_check_branch
          %155 = sbr.rel (%p153) target = $region16
        $region15: #{db_forward.14} parent=11 // pred_region
          %s156 = smul.u32 16, %s19
          %p157 = scmp.lt.s32.totalorder %s156, 15
          %s158 = scalar_select %p157, %s156, 15
          %p159 = scmp.lt.s32.totalorder %s21, 0
          %s160 = scalar_select %p159, %s21, 0
          %s161 = sadd.s32 %s160, %s158
          %s162 = smul.addr %s161, 4
          %s163 = scalar_lea.vmem %s0, %s162
          %s164 = smul.u32 16, %s19
        $region16: #{db_forward.14} parent=11 // pred_fallthru
          _
      $region12: #{db_forward.14} parent=5 // pred_fallthru
        _
      %p165 = scmp.lt.s32.totalorder %s9, 2
      // Predicated region
      $region17: #{db_forward.14} parent=5 // pred_check
        %p166 = pneg %p165
      $region18: #{db_forward.14} parent=5 // pred_check_branch
        %168 = sbr.rel (%p166) target = $region20
      $region19: #{db_forward.14} parent=5 // pred_region
        // Predicated region
        $region21: #{db_forward.14} parent=19 // pred_check
          %p169 = pneg %p78
        $region22: #{db_forward.14} parent=19 // pred_check_branch
          %171 = sbr.rel (%p169) target = $region24
        $region23: #{db_forward.14} parent=19 // pred_region
          %s172 = sand.u32 %s68, 1
          %s173 = sand.u32 %s68, 1
          %s174 = smul.addr %s173, 128
          %s175 = scalar_lea.vmem [#allocation3], %s174
          %s176 = smul.u32 16, %s18
          %s177 = smul.u32 2, %s17
          %s178 = smul.addr %s176, 4
          %s179 = sadd.s32 %s177, %s178
          %s180 = smul.addr %s179, 4
          %s181 = scalar_lea.vmem %s1, %s180
          // Predicated region
          $region25: #{db_forward.14} parent=23 // pred_check
            _
          $region26: #{db_forward.14} parent=23 // pred_check_branch
            %183 = sbr.rel (0) target = $region28
          $region27: #{db_forward.14} parent=23 // pred_region
            // Predicated region
            $region29: #{db_forward.14} parent=27 // pred_check
              _
            $region30: #{db_forward.14} parent=27 // pred_check_branch
              %185 = sbr.rel (0) target = $region32
            $region31: #{db_forward.14} parent=27 // pred_region
              // Predicated region
              $region44: #{db_forward.14} parent=31 // pred_check
                _
              $region45: #{db_forward.14} parent=31 // pred_check_branch
                %231 = sbr.rel (0) target = $region47
              $region46: #{db_forward.14} parent=31 // pred_region
                loop: start=0, step=1, limit=1
                $region48: #{db_forward.14} parent=46 // loop_pre_header
                  _
                $region49: #{db_forward.14} parent=46 // loop_header
                  %s233 = sphi 0, %s237
                  %p234 = scmp.ge.s32.totalorder %s233, 1
                  %s238 = sphi %s181, %s181
                  %s239 = sphi %s175, %s175
                $region50: #{db_forward.14} parent=46 // loop_header_branch
                  %236 = sbr.rel (%p234) target = $region54
                $region51: #{db_forward.14} parent=46 // loop_body
                  %v240 = vld [vmem:[%s238] sm:$0xff]
                  %241 = vst [vmem:[%s239] sm:$0xff] %v240
                  %v242 = vld [vmem:[%s238 + $0x10] sm:$0xff]
                  %243 = vst [vmem:[%s239 + $0x8] sm:$0xff] %v242
                  %v244 = vld [vmem:[%s238 + $0x20] sm:$0xff]
                  %245 = vst [vmem:[%s239 + $0x10] sm:$0xff] %v244
                  %v246 = vld [vmem:[%s238 + $0x30] sm:$0xff]
                  %247 = vst [vmem:[%s239 + $0x18] sm:$0xff] %v246
                  %v248 = vld [vmem:[%s238 + $0x40] sm:$0xff]
                  %249 = vst [vmem:[%s239 + $0x20] sm:$0xff] %v248
                  %v250 = vld [vmem:[%s238 + $0x50] sm:$0xff]
                  %251 = vst [vmem:[%s239 + $0x28] sm:$0xff] %v250
                  %v252 = vld [vmem:[%s238 + $0x60] sm:$0xff]
                  %253 = vst [vmem:[%s239 + $0x30] sm:$0xff] %v252
                  %v254 = vld [vmem:[%s238 + $0x70] sm:$0xff]
                  %255 = vst [vmem:[%s239 + $0x38] sm:$0xff] %v254
                  %v256 = vld [vmem:[%s238 + $0x80] sm:$0xff]
                  %257 = vst [vmem:[%s239 + $0x40] sm:$0xff] %v256
                  %v258 = vld [vmem:[%s238 + $0x90] sm:$0xff]
                  %259 = vst [vmem:[%s239 + $0x48] sm:$0xff] %v258
                  %v260 = vld [vmem:[%s238 + $0xa0] sm:$0xff]
                  %261 = vst [vmem:[%s239 + $0x50] sm:$0xff] %v260
                  %v262 = vld [vmem:[%s238 + $0xb0] sm:$0xff]
                  %263 = vst [vmem:[%s239 + $0x58] sm:$0xff] %v262
                  %v264 = vld [vmem:[%s238 + $0xc0] sm:$0xff]
                  %265 = vst [vmem:[%s239 + $0x60] sm:$0xff] %v264
                  %v266 = vld [vmem:[%s238 + $0xd0] sm:$0xff]
                  %267 = vst [vmem:[%s239 + $0x68] sm:$0xff] %v266
                  %v268 = vld [vmem:[%s238 + $0xe0] sm:$0xff]
                  %269 = vst [vmem:[%s239 + $0x70] sm:$0xff] %v268
                  %v270 = vld [vmem:[%s238 + $0xf0] sm:$0xff]
                  %271 = vst [vmem:[%s239 + $0x78] sm:$0xff] %v270
                $region52: #{db_forward.14} parent=46 // loop_footer
                  %s237 = sadd.s32 1, %s233
                $region53: #{db_forward.14} parent=46 // loop_footer_branch
                  %232 = sbr.rel target = $region49
                $region54: #{db_forward.14} parent=46 // loop_exit
                  _
              $region47: #{db_forward.14} parent=31 // pred_fallthru
                _
              // Predicated region
              $region55: #{db_forward.14} parent=31 // pred_check
                _
              $region56: #{db_forward.14} parent=31 // pred_check_branch
                %273 = sbr.rel target = $region58
              $region57: #{db_forward.14} parent=31 // pred_region
                _
              $region58: #{db_forward.14} parent=31 // pred_fallthru
                _
            $region32: #{db_forward.14} parent=27 // pred_fallthru
              _
            // Predicated region
            $region33: #{db_forward.14} parent=27 // pred_check
              _
            $region34: #{db_forward.14} parent=27 // pred_check_branch
              %187 = sbr.rel target = $region36
            $region35: #{db_forward.14} parent=27 // pred_region
              %s189 = ssub.s32 256, 1
              loop: start=0, step=1, limit=1
              $region37: #{db_forward.14} parent=35 // loop_pre_header
                _
              $region38: #{db_forward.14} parent=35 // loop_header
                %s191 = sphi 0, %s195
                %p192 = scmp.ge.s32.totalorder %s191, 1
                %s196 = sphi %s181, %s181
                %s197 = sphi %s175, %s175
              $region39: #{db_forward.14} parent=35 // loop_header_branch
                %194 = sbr.rel (%p192) target = $region43
              $region40: #{db_forward.14} parent=35 // loop_body
                %v198 = vld [vmem:[%s196] sm:%s189]
                %199 = vst [vmem:[%s197] sm:%s189] %v198
                %v200 = vld [vmem:[%s196 + $0x10] sm:%s189]
                %201 = vst [vmem:[%s197 + $0x8] sm:%s189] %v200
                %v202 = vld [vmem:[%s196 + $0x20] sm:%s189]
                %203 = vst [vmem:[%s197 + $0x10] sm:%s189] %v202
                %v204 = vld [vmem:[%s196 + $0x30] sm:%s189]
                %205 = vst [vmem:[%s197 + $0x18] sm:%s189] %v204
                %v206 = vld [vmem:[%s196 + $0x40] sm:%s189]
                %207 = vst [vmem:[%s197 + $0x20] sm:%s189] %v206
                %v208 = vld [vmem:[%s196 + $0x50] sm:%s189]
                %209 = vst [vmem:[%s197 + $0x28] sm:%s189] %v208
                %v210 = vld [vmem:[%s196 + $0x60] sm:%s189]
                %211 = vst [vmem:[%s197 + $0x30] sm:%s189] %v210
                %v212 = vld [vmem:[%s196 + $0x70] sm:%s189]
                %213 = vst [vmem:[%s197 + $0x38] sm:%s189] %v212
                %v214 = vld [vmem:[%s196 + $0x80] sm:%s189]
                %215 = vst [vmem:[%s197 + $0x40] sm:%s189] %v214
                %v216 = vld [vmem:[%s196 + $0x90] sm:%s189]
                %217 = vst [vmem:[%s197 + $0x48] sm:%s189] %v216
                %v218 = vld [vmem:[%s196 + $0xa0] sm:%s189]
                %219 = vst [vmem:[%s197 + $0x50] sm:%s189] %v218
                %v220 = vld [vmem:[%s196 + $0xb0] sm:%s189]
                %221 = vst [vmem:[%s197 + $0x58] sm:%s189] %v220
                %v222 = vld [vmem:[%s196 + $0xc0] sm:%s189]
                %223 = vst [vmem:[%s197 + $0x60] sm:%s189] %v222
                %v224 = vld [vmem:[%s196 + $0xd0] sm:%s189]
                %225 = vst [vmem:[%s197 + $0x68] sm:%s189] %v224
                %v226 = vld [vmem:[%s196 + $0xe0] sm:%s189]
                %227 = vst [vmem:[%s197 + $0x70] sm:%s189] %v226
                %v228 = vld [vmem:[%s196 + $0xf0] sm:%s189]
                %229 = vst [vmem:[%s197 + $0x78] sm:%s189] %v228
              $region41: #{db_forward.14} parent=35 // loop_footer
                %s195 = sadd.s32 1, %s191
              $region42: #{db_forward.14} parent=35 // loop_footer_branch
                %190 = sbr.rel target = $region38
              $region43: #{db_forward.14} parent=35 // loop_exit
                _
            $region36: #{db_forward.14} parent=27 // pred_fallthru
              _
          $region28: #{db_forward.14} parent=23 // pred_fallthru
            _
          %274 = vnop
        $region24: #{db_forward.14} parent=19 // pred_fallthru
          _
        // Predicated region
        $region59: #{db_forward.14} parent=19 // pred_check
          %p275 = pneg %p104
        $region60: #{db_forward.14} parent=19 // pred_check_branch
          %277 = sbr.rel (%p275) target = $region62
        $region61: #{db_forward.14} parent=19 // pred_region
          %s278 = smul.u32 2, %s17
          %p279 = scmp.lt.s32.totalorder %s278, 3
          %s280 = scalar_select %p279, %s278, 3
          %s281 = smul.addr %s280, 2
          %s282 = scalar_lea.vmem %s2, %s281
          %s283 = smul.u32 2, %s17
        $region62: #{db_forward.14} parent=19 // pred_fallthru
          _
      $region20: #{db_forward.14} parent=5 // pred_fallthru
        _
      %p284 = scmp.le.s32.totalorder 1, %s9
      %p285 = scmp.lt.s32.totalorder %s9, 3
      %p286 = pnand %p284, %p285
      %p287 = pneg %p286
      // Predicated region
      $region63: #{db_forward.14} parent=5 // pred_check
        _
      $region64: #{db_forward.14} parent=5 // pred_check_branch
        %289 = sbr.rel (%p286) target = $region66
      $region65: #{db_forward.14} parent=5 // pred_region
        %s290 = ssub.s32 %s9, 1
        %s291 = sand.u32 %s71, 1
        %s292 = sand.u32 %s71, 1
        %s293 = smul.addr %s292, 128
        %s294 = scalar_lea.vmem [#allocation3], %s293
        // Predicated region
        $region67: #{db_forward.14} parent=65 // pred_check
          %p295 = pneg %p84
        $region68: #{db_forward.14} parent=65 // pred_check_branch
          %297 = sbr.rel (%p295) target = $region70
        $region69: #{db_forward.14} parent=65 // pred_region
          _
        $region70: #{db_forward.14} parent=65 // pred_fallthru
          _
        %s298 = smul.u32 16, %s19
        %p299 = scmp.lt.s32.totalorder %s298, 15
        %s300 = scalar_select %p299, %s298, 15
        %p301 = scmp.lt.s32.totalorder %s21, 0
        %s302 = scalar_select %p301, %s21, 0
        %s303 = sadd.s32 %s302, %s300
        %s304 = smul.addr %s303, 4
        %s305 = scalar_lea.vmem %s0, %s304
        %p306 = pneg %p56
        %p307 = pneg %p53
        %s308 = sand.u32 %s71, 1
        %s309 = sand.u32 %s71, 1
        %s310 = smul.addr %s309, 128
        %s311 = scalar_lea.vmem [#allocation3], %s310
        %p312 = pneg %p84
        %p313 = pneg %p81
        %s314 = smul.u32 2, %s20
        %p315 = scmp.lt.s32.totalorder %s314, 3
        %s316 = scalar_select %p315, %s314, 3
        %s317 = smul.addr %s316, 2
        %s318 = scalar_lea.vmem %s2, %s317
        %p319 = pneg %p110
        %p320 = pneg %p107
        %p321 = pneg %p138
        %p322 = pneg %p135
        %s323 = sand.u32 %s125, 1
        %s324 = sand.u32 %s125, 1
        %s325 = smul.addr %s324, 128
        %s326 = scalar_lea.vmem [#allocation4], %s325
        %s327 = smul.u32 16, %s19
        %p328 = scmp.lt.s32.totalorder %s327, 15
        %s329 = scalar_select %p328, %s327, 15
        %p330 = scmp.lt.s32.totalorder %s21, 0
        %s331 = scalar_select %p330, %s21, 0
        %s332 = sadd.s32 %s331, %s329
        %s333 = smul.addr %s332, 4
        %s334 = scalar_lea.vmem %s0, %s333
        %s335 = smul.u32 16, %s19
        %s336 = smul.u32 16, %s21
        %s337 = smul.u32 2, %s20
        %s338 = smul.u32 2, %s20
        %p339 = scmp.lt.s32.totalorder %s338, 3
        %s340 = scalar_select %p339, %s338, 3
        %s341 = smul.addr %s340, 2
        %s342 = scalar_lea.vmem %s2, %s341
        %s343 = smul.u32 2, %s20
        %s344 = smul.u32 16, %s19
        %s345 = smul.u32 2, %s20
        %p347 = scmp.eq.s32.totalorder %s21, 0
        // Predicated region
        $region71: #{db_forward.14} parent=65 // pred_check
          %p348 = pneg %p347
        $region72: #{db_forward.14} parent=65 // pred_check_branch
          %350 = sbr.rel (%p348) target = $region74
        $region73: #{db_forward.14} parent=65 // pred_region
          %351 = vst [vmem:[#allocation2] sm:$0xff] 0.0
          %352 = vst [vmem:[#allocation2 + $0x8] sm:$0xff] 0.0
          %353 = vst [vmem:[#allocation2 + $0x10] sm:$0xff] 0.0
          %354 = vst [vmem:[#allocation2 + $0x18] sm:$0xff] 0.0
          %355 = vst [vmem:[#allocation2 + $0x20] sm:$0xff] 0.0
          %356 = vst [vmem:[#allocation2 + $0x28] sm:$0xff] 0.0
          %357 = vst [vmem:[#allocation2 + $0x30] sm:$0xff] 0.0
          %358 = vst [vmem:[#allocation2 + $0x38] sm:$0xff] 0.0
          %359 = vst [vmem:[#allocation2 + $0x40] sm:$0xff] 0.0
          %360 = vst [vmem:[#allocation2 + $0x48] sm:$0xff] 0.0
          %361 = vst [vmem:[#allocation2 + $0x50] sm:$0xff] 0.0
          %362 = vst [vmem:[#allocation2 + $0x58] sm:$0xff] 0.0
          %363 = vst [vmem:[#allocation2 + $0x60] sm:$0xff] 0.0
          %364 = vst [vmem:[#allocation2 + $0x68] sm:$0xff] 0.0
          %365 = vst [vmem:[#allocation2 + $0x70] sm:$0xff] 0.0
          %366 = vst [vmem:[#allocation2 + $0x78] sm:$0xff] 0.0
          %367 = vst [vmem:[#allocation2 + $0x80] sm:$0xff] 0.0
          %368 = vst [vmem:[#allocation2 + $0x88] sm:$0xff] 0.0
          %369 = vst [vmem:[#allocation2 + $0x90] sm:$0xff] 0.0
          %370 = vst [vmem:[#allocation2 + $0x98] sm:$0xff] 0.0
          %371 = vst [vmem:[#allocation2 + $0xa0] sm:$0xff] 0.0
          %372 = vst [vmem:[#allocation2 + $0xa8] sm:$0xff] 0.0
          %373 = vst [vmem:[#allocation2 + $0xb0] sm:$0xff] 0.0
          %374 = vst [vmem:[#allocation2 + $0xb8] sm:$0xff] 0.0
          %375 = vst [vmem:[#allocation2 + $0xc0] sm:$0xff] 0.0
          %376 = vst [vmem:[#allocation2 + $0xc8] sm:$0xff] 0.0
          %377 = vst [vmem:[#allocation2 + $0xd0] sm:$0xff] 0.0
          %378 = vst [vmem:[#allocation2 + $0xd8] sm:$0xff] 0.0
          %379 = vst [vmem:[#allocation2 + $0xe0] sm:$0xff] 0.0
          %380 = vst [vmem:[#allocation2 + $0xe8] sm:$0xff] 0.0
          %381 = vst [vmem:[#allocation2 + $0xf0] sm:$0xff] 0.0
          %382 = vst [vmem:[#allocation2 + $0xf8] sm:$0xff] 0.0
        $region74: #{db_forward.14} parent=65 // pred_fallthru
          _
        %v383 = vld [vmem:[#allocation2] sm:$0xff]
        %v384 = vld [vmem:[#allocation2 + $0x8] sm:$0xff]
        %v385 = vld [vmem:[#allocation2 + $0x10] sm:$0xff]
        %v386 = vld [vmem:[#allocation2 + $0x18] sm:$0xff]
        %v387 = vld [vmem:[#allocation2 + $0x20] sm:$0xff]
        %v388 = vld [vmem:[#allocation2 + $0x28] sm:$0xff]
        %v389 = vld [vmem:[#allocation2 + $0x30] sm:$0xff]
        %v390 = vld [vmem:[#allocation2 + $0x38] sm:$0xff]
        %v391 = vld [vmem:[#allocation2 + $0x40] sm:$0xff]
        %v392 = vld [vmem:[#allocation2 + $0x48] sm:$0xff]
        %v393 = vld [vmem:[#allocation2 + $0x50] sm:$0xff]
        %v394 = vld [vmem:[#allocation2 + $0x58] sm:$0xff]
        %v395 = vld [vmem:[#allocation2 + $0x60] sm:$0xff]
        %v396 = vld [vmem:[#allocation2 + $0x68] sm:$0xff]
        %v397 = vld [vmem:[#allocation2 + $0x70] sm:$0xff]
        %v398 = vld [vmem:[#allocation2 + $0x78] sm:$0xff]
        %v399 = vld [vmem:[#allocation2 + $0x80] sm:$0xff]
        %v400 = vld [vmem:[#allocation2 + $0x88] sm:$0xff]
        %v401 = vld [vmem:[#allocation2 + $0x90] sm:$0xff]
        %v402 = vld [vmem:[#allocation2 + $0x98] sm:$0xff]
        %v403 = vld [vmem:[#allocation2 + $0xa0] sm:$0xff]
        %v404 = vld [vmem:[#allocation2 + $0xa8] sm:$0xff]
        %v405 = vld [vmem:[#allocation2 + $0xb0] sm:$0xff]
        %v406 = vld [vmem:[#allocation2 + $0xb8] sm:$0xff]
        %v407 = vld [vmem:[#allocation2 + $0xc0] sm:$0xff]
        %v408 = vld [vmem:[#allocation2 + $0xc8] sm:$0xff]
        %v409 = vld [vmem:[#allocation2 + $0xd0] sm:$0xff]
        %v410 = vld [vmem:[#allocation2 + $0xd8] sm:$0xff]
        %v411 = vld [vmem:[#allocation2 + $0xe0] sm:$0xff]
        %v412 = vld [vmem:[#allocation2 + $0xe8] sm:$0xff]
        %v413 = vld [vmem:[#allocation2 + $0xf0] sm:$0xff]
        %v414 = vld [vmem:[#allocation2 + $0xf8] sm:$0xff]
        %v415 = vld [vmem:[%s334] sm:$0xf]
        %v416 = vld [vmem:[%s334 + $0x4] sm:$0xf]
        %v417 = vld [vmem:[%s334 + $0x8] sm:$0xf]
        %v418 = vld [vmem:[%s334 + $0xc] sm:$0xf]
        %v419 = vld [vmem:[%s334 + $0x10] sm:$0xf]
        %v420 = vld [vmem:[%s334 + $0x14] sm:$0xf]
        %v421 = vld [vmem:[%s334 + $0x18] sm:$0xf]
        %v422 = vld [vmem:[%s334 + $0x1c] sm:$0xf]
        %v423 = vld [vmem:[%s334 + $0x20] sm:$0xf]
        %v424 = vld [vmem:[%s334 + $0x24] sm:$0xf]
        %v425 = vld [vmem:[%s334 + $0x28] sm:$0xf]
        %v426 = vld [vmem:[%s334 + $0x2c] sm:$0xf]
        %v427 = vld [vmem:[%s334 + $0x30] sm:$0xf]
        %v428 = vld [vmem:[%s334 + $0x34] sm:$0xf]
        %v429 = vld [vmem:[%s334 + $0x38] sm:$0xf]
        %v430 = vld [vmem:[%s334 + $0x3c] sm:$0xf]
        %v431 = vld [vmem:[%s294] sm:$0xff]
        %v432 = vld [vmem:[%s294 + $0x8] sm:$0xff]
        %v433 = vld [vmem:[%s294 + $0x10] sm:$0xff]
        %v434 = vld [vmem:[%s294 + $0x18] sm:$0xff]
        %v435 = vld [vmem:[%s294 + $0x20] sm:$0xff]
        %v436 = vld [vmem:[%s294 + $0x28] sm:$0xff]
        %v437 = vld [vmem:[%s294 + $0x30] sm:$0xff]
        %v438 = vld [vmem:[%s294 + $0x38] sm:$0xff]
        %v439 = vld [vmem:[%s294 + $0x40] sm:$0xff]
        %v440 = vld [vmem:[%s294 + $0x48] sm:$0xff]
        %v441 = vld [vmem:[%s294 + $0x50] sm:$0xff]
        %v442 = vld [vmem:[%s294 + $0x58] sm:$0xff]
        %v443 = vld [vmem:[%s294 + $0x60] sm:$0xff]
        %v444 = vld [vmem:[%s294 + $0x68] sm:$0xff]
        %v445 = vld [vmem:[%s294 + $0x70] sm:$0xff]
        %v446 = vld [vmem:[%s294 + $0x78] sm:$0xff]
        %v463 = vunpack.c.l.b16 %v415
        %v464 = vunpack.c.l.b16 %v416
        %v465 = vunpack.c.l.b16 %v417
        %v466 = vunpack.c.l.b16 %v418
        %v467 = vunpack.c.l.b16 %v419
        %v468 = vunpack.c.l.b16 %v420
        %v469 = vunpack.c.l.b16 %v421
        %v470 = vunpack.c.l.b16 %v422
        %v471 = vunpack.c.l.b16 %v423
        %v472 = vunpack.c.l.b16 %v424
        %v473 = vunpack.c.l.b16 %v425
        %v474 = vunpack.c.l.b16 %v426
        %v475 = vunpack.c.l.b16 %v427
        %v476 = vunpack.c.l.b16 %v428
        %v477 = vunpack.c.l.b16 %v429
        %v478 = vunpack.c.l.b16 %v430
        %v479 = vpack.c.b16 %v464, %v463
        %v480 = vpack.c.b16 %v466, %v465
        %v481 = vpack.c.b16 %v468, %v467
        %v482 = vpack.c.b16 %v470, %v469
        %v483 = vpack.c.b16 %v472, %v471
        %v484 = vpack.c.b16 %v474, %v473
        %v485 = vpack.c.b16 %v476, %v475
        %v486 = vpack.c.b16 %v478, %v477
        %v511 = vunpack.c.l.b16 %v431
        %v512 = vunpack.c.h.b16 %v431
        %v513 = vunpack.c.l.b16 %v432
        %v514 = vunpack.c.h.b16 %v432
        %v515 = vunpack.c.l.b16 %v433
        %v516 = vunpack.c.h.b16 %v433
        %v517 = vunpack.c.l.b16 %v434
        %v518 = vunpack.c.h.b16 %v434
        %v519 = vunpack.c.l.b16 %v435
        %v520 = vunpack.c.h.b16 %v435
        %v521 = vunpack.c.l.b16 %v436
        %v522 = vunpack.c.h.b16 %v436
        %v523 = vunpack.c.l.b16 %v437
        %v524 = vunpack.c.h.b16 %v437
        %v525 = vunpack.c.l.b16 %v438
        %v526 = vunpack.c.h.b16 %v438
        %v527 = vunpack.c.l.b16 %v439
        %v528 = vunpack.c.h.b16 %v439
        %v529 = vunpack.c.l.b16 %v440
        %v530 = vunpack.c.h.b16 %v440
        %v531 = vunpack.c.l.b16 %v441
        %v532 = vunpack.c.h.b16 %v441
        %v533 = vunpack.c.l.b16 %v442
        %v534 = vunpack.c.h.b16 %v442
        %v535 = vunpack.c.l.b16 %v443
        %v536 = vunpack.c.h.b16 %v443
        %v537 = vunpack.c.l.b16 %v444
        %v538 = vunpack.c.h.b16 %v444
        %v539 = vunpack.c.l.b16 %v445
        %v540 = vunpack.c.h.b16 %v445
        %v541 = vunpack.c.l.b16 %v446
        %v542 = vunpack.c.h.b16 %v446
        %v543 = vpack.c.b16 %v513, %v511
        %v544 = vpack.c.b16 %v514, %v512
        %v545 = vpack.c.b16 %v517, %v515
        %v546 = vpack.c.b16 %v518, %v516
        %v547 = vpack.c.b16 %v521, %v519
        %v548 = vpack.c.b16 %v522, %v520
        %v549 = vpack.c.b16 %v525, %v523
        %v550 = vpack.c.b16 %v526, %v524
        %v551 = vpack.c.b16 %v529, %v527
        %v552 = vpack.c.b16 %v530, %v528
        %v553 = vpack.c.b16 %v533, %v531
        %v554 = vpack.c.b16 %v534, %v532
        %v555 = vpack.c.b16 %v537, %v535
        %v556 = vpack.c.b16 %v538, %v536
        %v557 = vpack.c.b16 %v541, %v539
        %v558 = vpack.c.b16 %v542, %v540
        %575 = vmatprep.subr.bf16.mxu0 %v558
        %576 = vmatpush1.bf16.msra.mxu0 %v557
        %577 = vmatprep.subr.bf16.mxu0 %v556
        %578 = vmatpush1.bf16.msra.mxu0 %v555
        %579 = vmatprep.subr.bf16.mxu0 %v554
        %580 = vmatpush1.bf16.msra.mxu0 %v553
        %581 = vmatprep.subr.bf16.mxu0 %v552
        %582 = vmatpush1.bf16.msra.mxu0 %v551
        %583 = vmatprep.subr.bf16.mxu0 %v550
        %584 = vmatpush1.bf16.msra.mxu0 %v549
        %585 = vmatprep.subr.bf16.mxu0 %v548
        %586 = vmatpush1.bf16.msra.mxu0 %v547
        %587 = vmatprep.subr.bf16.mxu0 %v546
        %588 = vmatpush1.bf16.msra.mxu0 %v545
        %589 = vmatprep.subr.bf16.mxu0 %v544
        %590 = vmatpush1.bf16.msra.mxu0 %v543
        %591 = vmatprep.subr.bf16.mxu0 0
        %592 = vmatpush2.bf16.msra.mxu0 0
        %593 = vmatprep.subr.bf16.mxu0 0
        %594 = vmatpush2.bf16.msra.mxu0 0
        %595 = vmatprep.subr.bf16.mxu0 0
        %596 = vmatpush2.bf16.msra.mxu0 0
        %597 = vmatprep.subr.bf16.mxu0 0
        %598 = vmatpush2.bf16.msra.mxu0 0
        %599 = vmatprep.subr.bf16.mxu0 0
        %600 = vmatpush2.bf16.msra.mxu0 0
        %601 = vmatprep.subr.bf16.mxu0 0
        %602 = vmatpush2.bf16.msra.mxu0 0
        %603 = vmatprep.subr.bf16.mxu0 0
        %604 = vmatpush2.bf16.msra.mxu0 0
        %605 = vmatprep.subr.bf16.mxu0 0
        %606 = vmatpush2.bf16.msra.mxu0 0
        %607 = vmatprep.mubr.bf16.mxu0 0
        %608 = vmatmul.mubr.bf16.gmra.mxu0 %v479
        %v609 = vpop.f32.mrf.mxu0
        %v610 = vadd.f32 0.0, %v609
        %v611 = vpop.f32.mrf.mxu0
        %v612 = vadd.f32 0.0, %v611
        %v613 = vpop.f32.mrf.mxu0
        %v614 = vadd.f32 0.0, %v613
        %v615 = vpop.f32.mrf.mxu0
        %v616 = vadd.f32 0.0, %v615
        %617 = vmatprep.mubr.bf16.mxu0 0
        %618 = vmatmul.mubr.bf16.gmra.mxu0 %v480
        %v619 = vpop.f32.mrf.mxu0
        %v620 = vadd.f32 0.0, %v619
        %v621 = vpop.f32.mrf.mxu0
        %v622 = vadd.f32 0.0, %v621
        %v623 = vpop.f32.mrf.mxu0
        %v624 = vadd.f32 0.0, %v623
        %v625 = vpop.f32.mrf.mxu0
        %v626 = vadd.f32 0.0, %v625
        %627 = vmatprep.mubr.bf16.mxu0 0
        %628 = vmatmul.mubr.bf16.gmra.mxu0 %v481
        %v629 = vpop.f32.mrf.mxu0
        %v630 = vadd.f32 0.0, %v629
        %v631 = vpop.f32.mrf.mxu0
        %v632 = vadd.f32 0.0, %v631
        %v633 = vpop.f32.mrf.mxu0
        %v634 = vadd.f32 0.0, %v633
        %v635 = vpop.f32.mrf.mxu0
        %v636 = vadd.f32 0.0, %v635
        %637 = vmatprep.mubr.bf16.mxu0 0
        %638 = vmatmul.mubr.bf16.gmra.mxu0 %v482
        %v639 = vpop.f32.mrf.mxu0
        %v640 = vadd.f32 0.0, %v639
        %v641 = vpop.f32.mrf.mxu0
        %v642 = vadd.f32 0.0, %v641
        %v643 = vpop.f32.mrf.mxu0
        %v644 = vadd.f32 0.0, %v643
        %v645 = vpop.f32.mrf.mxu0
        %v646 = vadd.f32 0.0, %v645
        %647 = vmatprep.mubr.bf16.mxu0 0
        %648 = vmatmul.mubr.bf16.gmra.mxu0 %v483
        %v649 = vpop.f32.mrf.mxu0
        %v650 = vadd.f32 0.0, %v649
        %v651 = vpop.f32.mrf.mxu0
        %v652 = vadd.f32 0.0, %v651
        %v653 = vpop.f32.mrf.mxu0
        %v654 = vadd.f32 0.0, %v653
        %v655 = vpop.f32.mrf.mxu0
        %v656 = vadd.f32 0.0, %v655
        %657 = vmatprep.mubr.bf16.mxu0 0
        %658 = vmatmul.mubr.bf16.gmra.mxu0 %v484
        %v659 = vpop.f32.mrf.mxu0
        %v660 = vadd.f32 0.0, %v659
        %v661 = vpop.f32.mrf.mxu0
        %v662 = vadd.f32 0.0, %v661
        %v663 = vpop.f32.mrf.mxu0
        %v664 = vadd.f32 0.0, %v663
        %v665 = vpop.f32.mrf.mxu0
        %v666 = vadd.f32 0.0, %v665
        %667 = vmatprep.mubr.bf16.mxu0 0
        %668 = vmatmul.mubr.bf16.gmra.mxu0 %v485
        %v669 = vpop.f32.mrf.mxu0
        %v670 = vadd.f32 0.0, %v669
        %v671 = vpop.f32.mrf.mxu0
        %v672 = vadd.f32 0.0, %v671
        %v673 = vpop.f32.mrf.mxu0
        %v674 = vadd.f32 0.0, %v673
        %v675 = vpop.f32.mrf.mxu0
        %v676 = vadd.f32 0.0, %v675
        %677 = vmatprep.mubr.bf16.mxu0 0
        %678 = vmatmul.mubr.bf16.gmra.mxu0 %v486
        %v679 = vpop.f32.mrf.mxu0
        %v680 = vadd.f32 0.0, %v679
        %v681 = vpop.f32.mrf.mxu0
        %v682 = vadd.f32 0.0, %v681
        %v683 = vpop.f32.mrf.mxu0
        %v684 = vadd.f32 0.0, %v683
        %v685 = vpop.f32.mrf.mxu0
        %v686 = vadd.f32 0.0, %v685
        %687 = vdwg.mxu0
        %v688 = vadd.f32 %v383, %v610
        %v689 = vadd.f32 %v384, %v612
        %v690 = vadd.f32 %v385, %v614
        %v691 = vadd.f32 %v386, %v616
        %v692 = vadd.f32 %v387, %v620
        %v693 = vadd.f32 %v388, %v622
        %v694 = vadd.f32 %v389, %v624
        %v695 = vadd.f32 %v390, %v626
        %v696 = vadd.f32 %v391, %v630
        %v697 = vadd.f32 %v392, %v632
        %v698 = vadd.f32 %v393, %v634
        %v699 = vadd.f32 %v394, %v636
        %v700 = vadd.f32 %v395, %v640
        %v701 = vadd.f32 %v396, %v642
        %v702 = vadd.f32 %v397, %v644
        %v703 = vadd.f32 %v398, %v646
        %v704 = vadd.f32 %v399, %v650
        %v705 = vadd.f32 %v400, %v652
        %v706 = vadd.f32 %v401, %v654
        %v707 = vadd.f32 %v402, %v656
        %v708 = vadd.f32 %v403, %v660
        %v709 = vadd.f32 %v404, %v662
        %v710 = vadd.f32 %v405, %v664
        %v711 = vadd.f32 %v406, %v666
        %v712 = vadd.f32 %v407, %v670
        %v713 = vadd.f32 %v408, %v672
        %v714 = vadd.f32 %v409, %v674
        %v715 = vadd.f32 %v410, %v676
        %v716 = vadd.f32 %v411, %v680
        %v717 = vadd.f32 %v412, %v682
        %v718 = vadd.f32 %v413, %v684
        %v719 = vadd.f32 %v414, %v686
        %720 = vst [vmem:[#allocation2] sm:$0xff] %v688
        %721 = vst [vmem:[#allocation2 + $0x8] sm:$0xff] %v689
        %722 = vst [vmem:[#allocation2 + $0x10] sm:$0xff] %v690
        %723 = vst [vmem:[#allocation2 + $0x18] sm:$0xff] %v691
        %724 = vst [vmem:[#allocation2 + $0x20] sm:$0xff] %v692
        %725 = vst [vmem:[#allocation2 + $0x28] sm:$0xff] %v693
        %726 = vst [vmem:[#allocation2 + $0x30] sm:$0xff] %v694
        %727 = vst [vmem:[#allocation2 + $0x38] sm:$0xff] %v695
        %728 = vst [vmem:[#allocation2 + $0x40] sm:$0xff] %v696
        %729 = vst [vmem:[#allocation2 + $0x48] sm:$0xff] %v697
        %730 = vst [vmem:[#allocation2 + $0x50] sm:$0xff] %v698
        %731 = vst [vmem:[#allocation2 + $0x58] sm:$0xff] %v699
        %732 = vst [vmem:[#allocation2 + $0x60] sm:$0xff] %v700
        %733 = vst [vmem:[#allocation2 + $0x68] sm:$0xff] %v701
        %734 = vst [vmem:[#allocation2 + $0x70] sm:$0xff] %v702
        %735 = vst [vmem:[#allocation2 + $0x78] sm:$0xff] %v703
        %736 = vst [vmem:[#allocation2 + $0x80] sm:$0xff] %v704
        %737 = vst [vmem:[#allocation2 + $0x88] sm:$0xff] %v705
        %738 = vst [vmem:[#allocation2 + $0x90] sm:$0xff] %v706
        %739 = vst [vmem:[#allocation2 + $0x98] sm:$0xff] %v707
        %740 = vst [vmem:[#allocation2 + $0xa0] sm:$0xff] %v708
        %741 = vst [vmem:[#allocation2 + $0xa8] sm:$0xff] %v709
        %742 = vst [vmem:[#allocation2 + $0xb0] sm:$0xff] %v710
        %743 = vst [vmem:[#allocation2 + $0xb8] sm:$0xff] %v711
        %744 = vst [vmem:[#allocation2 + $0xc0] sm:$0xff] %v712
        %745 = vst [vmem:[#allocation2 + $0xc8] sm:$0xff] %v713
        %746 = vst [vmem:[#allocation2 + $0xd0] sm:$0xff] %v714
        %747 = vst [vmem:[#allocation2 + $0xd8] sm:$0xff] %v715
        %748 = vst [vmem:[#allocation2 + $0xe0] sm:$0xff] %v716
        %749 = vst [vmem:[#allocation2 + $0xe8] sm:$0xff] %v717
        %750 = vst [vmem:[#allocation2 + $0xf0] sm:$0xff] %v718
        %751 = vst [vmem:[#allocation2 + $0xf8] sm:$0xff] %v719
        // Predicated region
        $region75: #{db_forward.14} parent=65 // pred_check
          %p752 = pneg %p347
        $region76: #{db_forward.14} parent=65 // pred_check_branch
          %754 = sbr.rel (%p752) target = $region78
        $region77: #{db_forward.14} parent=65 // pred_region
          %v755 = vld [vmem:[#allocation2] sm:$0xff]
          %v756 = vld [vmem:[#allocation2 + $0x8] sm:$0xff]
          %v757 = vld [vmem:[#allocation2 + $0x10] sm:$0xff]
          %v758 = vld [vmem:[#allocation2 + $0x18] sm:$0xff]
          %v759 = vld [vmem:[#allocation2 + $0x20] sm:$0xff]
          %v760 = vld [vmem:[#allocation2 + $0x28] sm:$0xff]
          %v761 = vld [vmem:[#allocation2 + $0x30] sm:$0xff]
          %v762 = vld [vmem:[#allocation2 + $0x38] sm:$0xff]
          %v763 = vld [vmem:[#allocation2 + $0x40] sm:$0xff]
          %v764 = vld [vmem:[#allocation2 + $0x48] sm:$0xff]
          %v765 = vld [vmem:[#allocation2 + $0x50] sm:$0xff]
          %v766 = vld [vmem:[#allocation2 + $0x58] sm:$0xff]
          %v767 = vld [vmem:[#allocation2 + $0x60] sm:$0xff]
          %v768 = vld [vmem:[#allocation2 + $0x68] sm:$0xff]
          %v769 = vld [vmem:[#allocation2 + $0x70] sm:$0xff]
          %v770 = vld [vmem:[#allocation2 + $0x78] sm:$0xff]
          %v771 = vld [vmem:[#allocation2 + $0x80] sm:$0xff]
          %v772 = vld [vmem:[#allocation2 + $0x88] sm:$0xff]
          %v773 = vld [vmem:[#allocation2 + $0x90] sm:$0xff]
          %v774 = vld [vmem:[#allocation2 + $0x98] sm:$0xff]
          %v775 = vld [vmem:[#allocation2 + $0xa0] sm:$0xff]
          %v776 = vld [vmem:[#allocation2 + $0xa8] sm:$0xff]
          %v777 = vld [vmem:[#allocation2 + $0xb0] sm:$0xff]
          %v778 = vld [vmem:[#allocation2 + $0xb8] sm:$0xff]
          %v779 = vld [vmem:[#allocation2 + $0xc0] sm:$0xff]
          %v780 = vld [vmem:[#allocation2 + $0xc8] sm:$0xff]
          %v781 = vld [vmem:[#allocation2 + $0xd0] sm:$0xff]
          %v782 = vld [vmem:[#allocation2 + $0xd8] sm:$0xff]
          %v783 = vld [vmem:[#allocation2 + $0xe0] sm:$0xff]
          %v784 = vld [vmem:[#allocation2 + $0xe8] sm:$0xff]
          %v785 = vld [vmem:[#allocation2 + $0xf0] sm:$0xff]
          %v786 = vld [vmem:[#allocation2 + $0xf8] sm:$0xff]
          %v787 = vld [vmem:[%s342] ss:$2 sm:$0x3]
          %v789 = vlaneseq
          %v790 = vshrl.u32 %v789, 7
          %v791 = vsub.s32 0, %v790
          %v792 = vrot.slane %v787, %v791
          %v793 = vlaneseq
          %v794 = vshrl.u32 %v793, 7
          %v795 = vsub.s32 1, %v794
          %v796 = vrot.slane %v787, %v795
          %v799 = vmul.f32 %v755, %v792
          %v800 = vmul.f32 %v756, %v796
          %v801 = vmul.f32 %v757, %v792
          %v802 = vmul.f32 %v758, %v796
          %v803 = vmul.f32 %v759, %v792
          %v804 = vmul.f32 %v760, %v796
          %v805 = vmul.f32 %v761, %v792
          %v806 = vmul.f32 %v762, %v796
          %v807 = vmul.f32 %v763, %v792
          %v808 = vmul.f32 %v764, %v796
          %v809 = vmul.f32 %v765, %v792
          %v810 = vmul.f32 %v766, %v796
          %v811 = vmul.f32 %v767, %v792
          %v812 = vmul.f32 %v768, %v796
          %v813 = vmul.f32 %v769, %v792
          %v814 = vmul.f32 %v770, %v796
          %v815 = vmul.f32 %v771, %v792
          %v816 = vmul.f32 %v772, %v796
          %v817 = vmul.f32 %v773, %v792
          %v818 = vmul.f32 %v774, %v796
          %v819 = vmul.f32 %v775, %v792
          %v820 = vmul.f32 %v776, %v796
          %v821 = vmul.f32 %v777, %v792
          %v822 = vmul.f32 %v778, %v796
          %v823 = vmul.f32 %v779, %v792
          %v824 = vmul.f32 %v780, %v796
          %v825 = vmul.f32 %v781, %v792
          %v826 = vmul.f32 %v782, %v796
          %v827 = vmul.f32 %v783, %v792
          %v828 = vmul.f32 %v784, %v796
          %v829 = vmul.f32 %v785, %v792
          %v830 = vmul.f32 %v786, %v796
          %s831 = scalar_lea.vmem %s342, 1
          %v832 = vld [vmem:[%s831] ss:$2 sm:$0x3]
          %v834 = vlaneseq
          %v835 = vshrl.u32 %v834, 7
          %v836 = vsub.s32 0, %v835
          %v837 = vrot.slane %v832, %v836
          %v838 = vlaneseq
          %v839 = vshrl.u32 %v838, 7
          %v840 = vsub.s32 1, %v839
          %v841 = vrot.slane %v832, %v840
          %v844 = vadd.f32 %v799, %v837
          %v845 = vadd.f32 %v800, %v841
          %v846 = vadd.f32 %v801, %v837
          %v847 = vadd.f32 %v802, %v841
          %v848 = vadd.f32 %v803, %v837
          %v849 = vadd.f32 %v804, %v841
          %v850 = vadd.f32 %v805, %v837
          %v851 = vadd.f32 %v806, %v841
          %v852 = vadd.f32 %v807, %v837
          %v853 = vadd.f32 %v808, %v841
          %v854 = vadd.f32 %v809, %v837
          %v855 = vadd.f32 %v810, %v841
          %v856 = vadd.f32 %v811, %v837
          %v857 = vadd.f32 %v812, %v841
          %v858 = vadd.f32 %v813, %v837
          %v859 = vadd.f32 %v814, %v841
          %v860 = vadd.f32 %v815, %v837
          %v861 = vadd.f32 %v816, %v841
          %v862 = vadd.f32 %v817, %v837
          %v863 = vadd.f32 %v818, %v841
          %v864 = vadd.f32 %v819, %v837
          %v865 = vadd.f32 %v820, %v841
          %v866 = vadd.f32 %v821, %v837
          %v867 = vadd.f32 %v822, %v841
          %v868 = vadd.f32 %v823, %v837
          %v869 = vadd.f32 %v824, %v841
          %v870 = vadd.f32 %v825, %v837
          %v871 = vadd.f32 %v826, %v841
          %v872 = vadd.f32 %v827, %v837
          %v873 = vadd.f32 %v828, %v841
          %v874 = vadd.f32 %v829, %v837
          %v875 = vadd.f32 %v830, %v841
          %v876 = vmax.f32 %v844, 0.0
          %v877 = vmax.f32 %v845, 0.0
          %v878 = vmax.f32 %v846, 0.0
          %v879 = vmax.f32 %v847, 0.0
          %v880 = vmax.f32 %v848, 0.0
          %v881 = vmax.f32 %v849, 0.0
          %v882 = vmax.f32 %v850, 0.0
          %v883 = vmax.f32 %v851, 0.0
          %v884 = vmax.f32 %v852, 0.0
          %v885 = vmax.f32 %v853, 0.0
          %v886 = vmax.f32 %v854, 0.0
          %v887 = vmax.f32 %v855, 0.0
          %v888 = vmax.f32 %v856, 0.0
          %v889 = vmax.f32 %v857, 0.0
          %v890 = vmax.f32 %v858, 0.0
          %v891 = vmax.f32 %v859, 0.0
          %v892 = vmax.f32 %v860, 0.0
          %v893 = vmax.f32 %v861, 0.0
          %v894 = vmax.f32 %v862, 0.0
          %v895 = vmax.f32 %v863, 0.0
          %v896 = vmax.f32 %v864, 0.0
          %v897 = vmax.f32 %v865, 0.0
          %v898 = vmax.f32 %v866, 0.0
          %v899 = vmax.f32 %v867, 0.0
          %v900 = vmax.f32 %v868, 0.0
          %v901 = vmax.f32 %v869, 0.0
          %v902 = vmax.f32 %v870, 0.0
          %v903 = vmax.f32 %v871, 0.0
          %v904 = vmax.f32 %v872, 0.0
          %v905 = vmax.f32 %v873, 0.0
          %v906 = vmax.f32 %v874, 0.0
          %v907 = vmax.f32 %v875, 0.0
          %v908 = vpack.c.bf16 %v878, %v876
          %v909 = vpack.c.bf16 %v879, %v877
          %v910 = vpack.c.bf16 %v882, %v880
          %v911 = vpack.c.bf16 %v883, %v881
          %v912 = vpack.c.bf16 %v886, %v884
          %v913 = vpack.c.bf16 %v887, %v885
          %v914 = vpack.c.bf16 %v890, %v888
          %v915 = vpack.c.bf16 %v891, %v889
          %v916 = vpack.c.bf16 %v894, %v892
          %v917 = vpack.c.bf16 %v895, %v893
          %v918 = vpack.c.bf16 %v898, %v896
          %v919 = vpack.c.bf16 %v899, %v897
          %v920 = vpack.c.bf16 %v902, %v900
          %v921 = vpack.c.bf16 %v903, %v901
          %v922 = vpack.c.bf16 %v906, %v904
          %v923 = vpack.c.bf16 %v907, %v905
          %v940 = vunpack.c.l.b16 %v908
          %v941 = vunpack.c.l.b16 %v909
          %v942 = vunpack.c.h.b16 %v908
          %v943 = vunpack.c.h.b16 %v909
          %v944 = vunpack.c.l.b16 %v910
          %v945 = vunpack.c.l.b16 %v911
          %v946 = vunpack.c.h.b16 %v910
          %v947 = vunpack.c.h.b16 %v911
          %v948 = vunpack.c.l.b16 %v912
          %v949 = vunpack.c.l.b16 %v913
          %v950 = vunpack.c.h.b16 %v912
          %v951 = vunpack.c.h.b16 %v913
          %v952 = vunpack.c.l.b16 %v914
          %v953 = vunpack.c.l.b16 %v915
          %v954 = vunpack.c.h.b16 %v914
          %v955 = vunpack.c.h.b16 %v915
          %v956 = vunpack.c.l.b16 %v916
          %v957 = vunpack.c.l.b16 %v917
          %v958 = vunpack.c.h.b16 %v916
          %v959 = vunpack.c.h.b16 %v917
          %v960 = vunpack.c.l.b16 %v918
          %v961 = vunpack.c.l.b16 %v919
          %v962 = vunpack.c.h.b16 %v918
          %v963 = vunpack.c.h.b16 %v919
          %v964 = vunpack.c.l.b16 %v920
          %v965 = vunpack.c.l.b16 %v921
          %v966 = vunpack.c.h.b16 %v920
          %v967 = vunpack.c.h.b16 %v921
          %v968 = vunpack.c.l.b16 %v922
          %v969 = vunpack.c.l.b16 %v923
          %v970 = vunpack.c.h.b16 %v922
          %v971 = vunpack.c.h.b16 %v923
          %v972 = vpack.c.b16 %v941, %v940
          %v973 = vpack.c.b16 %v943, %v942
          %v974 = vpack.c.b16 %v945, %v944
          %v975 = vpack.c.b16 %v947, %v946
          %v976 = vpack.c.b16 %v949, %v948
          %v977 = vpack.c.b16 %v951, %v950
          %v978 = vpack.c.b16 %v953, %v952
          %v979 = vpack.c.b16 %v955, %v954
          %v980 = vpack.c.b16 %v957, %v956
          %v981 = vpack.c.b16 %v959, %v958
          %v982 = vpack.c.b16 %v961, %v960
          %v983 = vpack.c.b16 %v963, %v962
          %v984 = vpack.c.b16 %v965, %v964
          %v985 = vpack.c.b16 %v967, %v966
          %v986 = vpack.c.b16 %v969, %v968
          %v987 = vpack.c.b16 %v971, %v970
          %1004 = vst [vmem:[%s326] sm:$0xff] %v972
          %1005 = vst [vmem:[%s326 + $0x8] sm:$0xff] %v973
          %1006 = vst [vmem:[%s326 + $0x10] sm:$0xff] %v974
          %1007 = vst [vmem:[%s326 + $0x18] sm:$0xff] %v975
          %1008 = vst [vmem:[%s326 + $0x20] sm:$0xff] %v976
          %1009 = vst [vmem:[%s326 + $0x28] sm:$0xff] %v977
          %1010 = vst [vmem:[%s326 + $0x30] sm:$0xff] %v978
          %1011 = vst [vmem:[%s326 + $0x38] sm:$0xff] %v979
          %1012 = vst [vmem:[%s326 + $0x40] sm:$0xff] %v980
          %1013 = vst [vmem:[%s326 + $0x48] sm:$0xff] %v981
          %1014 = vst [vmem:[%s326 + $0x50] sm:$0xff] %v982
          %1015 = vst [vmem:[%s326 + $0x58] sm:$0xff] %v983
          %1016 = vst [vmem:[%s326 + $0x60] sm:$0xff] %v984
          %1017 = vst [vmem:[%s326 + $0x68] sm:$0xff] %v985
          %1018 = vst [vmem:[%s326 + $0x70] sm:$0xff] %v986
          %1019 = vst [vmem:[%s326 + $0x78] sm:$0xff] %v987
        $region78: #{db_forward.14} parent=65 // pred_fallthru
          _
        %s1020 = sand.u32 %s125, 1
        %s1021 = sand.u32 %s125, 1
        %s1022 = smul.addr %s1021, 128
        %s1023 = scalar_lea.vmem [#allocation4], %s1022
        // Predicated region
        $region79: #{db_forward.14} parent=65 // pred_check
          %p1024 = pneg %p135
        $region80: #{db_forward.14} parent=65 // pred_check_branch
          %1026 = sbr.rel (%p1024) target = $region82
        $region81: #{db_forward.14} parent=65 // pred_region
          %s1027 = smul.u32 16, %s19
          %s1028 = smul.u32 2, %s20
          %s1029 = smul.addr %s1027, 4
          %s1030 = sadd.s32 %s1028, %s1029
          %s1031 = smul.addr %s1030, 4
          %s1032 = scalar_lea.vmem %s3, %s1031
          // Predicated region
          $region83: #{db_forward.14} parent=81 // pred_check
            _
          $region84: #{db_forward.14} parent=81 // pred_check_branch
            %1034 = sbr.rel (0) target = $region86
          $region85: #{db_forward.14} parent=81 // pred_region
            // Predicated region
            $region87: #{db_forward.14} parent=85 // pred_check
              _
            $region88: #{db_forward.14} parent=85 // pred_check_branch
              %1036 = sbr.rel (0) target = $region90
            $region89: #{db_forward.14} parent=85 // pred_region
              // Predicated region
              $region102: #{db_forward.14} parent=89 // pred_check
                _
              $region103: #{db_forward.14} parent=89 // pred_check_branch
                %1082 = sbr.rel (0) target = $region105
              $region104: #{db_forward.14} parent=89 // pred_region
                loop: start=0, step=1, limit=1
                $region106: #{db_forward.14} parent=104 // loop_pre_header
                  _
                $region107: #{db_forward.14} parent=104 // loop_header
                  %s1084 = sphi 0, %s1088
                  %p1085 = scmp.ge.s32.totalorder %s1084, 1
                  %s1089 = sphi %s1023, %s1023
                  %s1090 = sphi %s1032, %s1032
                $region108: #{db_forward.14} parent=104 // loop_header_branch
                  %1087 = sbr.rel (%p1085) target = $region112
                $region109: #{db_forward.14} parent=104 // loop_body
                  %v1091 = vld [vmem:[%s1089] sm:$0xff]
                  %1092 = vst [vmem:[%s1090] sm:$0xff] %v1091
                  %v1093 = vld [vmem:[%s1089 + $0x8] sm:$0xff]
                  %1094 = vst [vmem:[%s1090 + $0x10] sm:$0xff] %v1093
                  %v1095 = vld [vmem:[%s1089 + $0x10] sm:$0xff]
                  %1096 = vst [vmem:[%s1090 + $0x20] sm:$0xff] %v1095
                  %v1097 = vld [vmem:[%s1089 + $0x18] sm:$0xff]
                  %1098 = vst [vmem:[%s1090 + $0x30] sm:$0xff] %v1097
                  %v1099 = vld [vmem:[%s1089 + $0x20] sm:$0xff]
                  %1100 = vst [vmem:[%s1090 + $0x40] sm:$0xff] %v1099
                  %v1101 = vld [vmem:[%s1089 + $0x28] sm:$0xff]
                  %1102 = vst [vmem:[%s1090 + $0x50] sm:$0xff] %v1101
                  %v1103 = vld [vmem:[%s1089 + $0x30] sm:$0xff]
                  %1104 = vst [vmem:[%s1090 + $0x60] sm:$0xff] %v1103
                  %v1105 = vld [vmem:[%s1089 + $0x38] sm:$0xff]
                  %1106 = vst [vmem:[%s1090 + $0x70] sm:$0xff] %v1105
                  %v1107 = vld [vmem:[%s1089 + $0x40] sm:$0xff]
                  %1108 = vst [vmem:[%s1090 + $0x80] sm:$0xff] %v1107
                  %v1109 = vld [vmem:[%s1089 + $0x48] sm:$0xff]
                  %1110 = vst [vmem:[%s1090 + $0x90] sm:$0xff] %v1109
                  %v1111 = vld [vmem:[%s1089 + $0x50] sm:$0xff]
                  %1112 = vst [vmem:[%s1090 + $0xa0] sm:$0xff] %v1111
                  %v1113 = vld [vmem:[%s1089 + $0x58] sm:$0xff]
                  %1114 = vst [vmem:[%s1090 + $0xb0] sm:$0xff] %v1113
                  %v1115 = vld [vmem:[%s1089 + $0x60] sm:$0xff]
                  %1116 = vst [vmem:[%s1090 + $0xc0] sm:$0xff] %v1115
                  %v1117 = vld [vmem:[%s1089 + $0x68] sm:$0xff]
                  %1118 = vst [vmem:[%s1090 + $0xd0] sm:$0xff] %v1117
                  %v1119 = vld [vmem:[%s1089 + $0x70] sm:$0xff]
                  %1120 = vst [vmem:[%s1090 + $0xe0] sm:$0xff] %v1119
                  %v1121 = vld [vmem:[%s1089 + $0x78] sm:$0xff]
                  %1122 = vst [vmem:[%s1090 + $0xf0] sm:$0xff] %v1121
                $region110: #{db_forward.14} parent=104 // loop_footer
                  %s1088 = sadd.s32 1, %s1084
                $region111: #{db_forward.14} parent=104 // loop_footer_branch
                  %1083 = sbr.rel target = $region107
                $region112: #{db_forward.14} parent=104 // loop_exit
                  _
              $region105: #{db_forward.14} parent=89 // pred_fallthru
                _
              // Predicated region
              $region113: #{db_forward.14} parent=89 // pred_check
                _
              $region114: #{db_forward.14} parent=89 // pred_check_branch
                %1124 = sbr.rel target = $region116
              $region115: #{db_forward.14} parent=89 // pred_region
                _
              $region116: #{db_forward.14} parent=89 // pred_fallthru
                _
            $region90: #{db_forward.14} parent=85 // pred_fallthru
              _
            // Predicated region
            $region91: #{db_forward.14} parent=85 // pred_check
              _
            $region92: #{db_forward.14} parent=85 // pred_check_branch
              %1038 = sbr.rel target = $region94
            $region93: #{db_forward.14} parent=85 // pred_region
              %s1040 = ssub.s32 256, 1
              loop: start=0, step=1, limit=1
              $region95: #{db_forward.14} parent=93 // loop_pre_header
                _
              $region96: #{db_forward.14} parent=93 // loop_header
                %s1042 = sphi 0, %s1046
                %p1043 = scmp.ge.s32.totalorder %s1042, 1
                %s1047 = sphi %s1023, %s1023
                %s1048 = sphi %s1032, %s1032
              $region97: #{db_forward.14} parent=93 // loop_header_branch
                %1045 = sbr.rel (%p1043) target = $region101
              $region98: #{db_forward.14} parent=93 // loop_body
                %v1049 = vld [vmem:[%s1047] sm:%s1040]
                %1050 = vst [vmem:[%s1048] sm:%s1040] %v1049
                %v1051 = vld [vmem:[%s1047 + $0x8] sm:%s1040]
                %1052 = vst [vmem:[%s1048 + $0x10] sm:%s1040] %v1051
                %v1053 = vld [vmem:[%s1047 + $0x10] sm:%s1040]
                %1054 = vst [vmem:[%s1048 + $0x20] sm:%s1040] %v1053
                %v1055 = vld [vmem:[%s1047 + $0x18] sm:%s1040]
                %1056 = vst [vmem:[%s1048 + $0x30] sm:%s1040] %v1055
                %v1057 = vld [vmem:[%s1047 + $0x20] sm:%s1040]
                %1058 = vst [vmem:[%s1048 + $0x40] sm:%s1040] %v1057
                %v1059 = vld [vmem:[%s1047 + $0x28] sm:%s1040]
                %1060 = vst [vmem:[%s1048 + $0x50] sm:%s1040] %v1059
                %v1061 = vld [vmem:[%s1047 + $0x30] sm:%s1040]
                %1062 = vst [vmem:[%s1048 + $0x60] sm:%s1040] %v1061
                %v1063 = vld [vmem:[%s1047 + $0x38] sm:%s1040]
                %1064 = vst [vmem:[%s1048 + $0x70] sm:%s1040] %v1063
                %v1065 = vld [vmem:[%s1047 + $0x40] sm:%s1040]
                %1066 = vst [vmem:[%s1048 + $0x80] sm:%s1040] %v1065
                %v1067 = vld [vmem:[%s1047 + $0x48] sm:%s1040]
                %1068 = vst [vmem:[%s1048 + $0x90] sm:%s1040] %v1067
                %v1069 = vld [vmem:[%s1047 + $0x50] sm:%s1040]
                %1070 = vst [vmem:[%s1048 + $0xa0] sm:%s1040] %v1069
                %v1071 = vld [vmem:[%s1047 + $0x58] sm:%s1040]
                %1072 = vst [vmem:[%s1048 + $0xb0] sm:%s1040] %v1071
                %v1073 = vld [vmem:[%s1047 + $0x60] sm:%s1040]
                %1074 = vst [vmem:[%s1048 + $0xc0] sm:%s1040] %v1073
                %v1075 = vld [vmem:[%s1047 + $0x68] sm:%s1040]
                %1076 = vst [vmem:[%s1048 + $0xd0] sm:%s1040] %v1075
                %v1077 = vld [vmem:[%s1047 + $0x70] sm:%s1040]
                %1078 = vst [vmem:[%s1048 + $0xe0] sm:%s1040] %v1077
                %v1079 = vld [vmem:[%s1047 + $0x78] sm:%s1040]
                %1080 = vst [vmem:[%s1048 + $0xf0] sm:%s1040] %v1079
              $region99: #{db_forward.14} parent=93 // loop_footer
                %s1046 = sadd.s32 1, %s1042
              $region100: #{db_forward.14} parent=93 // loop_footer_branch
                %1041 = sbr.rel target = $region96
              $region101: #{db_forward.14} parent=93 // loop_exit
                _
            $region94: #{db_forward.14} parent=85 // pred_fallthru
              _
          $region86: #{db_forward.14} parent=81 // pred_fallthru
            _
          %1125 = vnop
        $region82: #{db_forward.14} parent=65 // pred_fallthru
          _
      $region66: #{db_forward.14} parent=5 // pred_fallthru
        _
      %p1126 = scmp.le.s32.totalorder 2, %s9
      // Predicated region
      $region117: #{db_forward.14} parent=5 // pred_check
        %p1127 = pneg %p1126
      $region118: #{db_forward.14} parent=5 // pred_check_branch
        %1129 = sbr.rel (%p1127) target = $region120
      $region119: #{db_forward.14} parent=5 // pred_region
        %s1130 = ssub.s32 %s9, 2
        // Predicated region
        $region121: #{db_forward.14} parent=119 // pred_check
          %p1131 = pneg %p141
        $region122: #{db_forward.14} parent=119 // pred_check_branch
          %1133 = sbr.rel (%p1131) target = $region124
        $region123: #{db_forward.14} parent=119 // pred_region
          %s1134 = sand.u32 %s126, 1
          %s1135 = sand.u32 %s126, 1
          %s1136 = smul.addr %s1135, 128
          %s1137 = scalar_lea.vmem [#allocation4], %s1136
        $region124: #{db_forward.14} parent=119 // pred_fallthru
          _
      $region120: #{db_forward.14} parent=5 // pred_fallthru
        _
    $region6: #{db_forward.14} parent=1 // loop_footer
      %s13 = sadd.s32 1, %s9
    $region7: #{db_forward.14} parent=1 // loop_footer_branch
      %8 = sbr.rel target = $region3
    $region8: #{db_forward.14} parent=1 // loop_exit
      _

// kernel: db_forward.15
$region0: #{db_forward.15}
  #allocation0 [shape = 'u32[]', space=smem, size = 0x4, offset = 0x4, fixed_abs, tag = 'smem constant byte address 0x4 - core index']
  #allocation1 [shape = 'u32[144,128]{1,0:T(1,128)}', space=vmem, size = 0x12000, scoped, tag = 'internal scratch']
  #allocation2 [shape = 'f32[256,128]{1,0:T(8,128)}', space=vmem, size = 0x20000, scoped, tag = 'scratch operand']
  %s0 = inlined_call_operand.vmem [shape: bf16[512,128], index: 0, kind: input, shape index: {}]
  %s1 = inlined_call_operand.vmem [shape: bf16[128,128], index: 1, kind: input, shape index: {}]
  %s2 = inlined_call_operand.vmem [shape: f32[2,128], index: 2, kind: input, shape index: {}]
  %s3 = inlined_call_operand.vmem [shape: f32[512,128], index: 3, kind: output, shape index: {}]
  %s4 = sld [smem:[#allocation0]]
  $region53: #{db_forward.15} parent=0
    _
  %s6 = ssub.s32 1, %s4
  %s7 = scalar_select 0, %s6, %s4
  loop: start=0, step=1, limit=4
  $region2: #{db_forward.15} parent=0 // loop_pre_header
    _
  $region3: #{db_forward.15} parent=0 // loop_header
    %s9 = sphi 0, %s13
    %p10 = scmp.ge.s32.totalorder %s9, 4
    %s16 = sphi 0, %s35
    %s17 = sphi 0, %s31
    %s18 = sphi 0, %s27
    %s19 = sphi 0, %s16
    %s20 = sphi 0, %s17
    %s21 = sphi 0, %s18
    %s22 = sphi 0, %s19
    %s23 = sphi 0, %s20
    %s24 = sphi 0, %s21
    %s40 = sphi 0, %s42
    %s43 = sphi 0, %s40
    %s44 = sphi 0, %s43
    %s60 = sphi 0, %s44
    %s68 = sphi 0, %s70
    %s71 = sphi 0, %s68
    %s72 = sphi 0, %s71
    %s88 = sphi 0, %s72
    %s94 = sphi 0, %s96
    %s97 = sphi 0, %s94
    %s98 = sphi 0, %s97
    %s114 = sphi 0, %s98
    %s122 = sphi 0, %s124
    %s125 = sphi 0, %s122
    %s126 = sphi 0, %s125
    %s142 = sphi 0, %s126
  $region4: #{db_forward.15} parent=0 // loop_header_branch
    %12 = sbr.rel (%p10) target = $region8
  $region5: #{db_forward.15} parent=0 // loop_body
    %s14 = ssub.s32 %s9, 1
    %s15 = ssub.s32 %s9, 2
    %s25 = sadd.s32 1, %s18
    %p26 = scmp.ge.s32.totalorder %s25, 1
    %s27 = scalar_select %p26, 0, %s25
    %s28 = sadd.s32 1, %s17
    %s29 = scalar_select %p26, %s28, %s17
    %p30 = scmp.ge.s32.totalorder %s29, 1
    %s31 = scalar_select %p30, 0, %s29
    %s32 = sadd.s32 1, %s16
    %s33 = scalar_select %p30, %s32, %s16
    %p34 = scmp.ge.s32.totalorder %s33, 2
    %s35 = scalar_select %p34, 0, %s33
    %s36 = ssub.s32 %s16, %s35
    %s37 = ssub.s32 %s18, %s27
    %s38 = sor.u32 %s36, %s37
    %p39 = scmp.eq.s32.totalorder %s38, 0
    %s41 = sadd.s32 %s40, 1
    %s42 = scalar_select %p39, %s40, %s41
    %p45 = pneg %p39
    %p46 = scmp.eq.s32.totalorder %s9, 1
    %p47 = por %p45, %p46
    %p48 = scmp.ne.s32.totalorder %s40, %s43
    %p49 = scmp.eq.s32.totalorder %s9, 0
    %p50 = por %p48, %p49
    %p51 = scmp.ne.s32.totalorder %s40, %s43
    %p52 = scmp.eq.s32.totalorder %s14, 1
    %p53 = por %p51, %p52
    %p54 = scmp.ne.s32.totalorder %s43, %s44
    %p55 = scmp.eq.s32.totalorder %s14, 0
    %p56 = por %p54, %p55
    %p57 = scmp.ne.s32.totalorder %s43, %s44
    %p58 = scmp.eq.s32.totalorder %s15, 1
    %p59 = por %p57, %p58
    %p61 = scmp.ne.s32.totalorder %s44, %s60
    %p62 = scmp.eq.s32.totalorder %s15, 0
    %p63 = por %p61, %p62
    %s64 = ssub.s32 %s18, %s27
    %s65 = ssub.s32 %s17, %s31
    %s66 = sor.u32 %s64, %s65
    %p67 = scmp.eq.s32.totalorder %s66, 0
    %s69 = sadd.s32 %s68, 1
    %s70 = scalar_select %p67, %s68, %s69
    %p73 = pneg %p67
    %p74 = scmp.eq.s32.totalorder %s9, 1
    %p75 = por %p73, %p74
    %p76 = scmp.ne.s32.totalorder %s68, %s71
    %p77 = scmp.eq.s32.totalorder %s9, 0
    %p78 = por %p76, %p77
    %p79 = scmp.ne.s32.totalorder %s68, %s71
    %p80 = scmp.eq.s32.totalorder %s14, 1
    %p81 = por %p79, %p80
    %p82 = scmp.ne.s32.totalorder %s71, %s72
    %p83 = scmp.eq.s32.totalorder %s14, 0
    %p84 = por %p82, %p83
    %p85 = scmp.ne.s32.totalorder %s71, %s72
    %p86 = scmp.eq.s32.totalorder %s15, 1
    %p87 = por %p85, %p86
    %p89 = scmp.ne.s32.totalorder %s72, %s88
    %p90 = scmp.eq.s32.totalorder %s15, 0
    %p91 = por %p89, %p90
    %s92 = ssub.s32 %s17, %s31
    %p93 = scmp.eq.s32.totalorder %s92, 0
    %s95 = sadd.s32 %s94, 1
    %s96 = scalar_select %p93, %s94, %s95
    %p99 = pneg %p93
    %p100 = scmp.eq.s32.totalorder %s9, 1
    %p101 = por %p99, %p100
    %p102 = scmp.ne.s32.totalorder %s94, %s97
    %p103 = scmp.eq.s32.totalorder %s9, 0
    %p104 = por %p102, %p103
    %p105 = scmp.ne.s32.totalorder %s94, %s97
    %p106 = scmp.eq.s32.totalorder %s14, 1
    %p107 = por %p105, %p106
    %p108 = scmp.ne.s32.totalorder %s97, %s98
    %p109 = scmp.eq.s32.totalorder %s14, 0
    %p110 = por %p108, %p109
    %p111 = scmp.ne.s32.totalorder %s97, %s98
    %p112 = scmp.eq.s32.totalorder %s15, 1
    %p113 = por %p111, %p112
    %p115 = scmp.ne.s32.totalorder %s98, %s114
    %p116 = scmp.eq.s32.totalorder %s15, 0
    %p117 = por %p115, %p116
    %s118 = ssub.s32 %s16, %s35
    %s119 = ssub.s32 %s17, %s31
    %s120 = sor.u32 %s118, %s119
    %p121 = scmp.eq.s32.totalorder %s120, 0
    %s123 = sadd.s32 %s122, 1
    %s124 = scalar_select %p121, %s122, %s123
    %p127 = pneg %p121
    %p128 = scmp.eq.s32.totalorder %s9, 1
    %p129 = por %p127, %p128
    %p130 = scmp.ne.s32.totalorder %s122, %s125
    %p131 = scmp.eq.s32.totalorder %s9, 0
    %p132 = por %p130, %p131
    %p133 = scmp.ne.s32.totalorder %s122, %s125
    %p134 = scmp.eq.s32.totalorder %s14, 1
    %p135 = por %p133, %p134
    %p136 = scmp.ne.s32.totalorder %s125, %s126
    %p137 = scmp.eq.s32.totalorder %s14, 0
    %p138 = por %p136, %p137
    %p139 = scmp.ne.s32.totalorder %s125, %s126
    %p140 = scmp.eq.s32.totalorder %s15, 1
    %p141 = por %p139, %p140
    %p143 = scmp.ne.s32.totalorder %s126, %s142
    %p144 = scmp.eq.s32.totalorder %s15, 0
    %p145 = por %p143, %p144
    %p146 = scmp.le.s32.totalorder 1, %s9
    %p147 = scmp.lt.s32.totalorder %s9, 3
    %p148 = pnand %p146, %p147
    %p149 = pneg %p148
    // Predicated region
    $region9: #{db_forward.15} parent=5 // pred_check
      _
    $region10: #{db_forward.15} parent=5 // pred_check_branch
      %151 = sbr.rel (%p148) target = $region12
    $region11: #{db_forward.15} parent=5 // pred_region
      %s152 = ssub.s32 %s9, 1
      // Predicated region
      $region13: #{db_forward.15} parent=11 // pred_check
        %p153 = pneg %p84
      $region14: #{db_forward.15} parent=11 // pred_check_branch
        %155 = sbr.rel (%p153) target = $region16
      $region15: #{db_forward.15} parent=11 // pred_region
        %s156 = smul.u32 16, %s21
        %p157 = scmp.lt.s32.totalorder %s156, 15
        %s158 = scalar_select %p157, %s156, 15
        %p159 = scmp.lt.s32.totalorder %s20, 0
        %s160 = scalar_select %p159, %s20, 0
        %s161 = sadd.s32 %s160, %s158
        %s162 = smul.addr %s161, 4
        %s163 = scalar_lea.vmem %s1, %s162
        %s164 = smul.u32 16, %s21
      $region16: #{db_forward.15} parent=11 // pred_fallthru
        _
      // Predicated region
      $region17: #{db_forward.15} parent=11 // pred_check
        %p165 = pneg %p110
      $region18: #{db_forward.15} parent=11 // pred_check_branch
        %167 = sbr.rel (%p165) target = $region20
      $region19: #{db_forward.15} parent=11 // pred_region
        %p168 = scmp.lt.s32.totalorder %s20, 0
        %s169 = scalar_select %p168, %s20, 0
        %s170 = smul.addr %s169, 2
        %s171 = scalar_lea.vmem %s2, %s170
      $region20: #{db_forward.15} parent=11 // pred_fallthru
        _
    $region12: #{db_forward.15} parent=5 // pred_fallthru
      _
    %p172 = scmp.lt.s32.totalorder %s9, 2
    // Predicated region
    $region21: #{db_forward.15} parent=5 // pred_check
      %p173 = pneg %p172
    $region22: #{db_forward.15} parent=5 // pred_check_branch
      %175 = sbr.rel (%p173) target = $region24
    $region23: #{db_forward.15} parent=5 // pred_region
      // Predicated region
      $region25: #{db_forward.15} parent=23 // pred_check
        %p176 = pneg %p50
      $region26: #{db_forward.15} parent=23 // pred_check_branch
        %178 = sbr.rel (%p176) target = $region28
      $region27: #{db_forward.15} parent=23 // pred_region
        %s179 = smul.u32 32, %s16
        %p180 = scmp.lt.s32.totalorder %s179, 63
        %s181 = scalar_select %p180, %s179, 63
        %p182 = scmp.lt.s32.totalorder %s18, 0
        %s183 = scalar_select %p182, %s18, 0
        %s184 = sadd.s32 %s183, %s181
        %s185 = smul.addr %s184, 4
        %s186 = scalar_lea.vmem %s0, %s185
        %s187 = smul.u32 32, %s16
      $region28: #{db_forward.15} parent=23 // pred_fallthru
        _
    $region24: #{db_forward.15} parent=5 // pred_fallthru
      _
    %p188 = scmp.le.s32.totalorder 1, %s9
    %p189 = scmp.lt.s32.totalorder %s9, 3
    %p190 = pnand %p188, %p189
    %p191 = pneg %p190
    // Predicated region
    $region29: #{db_forward.15} parent=5 // pred_check
      _
    $region30: #{db_forward.15} parent=5 // pred_check_branch
      %193 = sbr.rel (%p190) target = $region32
    $region31: #{db_forward.15} parent=5 // pred_region
      %s194 = ssub.s32 %s9, 1
      %s195 = smul.u32 32, %s19
      %p196 = scmp.lt.s32.totalorder %s195, 63
      %s197 = scalar_select %p196, %s195, 63
      %p198 = scmp.lt.s32.totalorder %s21, 0
      %s199 = scalar_select %p198, %s21, 0
      %s200 = sadd.s32 %s199, %s197
      %s201 = smul.addr %s200, 4
      %s202 = scalar_lea.vmem %s0, %s201
      %p203 = pneg %p56
      %p204 = pneg %p53
      %s205 = smul.u32 16, %s21
      %p206 = scmp.lt.s32.totalorder %s205, 15
      %s207 = scalar_select %p206, %s205, 15
      %p208 = scmp.lt.s32.totalorder %s20, 0
      %s209 = scalar_select %p208, %s20, 0
      %s210 = sadd.s32 %s209, %s207
      %s211 = smul.addr %s210, 4
      %s212 = scalar_lea.vmem %s1, %s211
      %p213 = pneg %p84
      %p214 = pneg %p81
      %p215 = scmp.lt.s32.totalorder %s20, 0
      %s216 = scalar_select %p215, %s20, 0
      %s217 = smul.addr %s216, 2
      %s218 = scalar_lea.vmem %s2, %s217
      %p219 = pneg %p110
      %p220 = pneg %p107
      %p221 = pneg %p138
      %p222 = pneg %p135
      %s223 = smul.u32 32, %s19
      %p224 = scmp.lt.s32.totalorder %s223, 63
      %s225 = scalar_select %p224, %s223, 63
      %p226 = scmp.lt.s32.totalorder %s20, 0
      %s227 = scalar_select %p226, %s20, 0
      %s228 = sadd.s32 %s227, %s225
      %s229 = smul.addr %s228, 8
      %s230 = scalar_lea.vmem %s3, %s229
      %s231 = smul.u32 32, %s19
      %p232 = scmp.lt.s32.totalorder %s231, 63
      %s233 = scalar_select %p232, %s231, 63
      %p234 = scmp.lt.s32.totalorder %s21, 0
      %s235 = scalar_select %p234, %s21, 0
      %s236 = sadd.s32 %s235, %s233
      %s237 = smul.addr %s236, 4
      %s238 = scalar_lea.vmem %s0, %s237
      %s239 = smul.u32 32, %s19
      %s240 = smul.u32 16, %s21
      %p241 = scmp.lt.s32.totalorder %s240, 15
      %s242 = scalar_select %p241, %s240, 15
      %p243 = scmp.lt.s32.totalorder %s20, 0
      %s244 = scalar_select %p243, %s20, 0
      %s245 = sadd.s32 %s244, %s242
      %s246 = smul.addr %s245, 4
      %s247 = scalar_lea.vmem %s1, %s246
      %s248 = smul.u32 16, %s21
      %p249 = scmp.lt.s32.totalorder %s20, 0
      %s250 = scalar_select %p249, %s20, 0
      %s251 = smul.addr %s250, 2
      %s252 = scalar_lea.vmem %s2, %s251
      %s253 = smul.u32 32, %s19
      %p254 = scmp.lt.s32.totalorder %s253, 63
      %s255 = scalar_select %p254, %s253, 63
      %p256 = scmp.lt.s32.totalorder %s20, 0
      %s257 = scalar_select %p256, %s20, 0
      %s258 = sadd.s32 %s257, %s255
      %s259 = smul.addr %s258, 8
      %s260 = scalar_lea.vmem %s3, %s259
      %s261 = smul.u32 32, %s19
      %p263 = scmp.eq.s32.totalorder %s21, 0
      // Predicated region
      $region33: #{db_forward.15} parent=31 // pred_check
        %p264 = pneg %p263
      $region34: #{db_forward.15} parent=31 // pred_check_branch
        %266 = sbr.rel (%p264) target = $region36
      $region35: #{db_forward.15} parent=31 // pred_region
        %267 = vst [vmem:[#allocation2] sm:$0xff] 0.0
        %268 = vst [vmem:[#allocation2 + $0x8] sm:$0xff] 0.0
        %269 = vst [vmem:[#allocation2 + $0x10] sm:$0xff] 0.0
        %270 = vst [vmem:[#allocation2 + $0x18] sm:$0xff] 0.0
        %271 = vst [vmem:[#allocation2 + $0x20] sm:$0xff] 0.0
        %272 = vst [vmem:[#allocation2 + $0x28] sm:$0xff] 0.0
        %273 = vst [vmem:[#allocation2 + $0x30] sm:$0xff] 0.0
        %274 = vst [vmem:[#allocation2 + $0x38] sm:$0xff] 0.0
        %275 = vst [vmem:[#allocation2 + $0x40] sm:$0xff] 0.0
        %276 = vst [vmem:[#allocation2 + $0x48] sm:$0xff] 0.0
        %277 = vst [vmem:[#allocation2 + $0x50] sm:$0xff] 0.0
        %278 = vst [vmem:[#allocation2 + $0x58] sm:$0xff] 0.0
        %279 = vst [vmem:[#allocation2 + $0x60] sm:$0xff] 0.0
        %280 = vst [vmem:[#allocation2 + $0x68] sm:$0xff] 0.0
        %281 = vst [vmem:[#allocation2 + $0x70] sm:$0xff] 0.0
        %282 = vst [vmem:[#allocation2 + $0x78] sm:$0xff] 0.0
        %283 = vst [vmem:[#allocation2 + $0x80] sm:$0xff] 0.0
        %284 = vst [vmem:[#allocation2 + $0x88] sm:$0xff] 0.0
        %285 = vst [vmem:[#allocation2 + $0x90] sm:$0xff] 0.0
        %286 = vst [vmem:[#allocation2 + $0x98] sm:$0xff] 0.0
        %287 = vst [vmem:[#allocation2 + $0xa0] sm:$0xff] 0.0
        %288 = vst [vmem:[#allocation2 + $0xa8] sm:$0xff] 0.0
        %289 = vst [vmem:[#allocation2 + $0xb0] sm:$0xff] 0.0
        %290 = vst [vmem:[#allocation2 + $0xb8] sm:$0xff] 0.0
        %291 = vst [vmem:[#allocation2 + $0xc0] sm:$0xff] 0.0
        %292 = vst [vmem:[#allocation2 + $0xc8] sm:$0xff] 0.0
        %293 = vst [vmem:[#allocation2 + $0xd0] sm:$0xff] 0.0
        %294 = vst [vmem:[#allocation2 + $0xd8] sm:$0xff] 0.0
        %295 = vst [vmem:[#allocation2 + $0xe0] sm:$0xff] 0.0
        %296 = vst [vmem:[#allocation2 + $0xe8] sm:$0xff] 0.0
        %297 = vst [vmem:[#allocation2 + $0xf0] sm:$0xff] 0.0
        %298 = vst [vmem:[#allocation2 + $0xf8] sm:$0xff] 0.0
      $region36: #{db_forward.15} parent=31 // pred_fallthru
        _
      %v299 = vld [vmem:[#allocation2] sm:$0xff]
      %v300 = vld [vmem:[#allocation2 + $0x8] sm:$0xff]
      %v301 = vld [vmem:[#allocation2 + $0x10] sm:$0xff]
      %v302 = vld [vmem:[#allocation2 + $0x18] sm:$0xff]
      %v303 = vld [vmem:[#allocation2 + $0x20] sm:$0xff]
      %v304 = vld [vmem:[#allocation2 + $0x28] sm:$0xff]
      %v305 = vld [vmem:[#allocation2 + $0x30] sm:$0xff]
      %v306 = vld [vmem:[#allocation2 + $0x38] sm:$0xff]
      %v307 = vld [vmem:[#allocation2 + $0x40] sm:$0xff]
      %v308 = vld [vmem:[#allocation2 + $0x48] sm:$0xff]
      %v309 = vld [vmem:[#allocation2 + $0x50] sm:$0xff]
      %v310 = vld [vmem:[#allocation2 + $0x58] sm:$0xff]
      %v311 = vld [vmem:[#allocation2 + $0x60] sm:$0xff]
      %v312 = vld [vmem:[#allocation2 + $0x68] sm:$0xff]
      %v313 = vld [vmem:[#allocation2 + $0x70] sm:$0xff]
      %v314 = vld [vmem:[#allocation2 + $0x78] sm:$0xff]
      %v315 = vld [vmem:[#allocation2 + $0x80] sm:$0xff]
      %v316 = vld [vmem:[#allocation2 + $0x88] sm:$0xff]
      %v317 = vld [vmem:[#allocation2 + $0x90] sm:$0xff]
      %v318 = vld [vmem:[#allocation2 + $0x98] sm:$0xff]
      %v319 = vld [vmem:[#allocation2 + $0xa0] sm:$0xff]
      %v320 = vld [vmem:[#allocation2 + $0xa8] sm:$0xff]
      %v321 = vld [vmem:[#allocation2 + $0xb0] sm:$0xff]
      %v322 = vld [vmem:[#allocation2 + $0xb8] sm:$0xff]
      %v323 = vld [vmem:[#allocation2 + $0xc0] sm:$0xff]
      %v324 = vld [vmem:[#allocation2 + $0xc8] sm:$0xff]
      %v325 = vld [vmem:[#allocation2 + $0xd0] sm:$0xff]
      %v326 = vld [vmem:[#allocation2 + $0xd8] sm:$0xff]
      %v327 = vld [vmem:[#allocation2 + $0xe0] sm:$0xff]
      %v328 = vld [vmem:[#allocation2 + $0xe8] sm:$0xff]
      %v329 = vld [vmem:[#allocation2 + $0xf0] sm:$0xff]
      %v330 = vld [vmem:[#allocation2 + $0xf8] sm:$0xff]
      %v331 = vld [vmem:[%s238] sm:$0xf]
      %v332 = vld [vmem:[%s238 + $0x4] sm:$0xf]
      %v333 = vld [vmem:[%s238 + $0x8] sm:$0xf]
      %v334 = vld [vmem:[%s238 + $0xc] sm:$0xf]
      %v335 = vld [vmem:[%s238 + $0x10] sm:$0xf]
      %v336 = vld [vmem:[%s238 + $0x14] sm:$0xf]
      %v337 = vld [vmem:[%s238 + $0x18] sm:$0xf]
      %v338 = vld [vmem:[%s238 + $0x1c] sm:$0xf]
      %v339 = vld [vmem:[%s238 + $0x20] sm:$0xf]
      %v340 = vld [vmem:[%s238 + $0x24] sm:$0xf]
      %v341 = vld [vmem:[%s238 + $0x28] sm:$0xf]
      %v342 = vld [vmem:[%s238 + $0x2c] sm:$0xf]
      %v343 = vld [vmem:[%s238 + $0x30] sm:$0xf]
      %v344 = vld [vmem:[%s238 + $0x34] sm:$0xf]
      %v345 = vld [vmem:[%s238 + $0x38] sm:$0xf]
      %v346 = vld [vmem:[%s238 + $0x3c] sm:$0xf]
      %v347 = vld [vmem:[%s238 + $0x40] sm:$0xf]
      %v348 = vld [vmem:[%s238 + $0x44] sm:$0xf]
      %v349 = vld [vmem:[%s238 + $0x48] sm:$0xf]
      %v350 = vld [vmem:[%s238 + $0x4c] sm:$0xf]
      %v351 = vld [vmem:[%s238 + $0x50] sm:$0xf]
      %v352 = vld [vmem:[%s238 + $0x54] sm:$0xf]
      %v353 = vld [vmem:[%s238 + $0x58] sm:$0xf]
      %v354 = vld [vmem:[%s238 + $0x5c] sm:$0xf]
      %v355 = vld [vmem:[%s238 + $0x60] sm:$0xf]
      %v356 = vld [vmem:[%s238 + $0x64] sm:$0xf]
      %v357 = vld [vmem:[%s238 + $0x68] sm:$0xf]
      %v358 = vld [vmem:[%s238 + $0x6c] sm:$0xf]
      %v359 = vld [vmem:[%s238 + $0x70] sm:$0xf]
      %v360 = vld [vmem:[%s238 + $0x74] sm:$0xf]
      %v361 = vld [vmem:[%s238 + $0x78] sm:$0xf]
      %v362 = vld [vmem:[%s238 + $0x7c] sm:$0xf]
      %v363 = vld [vmem:[%s247] sm:$0xf]
      %v364 = vld [vmem:[%s247 + $0x4] sm:$0xf]
      %v365 = vld [vmem:[%s247 + $0x8] sm:$0xf]
      %v366 = vld [vmem:[%s247 + $0xc] sm:$0xf]
      %v367 = vld [vmem:[%s247 + $0x10] sm:$0xf]
      %v368 = vld [vmem:[%s247 + $0x14] sm:$0xf]
      %v369 = vld [vmem:[%s247 + $0x18] sm:$0xf]
      %v370 = vld [vmem:[%s247 + $0x1c] sm:$0xf]
      %v371 = vld [vmem:[%s247 + $0x20] sm:$0xf]
      %v372 = vld [vmem:[%s247 + $0x24] sm:$0xf]
      %v373 = vld [vmem:[%s247 + $0x28] sm:$0xf]
      %v374 = vld [vmem:[%s247 + $0x2c] sm:$0xf]
      %v375 = vld [vmem:[%s247 + $0x30] sm:$0xf]
      %v376 = vld [vmem:[%s247 + $0x34] sm:$0xf]
      %v377 = vld [vmem:[%s247 + $0x38] sm:$0xf]
      %v378 = vld [vmem:[%s247 + $0x3c] sm:$0xf]
      %v411 = vunpack.c.l.b16 %v331
      %v412 = vunpack.c.l.b16 %v332
      %v413 = vunpack.c.l.b16 %v333
      %v414 = vunpack.c.l.b16 %v334
      %v415 = vunpack.c.l.b16 %v335
      %v416 = vunpack.c.l.b16 %v336
      %v417 = vunpack.c.l.b16 %v337
      %v418 = vunpack.c.l.b16 %v338
      %v419 = vunpack.c.l.b16 %v339
      %v420 = vunpack.c.l.b16 %v340
      %v421 = vunpack.c.l.b16 %v341
      %v422 = vunpack.c.l.b16 %v342
      %v423 = vunpack.c.l.b16 %v343
      %v424 = vunpack.c.l.b16 %v344
      %v425 = vunpack.c.l.b16 %v345
      %v426 = vunpack.c.l.b16 %v346
      %v427 = vunpack.c.l.b16 %v347
      %v428 = vunpack.c.l.b16 %v348
      %v429 = vunpack.c.l.b16 %v349
      %v430 = vunpack.c.l.b16 %v350
      %v431 = vunpack.c.l.b16 %v351
      %v432 = vunpack.c.l.b16 %v352
      %v433 = vunpack.c.l.b16 %v353
      %v434 = vunpack.c.l.b16 %v354
      %v435 = vunpack.c.l.b16 %v355
      %v436 = vunpack.c.l.b16 %v356
      %v437 = vunpack.c.l.b16 %v357
      %v438 = vunpack.c.l.b16 %v358
      %v439 = vunpack.c.l.b16 %v359
      %v440 = vunpack.c.l.b16 %v360
      %v441 = vunpack.c.l.b16 %v361
      %v442 = vunpack.c.l.b16 %v362
      %v443 = vpack.c.b16 %v412, %v411
      %v444 = vpack.c.b16 %v414, %v413
      %v445 = vpack.c.b16 %v416, %v415
      %v446 = vpack.c.b16 %v418, %v417
      %v447 = vpack.c.b16 %v420, %v419
      %v448 = vpack.c.b16 %v422, %v421
      %v449 = vpack.c.b16 %v424, %v423
      %v450 = vpack.c.b16 %v426, %v425
      %v451 = vpack.c.b16 %v428, %v427
      %v452 = vpack.c.b16 %v430, %v429
      %v453 = vpack.c.b16 %v432, %v431
      %v454 = vpack.c.b16 %v434, %v433
      %v455 = vpack.c.b16 %v436, %v435
      %v456 = vpack.c.b16 %v438, %v437
      %v457 = vpack.c.b16 %v440, %v439
      %v458 = vpack.c.b16 %v442, %v441
      %v491 = vunpack.c.l.b16 %v363
      %v492 = vunpack.c.l.b16 %v364
      %v493 = vunpack.c.l.b16 %v365
      %v494 = vunpack.c.l.b16 %v366
      %v495 = vunpack.c.l.b16 %v367
      %v496 = vunpack.c.l.b16 %v368
      %v497 = vunpack.c.l.b16 %v369
      %v498 = vunpack.c.l.b16 %v370
      %v499 = vunpack.c.l.b16 %v371
      %v500 = vunpack.c.l.b16 %v372
      %v501 = vunpack.c.l.b16 %v373
      %v502 = vunpack.c.l.b16 %v374
      %v503 = vunpack.c.l.b16 %v375
      %v504 = vunpack.c.l.b16 %v376
      %v505 = vunpack.c.l.b16 %v377
      %v506 = vunpack.c.l.b16 %v378
      %v507 = vpack.c.b16 %v492, %v491
      %v508 = vpack.c.b16 %v494, %v493
      %v509 = vpack.c.b16 %v496, %v495
      %v510 = vpack.c.b16 %v498, %v497
      %v511 = vpack.c.b16 %v500, %v499
      %v512 = vpack.c.b16 %v502, %v501
      %v513 = vpack.c.b16 %v504, %v503
      %v514 = vpack.c.b16 %v506, %v505
      %523 = vmatprep.subr.bf16.mxu0 0
      %524 = vmatpush1.bf16.msra.mxu0 %v514
      %525 = vmatprep.subr.bf16.mxu0 0
      %526 = vmatpush1.bf16.msra.mxu0 %v513
      %527 = vmatprep.subr.bf16.mxu0 0
      %528 = vmatpush1.bf16.msra.mxu0 %v512
      %529 = vmatprep.subr.bf16.mxu0 0
      %530 = vmatpush1.bf16.msra.mxu0 %v511
      %531 = vmatprep.subr.bf16.mxu0 0
      %532 = vmatpush1.bf16.msra.mxu0 %v510
      %533 = vmatprep.subr.bf16.mxu0 0
      %534 = vmatpush1.bf16.msra.mxu0 %v509
      %535 = vmatprep.subr.bf16.mxu0 0
      %536 = vmatpush1.bf16.msra.mxu0 %v508
      %537 = vmatprep.subr.bf16.mxu0 0
      %538 = vmatpush1.bf16.msra.mxu0 %v507
      %539 = vmatprep.subr.bf16.mxu0 0
      %540 = vmatpush2.bf16.msra.mxu0 0
      %541 = vmatprep.subr.bf16.mxu0 0
      %542 = vmatpush2.bf16.msra.mxu0 0
      %543 = vmatprep.subr.bf16.mxu0 0
      %544 = vmatpush2.bf16.msra.mxu0 0
      %545 = vmatprep.subr.bf16.mxu0 0
      %546 = vmatpush2.bf16.msra.mxu0 0
      %547 = vmatprep.subr.bf16.mxu0 0
      %548 = vmatpush2.bf16.msra.mxu0 0
      %549 = vmatprep.subr.bf16.mxu0 0
      %550 = vmatpush2.bf16.msra.mxu0 0
      %551 = vmatprep.subr.bf16.mxu0 0
      %552 = vmatpush2.bf16.msra.mxu0 0
      %553 = vmatprep.subr.bf16.mxu0 0
      %554 = vmatpush2.bf16.msra.mxu0 0
      %555 = vmatprep.mubr.bf16.mxu0 0
      %556 = vmatmul.mubr.bf16.gmra.mxu0 %v443
      %v557 = vpop.f32.mrf.mxu0
      %v558 = vadd.f32 0.0, %v557
      %v559 = vpop.f32.mrf.mxu0
      %v560 = vpop.f32.mrf.mxu0
      %v561 = vadd.f32 0.0, %v560
      %v562 = vpop.f32.mrf.mxu0
      %563 = vmatprep.mubr.bf16.mxu0 0
      %564 = vmatmul.mubr.bf16.gmra.mxu0 %v444
      %v565 = vpop.f32.mrf.mxu0
      %v566 = vadd.f32 0.0, %v565
      %v567 = vpop.f32.mrf.mxu0
      %v568 = vpop.f32.mrf.mxu0
      %v569 = vadd.f32 0.0, %v568
      %v570 = vpop.f32.mrf.mxu0
      %571 = vmatprep.mubr.bf16.mxu0 0
      %572 = vmatmul.mubr.bf16.gmra.mxu0 %v445
      %v573 = vpop.f32.mrf.mxu0
      %v574 = vadd.f32 0.0, %v573
      %v575 = vpop.f32.mrf.mxu0
      %v576 = vpop.f32.mrf.mxu0
      %v577 = vadd.f32 0.0, %v576
      %v578 = vpop.f32.mrf.mxu0
      %579 = vmatprep.mubr.bf16.mxu0 0
      %580 = vmatmul.mubr.bf16.gmra.mxu0 %v446
      %v581 = vpop.f32.mrf.mxu0
      %v582 = vadd.f32 0.0, %v581
      %v583 = vpop.f32.mrf.mxu0
      %v584 = vpop.f32.mrf.mxu0
      %v585 = vadd.f32 0.0, %v584
      %v586 = vpop.f32.mrf.mxu0
      %587 = vmatprep.mubr.bf16.mxu0 0
      %588 = vmatmul.mubr.bf16.gmra.mxu0 %v447
      %v589 = vpop.f32.mrf.mxu0
      %v590 = vadd.f32 0.0, %v589
      %v591 = vpop.f32.mrf.mxu0
      %v592 = vpop.f32.mrf.mxu0
      %v593 = vadd.f32 0.0, %v592
      %v594 = vpop.f32.mrf.mxu0
      %595 = vmatprep.mubr.bf16.mxu0 0
      %596 = vmatmul.mubr.bf16.gmra.mxu0 %v448
      %v597 = vpop.f32.mrf.mxu0
      %v598 = vadd.f32 0.0, %v597
      %v599 = vpop.f32.mrf.mxu0
      %v600 = vpop.f32.mrf.mxu0
      %v601 = vadd.f32 0.0, %v600
      %v602 = vpop.f32.mrf.mxu0
      %603 = vmatprep.mubr.bf16.mxu0 0
      %604 = vmatmul.mubr.bf16.gmra.mxu0 %v449
      %v605 = vpop.f32.mrf.mxu0
      %v606 = vadd.f32 0.0, %v605
      %v607 = vpop.f32.mrf.mxu0
      %v608 = vpop.f32.mrf.mxu0
      %v609 = vadd.f32 0.0, %v608
      %v610 = vpop.f32.mrf.mxu0
      %611 = vmatprep.mubr.bf16.mxu0 0
      %612 = vmatmul.mubr.bf16.gmra.mxu0 %v450
      %v613 = vpop.f32.mrf.mxu0
      %v614 = vadd.f32 0.0, %v613
      %v615 = vpop.f32.mrf.mxu0
      %v616 = vpop.f32.mrf.mxu0
      %v617 = vadd.f32 0.0, %v616
      %v618 = vpop.f32.mrf.mxu0
      %619 = vmatprep.mubr.bf16.mxu0 0
      %620 = vmatmul.mubr.bf16.gmra.mxu0 %v451
      %v621 = vpop.f32.mrf.mxu0
      %v622 = vadd.f32 0.0, %v621
      %v623 = vpop.f32.mrf.mxu0
      %v624 = vpop.f32.mrf.mxu0
      %v625 = vadd.f32 0.0, %v624
      %v626 = vpop.f32.mrf.mxu0
      %627 = vmatprep.mubr.bf16.mxu0 0
      %628 = vmatmul.mubr.bf16.gmra.mxu0 %v452
      %v629 = vpop.f32.mrf.mxu0
      %v630 = vadd.f32 0.0, %v629
      %v631 = vpop.f32.mrf.mxu0
      %v632 = vpop.f32.mrf.mxu0
      %v633 = vadd.f32 0.0, %v632
      %v634 = vpop.f32.mrf.mxu0
      %635 = vmatprep.mubr.bf16.mxu0 0
      %636 = vmatmul.mubr.bf16.gmra.mxu0 %v453
      %v637 = vpop.f32.mrf.mxu0
      %v638 = vadd.f32 0.0, %v637
      %v639 = vpop.f32.mrf.mxu0
      %v640 = vpop.f32.mrf.mxu0
      %v641 = vadd.f32 0.0, %v640
      %v642 = vpop.f32.mrf.mxu0
      %643 = vmatprep.mubr.bf16.mxu0 0
      %644 = vmatmul.mubr.bf16.gmra.mxu0 %v454
      %v645 = vpop.f32.mrf.mxu0
      %v646 = vadd.f32 0.0, %v645
      %v647 = vpop.f32.mrf.mxu0
      %v648 = vpop.f32.mrf.mxu0
      %v649 = vadd.f32 0.0, %v648
      %v650 = vpop.f32.mrf.mxu0
      %651 = vmatprep.mubr.bf16.mxu0 0
      %652 = vmatmul.mubr.bf16.gmra.mxu0 %v455
      %v653 = vpop.f32.mrf.mxu0
      %v654 = vadd.f32 0.0, %v653
      %v655 = vpop.f32.mrf.mxu0
      %v656 = vpop.f32.mrf.mxu0
      %v657 = vadd.f32 0.0, %v656
      %v658 = vpop.f32.mrf.mxu0
      %659 = vmatprep.mubr.bf16.mxu0 0
      %660 = vmatmul.mubr.bf16.gmra.mxu0 %v456
      %v661 = vpop.f32.mrf.mxu0
      %v662 = vadd.f32 0.0, %v661
      %v663 = vpop.f32.mrf.mxu0
      %v664 = vpop.f32.mrf.mxu0
      %v665 = vadd.f32 0.0, %v664
      %v666 = vpop.f32.mrf.mxu0
      %667 = vmatprep.mubr.bf16.mxu0 0
      %668 = vmatmul.mubr.bf16.gmra.mxu0 %v457
      %v669 = vpop.f32.mrf.mxu0
      %v670 = vadd.f32 0.0, %v669
      %v671 = vpop.f32.mrf.mxu0
      %v672 = vpop.f32.mrf.mxu0
      %v673 = vadd.f32 0.0, %v672
      %v674 = vpop.f32.mrf.mxu0
      %675 = vmatprep.mubr.bf16.mxu0 0
      %676 = vmatmul.mubr.bf16.gmra.mxu0 %v458
      %v677 = vpop.f32.mrf.mxu0
      %v678 = vadd.f32 0.0, %v677
      %v679 = vpop.f32.mrf.mxu0
      %v680 = vpop.f32.mrf.mxu0
      %v681 = vadd.f32 0.0, %v680
      %v682 = vpop.f32.mrf.mxu0
      %683 = vdwg.mxu0
      %v684 = vadd.f32 %v299, %v558
      %v685 = vadd.f32 %v300, %v561
      %v686 = vadd.f32 %v301, %v566
      %v687 = vadd.f32 %v302, %v569
      %v688 = vadd.f32 %v303, %v574
      %v689 = vadd.f32 %v304, %v577
      %v690 = vadd.f32 %v305, %v582
      %v691 = vadd.f32 %v306, %v585
      %v692 = vadd.f32 %v307, %v590
      %v693 = vadd.f32 %v308, %v593
      %v694 = vadd.f32 %v309, %v598
      %v695 = vadd.f32 %v310, %v601
      %v696 = vadd.f32 %v311, %v606
      %v697 = vadd.f32 %v312, %v609
      %v698 = vadd.f32 %v313, %v614
      %v699 = vadd.f32 %v314, %v617
      %v700 = vadd.f32 %v315, %v622
      %v701 = vadd.f32 %v316, %v625
      %v702 = vadd.f32 %v317, %v630
      %v703 = vadd.f32 %v318, %v633
      %v704 = vadd.f32 %v319, %v638
      %v705 = vadd.f32 %v320, %v641
      %v706 = vadd.f32 %v321, %v646
      %v707 = vadd.f32 %v322, %v649
      %v708 = vadd.f32 %v323, %v654
      %v709 = vadd.f32 %v324, %v657
      %v710 = vadd.f32 %v325, %v662
      %v711 = vadd.f32 %v326, %v665
      %v712 = vadd.f32 %v327, %v670
      %v713 = vadd.f32 %v328, %v673
      %v714 = vadd.f32 %v329, %v678
      %v715 = vadd.f32 %v330, %v681
      %716 = vst [vmem:[#allocation2] sm:$0xff] %v684
      %717 = vst [vmem:[#allocation2 + $0x8] sm:$0xff] %v685
      %718 = vst [vmem:[#allocation2 + $0x10] sm:$0xff] %v686
      %719 = vst [vmem:[#allocation2 + $0x18] sm:$0xff] %v687
      %720 = vst [vmem:[#allocation2 + $0x20] sm:$0xff] %v688
      %721 = vst [vmem:[#allocation2 + $0x28] sm:$0xff] %v689
      %722 = vst [vmem:[#allocation2 + $0x30] sm:$0xff] %v690
      %723 = vst [vmem:[#allocation2 + $0x38] sm:$0xff] %v691
      %724 = vst [vmem:[#allocation2 + $0x40] sm:$0xff] %v692
      %725 = vst [vmem:[#allocation2 + $0x48] sm:$0xff] %v693
      %726 = vst [vmem:[#allocation2 + $0x50] sm:$0xff] %v694
      %727 = vst [vmem:[#allocation2 + $0x58] sm:$0xff] %v695
      %728 = vst [vmem:[#allocation2 + $0x60] sm:$0xff] %v696
      %729 = vst [vmem:[#allocation2 + $0x68] sm:$0xff] %v697
      %730 = vst [vmem:[#allocation2 + $0x70] sm:$0xff] %v698
      %731 = vst [vmem:[#allocation2 + $0x78] sm:$0xff] %v699
      %732 = vst [vmem:[#allocation2 + $0x80] sm:$0xff] %v700
      %733 = vst [vmem:[#allocation2 + $0x88] sm:$0xff] %v701
      %734 = vst [vmem:[#allocation2 + $0x90] sm:$0xff] %v702
      %735 = vst [vmem:[#allocation2 + $0x98] sm:$0xff] %v703
      %736 = vst [vmem:[#allocation2 + $0xa0] sm:$0xff] %v704
      %737 = vst [vmem:[#allocation2 + $0xa8] sm:$0xff] %v705
      %738 = vst [vmem:[#allocation2 + $0xb0] sm:$0xff] %v706
      %739 = vst [vmem:[#allocation2 + $0xb8] sm:$0xff] %v707
      %740 = vst [vmem:[#allocation2 + $0xc0] sm:$0xff] %v708
      %741 = vst [vmem:[#allocation2 + $0xc8] sm:$0xff] %v709
      %742 = vst [vmem:[#allocation2 + $0xd0] sm:$0xff] %v710
      %743 = vst [vmem:[#allocation2 + $0xd8] sm:$0xff] %v711
      %744 = vst [vmem:[#allocation2 + $0xe0] sm:$0xff] %v712
      %745 = vst [vmem:[#allocation2 + $0xe8] sm:$0xff] %v713
      %746 = vst [vmem:[#allocation2 + $0xf0] sm:$0xff] %v714
      %747 = vst [vmem:[#allocation2 + $0xf8] sm:$0xff] %v715
      // Predicated region
      $region37: #{db_forward.15} parent=31 // pred_check
        %p748 = pneg %p263
      $region38: #{db_forward.15} parent=31 // pred_check_branch
        %750 = sbr.rel (%p748) target = $region40
      $region39: #{db_forward.15} parent=31 // pred_region
        %v751 = vld [vmem:[#allocation2] sm:$0xff]
        %v752 = vld [vmem:[#allocation2 + $0x8] sm:$0xff]
        %v753 = vld [vmem:[#allocation2 + $0x10] sm:$0xff]
        %v754 = vld [vmem:[#allocation2 + $0x18] sm:$0xff]
        %v755 = vld [vmem:[#allocation2 + $0x20] sm:$0xff]
        %v756 = vld [vmem:[#allocation2 + $0x28] sm:$0xff]
        %v757 = vld [vmem:[#allocation2 + $0x30] sm:$0xff]
        %v758 = vld [vmem:[#allocation2 + $0x38] sm:$0xff]
        %v759 = vld [vmem:[#allocation2 + $0x40] sm:$0xff]
        %v760 = vld [vmem:[#allocation2 + $0x48] sm:$0xff]
        %v761 = vld [vmem:[#allocation2 + $0x50] sm:$0xff]
        %v762 = vld [vmem:[#allocation2 + $0x58] sm:$0xff]
        %v763 = vld [vmem:[#allocation2 + $0x60] sm:$0xff]
        %v764 = vld [vmem:[#allocation2 + $0x68] sm:$0xff]
        %v765 = vld [vmem:[#allocation2 + $0x70] sm:$0xff]
        %v766 = vld [vmem:[#allocation2 + $0x78] sm:$0xff]
        %v767 = vld [vmem:[#allocation2 + $0x80] sm:$0xff]
        %v768 = vld [vmem:[#allocation2 + $0x88] sm:$0xff]
        %v769 = vld [vmem:[#allocation2 + $0x90] sm:$0xff]
        %v770 = vld [vmem:[#allocation2 + $0x98] sm:$0xff]
        %v771 = vld [vmem:[#allocation2 + $0xa0] sm:$0xff]
        %v772 = vld [vmem:[#allocation2 + $0xa8] sm:$0xff]
        %v773 = vld [vmem:[#allocation2 + $0xb0] sm:$0xff]
        %v774 = vld [vmem:[#allocation2 + $0xb8] sm:$0xff]
        %v775 = vld [vmem:[#allocation2 + $0xc0] sm:$0xff]
        %v776 = vld [vmem:[#allocation2 + $0xc8] sm:$0xff]
        %v777 = vld [vmem:[#allocation2 + $0xd0] sm:$0xff]
        %v778 = vld [vmem:[#allocation2 + $0xd8] sm:$0xff]
        %v779 = vld [vmem:[#allocation2 + $0xe0] sm:$0xff]
        %v780 = vld [vmem:[#allocation2 + $0xe8] sm:$0xff]
        %v781 = vld [vmem:[#allocation2 + $0xf0] sm:$0xff]
        %v782 = vld [vmem:[#allocation2 + $0xf8] sm:$0xff]
        %v783 = vld [vmem:[%s252] sm:$0x1]
        %v784 = vlaneseq
        %v785 = vshrl.u32 %v784, 7
        %v786 = vsub.s32 0, %v785
        %v787 = vrot.slane %v783, %v786
        %v788 = vmul.f32 %v751, %v787
        %v789 = vmul.f32 %v752, %v787
        %v790 = vmul.f32 %v753, %v787
        %v791 = vmul.f32 %v754, %v787
        %v792 = vmul.f32 %v755, %v787
        %v793 = vmul.f32 %v756, %v787
        %v794 = vmul.f32 %v757, %v787
        %v795 = vmul.f32 %v758, %v787
        %v796 = vmul.f32 %v759, %v787
        %v797 = vmul.f32 %v760, %v787
        %v798 = vmul.f32 %v761, %v787
        %v799 = vmul.f32 %v762, %v787
        %v800 = vmul.f32 %v763, %v787
        %v801 = vmul.f32 %v764, %v787
        %v802 = vmul.f32 %v765, %v787
        %v803 = vmul.f32 %v766, %v787
        %v804 = vmul.f32 %v767, %v787
        %v805 = vmul.f32 %v768, %v787
        %v806 = vmul.f32 %v769, %v787
        %v807 = vmul.f32 %v770, %v787
        %v808 = vmul.f32 %v771, %v787
        %v809 = vmul.f32 %v772, %v787
        %v810 = vmul.f32 %v773, %v787
        %v811 = vmul.f32 %v774, %v787
        %v812 = vmul.f32 %v775, %v787
        %v813 = vmul.f32 %v776, %v787
        %v814 = vmul.f32 %v777, %v787
        %v815 = vmul.f32 %v778, %v787
        %v816 = vmul.f32 %v779, %v787
        %v817 = vmul.f32 %v780, %v787
        %v818 = vmul.f32 %v781, %v787
        %v819 = vmul.f32 %v782, %v787
        %v820 = vld [vmem:[%s252 + $0x1] sm:$0x1]
        %v821 = vlaneseq
        %v822 = vshrl.u32 %v821, 7
        %v823 = vsub.s32 0, %v822
        %v824 = vrot.slane %v820, %v823
        %v825 = vadd.f32 %v788, %v824
        %v826 = vadd.f32 %v789, %v824
        %v827 = vadd.f32 %v790, %v824
        %v828 = vadd.f32 %v791, %v824
        %v829 = vadd.f32 %v792, %v824
        %v830 = vadd.f32 %v793, %v824
        %v831 = vadd.f32 %v794, %v824
        %v832 = vadd.f32 %v795, %v824
        %v833 = vadd.f32 %v796, %v824
        %v834 = vadd.f32 %v797, %v824
        %v835 = vadd.f32 %v798, %v824
        %v836 = vadd.f32 %v799, %v824
        %v837 = vadd.f32 %v800, %v824
        %v838 = vadd.f32 %v801, %v824
        %v839 = vadd.f32 %v802, %v824
        %v840 = vadd.f32 %v803, %v824
        %v841 = vadd.f32 %v804, %v824
        %v842 = vadd.f32 %v805, %v824
        %v843 = vadd.f32 %v806, %v824
        %v844 = vadd.f32 %v807, %v824
        %v845 = vadd.f32 %v808, %v824
        %v846 = vadd.f32 %v809, %v824
        %v847 = vadd.f32 %v810, %v824
        %v848 = vadd.f32 %v811, %v824
        %v849 = vadd.f32 %v812, %v824
        %v850 = vadd.f32 %v813, %v824
        %v851 = vadd.f32 %v814, %v824
        %v852 = vadd.f32 %v815, %v824
        %v853 = vadd.f32 %v816, %v824
        %v854 = vadd.f32 %v817, %v824
        %v855 = vadd.f32 %v818, %v824
        %v856 = vadd.f32 %v819, %v824
        %v857 = vxor.u32 %v825, 2147483648
        %v858 = vxor.u32 %v826, 2147483648
        %v859 = vxor.u32 %v827, 2147483648
        %v860 = vxor.u32 %v828, 2147483648
        %v861 = vxor.u32 %v829, 2147483648
        %v862 = vxor.u32 %v830, 2147483648
        %v863 = vxor.u32 %v831, 2147483648
        %v864 = vxor.u32 %v832, 2147483648
        %v865 = vxor.u32 %v833, 2147483648
        %v866 = vxor.u32 %v834, 2147483648
        %v867 = vxor.u32 %v835, 2147483648
        %v868 = vxor.u32 %v836, 2147483648
        %v869 = vxor.u32 %v837, 2147483648
        %v870 = vxor.u32 %v838, 2147483648
        %v871 = vxor.u32 %v839, 2147483648
        %v872 = vxor.u32 %v840, 2147483648
        %v873 = vxor.u32 %v841, 2147483648
        %v874 = vxor.u32 %v842, 2147483648
        %v875 = vxor.u32 %v843, 2147483648
        %v876 = vxor.u32 %v844, 2147483648
        %v877 = vxor.u32 %v845, 2147483648
        %v878 = vxor.u32 %v846, 2147483648
        %v879 = vxor.u32 %v847, 2147483648
        %v880 = vxor.u32 %v848, 2147483648
        %v881 = vxor.u32 %v849, 2147483648
        %v882 = vxor.u32 %v850, 2147483648
        %v883 = vxor.u32 %v851, 2147483648
        %v884 = vxor.u32 %v852, 2147483648
        %v885 = vxor.u32 %v853, 2147483648
        %v886 = vxor.u32 %v854, 2147483648
        %v887 = vxor.u32 %v855, 2147483648
        %v888 = vxor.u32 %v856, 2147483648
        %v889 = vmul.f32 %v857, 1.442695
        %v890 = vpow.pop %v889
        %v891 = vmul.f32 %v858, 1.442695
        %v892 = vpow.pop %v891
        %v893 = vmul.f32 %v859, 1.442695
        %v894 = vpow.pop %v893
        %v895 = vmul.f32 %v860, 1.442695
        %v896 = vpow.pop %v895
        %v897 = vmul.f32 %v861, 1.442695
        %v898 = vpow.pop %v897
        %v899 = vmul.f32 %v862, 1.442695
        %v900 = vpow.pop %v899
        %v901 = vmul.f32 %v863, 1.442695
        %v902 = vpow.pop %v901
        %v903 = vmul.f32 %v864, 1.442695
        %v904 = vpow.pop %v903
        %v905 = vmul.f32 %v865, 1.442695
        %v906 = vpow.pop %v905
        %v907 = vmul.f32 %v866, 1.442695
        %v908 = vpow.pop %v907
        %v909 = vmul.f32 %v867, 1.442695
        %v910 = vpow.pop %v909
        %v911 = vmul.f32 %v868, 1.442695
        %v912 = vpow.pop %v911
        %v913 = vmul.f32 %v869, 1.442695
        %v914 = vpow.pop %v913
        %v915 = vmul.f32 %v870, 1.442695
        %v916 = vpow.pop %v915
        %v917 = vmul.f32 %v871, 1.442695
        %v918 = vpow.pop %v917
        %v919 = vmul.f32 %v872, 1.442695
        %v920 = vpow.pop %v919
        %v921 = vmul.f32 %v873, 1.442695
        %v922 = vpow.pop %v921
        %v923 = vmul.f32 %v874, 1.442695
        %v924 = vpow.pop %v923
        %v925 = vmul.f32 %v875, 1.442695
        %v926 = vpow.pop %v925
        %v927 = vmul.f32 %v876, 1.442695
        %v928 = vpow.pop %v927
        %v929 = vmul.f32 %v877, 1.442695
        %v930 = vpow.pop %v929
        %v931 = vmul.f32 %v878, 1.442695
        %v932 = vpow.pop %v931
        %v933 = vmul.f32 %v879, 1.442695
        %v934 = vpow.pop %v933
        %v935 = vmul.f32 %v880, 1.442695
        %v936 = vpow.pop %v935
        %v937 = vmul.f32 %v881, 1.442695
        %v938 = vpow.pop %v937
        %v939 = vmul.f32 %v882, 1.442695
        %v940 = vpow.pop %v939
        %v941 = vmul.f32 %v883, 1.442695
        %v942 = vpow.pop %v941
        %v943 = vmul.f32 %v884, 1.442695
        %v944 = vpow.pop %v943
        %v945 = vmul.f32 %v885, 1.442695
        %v946 = vpow.pop %v945
        %v947 = vmul.f32 %v886, 1.442695
        %v948 = vpow.pop %v947
        %v949 = vmul.f32 %v887, 1.442695
        %v950 = vpow.pop %v949
        %v951 = vmul.f32 %v888, 1.442695
        %v952 = vpow.pop %v951
        %v953 = vadd.f32 %v890, 1.0
        %v954 = vadd.f32 %v892, 1.0
        %v955 = vadd.f32 %v894, 1.0
        %v956 = vadd.f32 %v896, 1.0
        %v957 = vadd.f32 %v898, 1.0
        %v958 = vadd.f32 %v900, 1.0
        %v959 = vadd.f32 %v902, 1.0
        %v960 = vadd.f32 %v904, 1.0
        %v961 = vadd.f32 %v906, 1.0
        %v962 = vadd.f32 %v908, 1.0
        %v963 = vadd.f32 %v910, 1.0
        %v964 = vadd.f32 %v912, 1.0
        %v965 = vadd.f32 %v914, 1.0
        %v966 = vadd.f32 %v916, 1.0
        %v967 = vadd.f32 %v918, 1.0
        %v968 = vadd.f32 %v920, 1.0
        %v969 = vadd.f32 %v922, 1.0
        %v970 = vadd.f32 %v924, 1.0
        %v971 = vadd.f32 %v926, 1.0
        %v972 = vadd.f32 %v928, 1.0
        %v973 = vadd.f32 %v930, 1.0
        %v974 = vadd.f32 %v932, 1.0
        %v975 = vadd.f32 %v934, 1.0
        %v976 = vadd.f32 %v936, 1.0
        %v977 = vadd.f32 %v938, 1.0
        %v978 = vadd.f32 %v940, 1.0
        %v979 = vadd.f32 %v942, 1.0
        %v980 = vadd.f32 %v944, 1.0
        %v981 = vadd.f32 %v946, 1.0
        %v982 = vadd.f32 %v948, 1.0
        %v983 = vadd.f32 %v950, 1.0
        %v984 = vadd.f32 %v952, 1.0
        %v985 = vrcp.pop %v953
        %v986 = vmul.f32 1.0, %v985
        %v987 = vrcp.pop %v954
        %v988 = vmul.f32 1.0, %v987
        %v989 = vrcp.pop %v955
        %v990 = vmul.f32 1.0, %v989
        %v991 = vrcp.pop %v956
        %v992 = vmul.f32 1.0, %v991
        %v993 = vrcp.pop %v957
        %v994 = vmul.f32 1.0, %v993
        %v995 = vrcp.pop %v958
        %v996 = vmul.f32 1.0, %v995
        %v997 = vrcp.pop %v959
        %v998 = vmul.f32 1.0, %v997
        %v999 = vrcp.pop %v960
        %v1000 = vmul.f32 1.0, %v999
        %v1001 = vrcp.pop %v961
        %v1002 = vmul.f32 1.0, %v1001
        %v1003 = vrcp.pop %v962
        %v1004 = vmul.f32 1.0, %v1003
        %v1005 = vrcp.pop %v963
        %v1006 = vmul.f32 1.0, %v1005
        %v1007 = vrcp.pop %v964
        %v1008 = vmul.f32 1.0, %v1007
        %v1009 = vrcp.pop %v965
        %v1010 = vmul.f32 1.0, %v1009
        %v1011 = vrcp.pop %v966
        %v1012 = vmul.f32 1.0, %v1011
        %v1013 = vrcp.pop %v967
        %v1014 = vmul.f32 1.0, %v1013
        %v1015 = vrcp.pop %v968
        %v1016 = vmul.f32 1.0, %v1015
        %v1017 = vrcp.pop %v969
        %v1018 = vmul.f32 1.0, %v1017
        %v1019 = vrcp.pop %v970
        %v1020 = vmul.f32 1.0, %v1019
        %v1021 = vrcp.pop %v971
        %v1022 = vmul.f32 1.0, %v1021
        %v1023 = vrcp.pop %v972
        %v1024 = vmul.f32 1.0, %v1023
        %v1025 = vrcp.pop %v973
        %v1026 = vmul.f32 1.0, %v1025
        %v1027 = vrcp.pop %v974
        %v1028 = vmul.f32 1.0, %v1027
        %v1029 = vrcp.pop %v975
        %v1030 = vmul.f32 1.0, %v1029
        %v1031 = vrcp.pop %v976
        %v1032 = vmul.f32 1.0, %v1031
        %v1033 = vrcp.pop %v977
        %v1034 = vmul.f32 1.0, %v1033
        %v1035 = vrcp.pop %v978
        %v1036 = vmul.f32 1.0, %v1035
        %v1037 = vrcp.pop %v979
        %v1038 = vmul.f32 1.0, %v1037
        %v1039 = vrcp.pop %v980
        %v1040 = vmul.f32 1.0, %v1039
        %v1041 = vrcp.pop %v981
        %v1042 = vmul.f32 1.0, %v1041
        %v1043 = vrcp.pop %v982
        %v1044 = vmul.f32 1.0, %v1043
        %v1045 = vrcp.pop %v983
        %v1046 = vmul.f32 1.0, %v1045
        %v1047 = vrcp.pop %v984
        %v1048 = vmul.f32 1.0, %v1047
        %1049 = vst [vmem:[%s260] sm:$0xff] %v986
        %1050 = vst [vmem:[%s260 + $0x8] sm:$0xff] %v988
        %1051 = vst [vmem:[%s260 + $0x10] sm:$0xff] %v990
        %1052 = vst [vmem:[%s260 + $0x18] sm:$0xff] %v992
        %1053 = vst [vmem:[%s260 + $0x20] sm:$0xff] %v994
        %1054 = vst [vmem:[%s260 + $0x28] sm:$0xff] %v996
        %1055 = vst [vmem:[%s260 + $0x30] sm:$0xff] %v998
        %1056 = vst [vmem:[%s260 + $0x38] sm:$0xff] %v1000
        %1057 = vst [vmem:[%s260 + $0x40] sm:$0xff] %v1002
        %1058 = vst [vmem:[%s260 + $0x48] sm:$0xff] %v1004
        %1059 = vst [vmem:[%s260 + $0x50] sm:$0xff] %v1006
        %1060 = vst [vmem:[%s260 + $0x58] sm:$0xff] %v1008
        %1061 = vst [vmem:[%s260 + $0x60] sm:$0xff] %v1010
        %1062 = vst [vmem:[%s260 + $0x68] sm:$0xff] %v1012
        %1063 = vst [vmem:[%s260 + $0x70] sm:$0xff] %v1014
        %1064 = vst [vmem:[%s260 + $0x78] sm:$0xff] %v1016
        %1065 = vst [vmem:[%s260 + $0x80] sm:$0xff] %v1018
        %1066 = vst [vmem:[%s260 + $0x88] sm:$0xff] %v1020
        %1067 = vst [vmem:[%s260 + $0x90] sm:$0xff] %v1022
        %1068 = vst [vmem:[%s260 + $0x98] sm:$0xff] %v1024
        %1069 = vst [vmem:[%s260 + $0xa0] sm:$0xff] %v1026
        %1070 = vst [vmem:[%s260 + $0xa8] sm:$0xff] %v1028
        %1071 = vst [vmem:[%s260 + $0xb0] sm:$0xff] %v1030
        %1072 = vst [vmem:[%s260 + $0xb8] sm:$0xff] %v1032
        %1073 = vst [vmem:[%s260 + $0xc0] sm:$0xff] %v1034
        %1074 = vst [vmem:[%s260 + $0xc8] sm:$0xff] %v1036
        %1075 = vst [vmem:[%s260 + $0xd0] sm:$0xff] %v1038
        %1076 = vst [vmem:[%s260 + $0xd8] sm:$0xff] %v1040
        %1077 = vst [vmem:[%s260 + $0xe0] sm:$0xff] %v1042
        %1078 = vst [vmem:[%s260 + $0xe8] sm:$0xff] %v1044
        %1079 = vst [vmem:[%s260 + $0xf0] sm:$0xff] %v1046
        %1080 = vst [vmem:[%s260 + $0xf8] sm:$0xff] %v1048
      $region40: #{db_forward.15} parent=31 // pred_fallthru
        _
      %s1081 = smul.u32 32, %s19
      %p1082 = scmp.lt.s32.totalorder %s1081, 63
      %s1083 = scalar_select %p1082, %s1081, 63
      %p1084 = scmp.lt.s32.totalorder %s20, 0
      %s1085 = scalar_select %p1084, %s20, 0
      %s1086 = sadd.s32 %s1085, %s1083
      %s1087 = smul.addr %s1086, 8
      %s1088 = scalar_lea.vmem %s3, %s1087
      // Predicated region
      $region41: #{db_forward.15} parent=31 // pred_check
        %p1089 = pneg %p135
      $region42: #{db_forward.15} parent=31 // pred_check_branch
        %1091 = sbr.rel (%p1089) target = $region44
      $region43: #{db_forward.15} parent=31 // pred_region
        %s1092 = smul.u32 32, %s19
      $region44: #{db_forward.15} parent=31 // pred_fallthru
        _
    $region32: #{db_forward.15} parent=5 // pred_fallthru
      _
    %p1093 = scmp.le.s32.totalorder 2, %s9
    // Predicated region
    $region45: #{db_forward.15} parent=5 // pred_check
      %p1094 = pneg %p1093
    $region46: #{db_forward.15} parent=5 // pred_check_branch
      %1096 = sbr.rel (%p1094) target = $region48
    $region47: #{db_forward.15} parent=5 // pred_region
      %s1097 = ssub.s32 %s9, 2
      // Predicated region
      $region49: #{db_forward.15} parent=47 // pred_check
        %p1098 = pneg %p141
      $region50: #{db_forward.15} parent=47 // pred_check_branch
        %1100 = sbr.rel (%p1098) target = $region52
      $region51: #{db_forward.15} parent=47 // pred_region
        %s1101 = smul.u32 32, %s22
        %p1102 = scmp.lt.s32.totalorder %s1101, 63
        %s1103 = scalar_select %p1102, %s1101, 63
        %p1104 = scmp.lt.s32.totalorder %s23, 0
        %s1105 = scalar_select %p1104, %s23, 0
        %s1106 = sadd.s32 %s1105, %s1103
        %s1107 = smul.addr %s1106, 8
        %s1108 = scalar_lea.vmem %s3, %s1107
      $region52: #{db_forward.15} parent=47 // pred_fallthru
        _
    $region48: #{db_forward.15} parent=5 // pred_fallthru
      _
  $region6: #{db_forward.15} parent=0 // loop_footer
    %s13 = sadd.s32 1, %s9
  $region7: #{db_forward.15} parent=0 // loop_footer_branch
    %8 = sbr.rel target = $region3
  $region8: #{db_forward.15} parent=0 // loop_exit
    _

</llo_original>
